<compile_context>
chip_gen: v6e
topology: v6e:2x2x1
jax: 0.10.0
libtpu: 0.0.40
codegen_flags: <defaults>
</compile_context>

<pallas_src>
import functools

import jax
import jax.numpy as jnp
from jax.experimental import pallas as pl
from jax.experimental.pallas import tpu as pltpu

PV = 8          # vertical (H / sublane) halo rows; >= max pad (dil_conv_5x5 = 4)
                # and a multiple of 8 so interior writes stay sublane-aligned.
BN_EPS = 1e-5
LANE = 128

# row offsets of each conv stage inside the packed depthwise-row weight
OFF_S3A, OFF_S3B, OFF_D3 = 0, 9, 18
OFF_S5A, OFF_S5B, OFF_D5 = 27, 52, 77
# pointwise block-diagonal weight indices (leading axis of wpw)
PW_S3A, PW_S3B, PW_D3, PW_S5A, PW_S5B, PW_D5 = 0, 1, 2, 3, 4, 5


def mixed_layer_kernel(x_ref, alpha_ref, invc_ref, fold_ref, dwrows_ref, wpw_ref,
                       out_ref, pbuf, *, n, h, w, c):
    nh, wc = n * h, w * c
    inv_count = 1.0 / float(n * h * w)

    x = x_ref[...]                                       # (N*H, W*C) f32
    lane = jax.lax.broadcasted_iota(jnp.int32, (nh, wc), 1)

    # ---- shifted-window helpers ---------------------------------------------
    def hshift(v, dx, pad_val):
        # out[:, l] = v[:, l + dx*c]; horizontally out-of-image lanes -> pad_val
        s = dx * c
        if s == 0:
            return v
        rolled = pltpu.roll(v, (-s) % wc, axis=1)        # XLU lane rotate
        if s > 0:
            valid = lane < (wc - s)
        else:
            valid = lane >= (-s)
        return jnp.where(valid, rolled, pad_val)

    def set_halo(val):
        # only the halo rows are (re)filled; the interior is always overwritten
        blk = jnp.full((n, PV, wc), val, jnp.float32)
        pbuf[:, 0:PV, :] = blk
        pbuf[:, PV + h:PV + h + PV, :] = blk

    def write_interior(v):                               # aligned full-vreg stores
        pbuf[:, PV:PV + h, :] = v.reshape(n, h, wc)

    def vtap(dy):                                        # vertical (sublane) tap
        return pbuf[:, PV + dy:PV + dy + h, :].reshape(nh, wc)

    # ---- BatchNorm (affine=False, training-mode batch stats) ----------------
    def stats(v):
        s1 = jnp.sum(v, axis=0, keepdims=True)
        s2 = jnp.sum(v * v, axis=0, keepdims=True)
        return jnp.concatenate([s1, s2], axis=0)         # (2, W*C)

    def fold(stack):
        # one tiny matmul with the 0/1 fold matrix sums over the W positions
        # inside the lane axis and re-broadcasts per-channel stats to all lanes
        return jnp.dot(stack, fold_ref[...], preferred_element_type=jnp.float32)

    def normalize(v, per_ch):
        # NOTE: single-pass E[x^2]-E[x]^2 variance; f32 accumulation keeps the
        # cancellation error small for these magnitudes.
        mean = per_ch[0:1] * inv_count
        var = per_ch[1:2] * inv_count - mean * mean       # biased variance
        return (v - mean) * jax.lax.rsqrt(var + BN_EPS)

    # ---- ReLU -> depthwise kxk (VPU, f32) -> 1x1 conv (MXU, bf16) -----------
    def conv_stage(v, k, pad, dil, row_off, pw_idx):
        a = jnp.maximum(v, 0.0)
        acc = jnp.zeros((nh, wc), jnp.float32)
        for j in range(k):                                # horizontal taps
            write_interior(hshift(a, j * dil - pad, 0.0))
            for i in range(k):                            # vertical taps
                drow = dwrows_ref[row_off + i * k + j, :][None, :]
                acc = acc + vtap(i * dil - pad) * drow
        # single pointwise matmul against the block-diagonal (W*C, W*C) weight
        return jnp.dot(acc.astype(jnp.bfloat16), wpw_ref[pw_idx],
                       preferred_element_type=jnp.float32)

    # ---- max_pool_3x3 (needs -inf halo) --------------------------------------
    set_halo(-jnp.inf)
    mp = None
    for j in range(3):
        write_interior(hshift(x, j - 1, -jnp.inf))
        for i in range(3):
            t = vtap(i - 1)
            mp = t if mp is None else jnp.maximum(mp, t)

    # ---- zero halo, reused by avgpool + all six conv stages ------------------
    set_halo(0.0)

    # ---- avg_pool_3x3 (count_include_pad=False) ------------------------------
    ap = jnp.zeros((nh, wc), jnp.float32)
    for j in range(3):
        write_interior(hshift(x, j - 1, 0.0))
        for i in range(3):
            ap = ap + vtap(i - 1)
    ap = (ap.reshape(n, h, wc) * invc_ref[...][None]).reshape(nh, wc)

    # ---- first conv stage of every conv branch (all independent of BN) ------
    s3a = conv_stage(x, 3, 1, 1, OFF_S3A, PW_S3A)
    s5a = conv_stage(x, 5, 2, 1, OFF_S5A, PW_S5A)
    d3 = conv_stage(x, 3, 2, 2, OFF_D3, PW_D3)
    d5 = conv_stage(x, 5, 4, 2, OFF_D5, PW_D5)

    # batched BN fold #1: six independent normalizations, one MXU push
    pc1 = fold(jnp.concatenate(
        [stats(mp), stats(ap), stats(s3a), stats(s5a), stats(d3), stats(d5)],
        axis=0))                                          # (12, W*C)
    branch_max = normalize(mp, pc1[0:2])
    branch_avg = normalize(ap, pc1[2:4])
    s3a_bn = normalize(s3a, pc1[4:6])
    s5a_bn = normalize(s5a, pc1[6:8])
    dil3 = normalize(d3, pc1[8:10])
    dil5 = normalize(d5, pc1[10:12])

    # ---- second sep-conv stages (depend on the stage-1 BN) --------------------
    s3b = conv_stage(s3a_bn, 3, 1, 1, OFF_S3B, PW_S3B)
    s5b = conv_stage(s5a_bn, 5, 2, 1, OFF_S5B, PW_S5B)
    pc2 = fold(jnp.concatenate([stats(s3b), stats(s5b)], axis=0))     # (4, W*C)
    sep3 = normalize(s3b, pc2[0:2])
    sep5 = normalize(s5b, pc2[2:4])

    # ---- weighted combine (alpha[0] multiplies 'none' -> exact zero) ---------
    acc = alpha_ref[1] * branch_max
    acc = acc + alpha_ref[2] * branch_avg
    acc = acc + alpha_ref[3] * x
    acc = acc + alpha_ref[4] * sep3
    acc = acc + alpha_ref[5] * sep5
    acc = acc + alpha_ref[6] * dil3
    acc = acc + alpha_ref[7] * dil5
    out_ref[...] = acc


# ----------------------------- wrapper-side prep ------------------------------

def _avgpool_inv_count(H, W, C):
    # 1 / (# non-padding elements in each 3x3/pad=1/stride=1 window), (H, W*C)
    ih = jnp.arange(H)
    iw = jnp.arange(W)
    rows = (jnp.minimum(ih + 1, H - 1) - jnp.maximum(ih - 1, 0) + 1).astype(jnp.float32)
    cols = (jnp.minimum(iw + 1, W - 1) - jnp.maximum(iw - 1, 0) + 1).astype(jnp.float32)
    inv = 1.0 / (rows[:, None] * cols[None, :])
    return jnp.broadcast_to(inv[:, :, None], (H, W, C)).reshape(H, W * C)


def _fold_matrix(W, C):
    # F[w*C+c, w'*C+c'] = 1 iff c == c': stats @ F sums over W inside the lane
    # axis and broadcasts the per-channel result back across all lanes.
    ch = jnp.arange(W * C) % C
    return (ch[:, None] == ch[None, :]).astype(jnp.float32)


def _dw_rows(dw, W):
    # dw: (k, k, C) depthwise weight -> (k*k, W*C) rows, dw[i,j,c] tiled over W.
    k, _, C = dw.shape
    return jnp.tile(dw.reshape(k * k, 1, C), (1, W, 1)).reshape(k * k, W * C)


def _pw_blockdiag(pw, W):
    # pw: (Cin, Cout) pointwise weight -> block-diagonal (W*C, W*C) matrix.
    return jnp.kron(jnp.eye(W, dtype=pw.dtype), pw)


@jax.jit
def mixed_layer(x, alpha, params):
    # x: NHWC (torch NCHW transposed (0, 2, 3, 1)); returns NHWC.
    N, H, W, C = x.shape
    NH, WC = N * H, W * C
    # the dw-row / block-diag / fold packing hard-codes the (w-major, c-minor)
    # lane layout with exactly one vreg of lanes
    assert WC == LANE, "kernel assumes lane-dense layout with W*C == 128"

    invc = _avgpool_inv_count(H, W, C)
    fold = _fold_matrix(W, C)
    dwrows = jnp.concatenate([                                   # (102, 128) f32
        _dw_rows(params['sep3_dw1'], W),
        _dw_rows(params['sep3_dw2'], W),
        _dw_rows(params['dil3_dw'], W),
        _dw_rows(params['sep5_dw1'], W),
        _dw_rows(params['sep5_dw2'], W),
        _dw_rows(params['dil5_dw'], W),
    ], axis=0).astype(jnp.float32)
    wpw = jnp.stack([                                            # (6, 128, 128) bf16
        _pw_blockdiag(params['sep3_pw1'], W),
        _pw_blockdiag(params['sep3_pw2'], W),
        _pw_blockdiag(params['dil3_pw'], W),
        _pw_blockdiag(params['sep5_pw1'], W),
        _pw_blockdiag(params['sep5_pw2'], W),
        _pw_blockdiag(params['dil5_pw'], W),
    ], axis=0).astype(jnp.bfloat16)

    kernel = functools.partial(mixed_layer_kernel, n=N, h=H, w=W, c=C)
    out2d = pl.pallas_call(
        kernel,
        out_shape=jax.ShapeDtypeStruct((NH, WC), jnp.float32),
        in_specs=[
            pl.BlockSpec(memory_space=pltpu.MemorySpace.VMEM),   # x  (N*H, W*C)
            pl.BlockSpec(memory_space=pltpu.MemorySpace.SMEM),   # alpha (8,)
            pl.BlockSpec(memory_space=pltpu.MemorySpace.VMEM),   # avgpool inv counts
            pl.BlockSpec(memory_space=pltpu.MemorySpace.VMEM),   # BN fold matrix
            pl.BlockSpec(memory_space=pltpu.MemorySpace.VMEM),   # depthwise rows
            pl.BlockSpec(memory_space=pltpu.MemorySpace.VMEM),   # block-diag pw (bf16)
        ],
        out_specs=pl.BlockSpec(memory_space=pltpu.MemorySpace.VMEM),
        scratch_shapes=[pltpu.VMEM((N, H + 2 * PV, WC), jnp.float32)],
        compiler_params=pltpu.CompilerParams(
            vmem_limit_bytes=8 * 1024 * 1024),   # real footprint < 1 MiB
    )(x.reshape(NH, WC), alpha, invc, fold, dwrows, wpw)
    return out2d.reshape(N, H, W, C)


# ----------------------------- pure-JAX reference -----------------------------

def _ref_bn(v):
    mean = jnp.mean(v, axis=(0, 1, 2), keepdims=True)
    var = jnp.mean((v - mean) ** 2, axis=(0, 1, 2), keepdims=True)
    return (v - mean) * jax.lax.rsqrt(var + BN_EPS)


def _ref_dwconv(v, w, pad, dil):
    C = v.shape[-1]
    rhs = w[:, :, None, :]  # HWIO, I=1 (groups=C)
    return jax.lax.conv_general_dilated(
        v, rhs, window_strides=(1, 1), padding=[(pad, pad), (pad, pad)],
        rhs_dilation=(dil, dil),
        dimension_numbers=('NHWC', 'HWIO', 'NHWC'),
        feature_group_count=C)


def _ref_pw(v, wt):
    return jnp.einsum('nhwc,cd->nhwd', v, wt)


def _ref_maxpool(v):
    return jax.lax.reduce_window(v, -jnp.inf, jax.lax.max, (1, 3, 3, 1),
                                 (1, 1, 1, 1),
                                 padding=[(0, 0), (1, 1), (1, 1), (0, 0)])


def _ref_avgpool(v):
    N, H, W, C = v.shape
    s = jax.lax.reduce_window(v, 0.0, jax.lax.add, (1, 3, 3, 1), (1, 1, 1, 1),
                              padding=[(0, 0), (1, 1), (1, 1), (0, 0)])
    return s * _avgpool_inv_count(H, W, C).reshape(1, H, W, C)


def mixed_layer_reference(x, alpha, p):
    def sep(v, pad, dw1, pw1, dw2, pw2):
        h = jax.nn.relu(v)
        h = _ref_bn(_ref_pw(_ref_dwconv(h, dw1, pad, 1), pw1))
        h = jax.nn.relu(h)
        h = _ref_bn(_ref_pw(_ref_dwconv(h, dw2, pad, 1), pw2))
        return h

    def dil(v, pad, d, dw, pw):
        h = jax.nn.relu(v)
        return _ref_bn(_ref_pw(_ref_dwconv(h, dw, pad, d), pw))

    outs = [
        jnp.zeros_like(x),                                    # none
        _ref_bn(_ref_maxpool(x)),                             # max_pool_3x3
        _ref_bn(_ref_avgpool(x)),                             # avg_pool_3x3
        x,                                                    # skip_connect
        sep(x, 1, p['sep3_dw1'], p['sep3_pw1'], p['sep3_dw2'], p['sep3_pw2']),
        sep(x, 2, p['sep5_dw1'], p['sep5_pw1'], p['sep5_dw2'], p['sep5_pw2']),
        dil(x, 2, 2, p['dil3_dw'], p['dil3_pw']),
        dil(x, 4, 2, p['dil5_dw'], p['dil5_pw']),
    ]
    return sum(a * o for a, o in zip(alpha, outs))


# ----------------------------------- main -------------------------------------

def make_params(key, C):
    ks = jax.random.split(key, 12)

    def dw(k_, ksize):
        return (jax.random.normal(k_, (ksize, ksize, C), jnp.float32)
                / float(ksize))

    def pw(k_):
        # stored as (Cin, Cout) == transposed torch (Cout, Cin, 1, 1) weight
        return jax.random.normal(k_, (C, C), jnp.float32) / jnp.sqrt(float(C))

    return {
        'sep3_dw1': dw(ks[0], 3), 'sep3_pw1': pw(ks[1]),
        'sep3_dw2': dw(ks[2], 3), 'sep3_pw2': pw(ks[3]),
        'sep5_dw1': dw(ks[4], 5), 'sep5_pw1': pw(ks[5]),
        'sep5_dw2': dw(ks[6], 5), 'sep5_pw2': pw(ks[7]),
        'dil3_dw': dw(ks[8], 3), 'dil3_pw': pw(ks[9]),
        'dil5_dw': dw(ks[10], 5), 'dil5_pw': pw(ks[11]),
    }


if __name__ == "__main__":
    # NHWC (== PyTorch NCHW [2, 8, 16, 16]); W*C = 128 -> lane-dense layout.
    N, H, W, C = 2, 16, 16, 8

    root = jax.random.PRNGKey(0)
    kx, ka, kp = jax.random.split(root, 3)

    x = jax.random.normal(kx, (N, H, W, C), jnp.float32)
    alpha = jax.nn.softmax(jax.random.normal(ka, (8,), jnp.float32))
    params = make_params(kp, C)

    out = jax.block_until_ready(mixed_layer(x, alpha, params))
    ref = jax.block_until_ready(mixed_layer_reference(x, alpha, params))

    max_err = float(jnp.max(jnp.abs(out - ref)))
    assert out.shape == (N, H, W, C)
    # tolerance sized for the bf16 pointwise matmul (f32 stencil/accumulation)
    assert max_err < 2e-2, f"mismatch vs reference: max abs err = {max_err}"

    print("KERNEL_OK")
</pallas_src>

<mosaic_0001>
module attributes {stable_mosaic.version = 11 : i64} {
  func.func @mixed_layer_kernel(%arg0: memref<32x128xf32, #tpu.memory_space<vmem>>, %arg1: memref<8xf32, #tpu.memory_space<smem>>, %arg2: memref<16x128xf32, #tpu.memory_space<vmem>>, %arg3: memref<128x128xf32, #tpu.memory_space<vmem>>, %arg4: memref<102x128xf32, #tpu.memory_space<vmem>>, %arg5: memref<6x128x128xbf16, #tpu.memory_space<vmem>>, %arg6: memref<32x128xf32, #tpu.memory_space<vmem>>, %arg7: memref<2x32x128xf32, #tpu.memory_space<vmem>>) attributes {dimension_semantics = [], scalar_prefetch = 0 : i64, scratch_operands = 1 : i64, tpu.core_type = #tpu.core_type<tc>} {
    %c0 = arith.constant 0 : index
    %c0_0 = arith.constant 0 : index
    %0 = vector.load %arg0[%c0, %c0_0] : memref<32x128xf32, #tpu.memory_space<vmem>>, vector<32x128xf32>
    %1 = tpu.iota {dimensions = array<i32: 1>} : vector<32x128xi32>
    %cst = arith.constant 0xFF800000 : f32
    %2 = vector.broadcast %cst : f32 to vector<2x8x128xf32>
    %c0_1 = arith.constant 0 : index
    %c0_2 = arith.constant 0 : index
    %c0_3 = arith.constant 0 : index
    %3 = vector.load %arg7[%c0_1, %c0_2, %c0_3] : memref<2x32x128xf32, #tpu.memory_space<vmem>>, vector<2x8x128xf32>
    tpu.vector_store %arg7[%c0_1, %c0_2, %c0_3], %2 {strides = array<i32>} : memref<2x32x128xf32, #tpu.memory_space<vmem>>, vector<2x8x128xf32>,
    %c0_4 = arith.constant 0 : index
    %c24 = arith.constant 24 : index
    %c0_5 = arith.constant 0 : index
    %4 = vector.load %arg7[%c0_4, %c24, %c0_5] : memref<2x32x128xf32, #tpu.memory_space<vmem>>, vector<2x8x128xf32>
    tpu.vector_store %arg7[%c0_4, %c24, %c0_5], %2 {strides = array<i32>} : memref<2x32x128xf32, #tpu.memory_space<vmem>>, vector<2x8x128xf32>,
    %c8_i32 = arith.constant 8 : i32
    %5 = tpu.dynamic_rotate %0 by %c8_i32 dim 1 : vector<32x128xf32>, i32 -> vector<32x128xf32>
    %c8_i32_6 = arith.constant 8 : i32
    %6 = vector.broadcast %c8_i32_6 : i32 to vector<32x128xi32>
    %7 = arith.cmpi sge, %1, %6 : vector<32x128xi32>
    %cst_7 = arith.constant 0xFF800000 : f32
    %8 = vector.broadcast %cst_7 : f32 to vector<32x128xf32>
    %9 = arith.select %7, %5, %8 : vector<32x128xi1>, vector<32x128xf32>
    %10 = vector.shape_cast %9 : vector<32x128xf32> to vector<2x16x128xf32>
    %c0_8 = arith.constant 0 : index
    %c8 = arith.constant 8 : index
    %c0_9 = arith.constant 0 : index
    %11 = vector.load %arg7[%c0_8, %c8, %c0_9] : memref<2x32x128xf32, #tpu.memory_space<vmem>>, vector<2x16x128xf32>
    tpu.vector_store %arg7[%c0_8, %c8, %c0_9], %10 {strides = array<i32>} : memref<2x32x128xf32, #tpu.memory_space<vmem>>, vector<2x16x128xf32>,
    %c0_10 = arith.constant 0 : index
    %c7 = arith.constant 7 : index
    %c0_11 = arith.constant 0 : index
    %12 = vector.load %arg7[%c0_10, %c7, %c0_11] : memref<2x32x128xf32, #tpu.memory_space<vmem>>, vector<2x16x128xf32>
    %13 = vector.shape_cast %12 : vector<2x16x128xf32> to vector<32x128xf32>
    %c0_12 = arith.constant 0 : index
    %c8_13 = arith.constant 8 : index
    %c0_14 = arith.constant 0 : index
    %14 = vector.load %arg7[%c0_12, %c8_13, %c0_14] : memref<2x32x128xf32, #tpu.memory_space<vmem>>, vector<2x16x128xf32>
    %15 = vector.shape_cast %14 : vector<2x16x128xf32> to vector<32x128xf32>
    %16 = arith.maximumf %13, %15 : vector<32x128xf32>
    %c0_15 = arith.constant 0 : index
    %c9 = arith.constant 9 : index
    %c0_16 = arith.constant 0 : index
    %17 = vector.load %arg7[%c0_15, %c9, %c0_16] : memref<2x32x128xf32, #tpu.memory_space<vmem>>, vector<2x16x128xf32>
    %18 = vector.shape_cast %17 : vector<2x16x128xf32> to vector<32x128xf32>
    %19 = arith.maximumf %16, %18 : vector<32x128xf32>
    %20 = vector.shape_cast %0 : vector<32x128xf32> to vector<2x16x128xf32>
    %c0_17 = arith.constant 0 : index
    %c8_18 = arith.constant 8 : index
    %c0_19 = arith.constant 0 : index
    %21 = vector.load %arg7[%c0_17, %c8_18, %c0_19] : memref<2x32x128xf32, #tpu.memory_space<vmem>>, vector<2x16x128xf32>
    tpu.vector_store %arg7[%c0_17, %c8_18, %c0_19], %20 {strides = array<i32>} : memref<2x32x128xf32, #tpu.memory_space<vmem>>, vector<2x16x128xf32>,
    %c0_20 = arith.constant 0 : index
    %c7_21 = arith.constant 7 : index
    %c0_22 = arith.constant 0 : index
    %22 = vector.load %arg7[%c0_20, %c7_21, %c0_22] : memref<2x32x128xf32, #tpu.memory_space<vmem>>, vector<2x16x128xf32>
    %23 = vector.shape_cast %22 : vector<2x16x128xf32> to vector<32x128xf32>
    %24 = arith.maximumf %19, %23 : vector<32x128xf32>
    %c0_23 = arith.constant 0 : index
    %c8_24 = arith.constant 8 : index
    %c0_25 = arith.constant 0 : index
    %25 = vector.load %arg7[%c0_23, %c8_24, %c0_25] : memref<2x32x128xf32, #tpu.memory_space<vmem>>, vector<2x16x128xf32>
    %26 = vector.shape_cast %25 : vector<2x16x128xf32> to vector<32x128xf32>
    %27 = arith.maximumf %24, %26 : vector<32x128xf32>
    %c0_26 = arith.constant 0 : index
    %c9_27 = arith.constant 9 : index
    %c0_28 = arith.constant 0 : index
    %28 = vector.load %arg7[%c0_26, %c9_27, %c0_28] : memref<2x32x128xf32, #tpu.memory_space<vmem>>, vector<2x16x128xf32>
    %29 = vector.shape_cast %28 : vector<2x16x128xf32> to vector<32x128xf32>
    %30 = arith.maximumf %27, %29 : vector<32x128xf32>
    %c120_i32 = arith.constant 120 : i32
    %31 = tpu.dynamic_rotate %0 by %c120_i32 dim 1 : vector<32x128xf32>, i32 -> vector<32x128xf32>
    %c120_i32_29 = arith.constant 120 : i32
    %32 = vector.broadcast %c120_i32_29 : i32 to vector<32x128xi32>
    %33 = arith.cmpi slt, %1, %32 : vector<32x128xi32>
    %cst_30 = arith.constant 0xFF800000 : f32
    %34 = vector.broadcast %cst_30 : f32 to vector<32x128xf32>
    %35 = arith.select %33, %31, %34 : vector<32x128xi1>, vector<32x128xf32>
    %36 = vector.shape_cast %35 : vector<32x128xf32> to vector<2x16x128xf32>
    %c0_31 = arith.constant 0 : index
    %c8_32 = arith.constant 8 : index
    %c0_33 = arith.constant 0 : index
    %37 = vector.load %arg7[%c0_31, %c8_32, %c0_33] : memref<2x32x128xf32, #tpu.memory_space<vmem>>, vector<2x16x128xf32>
    tpu.vector_store %arg7[%c0_31, %c8_32, %c0_33], %36 {strides = array<i32>} : memref<2x32x128xf32, #tpu.memory_space<vmem>>, vector<2x16x128xf32>,
    %c0_34 = arith.constant 0 : index
    %c7_35 = arith.constant 7 : index
    %c0_36 = arith.constant 0 : index
    %38 = vector.load %arg7[%c0_34, %c7_35, %c0_36] : memref<2x32x128xf32, #tpu.memory_space<vmem>>, vector<2x16x128xf32>
    %39 = vector.shape_cast %38 : vector<2x16x128xf32> to vector<32x128xf32>
    %40 = arith.maximumf %30, %39 : vector<32x128xf32>
    %c0_37 = arith.constant 0 : index
    %c8_38 = arith.constant 8 : index
    %c0_39 = arith.constant 0 : index
    %41 = vector.load %arg7[%c0_37, %c8_38, %c0_39] : memref<2x32x128xf32, #tpu.memory_space<vmem>>, vector<2x16x128xf32>
    %42 = vector.shape_cast %41 : vector<2x16x128xf32> to vector<32x128xf32>
    %43 = arith.maximumf %40, %42 : vector<32x128xf32>
    %c0_40 = arith.constant 0 : index
    %c9_41 = arith.constant 9 : index
    %c0_42 = arith.constant 0 : index
    %44 = vector.load %arg7[%c0_40, %c9_41, %c0_42] : memref<2x32x128xf32, #tpu.memory_space<vmem>>, vector<2x16x128xf32>
    %45 = vector.shape_cast %44 : vector<2x16x128xf32> to vector<32x128xf32>
    %46 = arith.maximumf %43, %45 : vector<32x128xf32>
    %cst_43 = arith.constant 0.000000e+00 : f32
    %47 = vector.broadcast %cst_43 : f32 to vector<2x8x128xf32>
    %c0_44 = arith.constant 0 : index
    %c0_45 = arith.constant 0 : index
    %c0_46 = arith.constant 0 : index
    %48 = vector.load %arg7[%c0_44, %c0_45, %c0_46] : memref<2x32x128xf32, #tpu.memory_space<vmem>>, vector<2x8x128xf32>
    tpu.vector_store %arg7[%c0_44, %c0_45, %c0_46], %47 {strides = array<i32>} : memref<2x32x128xf32, #tpu.memory_space<vmem>>, vector<2x8x128xf32>,
    %c0_47 = arith.constant 0 : index
    %c24_48 = arith.constant 24 : index
    %c0_49 = arith.constant 0 : index
    %49 = vector.load %arg7[%c0_47, %c24_48, %c0_49] : memref<2x32x128xf32, #tpu.memory_space<vmem>>, vector<2x8x128xf32>
    tpu.vector_store %arg7[%c0_47, %c24_48, %c0_49], %47 {strides = array<i32>} : memref<2x32x128xf32, #tpu.memory_space<vmem>>, vector<2x8x128xf32>,
    %cst_50 = arith.constant 0.000000e+00 : f32
    %50 = vector.broadcast %cst_50 : f32 to vector<32x128xf32>
    %c8_i32_51 = arith.constant 8 : i32
    %51 = tpu.dynamic_rotate %0 by %c8_i32_51 dim 1 : vector<32x128xf32>, i32 -> vector<32x128xf32>
    %c8_i32_52 = arith.constant 8 : i32
    %52 = vector.broadcast %c8_i32_52 : i32 to vector<32x128xi32>
    %53 = arith.cmpi sge, %1, %52 : vector<32x128xi32>
    %cst_53 = arith.constant 0.000000e+00 : f32
    %54 = vector.broadcast %cst_53 : f32 to vector<32x128xf32>
    %55 = arith.select %53, %51, %54 : vector<32x128xi1>, vector<32x128xf32>
    %56 = vector.shape_cast %55 : vector<32x128xf32> to vector<2x16x128xf32>
    %c0_54 = arith.constant 0 : index
    %c8_55 = arith.constant 8 : index
    %c0_56 = arith.constant 0 : index
    %57 = vector.load %arg7[%c0_54, %c8_55, %c0_56] : memref<2x32x128xf32, #tpu.memory_space<vmem>>, vector<2x16x128xf32>
    tpu.vector_store %arg7[%c0_54, %c8_55, %c0_56], %56 {strides = array<i32>} : memref<2x32x128xf32, #tpu.memory_space<vmem>>, vector<2x16x128xf32>,
    %c0_57 = arith.constant 0 : index
    %c7_58 = arith.constant 7 : index
    %c0_59 = arith.constant 0 : index
    %58 = vector.load %arg7[%c0_57, %c7_58, %c0_59] : memref<2x32x128xf32, #tpu.memory_space<vmem>>, vector<2x16x128xf32>
    %59 = vector.shape_cast %58 : vector<2x16x128xf32> to vector<32x128xf32>
    %60 = arith.addf %50, %59 : vector<32x128xf32>
    %c0_60 = arith.constant 0 : index
    %c8_61 = arith.constant 8 : index
    %c0_62 = arith.constant 0 : index
    %61 = vector.load %arg7[%c0_60, %c8_61, %c0_62] : memref<2x32x128xf32, #tpu.memory_space<vmem>>, vector<2x16x128xf32>
    %62 = vector.shape_cast %61 : vector<2x16x128xf32> to vector<32x128xf32>
    %63 = arith.addf %60, %62 : vector<32x128xf32>
    %c0_63 = arith.constant 0 : index
    %c9_64 = arith.constant 9 : index
    %c0_65 = arith.constant 0 : index
    %64 = vector.load %arg7[%c0_63, %c9_64, %c0_65] : memref<2x32x128xf32, #tpu.memory_space<vmem>>, vector<2x16x128xf32>
    %65 = vector.shape_cast %64 : vector<2x16x128xf32> to vector<32x128xf32>
    %66 = arith.addf %63, %65 : vector<32x128xf32>
    %67 = vector.shape_cast %0 : vector<32x128xf32> to vector<2x16x128xf32>
    %c0_66 = arith.constant 0 : index
    %c8_67 = arith.constant 8 : index
    %c0_68 = arith.constant 0 : index
    %68 = vector.load %arg7[%c0_66, %c8_67, %c0_68] : memref<2x32x128xf32, #tpu.memory_space<vmem>>, vector<2x16x128xf32>
    tpu.vector_store %arg7[%c0_66, %c8_67, %c0_68], %67 {strides = array<i32>} : memref<2x32x128xf32, #tpu.memory_space<vmem>>, vector<2x16x128xf32>,
    %c0_69 = arith.constant 0 : index
    %c7_70 = arith.constant 7 : index
    %c0_71 = arith.constant 0 : index
    %69 = vector.load %arg7[%c0_69, %c7_70, %c0_71] : memref<2x32x128xf32, #tpu.memory_space<vmem>>, vector<2x16x128xf32>
    %70 = vector.shape_cast %69 : vector<2x16x128xf32> to vector<32x128xf32>
    %71 = arith.addf %66, %70 : vector<32x128xf32>
    %c0_72 = arith.constant 0 : index
    %c8_73 = arith.constant 8 : index
    %c0_74 = arith.constant 0 : index
    %72 = vector.load %arg7[%c0_72, %c8_73, %c0_74] : memref<2x32x128xf32, #tpu.memory_space<vmem>>, vector<2x16x128xf32>
    %73 = vector.shape_cast %72 : vector<2x16x128xf32> to vector<32x128xf32>
    %74 = arith.addf %71, %73 : vector<32x128xf32>
    %c0_75 = arith.constant 0 : index
    %c9_76 = arith.constant 9 : index
    %c0_77 = arith.constant 0 : index
    %75 = vector.load %arg7[%c0_75, %c9_76, %c0_77] : memref<2x32x128xf32, #tpu.memory_space<vmem>>, vector<2x16x128xf32>
    %76 = vector.shape_cast %75 : vector<2x16x128xf32> to vector<32x128xf32>
    %77 = arith.addf %74, %76 : vector<32x128xf32>
    %c120_i32_78 = arith.constant 120 : i32
    %78 = tpu.dynamic_rotate %0 by %c120_i32_78 dim 1 : vector<32x128xf32>, i32 -> vector<32x128xf32>
    %c120_i32_79 = arith.constant 120 : i32
    %79 = vector.broadcast %c120_i32_79 : i32 to vector<32x128xi32>
    %80 = arith.cmpi slt, %1, %79 : vector<32x128xi32>
    %cst_80 = arith.constant 0.000000e+00 : f32
    %81 = vector.broadcast %cst_80 : f32 to vector<32x128xf32>
    %82 = arith.select %80, %78, %81 : vector<32x128xi1>, vector<32x128xf32>
    %83 = vector.shape_cast %82 : vector<32x128xf32> to vector<2x16x128xf32>
    %c0_81 = arith.constant 0 : index
    %c8_82 = arith.constant 8 : index
    %c0_83 = arith.constant 0 : index
    %84 = vector.load %arg7[%c0_81, %c8_82, %c0_83] : memref<2x32x128xf32, #tpu.memory_space<vmem>>, vector<2x16x128xf32>
    tpu.vector_store %arg7[%c0_81, %c8_82, %c0_83], %83 {strides = array<i32>} : memref<2x32x128xf32, #tpu.memory_space<vmem>>, vector<2x16x128xf32>,
    %c0_84 = arith.constant 0 : index
    %c7_85 = arith.constant 7 : index
    %c0_86 = arith.constant 0 : index
    %85 = vector.load %arg7[%c0_84, %c7_85, %c0_86] : memref<2x32x128xf32, #tpu.memory_space<vmem>>, vector<2x16x128xf32>
    %86 = vector.shape_cast %85 : vector<2x16x128xf32> to vector<32x128xf32>
    %87 = arith.addf %77, %86 : vector<32x128xf32>
    %c0_87 = arith.constant 0 : index
    %c8_88 = arith.constant 8 : index
    %c0_89 = arith.constant 0 : index
    %88 = vector.load %arg7[%c0_87, %c8_88, %c0_89] : memref<2x32x128xf32, #tpu.memory_space<vmem>>, vector<2x16x128xf32>
    %89 = vector.shape_cast %88 : vector<2x16x128xf32> to vector<32x128xf32>
    %90 = arith.addf %87, %89 : vector<32x128xf32>
    %c0_90 = arith.constant 0 : index
    %c9_91 = arith.constant 9 : index
    %c0_92 = arith.constant 0 : index
    %91 = vector.load %arg7[%c0_90, %c9_91, %c0_92] : memref<2x32x128xf32, #tpu.memory_space<vmem>>, vector<2x16x128xf32>
    %92 = vector.shape_cast %91 : vector<2x16x128xf32> to vector<32x128xf32>
    %93 = arith.addf %90, %92 : vector<32x128xf32>
    %94 = vector.shape_cast %93 : vector<32x128xf32> to vector<2x16x128xf32>
    %c0_93 = arith.constant 0 : index
    %c0_94 = arith.constant 0 : index
    %95 = vector.load %arg2[%c0_93, %c0_94] : memref<16x128xf32, #tpu.memory_space<vmem>>, vector<16x128xf32>
    %96 = vector.shape_cast %95 : vector<16x128xf32> to vector<1x16x128xf32>
    %97 = vector.broadcast %96 : vector<1x16x128xf32> to vector<2x16x128xf32>
    %98 = arith.mulf %94, %97 : vector<2x16x128xf32>
    %99 = vector.shape_cast %98 : vector<2x16x128xf32> to vector<32x128xf32>
    %cst_95 = arith.constant 0.000000e+00 : f32
    %100 = vector.broadcast %cst_95 : f32 to vector<32x128xf32>
    %101 = arith.maximumf %0, %100 : vector<32x128xf32>
    %cst_96 = arith.constant 0.000000e+00 : f32
    %102 = vector.broadcast %cst_96 : f32 to vector<32x128xf32>
    %c8_i32_97 = arith.constant 8 : i32
    %103 = tpu.dynamic_rotate %101 by %c8_i32_97 dim 1 : vector<32x128xf32>, i32 -> vector<32x128xf32>
    %c8_i32_98 = arith.constant 8 : i32
    %104 = vector.broadcast %c8_i32_98 : i32 to vector<32x128xi32>
    %105 = arith.cmpi sge, %1, %104 : vector<32x128xi32>
    %cst_99 = arith.constant 0.000000e+00 : f32
    %106 = vector.broadcast %cst_99 : f32 to vector<32x128xf32>
    %107 = arith.select %105, %103, %106 : vector<32x128xi1>, vector<32x128xf32>
    %108 = vector.shape_cast %107 : vector<32x128xf32> to vector<2x16x128xf32>
    %c0_100 = arith.constant 0 : index
    %c8_101 = arith.constant 8 : index
    %c0_102 = arith.constant 0 : index
    %109 = vector.load %arg7[%c0_100, %c8_101, %c0_102] : memref<2x32x128xf32, #tpu.memory_space<vmem>>, vector<2x16x128xf32>
    tpu.vector_store %arg7[%c0_100, %c8_101, %c0_102], %108 {strides = array<i32>} : memref<2x32x128xf32, #tpu.memory_space<vmem>>, vector<2x16x128xf32>,
    %c0_103 = arith.constant 0 : index
    %c0_104 = arith.constant 0 : index
    %110 = vector.load %arg4[%c0_103, %c0_104] : memref<102x128xf32, #tpu.memory_space<vmem>>, vector<1x128xf32>
    %111 = vector.shape_cast %110 : vector<1x128xf32> to vector<128xf32>
    %112 = vector.shape_cast %111 : vector<128xf32> to vector<1x128xf32>
    %c0_105 = arith.constant 0 : index
    %c7_106 = arith.constant 7 : index
    %c0_107 = arith.constant 0 : index
    %113 = vector.load %arg7[%c0_105, %c7_106, %c0_107] : memref<2x32x128xf32, #tpu.memory_space<vmem>>, vector<2x16x128xf32>
    %114 = vector.shape_cast %113 : vector<2x16x128xf32> to vector<32x128xf32>
    %115 = vector.broadcast %112 : vector<1x128xf32> to vector<32x128xf32>
    %116 = arith.mulf %114, %115 : vector<32x128xf32>
    %117 = arith.addf %102, %116 : vector<32x128xf32>
    %c3 = arith.constant 3 : index
    %c0_108 = arith.constant 0 : index
    %118 = vector.load %arg4[%c3, %c0_108] : memref<102x128xf32, #tpu.memory_space<vmem>>, vector<1x128xf32>
    %119 = vector.shape_cast %118 : vector<1x128xf32> to vector<128xf32>
    %120 = vector.shape_cast %119 : vector<128xf32> to vector<1x128xf32>
    %c0_109 = arith.constant 0 : index
    %c8_110 = arith.constant 8 : index
    %c0_111 = arith.constant 0 : index
    %121 = vector.load %arg7[%c0_109, %c8_110, %c0_111] : memref<2x32x128xf32, #tpu.memory_space<vmem>>, vector<2x16x128xf32>
    %122 = vector.shape_cast %121 : vector<2x16x128xf32> to vector<32x128xf32>
    %123 = vector.broadcast %120 : vector<1x128xf32> to vector<32x128xf32>
    %124 = arith.mulf %122, %123 : vector<32x128xf32>
    %125 = arith.addf %117, %124 : vector<32x128xf32>
    %c6 = arith.constant 6 : index
    %c0_112 = arith.constant 0 : index
    %126 = vector.load %arg4[%c6, %c0_112] : memref<102x128xf32, #tpu.memory_space<vmem>>, vector<1x128xf32>
    %127 = vector.shape_cast %126 : vector<1x128xf32> to vector<128xf32>
    %128 = vector.shape_cast %127 : vector<128xf32> to vector<1x128xf32>
    %c0_113 = arith.constant 0 : index
    %c9_114 = arith.constant 9 : index
    %c0_115 = arith.constant 0 : index
    %129 = vector.load %arg7[%c0_113, %c9_114, %c0_115] : memref<2x32x128xf32, #tpu.memory_space<vmem>>, vector<2x16x128xf32>
    %130 = vector.shape_cast %129 : vector<2x16x128xf32> to vector<32x128xf32>
    %131 = vector.broadcast %128 : vector<1x128xf32> to vector<32x128xf32>
    %132 = arith.mulf %130, %131 : vector<32x128xf32>
    %133 = arith.addf %125, %132 : vector<32x128xf32>
    %134 = vector.shape_cast %101 : vector<32x128xf32> to vector<2x16x128xf32>
    %c0_116 = arith.constant 0 : index
    %c8_117 = arith.constant 8 : index
    %c0_118 = arith.constant 0 : index
    %135 = vector.load %arg7[%c0_116, %c8_117, %c0_118] : memref<2x32x128xf32, #tpu.memory_space<vmem>>, vector<2x16x128xf32>
    tpu.vector_store %arg7[%c0_116, %c8_117, %c0_118], %134 {strides = array<i32>} : memref<2x32x128xf32, #tpu.memory_space<vmem>>, vector<2x16x128xf32>,
    %c1 = arith.constant 1 : index
    %c0_119 = arith.constant 0 : index
    %136 = vector.load %arg4[%c1, %c0_119] : memref<102x128xf32, #tpu.memory_space<vmem>>, vector<1x128xf32>
    %137 = vector.shape_cast %136 : vector<1x128xf32> to vector<128xf32>
    %138 = vector.shape_cast %137 : vector<128xf32> to vector<1x128xf32>
    %c0_120 = arith.constant 0 : index
    %c7_121 = arith.constant 7 : index
    %c0_122 = arith.constant 0 : index
    %139 = vector.load %arg7[%c0_120, %c7_121, %c0_122] : memref<2x32x128xf32, #tpu.memory_space<vmem>>, vector<2x16x128xf32>
    %140 = vector.shape_cast %139 : vector<2x16x128xf32> to vector<32x128xf32>
    %141 = vector.broadcast %138 : vector<1x128xf32> to vector<32x128xf32>
    %142 = arith.mulf %140, %141 : vector<32x128xf32>
    %143 = arith.addf %133, %142 : vector<32x128xf32>
    %c4 = arith.constant 4 : index
    %c0_123 = arith.constant 0 : index
    %144 = vector.load %arg4[%c4, %c0_123] : memref<102x128xf32, #tpu.memory_space<vmem>>, vector<1x128xf32>
    %145 = vector.shape_cast %144 : vector<1x128xf32> to vector<128xf32>
    %146 = vector.shape_cast %145 : vector<128xf32> to vector<1x128xf32>
    %c0_124 = arith.constant 0 : index
    %c8_125 = arith.constant 8 : index
    %c0_126 = arith.constant 0 : index
    %147 = vector.load %arg7[%c0_124, %c8_125, %c0_126] : memref<2x32x128xf32, #tpu.memory_space<vmem>>, vector<2x16x128xf32>
    %148 = vector.shape_cast %147 : vector<2x16x128xf32> to vector<32x128xf32>
    %149 = vector.broadcast %146 : vector<1x128xf32> to vector<32x128xf32>
    %150 = arith.mulf %148, %149 : vector<32x128xf32>
    %151 = arith.addf %143, %150 : vector<32x128xf32>
    %c7_127 = arith.constant 7 : index
    %c0_128 = arith.constant 0 : index
    %152 = vector.load %arg4[%c7_127, %c0_128] : memref<102x128xf32, #tpu.memory_space<vmem>>, vector<1x128xf32>
    %153 = vector.shape_cast %152 : vector<1x128xf32> to vector<128xf32>
    %154 = vector.shape_cast %153 : vector<128xf32> to vector<1x128xf32>
    %c0_129 = arith.constant 0 : index
    %c9_130 = arith.constant 9 : index
    %c0_131 = arith.constant 0 : index
    %155 = vector.load %arg7[%c0_129, %c9_130, %c0_131] : memref<2x32x128xf32, #tpu.memory_space<vmem>>, vector<2x16x128xf32>
    %156 = vector.shape_cast %155 : vector<2x16x128xf32> to vector<32x128xf32>
    %157 = vector.broadcast %154 : vector<1x128xf32> to vector<32x128xf32>
    %158 = arith.mulf %156, %157 : vector<32x128xf32>
    %159 = arith.addf %151, %158 : vector<32x128xf32>
    %c120_i32_132 = arith.constant 120 : i32
    %160 = tpu.dynamic_rotate %101 by %c120_i32_132 dim 1 : vector<32x128xf32>, i32 -> vector<32x128xf32>
    %c120_i32_133 = arith.constant 120 : i32
    %161 = vector.broadcast %c120_i32_133 : i32 to vector<32x128xi32>
    %162 = arith.cmpi slt, %1, %161 : vector<32x128xi32>
    %cst_134 = arith.constant 0.000000e+00 : f32
    %163 = vector.broadcast %cst_134 : f32 to vector<32x128xf32>
    %164 = arith.select %162, %160, %163 : vector<32x128xi1>, vector<32x128xf32>
    %165 = vector.shape_cast %164 : vector<32x128xf32> to vector<2x16x128xf32>
    %c0_135 = arith.constant 0 : index
    %c8_136 = arith.constant 8 : index
    %c0_137 = arith.constant 0 : index
    %166 = vector.load %arg7[%c0_135, %c8_136, %c0_137] : memref<2x32x128xf32, #tpu.memory_space<vmem>>, vector<2x16x128xf32>
    tpu.vector_store %arg7[%c0_135, %c8_136, %c0_137], %165 {strides = array<i32>} : memref<2x32x128xf32, #tpu.memory_space<vmem>>, vector<2x16x128xf32>,
    %c2 = arith.constant 2 : index
    %c0_138 = arith.constant 0 : index
    %167 = vector.load %arg4[%c2, %c0_138] : memref<102x128xf32, #tpu.memory_space<vmem>>, vector<1x128xf32>
    %168 = vector.shape_cast %167 : vector<1x128xf32> to vector<128xf32>
    %169 = vector.shape_cast %168 : vector<128xf32> to vector<1x128xf32>
    %c0_139 = arith.constant 0 : index
    %c7_140 = arith.constant 7 : index
    %c0_141 = arith.constant 0 : index
    %170 = vector.load %arg7[%c0_139, %c7_140, %c0_141] : memref<2x32x128xf32, #tpu.memory_space<vmem>>, vector<2x16x128xf32>
    %171 = vector.shape_cast %170 : vector<2x16x128xf32> to vector<32x128xf32>
    %172 = vector.broadcast %169 : vector<1x128xf32> to vector<32x128xf32>
    %173 = arith.mulf %171, %172 : vector<32x128xf32>
    %174 = arith.addf %159, %173 : vector<32x128xf32>
    %c5 = arith.constant 5 : index
    %c0_142 = arith.constant 0 : index
    %175 = vector.load %arg4[%c5, %c0_142] : memref<102x128xf32, #tpu.memory_space<vmem>>, vector<1x128xf32>
    %176 = vector.shape_cast %175 : vector<1x128xf32> to vector<128xf32>
    %177 = vector.shape_cast %176 : vector<128xf32> to vector<1x128xf32>
    %c0_143 = arith.constant 0 : index
    %c8_144 = arith.constant 8 : index
    %c0_145 = arith.constant 0 : index
    %178 = vector.load %arg7[%c0_143, %c8_144, %c0_145] : memref<2x32x128xf32, #tpu.memory_space<vmem>>, vector<2x16x128xf32>
    %179 = vector.shape_cast %178 : vector<2x16x128xf32> to vector<32x128xf32>
    %180 = vector.broadcast %177 : vector<1x128xf32> to vector<32x128xf32>
    %181 = arith.mulf %179, %180 : vector<32x128xf32>
    %182 = arith.addf %174, %181 : vector<32x128xf32>
    %c8_146 = arith.constant 8 : index
    %c0_147 = arith.constant 0 : index
    %183 = vector.load %arg4[%c8_146, %c0_147] : memref<102x128xf32, #tpu.memory_space<vmem>>, vector<1x128xf32>
    %184 = vector.shape_cast %183 : vector<1x128xf32> to vector<128xf32>
    %185 = vector.shape_cast %184 : vector<128xf32> to vector<1x128xf32>
    %c0_148 = arith.constant 0 : index
    %c9_149 = arith.constant 9 : index
    %c0_150 = arith.constant 0 : index
    %186 = vector.load %arg7[%c0_148, %c9_149, %c0_150] : memref<2x32x128xf32, #tpu.memory_space<vmem>>, vector<2x16x128xf32>
    %187 = vector.shape_cast %186 : vector<2x16x128xf32> to vector<32x128xf32>
    %188 = vector.broadcast %185 : vector<1x128xf32> to vector<32x128xf32>
    %189 = arith.mulf %187, %188 : vector<32x128xf32>
    %190 = arith.addf %182, %189 : vector<32x128xf32>
    %191 = arith.truncf %190 : vector<32x128xf32> to vector<32x128xbf16>
    %c0_151 = arith.constant 0 : index
    %c0_152 = arith.constant 0 : index
    %c0_153 = arith.constant 0 : index
    %192 = vector.load %arg5[%c0_151, %c0_152, %c0_153] : memref<6x128x128xbf16, #tpu.memory_space<vmem>>, vector<1x128x128xbf16>
    %193 = vector.shape_cast %192 : vector<1x128x128xbf16> to vector<128x128xbf16>
    %cst_154 = arith.constant dense<0.000000e+00> : vector<32x128xf32>
    %194 = tpu.matmul %191, %193, %cst_154 {dimension_numbers = #tpu.dot_dimension_numbers<[1], [0], [0], [1], [0, 0, 1, 1], [], []>} : vector<32x128xbf16>, vector<128x128xbf16>, vector<32x128xf32> -> vector<32x128xf32>
    %cst_155 = arith.constant 0.000000e+00 : f32
    %195 = vector.broadcast %cst_155 : f32 to vector<32x128xf32>
    %196 = arith.maximumf %0, %195 : vector<32x128xf32>
    %cst_156 = arith.constant 0.000000e+00 : f32
    %197 = vector.broadcast %cst_156 : f32 to vector<32x128xf32>
    %c16_i32 = arith.constant 16 : i32
    %198 = tpu.dynamic_rotate %196 by %c16_i32 dim 1 : vector<32x128xf32>, i32 -> vector<32x128xf32>
    %c16_i32_157 = arith.constant 16 : i32
    %199 = vector.broadcast %c16_i32_157 : i32 to vector<32x128xi32>
    %200 = arith.cmpi sge, %1, %199 : vector<32x128xi32>
    %cst_158 = arith.constant 0.000000e+00 : f32
    %201 = vector.broadcast %cst_158 : f32 to vector<32x128xf32>
    %202 = arith.select %200, %198, %201 : vector<32x128xi1>, vector<32x128xf32>
    %203 = vector.shape_cast %202 : vector<32x128xf32> to vector<2x16x128xf32>
    %c0_159 = arith.constant 0 : index
    %c8_160 = arith.constant 8 : index
    %c0_161 = arith.constant 0 : index
    %204 = vector.load %arg7[%c0_159, %c8_160, %c0_161] : memref<2x32x128xf32, #tpu.memory_space<vmem>>, vector<2x16x128xf32>
    tpu.vector_store %arg7[%c0_159, %c8_160, %c0_161], %203 {strides = array<i32>} : memref<2x32x128xf32, #tpu.memory_space<vmem>>, vector<2x16x128xf32>,
    %c27 = arith.constant 27 : index
    %c0_162 = arith.constant 0 : index
    %205 = vector.load %arg4[%c27, %c0_162] : memref<102x128xf32, #tpu.memory_space<vmem>>, vector<1x128xf32>
    %206 = vector.shape_cast %205 : vector<1x128xf32> to vector<128xf32>
    %207 = vector.shape_cast %206 : vector<128xf32> to vector<1x128xf32>
    %c0_163 = arith.constant 0 : index
    %c6_164 = arith.constant 6 : index
    %c0_165 = arith.constant 0 : index
    %208 = vector.load %arg7[%c0_163, %c6_164, %c0_165] : memref<2x32x128xf32, #tpu.memory_space<vmem>>, vector<2x16x128xf32>
    %209 = vector.shape_cast %208 : vector<2x16x128xf32> to vector<32x128xf32>
    %210 = vector.broadcast %207 : vector<1x128xf32> to vector<32x128xf32>
    %211 = arith.mulf %209, %210 : vector<32x128xf32>
    %212 = arith.addf %197, %211 : vector<32x128xf32>
    %c32 = arith.constant 32 : index
    %c0_166 = arith.constant 0 : index
    %213 = vector.load %arg4[%c32, %c0_166] : memref<102x128xf32, #tpu.memory_space<vmem>>, vector<1x128xf32>
    %214 = vector.shape_cast %213 : vector<1x128xf32> to vector<128xf32>
    %215 = vector.shape_cast %214 : vector<128xf32> to vector<1x128xf32>
    %c0_167 = arith.constant 0 : index
    %c7_168 = arith.constant 7 : index
    %c0_169 = arith.constant 0 : index
    %216 = vector.load %arg7[%c0_167, %c7_168, %c0_169] : memref<2x32x128xf32, #tpu.memory_space<vmem>>, vector<2x16x128xf32>
    %217 = vector.shape_cast %216 : vector<2x16x128xf32> to vector<32x128xf32>
    %218 = vector.broadcast %215 : vector<1x128xf32> to vector<32x128xf32>
    %219 = arith.mulf %217, %218 : vector<32x128xf32>
    %220 = arith.addf %212, %219 : vector<32x128xf32>
    %c37 = arith.constant 37 : index
    %c0_170 = arith.constant 0 : index
    %221 = vector.load %arg4[%c37, %c0_170] : memref<102x128xf32, #tpu.memory_space<vmem>>, vector<1x128xf32>
    %222 = vector.shape_cast %221 : vector<1x128xf32> to vector<128xf32>
    %223 = vector.shape_cast %222 : vector<128xf32> to vector<1x128xf32>
    %c0_171 = arith.constant 0 : index
    %c8_172 = arith.constant 8 : index
    %c0_173 = arith.constant 0 : index
    %224 = vector.load %arg7[%c0_171, %c8_172, %c0_173] : memref<2x32x128xf32, #tpu.memory_space<vmem>>, vector<2x16x128xf32>
    %225 = vector.shape_cast %224 : vector<2x16x128xf32> to vector<32x128xf32>
    %226 = vector.broadcast %223 : vector<1x128xf32> to vector<32x128xf32>
    %227 = arith.mulf %225, %226 : vector<32x128xf32>
    %228 = arith.addf %220, %227 : vector<32x128xf32>
    %c42 = arith.constant 42 : index
    %c0_174 = arith.constant 0 : index
    %229 = vector.load %arg4[%c42, %c0_174] : memref<102x128xf32, #tpu.memory_space<vmem>>, vector<1x128xf32>
    %230 = vector.shape_cast %229 : vector<1x128xf32> to vector<128xf32>
    %231 = vector.shape_cast %230 : vector<128xf32> to vector<1x128xf32>
    %c0_175 = arith.constant 0 : index
    %c9_176 = arith.constant 9 : index
    %c0_177 = arith.constant 0 : index
    %232 = vector.load %arg7[%c0_175, %c9_176, %c0_177] : memref<2x32x128xf32, #tpu.memory_space<vmem>>, vector<2x16x128xf32>
    %233 = vector.shape_cast %232 : vector<2x16x128xf32> to vector<32x128xf32>
    %234 = vector.broadcast %231 : vector<1x128xf32> to vector<32x128xf32>
    %235 = arith.mulf %233, %234 : vector<32x128xf32>
    %236 = arith.addf %228, %235 : vector<32x128xf32>
    %c47 = arith.constant 47 : index
    %c0_178 = arith.constant 0 : index
    %237 = vector.load %arg4[%c47, %c0_178] : memref<102x128xf32, #tpu.memory_space<vmem>>, vector<1x128xf32>
    %238 = vector.shape_cast %237 : vector<1x128xf32> to vector<128xf32>
    %239 = vector.shape_cast %238 : vector<128xf32> to vector<1x128xf32>
    %c0_179 = arith.constant 0 : index
    %c10 = arith.constant 10 : index
    %c0_180 = arith.constant 0 : index
    %240 = vector.load %arg7[%c0_179, %c10, %c0_180] : memref<2x32x128xf32, #tpu.memory_space<vmem>>, vector<2x16x128xf32>
    %241 = vector.shape_cast %240 : vector<2x16x128xf32> to vector<32x128xf32>
    %242 = vector.broadcast %239 : vector<1x128xf32> to vector<32x128xf32>
    %243 = arith.mulf %241, %242 : vector<32x128xf32>
    %244 = arith.addf %236, %243 : vector<32x128xf32>
    %c8_i32_181 = arith.constant 8 : i32
    %245 = tpu.dynamic_rotate %196 by %c8_i32_181 dim 1 : vector<32x128xf32>, i32 -> vector<32x128xf32>
    %c8_i32_182 = arith.constant 8 : i32
    %246 = vector.broadcast %c8_i32_182 : i32 to vector<32x128xi32>
    %247 = arith.cmpi sge, %1, %246 : vector<32x128xi32>
    %cst_183 = arith.constant 0.000000e+00 : f32
    %248 = vector.broadcast %cst_183 : f32 to vector<32x128xf32>
    %249 = arith.select %247, %245, %248 : vector<32x128xi1>, vector<32x128xf32>
    %250 = vector.shape_cast %249 : vector<32x128xf32> to vector<2x16x128xf32>
    %c0_184 = arith.constant 0 : index
    %c8_185 = arith.constant 8 : index
    %c0_186 = arith.constant 0 : index
    %251 = vector.load %arg7[%c0_184, %c8_185, %c0_186] : memref<2x32x128xf32, #tpu.memory_space<vmem>>, vector<2x16x128xf32>
    tpu.vector_store %arg7[%c0_184, %c8_185, %c0_186], %250 {strides = array<i32>} : memref<2x32x128xf32, #tpu.memory_space<vmem>>, vector<2x16x128xf32>,
    %c28 = arith.constant 28 : index
    %c0_187 = arith.constant 0 : index
    %252 = vector.load %arg4[%c28, %c0_187] : memref<102x128xf32, #tpu.memory_space<vmem>>, vector<1x128xf32>
    %253 = vector.shape_cast %252 : vector<1x128xf32> to vector<128xf32>
    %254 = vector.shape_cast %253 : vector<128xf32> to vector<1x128xf32>
    %c0_188 = arith.constant 0 : index
    %c6_189 = arith.constant 6 : index
    %c0_190 = arith.constant 0 : index
    %255 = vector.load %arg7[%c0_188, %c6_189, %c0_190] : memref<2x32x128xf32, #tpu.memory_space<vmem>>, vector<2x16x128xf32>
    %256 = vector.shape_cast %255 : vector<2x16x128xf32> to vector<32x128xf32>
    %257 = vector.broadcast %254 : vector<1x128xf32> to vector<32x128xf32>
    %258 = arith.mulf %256, %257 : vector<32x128xf32>
    %259 = arith.addf %244, %258 : vector<32x128xf32>
    %c33 = arith.constant 33 : index
    %c0_191 = arith.constant 0 : index
    %260 = vector.load %arg4[%c33, %c0_191] : memref<102x128xf32, #tpu.memory_space<vmem>>, vector<1x128xf32>
    %261 = vector.shape_cast %260 : vector<1x128xf32> to vector<128xf32>
    %262 = vector.shape_cast %261 : vector<128xf32> to vector<1x128xf32>
    %c0_192 = arith.constant 0 : index
    %c7_193 = arith.constant 7 : index
    %c0_194 = arith.constant 0 : index
    %263 = vector.load %arg7[%c0_192, %c7_193, %c0_194] : memref<2x32x128xf32, #tpu.memory_space<vmem>>, vector<2x16x128xf32>
    %264 = vector.shape_cast %263 : vector<2x16x128xf32> to vector<32x128xf32>
    %265 = vector.broadcast %262 : vector<1x128xf32> to vector<32x128xf32>
    %266 = arith.mulf %264, %265 : vector<32x128xf32>
    %267 = arith.addf %259, %266 : vector<32x128xf32>
    %c38 = arith.constant 38 : index
    %c0_195 = arith.constant 0 : index
    %268 = vector.load %arg4[%c38, %c0_195] : memref<102x128xf32, #tpu.memory_space<vmem>>, vector<1x128xf32>
    %269 = vector.shape_cast %268 : vector<1x128xf32> to vector<128xf32>
    %270 = vector.shape_cast %269 : vector<128xf32> to vector<1x128xf32>
    %c0_196 = arith.constant 0 : index
    %c8_197 = arith.constant 8 : index
    %c0_198 = arith.constant 0 : index
    %271 = vector.load %arg7[%c0_196, %c8_197, %c0_198] : memref<2x32x128xf32, #tpu.memory_space<vmem>>, vector<2x16x128xf32>
    %272 = vector.shape_cast %271 : vector<2x16x128xf32> to vector<32x128xf32>
    %273 = vector.broadcast %270 : vector<1x128xf32> to vector<32x128xf32>
    %274 = arith.mulf %272, %273 : vector<32x128xf32>
    %275 = arith.addf %267, %274 : vector<32x128xf32>
    %c43 = arith.constant 43 : index
    %c0_199 = arith.constant 0 : index
    %276 = vector.load %arg4[%c43, %c0_199] : memref<102x128xf32, #tpu.memory_space<vmem>>, vector<1x128xf32>
    %277 = vector.shape_cast %276 : vector<1x128xf32> to vector<128xf32>
    %278 = vector.shape_cast %277 : vector<128xf32> to vector<1x128xf32>
    %c0_200 = arith.constant 0 : index
    %c9_201 = arith.constant 9 : index
    %c0_202 = arith.constant 0 : index
    %279 = vector.load %arg7[%c0_200, %c9_201, %c0_202] : memref<2x32x128xf32, #tpu.memory_space<vmem>>, vector<2x16x128xf32>
    %280 = vector.shape_cast %279 : vector<2x16x128xf32> to vector<32x128xf32>
    %281 = vector.broadcast %278 : vector<1x128xf32> to vector<32x128xf32>
    %282 = arith.mulf %280, %281 : vector<32x128xf32>
    %283 = arith.addf %275, %282 : vector<32x128xf32>
    %c48 = arith.constant 48 : index
    %c0_203 = arith.constant 0 : index
    %284 = vector.load %arg4[%c48, %c0_203] : memref<102x128xf32, #tpu.memory_space<vmem>>, vector<1x128xf32>
    %285 = vector.shape_cast %284 : vector<1x128xf32> to vector<128xf32>
    %286 = vector.shape_cast %285 : vector<128xf32> to vector<1x128xf32>
    %c0_204 = arith.constant 0 : index
    %c10_205 = arith.constant 10 : index
    %c0_206 = arith.constant 0 : index
    %287 = vector.load %arg7[%c0_204, %c10_205, %c0_206] : memref<2x32x128xf32, #tpu.memory_space<vmem>>, vector<2x16x128xf32>
    %288 = vector.shape_cast %287 : vector<2x16x128xf32> to vector<32x128xf32>
    %289 = vector.broadcast %286 : vector<1x128xf32> to vector<32x128xf32>
    %290 = arith.mulf %288, %289 : vector<32x128xf32>
    %291 = arith.addf %283, %290 : vector<32x128xf32>
    %292 = vector.shape_cast %196 : vector<32x128xf32> to vector<2x16x128xf32>
    %c0_207 = arith.constant 0 : index
    %c8_208 = arith.constant 8 : index
    %c0_209 = arith.constant 0 : index
    %293 = vector.load %arg7[%c0_207, %c8_208, %c0_209] : memref<2x32x128xf32, #tpu.memory_space<vmem>>, vector<2x16x128xf32>
    tpu.vector_store %arg7[%c0_207, %c8_208, %c0_209], %292 {strides = array<i32>} : memref<2x32x128xf32, #tpu.memory_space<vmem>>, vector<2x16x128xf32>,
    %c29 = arith.constant 29 : index
    %c0_210 = arith.constant 0 : index
    %294 = vector.load %arg4[%c29, %c0_210] : memref<102x128xf32, #tpu.memory_space<vmem>>, vector<1x128xf32>
    %295 = vector.shape_cast %294 : vector<1x128xf32> to vector<128xf32>
    %296 = vector.shape_cast %295 : vector<128xf32> to vector<1x128xf32>
    %c0_211 = arith.constant 0 : index
    %c6_212 = arith.constant 6 : index
    %c0_213 = arith.constant 0 : index
    %297 = vector.load %arg7[%c0_211, %c6_212, %c0_213] : memref<2x32x128xf32, #tpu.memory_space<vmem>>, vector<2x16x128xf32>
    %298 = vector.shape_cast %297 : vector<2x16x128xf32> to vector<32x128xf32>
    %299 = vector.broadcast %296 : vector<1x128xf32> to vector<32x128xf32>
    %300 = arith.mulf %298, %299 : vector<32x128xf32>
    %301 = arith.addf %291, %300 : vector<32x128xf32>
    %c34 = arith.constant 34 : index
    %c0_214 = arith.constant 0 : index
    %302 = vector.load %arg4[%c34, %c0_214] : memref<102x128xf32, #tpu.memory_space<vmem>>, vector<1x128xf32>
    %303 = vector.shape_cast %302 : vector<1x128xf32> to vector<128xf32>
    %304 = vector.shape_cast %303 : vector<128xf32> to vector<1x128xf32>
    %c0_215 = arith.constant 0 : index
    %c7_216 = arith.constant 7 : index
    %c0_217 = arith.constant 0 : index
    %305 = vector.load %arg7[%c0_215, %c7_216, %c0_217] : memref<2x32x128xf32, #tpu.memory_space<vmem>>, vector<2x16x128xf32>
    %306 = vector.shape_cast %305 : vector<2x16x128xf32> to vector<32x128xf32>
    %307 = vector.broadcast %304 : vector<1x128xf32> to vector<32x128xf32>
    %308 = arith.mulf %306, %307 : vector<32x128xf32>
    %309 = arith.addf %301, %308 : vector<32x128xf32>
    %c39 = arith.constant 39 : index
    %c0_218 = arith.constant 0 : index
    %310 = vector.load %arg4[%c39, %c0_218] : memref<102x128xf32, #tpu.memory_space<vmem>>, vector<1x128xf32>
    %311 = vector.shape_cast %310 : vector<1x128xf32> to vector<128xf32>
    %312 = vector.shape_cast %311 : vector<128xf32> to vector<1x128xf32>
    %c0_219 = arith.constant 0 : index
    %c8_220 = arith.constant 8 : index
    %c0_221 = arith.constant 0 : index
    %313 = vector.load %arg7[%c0_219, %c8_220, %c0_221] : memref<2x32x128xf32, #tpu.memory_space<vmem>>, vector<2x16x128xf32>
    %314 = vector.shape_cast %313 : vector<2x16x128xf32> to vector<32x128xf32>
    %315 = vector.broadcast %312 : vector<1x128xf32> to vector<32x128xf32>
    %316 = arith.mulf %314, %315 : vector<32x128xf32>
    %317 = arith.addf %309, %316 : vector<32x128xf32>
    %c44 = arith.constant 44 : index
    %c0_222 = arith.constant 0 : index
    %318 = vector.load %arg4[%c44, %c0_222] : memref<102x128xf32, #tpu.memory_space<vmem>>, vector<1x128xf32>
    %319 = vector.shape_cast %318 : vector<1x128xf32> to vector<128xf32>
    %320 = vector.shape_cast %319 : vector<128xf32> to vector<1x128xf32>
    %c0_223 = arith.constant 0 : index
    %c9_224 = arith.constant 9 : index
    %c0_225 = arith.constant 0 : index
    %321 = vector.load %arg7[%c0_223, %c9_224, %c0_225] : memref<2x32x128xf32, #tpu.memory_space<vmem>>, vector<2x16x128xf32>
    %322 = vector.shape_cast %321 : vector<2x16x128xf32> to vector<32x128xf32>
    %323 = vector.broadcast %320 : vector<1x128xf32> to vector<32x128xf32>
    %324 = arith.mulf %322, %323 : vector<32x128xf32>
    %325 = arith.addf %317, %324 : vector<32x128xf32>
    %c49 = arith.constant 49 : index
    %c0_226 = arith.constant 0 : index
    %326 = vector.load %arg4[%c49, %c0_226] : memref<102x128xf32, #tpu.memory_space<vmem>>, vector<1x128xf32>
    %327 = vector.shape_cast %326 : vector<1x128xf32> to vector<128xf32>
    %328 = vector.shape_cast %327 : vector<128xf32> to vector<1x128xf32>
    %c0_227 = arith.constant 0 : index
    %c10_228 = arith.constant 10 : index
    %c0_229 = arith.constant 0 : index
    %329 = vector.load %arg7[%c0_227, %c10_228, %c0_229] : memref<2x32x128xf32, #tpu.memory_space<vmem>>, vector<2x16x128xf32>
    %330 = vector.shape_cast %329 : vector<2x16x128xf32> to vector<32x128xf32>
    %331 = vector.broadcast %328 : vector<1x128xf32> to vector<32x128xf32>
    %332 = arith.mulf %330, %331 : vector<32x128xf32>
    %333 = arith.addf %325, %332 : vector<32x128xf32>
    %c120_i32_230 = arith.constant 120 : i32
    %334 = tpu.dynamic_rotate %196 by %c120_i32_230 dim 1 : vector<32x128xf32>, i32 -> vector<32x128xf32>
    %c120_i32_231 = arith.constant 120 : i32
    %335 = vector.broadcast %c120_i32_231 : i32 to vector<32x128xi32>
    %336 = arith.cmpi slt, %1, %335 : vector<32x128xi32>
    %cst_232 = arith.constant 0.000000e+00 : f32
    %337 = vector.broadcast %cst_232 : f32 to vector<32x128xf32>
    %338 = arith.select %336, %334, %337 : vector<32x128xi1>, vector<32x128xf32>
    %339 = vector.shape_cast %338 : vector<32x128xf32> to vector<2x16x128xf32>
    %c0_233 = arith.constant 0 : index
    %c8_234 = arith.constant 8 : index
    %c0_235 = arith.constant 0 : index
    %340 = vector.load %arg7[%c0_233, %c8_234, %c0_235] : memref<2x32x128xf32, #tpu.memory_space<vmem>>, vector<2x16x128xf32>
    tpu.vector_store %arg7[%c0_233, %c8_234, %c0_235], %339 {strides = array<i32>} : memref<2x32x128xf32, #tpu.memory_space<vmem>>, vector<2x16x128xf32>,
    %c30 = arith.constant 30 : index
    %c0_236 = arith.constant 0 : index
    %341 = vector.load %arg4[%c30, %c0_236] : memref<102x128xf32, #tpu.memory_space<vmem>>, vector<1x128xf32>
    %342 = vector.shape_cast %341 : vector<1x128xf32> to vector<128xf32>
    %343 = vector.shape_cast %342 : vector<128xf32> to vector<1x128xf32>
    %c0_237 = arith.constant 0 : index
    %c6_238 = arith.constant 6 : index
    %c0_239 = arith.constant 0 : index
    %344 = vector.load %arg7[%c0_237, %c6_238, %c0_239] : memref<2x32x128xf32, #tpu.memory_space<vmem>>, vector<2x16x128xf32>
    %345 = vector.shape_cast %344 : vector<2x16x128xf32> to vector<32x128xf32>
    %346 = vector.broadcast %343 : vector<1x128xf32> to vector<32x128xf32>
    %347 = arith.mulf %345, %346 : vector<32x128xf32>
    %348 = arith.addf %333, %347 : vector<32x128xf32>
    %c35 = arith.constant 35 : index
    %c0_240 = arith.constant 0 : index
    %349 = vector.load %arg4[%c35, %c0_240] : memref<102x128xf32, #tpu.memory_space<vmem>>, vector<1x128xf32>
    %350 = vector.shape_cast %349 : vector<1x128xf32> to vector<128xf32>
    %351 = vector.shape_cast %350 : vector<128xf32> to vector<1x128xf32>
    %c0_241 = arith.constant 0 : index
    %c7_242 = arith.constant 7 : index
    %c0_243 = arith.constant 0 : index
    %352 = vector.load %arg7[%c0_241, %c7_242, %c0_243] : memref<2x32x128xf32, #tpu.memory_space<vmem>>, vector<2x16x128xf32>
    %353 = vector.shape_cast %352 : vector<2x16x128xf32> to vector<32x128xf32>
    %354 = vector.broadcast %351 : vector<1x128xf32> to vector<32x128xf32>
    %355 = arith.mulf %353, %354 : vector<32x128xf32>
    %356 = arith.addf %348, %355 : vector<32x128xf32>
    %c40 = arith.constant 40 : index
    %c0_244 = arith.constant 0 : index
    %357 = vector.load %arg4[%c40, %c0_244] : memref<102x128xf32, #tpu.memory_space<vmem>>, vector<1x128xf32>
    %358 = vector.shape_cast %357 : vector<1x128xf32> to vector<128xf32>
    %359 = vector.shape_cast %358 : vector<128xf32> to vector<1x128xf32>
    %c0_245 = arith.constant 0 : index
    %c8_246 = arith.constant 8 : index
    %c0_247 = arith.constant 0 : index
    %360 = vector.load %arg7[%c0_245, %c8_246, %c0_247] : memref<2x32x128xf32, #tpu.memory_space<vmem>>, vector<2x16x128xf32>
    %361 = vector.shape_cast %360 : vector<2x16x128xf32> to vector<32x128xf32>
    %362 = vector.broadcast %359 : vector<1x128xf32> to vector<32x128xf32>
    %363 = arith.mulf %361, %362 : vector<32x128xf32>
    %364 = arith.addf %356, %363 : vector<32x128xf32>
    %c45 = arith.constant 45 : index
    %c0_248 = arith.constant 0 : index
    %365 = vector.load %arg4[%c45, %c0_248] : memref<102x128xf32, #tpu.memory_space<vmem>>, vector<1x128xf32>
    %366 = vector.shape_cast %365 : vector<1x128xf32> to vector<128xf32>
    %367 = vector.shape_cast %366 : vector<128xf32> to vector<1x128xf32>
    %c0_249 = arith.constant 0 : index
    %c9_250 = arith.constant 9 : index
    %c0_251 = arith.constant 0 : index
    %368 = vector.load %arg7[%c0_249, %c9_250, %c0_251] : memref<2x32x128xf32, #tpu.memory_space<vmem>>, vector<2x16x128xf32>
    %369 = vector.shape_cast %368 : vector<2x16x128xf32> to vector<32x128xf32>
    %370 = vector.broadcast %367 : vector<1x128xf32> to vector<32x128xf32>
    %371 = arith.mulf %369, %370 : vector<32x128xf32>
    %372 = arith.addf %364, %371 : vector<32x128xf32>
    %c50 = arith.constant 50 : index
    %c0_252 = arith.constant 0 : index
    %373 = vector.load %arg4[%c50, %c0_252] : memref<102x128xf32, #tpu.memory_space<vmem>>, vector<1x128xf32>
    %374 = vector.shape_cast %373 : vector<1x128xf32> to vector<128xf32>
    %375 = vector.shape_cast %374 : vector<128xf32> to vector<1x128xf32>
    %c0_253 = arith.constant 0 : index
    %c10_254 = arith.constant 10 : index
    %c0_255 = arith.constant 0 : index
    %376 = vector.load %arg7[%c0_253, %c10_254, %c0_255] : memref<2x32x128xf32, #tpu.memory_space<vmem>>, vector<2x16x128xf32>
    %377 = vector.shape_cast %376 : vector<2x16x128xf32> to vector<32x128xf32>
    %378 = vector.broadcast %375 : vector<1x128xf32> to vector<32x128xf32>
    %379 = arith.mulf %377, %378 : vector<32x128xf32>
    %380 = arith.addf %372, %379 : vector<32x128xf32>
    %c112_i32 = arith.constant 112 : i32
    %381 = tpu.dynamic_rotate %196 by %c112_i32 dim 1 : vector<32x128xf32>, i32 -> vector<32x128xf32>
    %c112_i32_256 = arith.constant 112 : i32
    %382 = vector.broadcast %c112_i32_256 : i32 to vector<32x128xi32>
    %383 = arith.cmpi slt, %1, %382 : vector<32x128xi32>
    %cst_257 = arith.constant 0.000000e+00 : f32
    %384 = vector.broadcast %cst_257 : f32 to vector<32x128xf32>
    %385 = arith.select %383, %381, %384 : vector<32x128xi1>, vector<32x128xf32>
    %386 = vector.shape_cast %385 : vector<32x128xf32> to vector<2x16x128xf32>
    %c0_258 = arith.constant 0 : index
    %c8_259 = arith.constant 8 : index
    %c0_260 = arith.constant 0 : index
    %387 = vector.load %arg7[%c0_258, %c8_259, %c0_260] : memref<2x32x128xf32, #tpu.memory_space<vmem>>, vector<2x16x128xf32>
    tpu.vector_store %arg7[%c0_258, %c8_259, %c0_260], %386 {strides = array<i32>} : memref<2x32x128xf32, #tpu.memory_space<vmem>>, vector<2x16x128xf32>,
    %c31 = arith.constant 31 : index
    %c0_261 = arith.constant 0 : index
    %388 = vector.load %arg4[%c31, %c0_261] : memref<102x128xf32, #tpu.memory_space<vmem>>, vector<1x128xf32>
    %389 = vector.shape_cast %388 : vector<1x128xf32> to vector<128xf32>
    %390 = vector.shape_cast %389 : vector<128xf32> to vector<1x128xf32>
    %c0_262 = arith.constant 0 : index
    %c6_263 = arith.constant 6 : index
    %c0_264 = arith.constant 0 : index
    %391 = vector.load %arg7[%c0_262, %c6_263, %c0_264] : memref<2x32x128xf32, #tpu.memory_space<vmem>>, vector<2x16x128xf32>
    %392 = vector.shape_cast %391 : vector<2x16x128xf32> to vector<32x128xf32>
    %393 = vector.broadcast %390 : vector<1x128xf32> to vector<32x128xf32>
    %394 = arith.mulf %392, %393 : vector<32x128xf32>
    %395 = arith.addf %380, %394 : vector<32x128xf32>
    %c36 = arith.constant 36 : index
    %c0_265 = arith.constant 0 : index
    %396 = vector.load %arg4[%c36, %c0_265] : memref<102x128xf32, #tpu.memory_space<vmem>>, vector<1x128xf32>
    %397 = vector.shape_cast %396 : vector<1x128xf32> to vector<128xf32>
    %398 = vector.shape_cast %397 : vector<128xf32> to vector<1x128xf32>
    %c0_266 = arith.constant 0 : index
    %c7_267 = arith.constant 7 : index
    %c0_268 = arith.constant 0 : index
    %399 = vector.load %arg7[%c0_266, %c7_267, %c0_268] : memref<2x32x128xf32, #tpu.memory_space<vmem>>, vector<2x16x128xf32>
    %400 = vector.shape_cast %399 : vector<2x16x128xf32> to vector<32x128xf32>
    %401 = vector.broadcast %398 : vector<1x128xf32> to vector<32x128xf32>
    %402 = arith.mulf %400, %401 : vector<32x128xf32>
    %403 = arith.addf %395, %402 : vector<32x128xf32>
    %c41 = arith.constant 41 : index
    %c0_269 = arith.constant 0 : index
    %404 = vector.load %arg4[%c41, %c0_269] : memref<102x128xf32, #tpu.memory_space<vmem>>, vector<1x128xf32>
    %405 = vector.shape_cast %404 : vector<1x128xf32> to vector<128xf32>
    %406 = vector.shape_cast %405 : vector<128xf32> to vector<1x128xf32>
    %c0_270 = arith.constant 0 : index
    %c8_271 = arith.constant 8 : index
    %c0_272 = arith.constant 0 : index
    %407 = vector.load %arg7[%c0_270, %c8_271, %c0_272] : memref<2x32x128xf32, #tpu.memory_space<vmem>>, vector<2x16x128xf32>
    %408 = vector.shape_cast %407 : vector<2x16x128xf32> to vector<32x128xf32>
    %409 = vector.broadcast %406 : vector<1x128xf32> to vector<32x128xf32>
    %410 = arith.mulf %408, %409 : vector<32x128xf32>
    %411 = arith.addf %403, %410 : vector<32x128xf32>
    %c46 = arith.constant 46 : index
    %c0_273 = arith.constant 0 : index
    %412 = vector.load %arg4[%c46, %c0_273] : memref<102x128xf32, #tpu.memory_space<vmem>>, vector<1x128xf32>
    %413 = vector.shape_cast %412 : vector<1x128xf32> to vector<128xf32>
    %414 = vector.shape_cast %413 : vector<128xf32> to vector<1x128xf32>
    %c0_274 = arith.constant 0 : index
    %c9_275 = arith.constant 9 : index
    %c0_276 = arith.constant 0 : index
    %415 = vector.load %arg7[%c0_274, %c9_275, %c0_276] : memref<2x32x128xf32, #tpu.memory_space<vmem>>, vector<2x16x128xf32>
    %416 = vector.shape_cast %415 : vector<2x16x128xf32> to vector<32x128xf32>
    %417 = vector.broadcast %414 : vector<1x128xf32> to vector<32x128xf32>
    %418 = arith.mulf %416, %417 : vector<32x128xf32>
    %419 = arith.addf %411, %418 : vector<32x128xf32>
    %c51 = arith.constant 51 : index
    %c0_277 = arith.constant 0 : index
    %420 = vector.load %arg4[%c51, %c0_277] : memref<102x128xf32, #tpu.memory_space<vmem>>, vector<1x128xf32>
    %421 = vector.shape_cast %420 : vector<1x128xf32> to vector<128xf32>
    %422 = vector.shape_cast %421 : vector<128xf32> to vector<1x128xf32>
    %c0_278 = arith.constant 0 : index
    %c10_279 = arith.constant 10 : index
    %c0_280 = arith.constant 0 : index
    %423 = vector.load %arg7[%c0_278, %c10_279, %c0_280] : memref<2x32x128xf32, #tpu.memory_space<vmem>>, vector<2x16x128xf32>
    %424 = vector.shape_cast %423 : vector<2x16x128xf32> to vector<32x128xf32>
    %425 = vector.broadcast %422 : vector<1x128xf32> to vector<32x128xf32>
    %426 = arith.mulf %424, %425 : vector<32x128xf32>
    %427 = arith.addf %419, %426 : vector<32x128xf32>
    %428 = arith.truncf %427 : vector<32x128xf32> to vector<32x128xbf16>
    %c3_281 = arith.constant 3 : index
    %c0_282 = arith.constant 0 : index
    %c0_283 = arith.constant 0 : index
    %429 = vector.load %arg5[%c3_281, %c0_282, %c0_283] : memref<6x128x128xbf16, #tpu.memory_space<vmem>>, vector<1x128x128xbf16>
    %430 = vector.shape_cast %429 : vector<1x128x128xbf16> to vector<128x128xbf16>
    %cst_284 = arith.constant dense<0.000000e+00> : vector<32x128xf32>
    %431 = tpu.matmul %428, %430, %cst_284 {dimension_numbers = #tpu.dot_dimension_numbers<[1], [0], [0], [1], [0, 0, 1, 1], [], []>} : vector<32x128xbf16>, vector<128x128xbf16>, vector<32x128xf32> -> vector<32x128xf32>
    %cst_285 = arith.constant 0.000000e+00 : f32
    %432 = vector.broadcast %cst_285 : f32 to vector<32x128xf32>
    %433 = arith.maximumf %0, %432 : vector<32x128xf32>
    %cst_286 = arith.constant 0.000000e+00 : f32
    %434 = vector.broadcast %cst_286 : f32 to vector<32x128xf32>
    %c16_i32_287 = arith.constant 16 : i32
    %435 = tpu.dynamic_rotate %433 by %c16_i32_287 dim 1 : vector<32x128xf32>, i32 -> vector<32x128xf32>
    %c16_i32_288 = arith.constant 16 : i32
    %436 = vector.broadcast %c16_i32_288 : i32 to vector<32x128xi32>
    %437 = arith.cmpi sge, %1, %436 : vector<32x128xi32>
    %cst_289 = arith.constant 0.000000e+00 : f32
    %438 = vector.broadcast %cst_289 : f32 to vector<32x128xf32>
    %439 = arith.select %437, %435, %438 : vector<32x128xi1>, vector<32x128xf32>
    %440 = vector.shape_cast %439 : vector<32x128xf32> to vector<2x16x128xf32>
    %c0_290 = arith.constant 0 : index
    %c8_291 = arith.constant 8 : index
    %c0_292 = arith.constant 0 : index
    %441 = vector.load %arg7[%c0_290, %c8_291, %c0_292] : memref<2x32x128xf32, #tpu.memory_space<vmem>>, vector<2x16x128xf32>
    tpu.vector_store %arg7[%c0_290, %c8_291, %c0_292], %440 {strides = array<i32>} : memref<2x32x128xf32, #tpu.memory_space<vmem>>, vector<2x16x128xf32>,
    %c18 = arith.constant 18 : index
    %c0_293 = arith.constant 0 : index
    %442 = vector.load %arg4[%c18, %c0_293] : memref<102x128xf32, #tpu.memory_space<vmem>>, vector<1x128xf32>
    %443 = vector.shape_cast %442 : vector<1x128xf32> to vector<128xf32>
    %444 = vector.shape_cast %443 : vector<128xf32> to vector<1x128xf32>
    %c0_294 = arith.constant 0 : index
    %c6_295 = arith.constant 6 : index
    %c0_296 = arith.constant 0 : index
    %445 = vector.load %arg7[%c0_294, %c6_295, %c0_296] : memref<2x32x128xf32, #tpu.memory_space<vmem>>, vector<2x16x128xf32>
    %446 = vector.shape_cast %445 : vector<2x16x128xf32> to vector<32x128xf32>
    %447 = vector.broadcast %444 : vector<1x128xf32> to vector<32x128xf32>
    %448 = arith.mulf %446, %447 : vector<32x128xf32>
    %449 = arith.addf %434, %448 : vector<32x128xf32>
    %c21 = arith.constant 21 : index
    %c0_297 = arith.constant 0 : index
    %450 = vector.load %arg4[%c21, %c0_297] : memref<102x128xf32, #tpu.memory_space<vmem>>, vector<1x128xf32>
    %451 = vector.shape_cast %450 : vector<1x128xf32> to vector<128xf32>
    %452 = vector.shape_cast %451 : vector<128xf32> to vector<1x128xf32>
    %c0_298 = arith.constant 0 : index
    %c8_299 = arith.constant 8 : index
    %c0_300 = arith.constant 0 : index
    %453 = vector.load %arg7[%c0_298, %c8_299, %c0_300] : memref<2x32x128xf32, #tpu.memory_space<vmem>>, vector<2x16x128xf32>
    %454 = vector.shape_cast %453 : vector<2x16x128xf32> to vector<32x128xf32>
    %455 = vector.broadcast %452 : vector<1x128xf32> to vector<32x128xf32>
    %456 = arith.mulf %454, %455 : vector<32x128xf32>
    %457 = arith.addf %449, %456 : vector<32x128xf32>
    %c24_301 = arith.constant 24 : index
    %c0_302 = arith.constant 0 : index
    %458 = vector.load %arg4[%c24_301, %c0_302] : memref<102x128xf32, #tpu.memory_space<vmem>>, vector<1x128xf32>
    %459 = vector.shape_cast %458 : vector<1x128xf32> to vector<128xf32>
    %460 = vector.shape_cast %459 : vector<128xf32> to vector<1x128xf32>
    %c0_303 = arith.constant 0 : index
    %c10_304 = arith.constant 10 : index
    %c0_305 = arith.constant 0 : index
    %461 = vector.load %arg7[%c0_303, %c10_304, %c0_305] : memref<2x32x128xf32, #tpu.memory_space<vmem>>, vector<2x16x128xf32>
    %462 = vector.shape_cast %461 : vector<2x16x128xf32> to vector<32x128xf32>
    %463 = vector.broadcast %460 : vector<1x128xf32> to vector<32x128xf32>
    %464 = arith.mulf %462, %463 : vector<32x128xf32>
    %465 = arith.addf %457, %464 : vector<32x128xf32>
    %466 = vector.shape_cast %433 : vector<32x128xf32> to vector<2x16x128xf32>
    %c0_306 = arith.constant 0 : index
    %c8_307 = arith.constant 8 : index
    %c0_308 = arith.constant 0 : index
    %467 = vector.load %arg7[%c0_306, %c8_307, %c0_308] : memref<2x32x128xf32, #tpu.memory_space<vmem>>, vector<2x16x128xf32>
    tpu.vector_store %arg7[%c0_306, %c8_307, %c0_308], %466 {strides = array<i32>} : memref<2x32x128xf32, #tpu.memory_space<vmem>>, vector<2x16x128xf32>,
    %c19 = arith.constant 19 : index
    %c0_309 = arith.constant 0 : index
    %468 = vector.load %arg4[%c19, %c0_309] : memref<102x128xf32, #tpu.memory_space<vmem>>, vector<1x128xf32>
    %469 = vector.shape_cast %468 : vector<1x128xf32> to vector<128xf32>
    %470 = vector.shape_cast %469 : vector<128xf32> to vector<1x128xf32>
    %c0_310 = arith.constant 0 : index
    %c6_311 = arith.constant 6 : index
    %c0_312 = arith.constant 0 : index
    %471 = vector.load %arg7[%c0_310, %c6_311, %c0_312] : memref<2x32x128xf32, #tpu.memory_space<vmem>>, vector<2x16x128xf32>
    %472 = vector.shape_cast %471 : vector<2x16x128xf32> to vector<32x128xf32>
    %473 = vector.broadcast %470 : vector<1x128xf32> to vector<32x128xf32>
    %474 = arith.mulf %472, %473 : vector<32x128xf32>
    %475 = arith.addf %465, %474 : vector<32x128xf32>
    %c22 = arith.constant 22 : index
    %c0_313 = arith.constant 0 : index
    %476 = vector.load %arg4[%c22, %c0_313] : memref<102x128xf32, #tpu.memory_space<vmem>>, vector<1x128xf32>
    %477 = vector.shape_cast %476 : vector<1x128xf32> to vector<128xf32>
    %478 = vector.shape_cast %477 : vector<128xf32> to vector<1x128xf32>
    %c0_314 = arith.constant 0 : index
    %c8_315 = arith.constant 8 : index
    %c0_316 = arith.constant 0 : index
    %479 = vector.load %arg7[%c0_314, %c8_315, %c0_316] : memref<2x32x128xf32, #tpu.memory_space<vmem>>, vector<2x16x128xf32>
    %480 = vector.shape_cast %479 : vector<2x16x128xf32> to vector<32x128xf32>
    %481 = vector.broadcast %478 : vector<1x128xf32> to vector<32x128xf32>
    %482 = arith.mulf %480, %481 : vector<32x128xf32>
    %483 = arith.addf %475, %482 : vector<32x128xf32>
    %c25 = arith.constant 25 : index
    %c0_317 = arith.constant 0 : index
    %484 = vector.load %arg4[%c25, %c0_317] : memref<102x128xf32, #tpu.memory_space<vmem>>, vector<1x128xf32>
    %485 = vector.shape_cast %484 : vector<1x128xf32> to vector<128xf32>
    %486 = vector.shape_cast %485 : vector<128xf32> to vector<1x128xf32>
    %c0_318 = arith.constant 0 : index
    %c10_319 = arith.constant 10 : index
    %c0_320 = arith.constant 0 : index
    %487 = vector.load %arg7[%c0_318, %c10_319, %c0_320] : memref<2x32x128xf32, #tpu.memory_space<vmem>>, vector<2x16x128xf32>
    %488 = vector.shape_cast %487 : vector<2x16x128xf32> to vector<32x128xf32>
    %489 = vector.broadcast %486 : vector<1x128xf32> to vector<32x128xf32>
    %490 = arith.mulf %488, %489 : vector<32x128xf32>
    %491 = arith.addf %483, %490 : vector<32x128xf32>
    %c112_i32_321 = arith.constant 112 : i32
    %492 = tpu.dynamic_rotate %433 by %c112_i32_321 dim 1 : vector<32x128xf32>, i32 -> vector<32x128xf32>
    %c112_i32_322 = arith.constant 112 : i32
    %493 = vector.broadcast %c112_i32_322 : i32 to vector<32x128xi32>
    %494 = arith.cmpi slt, %1, %493 : vector<32x128xi32>
    %cst_323 = arith.constant 0.000000e+00 : f32
    %495 = vector.broadcast %cst_323 : f32 to vector<32x128xf32>
    %496 = arith.select %494, %492, %495 : vector<32x128xi1>, vector<32x128xf32>
    %497 = vector.shape_cast %496 : vector<32x128xf32> to vector<2x16x128xf32>
    %c0_324 = arith.constant 0 : index
    %c8_325 = arith.constant 8 : index
    %c0_326 = arith.constant 0 : index
    %498 = vector.load %arg7[%c0_324, %c8_325, %c0_326] : memref<2x32x128xf32, #tpu.memory_space<vmem>>, vector<2x16x128xf32>
    tpu.vector_store %arg7[%c0_324, %c8_325, %c0_326], %497 {strides = array<i32>} : memref<2x32x128xf32, #tpu.memory_space<vmem>>, vector<2x16x128xf32>,
    %c20 = arith.constant 20 : index
    %c0_327 = arith.constant 0 : index
    %499 = vector.load %arg4[%c20, %c0_327] : memref<102x128xf32, #tpu.memory_space<vmem>>, vector<1x128xf32>
    %500 = vector.shape_cast %499 : vector<1x128xf32> to vector<128xf32>
    %501 = vector.shape_cast %500 : vector<128xf32> to vector<1x128xf32>
    %c0_328 = arith.constant 0 : index
    %c6_329 = arith.constant 6 : index
    %c0_330 = arith.constant 0 : index
    %502 = vector.load %arg7[%c0_328, %c6_329, %c0_330] : memref<2x32x128xf32, #tpu.memory_space<vmem>>, vector<2x16x128xf32>
    %503 = vector.shape_cast %502 : vector<2x16x128xf32> to vector<32x128xf32>
    %504 = vector.broadcast %501 : vector<1x128xf32> to vector<32x128xf32>
    %505 = arith.mulf %503, %504 : vector<32x128xf32>
    %506 = arith.addf %491, %505 : vector<32x128xf32>
    %c23 = arith.constant 23 : index
    %c0_331 = arith.constant 0 : index
    %507 = vector.load %arg4[%c23, %c0_331] : memref<102x128xf32, #tpu.memory_space<vmem>>, vector<1x128xf32>
    %508 = vector.shape_cast %507 : vector<1x128xf32> to vector<128xf32>
    %509 = vector.shape_cast %508 : vector<128xf32> to vector<1x128xf32>
    %c0_332 = arith.constant 0 : index
    %c8_333 = arith.constant 8 : index
    %c0_334 = arith.constant 0 : index
    %510 = vector.load %arg7[%c0_332, %c8_333, %c0_334] : memref<2x32x128xf32, #tpu.memory_space<vmem>>, vector<2x16x128xf32>
    %511 = vector.shape_cast %510 : vector<2x16x128xf32> to vector<32x128xf32>
    %512 = vector.broadcast %509 : vector<1x128xf32> to vector<32x128xf32>
    %513 = arith.mulf %511, %512 : vector<32x128xf32>
    %514 = arith.addf %506, %513 : vector<32x128xf32>
    %c26 = arith.constant 26 : index
    %c0_335 = arith.constant 0 : index
    %515 = vector.load %arg4[%c26, %c0_335] : memref<102x128xf32, #tpu.memory_space<vmem>>, vector<1x128xf32>
    %516 = vector.shape_cast %515 : vector<1x128xf32> to vector<128xf32>
    %517 = vector.shape_cast %516 : vector<128xf32> to vector<1x128xf32>
    %c0_336 = arith.constant 0 : index
    %c10_337 = arith.constant 10 : index
    %c0_338 = arith.constant 0 : index
    %518 = vector.load %arg7[%c0_336, %c10_337, %c0_338] : memref<2x32x128xf32, #tpu.memory_space<vmem>>, vector<2x16x128xf32>
    %519 = vector.shape_cast %518 : vector<2x16x128xf32> to vector<32x128xf32>
    %520 = vector.broadcast %517 : vector<1x128xf32> to vector<32x128xf32>
    %521 = arith.mulf %519, %520 : vector<32x128xf32>
    %522 = arith.addf %514, %521 : vector<32x128xf32>
    %523 = arith.truncf %522 : vector<32x128xf32> to vector<32x128xbf16>
    %c2_339 = arith.constant 2 : index
    %c0_340 = arith.constant 0 : index
    %c0_341 = arith.constant 0 : index
    %524 = vector.load %arg5[%c2_339, %c0_340, %c0_341] : memref<6x128x128xbf16, #tpu.memory_space<vmem>>, vector<1x128x128xbf16>
    %525 = vector.shape_cast %524 : vector<1x128x128xbf16> to vector<128x128xbf16>
    %cst_342 = arith.constant dense<0.000000e+00> : vector<32x128xf32>
    %526 = tpu.matmul %523, %525, %cst_342 {dimension_numbers = #tpu.dot_dimension_numbers<[1], [0], [0], [1], [0, 0, 1, 1], [], []>} : vector<32x128xbf16>, vector<128x128xbf16>, vector<32x128xf32> -> vector<32x128xf32>
    %cst_343 = arith.constant 0.000000e+00 : f32
    %527 = vector.broadcast %cst_343 : f32 to vector<32x128xf32>
    %528 = arith.maximumf %0, %527 : vector<32x128xf32>
    %cst_344 = arith.constant 0.000000e+00 : f32
    %529 = vector.broadcast %cst_344 : f32 to vector<32x128xf32>
    %c32_i32 = arith.constant 32 : i32
    %530 = tpu.dynamic_rotate %528 by %c32_i32 dim 1 : vector<32x128xf32>, i32 -> vector<32x128xf32>
    %c32_i32_345 = arith.constant 32 : i32
    %531 = vector.broadcast %c32_i32_345 : i32 to vector<32x128xi32>
    %532 = arith.cmpi sge, %1, %531 : vector<32x128xi32>
    %cst_346 = arith.constant 0.000000e+00 : f32
    %533 = vector.broadcast %cst_346 : f32 to vector<32x128xf32>
    %534 = arith.select %532, %530, %533 : vector<32x128xi1>, vector<32x128xf32>
    %535 = vector.shape_cast %534 : vector<32x128xf32> to vector<2x16x128xf32>
    %c0_347 = arith.constant 0 : index
    %c8_348 = arith.constant 8 : index
    %c0_349 = arith.constant 0 : index
    %536 = vector.load %arg7[%c0_347, %c8_348, %c0_349] : memref<2x32x128xf32, #tpu.memory_space<vmem>>, vector<2x16x128xf32>
    tpu.vector_store %arg7[%c0_347, %c8_348, %c0_349], %535 {strides = array<i32>} : memref<2x32x128xf32, #tpu.memory_space<vmem>>, vector<2x16x128xf32>,
    %c77 = arith.constant 77 : index
    %c0_350 = arith.constant 0 : index
    %537 = vector.load %arg4[%c77, %c0_350] : memref<102x128xf32, #tpu.memory_space<vmem>>, vector<1x128xf32>
    %538 = vector.shape_cast %537 : vector<1x128xf32> to vector<128xf32>
    %539 = vector.shape_cast %538 : vector<128xf32> to vector<1x128xf32>
    %c0_351 = arith.constant 0 : index
    %c4_352 = arith.constant 4 : index
    %c0_353 = arith.constant 0 : index
    %540 = vector.load %arg7[%c0_351, %c4_352, %c0_353] : memref<2x32x128xf32, #tpu.memory_space<vmem>>, vector<2x16x128xf32>
    %541 = vector.shape_cast %540 : vector<2x16x128xf32> to vector<32x128xf32>
    %542 = vector.broadcast %539 : vector<1x128xf32> to vector<32x128xf32>
    %543 = arith.mulf %541, %542 : vector<32x128xf32>
    %544 = arith.addf %529, %543 : vector<32x128xf32>
    %c82 = arith.constant 82 : index
    %c0_354 = arith.constant 0 : index
    %545 = vector.load %arg4[%c82, %c0_354] : memref<102x128xf32, #tpu.memory_space<vmem>>, vector<1x128xf32>
    %546 = vector.shape_cast %545 : vector<1x128xf32> to vector<128xf32>
    %547 = vector.shape_cast %546 : vector<128xf32> to vector<1x128xf32>
    %c0_355 = arith.constant 0 : index
    %c6_356 = arith.constant 6 : index
    %c0_357 = arith.constant 0 : index
    %548 = vector.load %arg7[%c0_355, %c6_356, %c0_357] : memref<2x32x128xf32, #tpu.memory_space<vmem>>, vector<2x16x128xf32>
    %549 = vector.shape_cast %548 : vector<2x16x128xf32> to vector<32x128xf32>
    %550 = vector.broadcast %547 : vector<1x128xf32> to vector<32x128xf32>
    %551 = arith.mulf %549, %550 : vector<32x128xf32>
    %552 = arith.addf %544, %551 : vector<32x128xf32>
    %c87 = arith.constant 87 : index
    %c0_358 = arith.constant 0 : index
    %553 = vector.load %arg4[%c87, %c0_358] : memref<102x128xf32, #tpu.memory_space<vmem>>, vector<1x128xf32>
    %554 = vector.shape_cast %553 : vector<1x128xf32> to vector<128xf32>
    %555 = vector.shape_cast %554 : vector<128xf32> to vector<1x128xf32>
    %c0_359 = arith.constant 0 : index
    %c8_360 = arith.constant 8 : index
    %c0_361 = arith.constant 0 : index
    %556 = vector.load %arg7[%c0_359, %c8_360, %c0_361] : memref<2x32x128xf32, #tpu.memory_space<vmem>>, vector<2x16x128xf32>
    %557 = vector.shape_cast %556 : vector<2x16x128xf32> to vector<32x128xf32>
    %558 = vector.broadcast %555 : vector<1x128xf32> to vector<32x128xf32>
    %559 = arith.mulf %557, %558 : vector<32x128xf32>
    %560 = arith.addf %552, %559 : vector<32x128xf32>
    %c92 = arith.constant 92 : index
    %c0_362 = arith.constant 0 : index
    %561 = vector.load %arg4[%c92, %c0_362] : memref<102x128xf32, #tpu.memory_space<vmem>>, vector<1x128xf32>
    %562 = vector.shape_cast %561 : vector<1x128xf32> to vector<128xf32>
    %563 = vector.shape_cast %562 : vector<128xf32> to vector<1x128xf32>
    %c0_363 = arith.constant 0 : index
    %c10_364 = arith.constant 10 : index
    %c0_365 = arith.constant 0 : index
    %564 = vector.load %arg7[%c0_363, %c10_364, %c0_365] : memref<2x32x128xf32, #tpu.memory_space<vmem>>, vector<2x16x128xf32>
    %565 = vector.shape_cast %564 : vector<2x16x128xf32> to vector<32x128xf32>
    %566 = vector.broadcast %563 : vector<1x128xf32> to vector<32x128xf32>
    %567 = arith.mulf %565, %566 : vector<32x128xf32>
    %568 = arith.addf %560, %567 : vector<32x128xf32>
    %c97 = arith.constant 97 : index
    %c0_366 = arith.constant 0 : index
    %569 = vector.load %arg4[%c97, %c0_366] : memref<102x128xf32, #tpu.memory_space<vmem>>, vector<1x128xf32>
    %570 = vector.shape_cast %569 : vector<1x128xf32> to vector<128xf32>
    %571 = vector.shape_cast %570 : vector<128xf32> to vector<1x128xf32>
    %c0_367 = arith.constant 0 : index
    %c12 = arith.constant 12 : index
    %c0_368 = arith.constant 0 : index
    %572 = vector.load %arg7[%c0_367, %c12, %c0_368] : memref<2x32x128xf32, #tpu.memory_space<vmem>>, vector<2x16x128xf32>
    %573 = vector.shape_cast %572 : vector<2x16x128xf32> to vector<32x128xf32>
    %574 = vector.broadcast %571 : vector<1x128xf32> to vector<32x128xf32>
    %575 = arith.mulf %573, %574 : vector<32x128xf32>
    %576 = arith.addf %568, %575 : vector<32x128xf32>
    %c16_i32_369 = arith.constant 16 : i32
    %577 = tpu.dynamic_rotate %528 by %c16_i32_369 dim 1 : vector<32x128xf32>, i32 -> vector<32x128xf32>
    %c16_i32_370 = arith.constant 16 : i32
    %578 = vector.broadcast %c16_i32_370 : i32 to vector<32x128xi32>
    %579 = arith.cmpi sge, %1, %578 : vector<32x128xi32>
    %cst_371 = arith.constant 0.000000e+00 : f32
    %580 = vector.broadcast %cst_371 : f32 to vector<32x128xf32>
    %581 = arith.select %579, %577, %580 : vector<32x128xi1>, vector<32x128xf32>
    %582 = vector.shape_cast %581 : vector<32x128xf32> to vector<2x16x128xf32>
    %c0_372 = arith.constant 0 : index
    %c8_373 = arith.constant 8 : index
    %c0_374 = arith.constant 0 : index
    %583 = vector.load %arg7[%c0_372, %c8_373, %c0_374] : memref<2x32x128xf32, #tpu.memory_space<vmem>>, vector<2x16x128xf32>
    tpu.vector_store %arg7[%c0_372, %c8_373, %c0_374], %582 {strides = array<i32>} : memref<2x32x128xf32, #tpu.memory_space<vmem>>, vector<2x16x128xf32>,
    %c78 = arith.constant 78 : index
    %c0_375 = arith.constant 0 : index
    %584 = vector.load %arg4[%c78, %c0_375] : memref<102x128xf32, #tpu.memory_space<vmem>>, vector<1x128xf32>
    %585 = vector.shape_cast %584 : vector<1x128xf32> to vector<128xf32>
    %586 = vector.shape_cast %585 : vector<128xf32> to vector<1x128xf32>
    %c0_376 = arith.constant 0 : index
    %c4_377 = arith.constant 4 : index
    %c0_378 = arith.constant 0 : index
    %587 = vector.load %arg7[%c0_376, %c4_377, %c0_378] : memref<2x32x128xf32, #tpu.memory_space<vmem>>, vector<2x16x128xf32>
    %588 = vector.shape_cast %587 : vector<2x16x128xf32> to vector<32x128xf32>
    %589 = vector.broadcast %586 : vector<1x128xf32> to vector<32x128xf32>
    %590 = arith.mulf %588, %589 : vector<32x128xf32>
    %591 = arith.addf %576, %590 : vector<32x128xf32>
    %c83 = arith.constant 83 : index
    %c0_379 = arith.constant 0 : index
    %592 = vector.load %arg4[%c83, %c0_379] : memref<102x128xf32, #tpu.memory_space<vmem>>, vector<1x128xf32>
    %593 = vector.shape_cast %592 : vector<1x128xf32> to vector<128xf32>
    %594 = vector.shape_cast %593 : vector<128xf32> to vector<1x128xf32>
    %c0_380 = arith.constant 0 : index
    %c6_381 = arith.constant 6 : index
    %c0_382 = arith.constant 0 : index
    %595 = vector.load %arg7[%c0_380, %c6_381, %c0_382] : memref<2x32x128xf32, #tpu.memory_space<vmem>>, vector<2x16x128xf32>
    %596 = vector.shape_cast %595 : vector<2x16x128xf32> to vector<32x128xf32>
    %597 = vector.broadcast %594 : vector<1x128xf32> to vector<32x128xf32>
    %598 = arith.mulf %596, %597 : vector<32x128xf32>
    %599 = arith.addf %591, %598 : vector<32x128xf32>
    %c88 = arith.constant 88 : index
    %c0_383 = arith.constant 0 : index
    %600 = vector.load %arg4[%c88, %c0_383] : memref<102x128xf32, #tpu.memory_space<vmem>>, vector<1x128xf32>
    %601 = vector.shape_cast %600 : vector<1x128xf32> to vector<128xf32>
    %602 = vector.shape_cast %601 : vector<128xf32> to vector<1x128xf32>
    %c0_384 = arith.constant 0 : index
    %c8_385 = arith.constant 8 : index
    %c0_386 = arith.constant 0 : index
    %603 = vector.load %arg7[%c0_384, %c8_385, %c0_386] : memref<2x32x128xf32, #tpu.memory_space<vmem>>, vector<2x16x128xf32>
    %604 = vector.shape_cast %603 : vector<2x16x128xf32> to vector<32x128xf32>
    %605 = vector.broadcast %602 : vector<1x128xf32> to vector<32x128xf32>
    %606 = arith.mulf %604, %605 : vector<32x128xf32>
    %607 = arith.addf %599, %606 : vector<32x128xf32>
    %c93 = arith.constant 93 : index
    %c0_387 = arith.constant 0 : index
    %608 = vector.load %arg4[%c93, %c0_387] : memref<102x128xf32, #tpu.memory_space<vmem>>, vector<1x128xf32>
    %609 = vector.shape_cast %608 : vector<1x128xf32> to vector<128xf32>
    %610 = vector.shape_cast %609 : vector<128xf32> to vector<1x128xf32>
    %c0_388 = arith.constant 0 : index
    %c10_389 = arith.constant 10 : index
    %c0_390 = arith.constant 0 : index
    %611 = vector.load %arg7[%c0_388, %c10_389, %c0_390] : memref<2x32x128xf32, #tpu.memory_space<vmem>>, vector<2x16x128xf32>
    %612 = vector.shape_cast %611 : vector<2x16x128xf32> to vector<32x128xf32>
    %613 = vector.broadcast %610 : vector<1x128xf32> to vector<32x128xf32>
    %614 = arith.mulf %612, %613 : vector<32x128xf32>
    %615 = arith.addf %607, %614 : vector<32x128xf32>
    %c98 = arith.constant 98 : index
    %c0_391 = arith.constant 0 : index
    %616 = vector.load %arg4[%c98, %c0_391] : memref<102x128xf32, #tpu.memory_space<vmem>>, vector<1x128xf32>
    %617 = vector.shape_cast %616 : vector<1x128xf32> to vector<128xf32>
    %618 = vector.shape_cast %617 : vector<128xf32> to vector<1x128xf32>
    %c0_392 = arith.constant 0 : index
    %c12_393 = arith.constant 12 : index
    %c0_394 = arith.constant 0 : index
    %619 = vector.load %arg7[%c0_392, %c12_393, %c0_394] : memref<2x32x128xf32, #tpu.memory_space<vmem>>, vector<2x16x128xf32>
    %620 = vector.shape_cast %619 : vector<2x16x128xf32> to vector<32x128xf32>
    %621 = vector.broadcast %618 : vector<1x128xf32> to vector<32x128xf32>
    %622 = arith.mulf %620, %621 : vector<32x128xf32>
    %623 = arith.addf %615, %622 : vector<32x128xf32>
    %624 = vector.shape_cast %528 : vector<32x128xf32> to vector<2x16x128xf32>
    %c0_395 = arith.constant 0 : index
    %c8_396 = arith.constant 8 : index
    %c0_397 = arith.constant 0 : index
    %625 = vector.load %arg7[%c0_395, %c8_396, %c0_397] : memref<2x32x128xf32, #tpu.memory_space<vmem>>, vector<2x16x128xf32>
    tpu.vector_store %arg7[%c0_395, %c8_396, %c0_397], %624 {strides = array<i32>} : memref<2x32x128xf32, #tpu.memory_space<vmem>>, vector<2x16x128xf32>,
    %c79 = arith.constant 79 : index
    %c0_398 = arith.constant 0 : index
    %626 = vector.load %arg4[%c79, %c0_398] : memref<102x128xf32, #tpu.memory_space<vmem>>, vector<1x128xf32>
    %627 = vector.shape_cast %626 : vector<1x128xf32> to vector<128xf32>
    %628 = vector.shape_cast %627 : vector<128xf32> to vector<1x128xf32>
    %c0_399 = arith.constant 0 : index
    %c4_400 = arith.constant 4 : index
    %c0_401 = arith.constant 0 : index
    %629 = vector.load %arg7[%c0_399, %c4_400, %c0_401] : memref<2x32x128xf32, #tpu.memory_space<vmem>>, vector<2x16x128xf32>
    %630 = vector.shape_cast %629 : vector<2x16x128xf32> to vector<32x128xf32>
    %631 = vector.broadcast %628 : vector<1x128xf32> to vector<32x128xf32>
    %632 = arith.mulf %630, %631 : vector<32x128xf32>
    %633 = arith.addf %623, %632 : vector<32x128xf32>
    %c84 = arith.constant 84 : index
    %c0_402 = arith.constant 0 : index
    %634 = vector.load %arg4[%c84, %c0_402] : memref<102x128xf32, #tpu.memory_space<vmem>>, vector<1x128xf32>
    %635 = vector.shape_cast %634 : vector<1x128xf32> to vector<128xf32>
    %636 = vector.shape_cast %635 : vector<128xf32> to vector<1x128xf32>
    %c0_403 = arith.constant 0 : index
    %c6_404 = arith.constant 6 : index
    %c0_405 = arith.constant 0 : index
    %637 = vector.load %arg7[%c0_403, %c6_404, %c0_405] : memref<2x32x128xf32, #tpu.memory_space<vmem>>, vector<2x16x128xf32>
    %638 = vector.shape_cast %637 : vector<2x16x128xf32> to vector<32x128xf32>
    %639 = vector.broadcast %636 : vector<1x128xf32> to vector<32x128xf32>
    %640 = arith.mulf %638, %639 : vector<32x128xf32>
    %641 = arith.addf %633, %640 : vector<32x128xf32>
    %c89 = arith.constant 89 : index
    %c0_406 = arith.constant 0 : index
    %642 = vector.load %arg4[%c89, %c0_406] : memref<102x128xf32, #tpu.memory_space<vmem>>, vector<1x128xf32>
    %643 = vector.shape_cast %642 : vector<1x128xf32> to vector<128xf32>
    %644 = vector.shape_cast %643 : vector<128xf32> to vector<1x128xf32>
    %c0_407 = arith.constant 0 : index
    %c8_408 = arith.constant 8 : index
    %c0_409 = arith.constant 0 : index
    %645 = vector.load %arg7[%c0_407, %c8_408, %c0_409] : memref<2x32x128xf32, #tpu.memory_space<vmem>>, vector<2x16x128xf32>
    %646 = vector.shape_cast %645 : vector<2x16x128xf32> to vector<32x128xf32>
    %647 = vector.broadcast %644 : vector<1x128xf32> to vector<32x128xf32>
    %648 = arith.mulf %646, %647 : vector<32x128xf32>
    %649 = arith.addf %641, %648 : vector<32x128xf32>
    %c94 = arith.constant 94 : index
    %c0_410 = arith.constant 0 : index
    %650 = vector.load %arg4[%c94, %c0_410] : memref<102x128xf32, #tpu.memory_space<vmem>>, vector<1x128xf32>
    %651 = vector.shape_cast %650 : vector<1x128xf32> to vector<128xf32>
    %652 = vector.shape_cast %651 : vector<128xf32> to vector<1x128xf32>
    %c0_411 = arith.constant 0 : index
    %c10_412 = arith.constant 10 : index
    %c0_413 = arith.constant 0 : index
    %653 = vector.load %arg7[%c0_411, %c10_412, %c0_413] : memref<2x32x128xf32, #tpu.memory_space<vmem>>, vector<2x16x128xf32>
    %654 = vector.shape_cast %653 : vector<2x16x128xf32> to vector<32x128xf32>
    %655 = vector.broadcast %652 : vector<1x128xf32> to vector<32x128xf32>
    %656 = arith.mulf %654, %655 : vector<32x128xf32>
    %657 = arith.addf %649, %656 : vector<32x128xf32>
    %c99 = arith.constant 99 : index
    %c0_414 = arith.constant 0 : index
    %658 = vector.load %arg4[%c99, %c0_414] : memref<102x128xf32, #tpu.memory_space<vmem>>, vector<1x128xf32>
    %659 = vector.shape_cast %658 : vector<1x128xf32> to vector<128xf32>
    %660 = vector.shape_cast %659 : vector<128xf32> to vector<1x128xf32>
    %c0_415 = arith.constant 0 : index
    %c12_416 = arith.constant 12 : index
    %c0_417 = arith.constant 0 : index
    %661 = vector.load %arg7[%c0_415, %c12_416, %c0_417] : memref<2x32x128xf32, #tpu.memory_space<vmem>>, vector<2x16x128xf32>
    %662 = vector.shape_cast %661 : vector<2x16x128xf32> to vector<32x128xf32>
    %663 = vector.broadcast %660 : vector<1x128xf32> to vector<32x128xf32>
    %664 = arith.mulf %662, %663 : vector<32x128xf32>
    %665 = arith.addf %657, %664 : vector<32x128xf32>
    %c112_i32_418 = arith.constant 112 : i32
    %666 = tpu.dynamic_rotate %528 by %c112_i32_418 dim 1 : vector<32x128xf32>, i32 -> vector<32x128xf32>
    %c112_i32_419 = arith.constant 112 : i32
    %667 = vector.broadcast %c112_i32_419 : i32 to vector<32x128xi32>
    %668 = arith.cmpi slt, %1, %667 : vector<32x128xi32>
    %cst_420 = arith.constant 0.000000e+00 : f32
    %669 = vector.broadcast %cst_420 : f32 to vector<32x128xf32>
    %670 = arith.select %668, %666, %669 : vector<32x128xi1>, vector<32x128xf32>
    %671 = vector.shape_cast %670 : vector<32x128xf32> to vector<2x16x128xf32>
    %c0_421 = arith.constant 0 : index
    %c8_422 = arith.constant 8 : index
    %c0_423 = arith.constant 0 : index
    %672 = vector.load %arg7[%c0_421, %c8_422, %c0_423] : memref<2x32x128xf32, #tpu.memory_space<vmem>>, vector<2x16x128xf32>
    tpu.vector_store %arg7[%c0_421, %c8_422, %c0_423], %671 {strides = array<i32>} : memref<2x32x128xf32, #tpu.memory_space<vmem>>, vector<2x16x128xf32>,
    %c80 = arith.constant 80 : index
    %c0_424 = arith.constant 0 : index
    %673 = vector.load %arg4[%c80, %c0_424] : memref<102x128xf32, #tpu.memory_space<vmem>>, vector<1x128xf32>
    %674 = vector.shape_cast %673 : vector<1x128xf32> to vector<128xf32>
    %675 = vector.shape_cast %674 : vector<128xf32> to vector<1x128xf32>
    %c0_425 = arith.constant 0 : index
    %c4_426 = arith.constant 4 : index
    %c0_427 = arith.constant 0 : index
    %676 = vector.load %arg7[%c0_425, %c4_426, %c0_427] : memref<2x32x128xf32, #tpu.memory_space<vmem>>, vector<2x16x128xf32>
    %677 = vector.shape_cast %676 : vector<2x16x128xf32> to vector<32x128xf32>
    %678 = vector.broadcast %675 : vector<1x128xf32> to vector<32x128xf32>
    %679 = arith.mulf %677, %678 : vector<32x128xf32>
    %680 = arith.addf %665, %679 : vector<32x128xf32>
    %c85 = arith.constant 85 : index
    %c0_428 = arith.constant 0 : index
    %681 = vector.load %arg4[%c85, %c0_428] : memref<102x128xf32, #tpu.memory_space<vmem>>, vector<1x128xf32>
    %682 = vector.shape_cast %681 : vector<1x128xf32> to vector<128xf32>
    %683 = vector.shape_cast %682 : vector<128xf32> to vector<1x128xf32>
    %c0_429 = arith.constant 0 : index
    %c6_430 = arith.constant 6 : index
    %c0_431 = arith.constant 0 : index
    %684 = vector.load %arg7[%c0_429, %c6_430, %c0_431] : memref<2x32x128xf32, #tpu.memory_space<vmem>>, vector<2x16x128xf32>
    %685 = vector.shape_cast %684 : vector<2x16x128xf32> to vector<32x128xf32>
    %686 = vector.broadcast %683 : vector<1x128xf32> to vector<32x128xf32>
    %687 = arith.mulf %685, %686 : vector<32x128xf32>
    %688 = arith.addf %680, %687 : vector<32x128xf32>
    %c90 = arith.constant 90 : index
    %c0_432 = arith.constant 0 : index
    %689 = vector.load %arg4[%c90, %c0_432] : memref<102x128xf32, #tpu.memory_space<vmem>>, vector<1x128xf32>
    %690 = vector.shape_cast %689 : vector<1x128xf32> to vector<128xf32>
    %691 = vector.shape_cast %690 : vector<128xf32> to vector<1x128xf32>
    %c0_433 = arith.constant 0 : index
    %c8_434 = arith.constant 8 : index
    %c0_435 = arith.constant 0 : index
    %692 = vector.load %arg7[%c0_433, %c8_434, %c0_435] : memref<2x32x128xf32, #tpu.memory_space<vmem>>, vector<2x16x128xf32>
    %693 = vector.shape_cast %692 : vector<2x16x128xf32> to vector<32x128xf32>
    %694 = vector.broadcast %691 : vector<1x128xf32> to vector<32x128xf32>
    %695 = arith.mulf %693, %694 : vector<32x128xf32>
    %696 = arith.addf %688, %695 : vector<32x128xf32>
    %c95 = arith.constant 95 : index
    %c0_436 = arith.constant 0 : index
    %697 = vector.load %arg4[%c95, %c0_436] : memref<102x128xf32, #tpu.memory_space<vmem>>, vector<1x128xf32>
    %698 = vector.shape_cast %697 : vector<1x128xf32> to vector<128xf32>
    %699 = vector.shape_cast %698 : vector<128xf32> to vector<1x128xf32>
    %c0_437 = arith.constant 0 : index
    %c10_438 = arith.constant 10 : index
    %c0_439 = arith.constant 0 : index
    %700 = vector.load %arg7[%c0_437, %c10_438, %c0_439] : memref<2x32x128xf32, #tpu.memory_space<vmem>>, vector<2x16x128xf32>
    %701 = vector.shape_cast %700 : vector<2x16x128xf32> to vector<32x128xf32>
    %702 = vector.broadcast %699 : vector<1x128xf32> to vector<32x128xf32>
    %703 = arith.mulf %701, %702 : vector<32x128xf32>
    %704 = arith.addf %696, %703 : vector<32x128xf32>
    %c100 = arith.constant 100 : index
    %c0_440 = arith.constant 0 : index
    %705 = vector.load %arg4[%c100, %c0_440] : memref<102x128xf32, #tpu.memory_space<vmem>>, vector<1x128xf32>
    %706 = vector.shape_cast %705 : vector<1x128xf32> to vector<128xf32>
    %707 = vector.shape_cast %706 : vector<128xf32> to vector<1x128xf32>
    %c0_441 = arith.constant 0 : index
    %c12_442 = arith.constant 12 : index
    %c0_443 = arith.constant 0 : index
    %708 = vector.load %arg7[%c0_441, %c12_442, %c0_443] : memref<2x32x128xf32, #tpu.memory_space<vmem>>, vector<2x16x128xf32>
    %709 = vector.shape_cast %708 : vector<2x16x128xf32> to vector<32x128xf32>
    %710 = vector.broadcast %707 : vector<1x128xf32> to vector<32x128xf32>
    %711 = arith.mulf %709, %710 : vector<32x128xf32>
    %712 = arith.addf %704, %711 : vector<32x128xf32>
    %c96_i32 = arith.constant 96 : i32
    %713 = tpu.dynamic_rotate %528 by %c96_i32 dim 1 : vector<32x128xf32>, i32 -> vector<32x128xf32>
    %c96_i32_444 = arith.constant 96 : i32
    %714 = vector.broadcast %c96_i32_444 : i32 to vector<32x128xi32>
    %715 = arith.cmpi slt, %1, %714 : vector<32x128xi32>
    %cst_445 = arith.constant 0.000000e+00 : f32
    %716 = vector.broadcast %cst_445 : f32 to vector<32x128xf32>
    %717 = arith.select %715, %713, %716 : vector<32x128xi1>, vector<32x128xf32>
    %718 = vector.shape_cast %717 : vector<32x128xf32> to vector<2x16x128xf32>
    %c0_446 = arith.constant 0 : index
    %c8_447 = arith.constant 8 : index
    %c0_448 = arith.constant 0 : index
    %719 = vector.load %arg7[%c0_446, %c8_447, %c0_448] : memref<2x32x128xf32, #tpu.memory_space<vmem>>, vector<2x16x128xf32>
    tpu.vector_store %arg7[%c0_446, %c8_447, %c0_448], %718 {strides = array<i32>} : memref<2x32x128xf32, #tpu.memory_space<vmem>>, vector<2x16x128xf32>,
    %c81 = arith.constant 81 : index
    %c0_449 = arith.constant 0 : index
    %720 = vector.load %arg4[%c81, %c0_449] : memref<102x128xf32, #tpu.memory_space<vmem>>, vector<1x128xf32>
    %721 = vector.shape_cast %720 : vector<1x128xf32> to vector<128xf32>
    %722 = vector.shape_cast %721 : vector<128xf32> to vector<1x128xf32>
    %c0_450 = arith.constant 0 : index
    %c4_451 = arith.constant 4 : index
    %c0_452 = arith.constant 0 : index
    %723 = vector.load %arg7[%c0_450, %c4_451, %c0_452] : memref<2x32x128xf32, #tpu.memory_space<vmem>>, vector<2x16x128xf32>
    %724 = vector.shape_cast %723 : vector<2x16x128xf32> to vector<32x128xf32>
    %725 = vector.broadcast %722 : vector<1x128xf32> to vector<32x128xf32>
    %726 = arith.mulf %724, %725 : vector<32x128xf32>
    %727 = arith.addf %712, %726 : vector<32x128xf32>
    %c86 = arith.constant 86 : index
    %c0_453 = arith.constant 0 : index
    %728 = vector.load %arg4[%c86, %c0_453] : memref<102x128xf32, #tpu.memory_space<vmem>>, vector<1x128xf32>
    %729 = vector.shape_cast %728 : vector<1x128xf32> to vector<128xf32>
    %730 = vector.shape_cast %729 : vector<128xf32> to vector<1x128xf32>
    %c0_454 = arith.constant 0 : index
    %c6_455 = arith.constant 6 : index
    %c0_456 = arith.constant 0 : index
    %731 = vector.load %arg7[%c0_454, %c6_455, %c0_456] : memref<2x32x128xf32, #tpu.memory_space<vmem>>, vector<2x16x128xf32>
    %732 = vector.shape_cast %731 : vector<2x16x128xf32> to vector<32x128xf32>
    %733 = vector.broadcast %730 : vector<1x128xf32> to vector<32x128xf32>
    %734 = arith.mulf %732, %733 : vector<32x128xf32>
    %735 = arith.addf %727, %734 : vector<32x128xf32>
    %c91 = arith.constant 91 : index
    %c0_457 = arith.constant 0 : index
    %736 = vector.load %arg4[%c91, %c0_457] : memref<102x128xf32, #tpu.memory_space<vmem>>, vector<1x128xf32>
    %737 = vector.shape_cast %736 : vector<1x128xf32> to vector<128xf32>
    %738 = vector.shape_cast %737 : vector<128xf32> to vector<1x128xf32>
    %c0_458 = arith.constant 0 : index
    %c8_459 = arith.constant 8 : index
    %c0_460 = arith.constant 0 : index
    %739 = vector.load %arg7[%c0_458, %c8_459, %c0_460] : memref<2x32x128xf32, #tpu.memory_space<vmem>>, vector<2x16x128xf32>
    %740 = vector.shape_cast %739 : vector<2x16x128xf32> to vector<32x128xf32>
    %741 = vector.broadcast %738 : vector<1x128xf32> to vector<32x128xf32>
    %742 = arith.mulf %740, %741 : vector<32x128xf32>
    %743 = arith.addf %735, %742 : vector<32x128xf32>
    %c96 = arith.constant 96 : index
    %c0_461 = arith.constant 0 : index
    %744 = vector.load %arg4[%c96, %c0_461] : memref<102x128xf32, #tpu.memory_space<vmem>>, vector<1x128xf32>
    %745 = vector.shape_cast %744 : vector<1x128xf32> to vector<128xf32>
    %746 = vector.shape_cast %745 : vector<128xf32> to vector<1x128xf32>
    %c0_462 = arith.constant 0 : index
    %c10_463 = arith.constant 10 : index
    %c0_464 = arith.constant 0 : index
    %747 = vector.load %arg7[%c0_462, %c10_463, %c0_464] : memref<2x32x128xf32, #tpu.memory_space<vmem>>, vector<2x16x128xf32>
    %748 = vector.shape_cast %747 : vector<2x16x128xf32> to vector<32x128xf32>
    %749 = vector.broadcast %746 : vector<1x128xf32> to vector<32x128xf32>
    %750 = arith.mulf %748, %749 : vector<32x128xf32>
    %751 = arith.addf %743, %750 : vector<32x128xf32>
    %c101 = arith.constant 101 : index
    %c0_465 = arith.constant 0 : index
    %752 = vector.load %arg4[%c101, %c0_465] : memref<102x128xf32, #tpu.memory_space<vmem>>, vector<1x128xf32>
    %753 = vector.shape_cast %752 : vector<1x128xf32> to vector<128xf32>
    %754 = vector.shape_cast %753 : vector<128xf32> to vector<1x128xf32>
    %c0_466 = arith.constant 0 : index
    %c12_467 = arith.constant 12 : index
    %c0_468 = arith.constant 0 : index
    %755 = vector.load %arg7[%c0_466, %c12_467, %c0_468] : memref<2x32x128xf32, #tpu.memory_space<vmem>>, vector<2x16x128xf32>
    %756 = vector.shape_cast %755 : vector<2x16x128xf32> to vector<32x128xf32>
    %757 = vector.broadcast %754 : vector<1x128xf32> to vector<32x128xf32>
    %758 = arith.mulf %756, %757 : vector<32x128xf32>
    %759 = arith.addf %751, %758 : vector<32x128xf32>
    %760 = arith.truncf %759 : vector<32x128xf32> to vector<32x128xbf16>
    %c5_469 = arith.constant 5 : index
    %c0_470 = arith.constant 0 : index
    %c0_471 = arith.constant 0 : index
    %761 = vector.load %arg5[%c5_469, %c0_470, %c0_471] : memref<6x128x128xbf16, #tpu.memory_space<vmem>>, vector<1x128x128xbf16>
    %762 = vector.shape_cast %761 : vector<1x128x128xbf16> to vector<128x128xbf16>
    %cst_472 = arith.constant dense<0.000000e+00> : vector<32x128xf32>
    %763 = tpu.matmul %760, %762, %cst_472 {dimension_numbers = #tpu.dot_dimension_numbers<[1], [0], [0], [1], [0, 0, 1, 1], [], []>} : vector<32x128xbf16>, vector<128x128xbf16>, vector<32x128xf32> -> vector<32x128xf32>
    %cst_473 = arith.constant dense<0.000000e+00> : vector<128xf32>
    %764 = vector.multi_reduction <add>, %46, %cst_473 [0] : vector<32x128xf32> to vector<128xf32>
    %765 = vector.shape_cast %764 : vector<128xf32> to vector<1x128xf32>
    %766 = arith.mulf %46, %46 : vector<32x128xf32>
    %cst_474 = arith.constant dense<0.000000e+00> : vector<128xf32>
    %767 = vector.multi_reduction <add>, %766, %cst_474 [0] : vector<32x128xf32> to vector<128xf32>
    %768 = vector.shape_cast %767 : vector<128xf32> to vector<1x128xf32>
    %769 = tpu.concatenate %765, %768 in 0 : vector<1x128xf32>, vector<1x128xf32> -> vector<2x128xf32>
    %cst_475 = arith.constant dense<0.000000e+00> : vector<128xf32>
    %770 = vector.multi_reduction <add>, %99, %cst_475 [0] : vector<32x128xf32> to vector<128xf32>
    %771 = vector.shape_cast %770 : vector<128xf32> to vector<1x128xf32>
    %772 = arith.mulf %99, %99 : vector<32x128xf32>
    %cst_476 = arith.constant dense<0.000000e+00> : vector<128xf32>
    %773 = vector.multi_reduction <add>, %772, %cst_476 [0] : vector<32x128xf32> to vector<128xf32>
    %774 = vector.shape_cast %773 : vector<128xf32> to vector<1x128xf32>
    %775 = tpu.concatenate %771, %774 in 0 : vector<1x128xf32>, vector<1x128xf32> -> vector<2x128xf32>
    %cst_477 = arith.constant dense<0.000000e+00> : vector<128xf32>
    %776 = vector.multi_reduction <add>, %194, %cst_477 [0] : vector<32x128xf32> to vector<128xf32>
    %777 = vector.shape_cast %776 : vector<128xf32> to vector<1x128xf32>
    %778 = arith.mulf %194, %194 : vector<32x128xf32>
    %cst_478 = arith.constant dense<0.000000e+00> : vector<128xf32>
    %779 = vector.multi_reduction <add>, %778, %cst_478 [0] : vector<32x128xf32> to vector<128xf32>
    %780 = vector.shape_cast %779 : vector<128xf32> to vector<1x128xf32>
    %781 = tpu.concatenate %777, %780 in 0 : vector<1x128xf32>, vector<1x128xf32> -> vector<2x128xf32>
    %cst_479 = arith.constant dense<0.000000e+00> : vector<128xf32>
    %782 = vector.multi_reduction <add>, %431, %cst_479 [0] : vector<32x128xf32> to vector<128xf32>
    %783 = vector.shape_cast %782 : vector<128xf32> to vector<1x128xf32>
    %784 = arith.mulf %431, %431 : vector<32x128xf32>
    %cst_480 = arith.constant dense<0.000000e+00> : vector<128xf32>
    %785 = vector.multi_reduction <add>, %784, %cst_480 [0] : vector<32x128xf32> to vector<128xf32>
    %786 = vector.shape_cast %785 : vector<128xf32> to vector<1x128xf32>
    %787 = tpu.concatenate %783, %786 in 0 : vector<1x128xf32>, vector<1x128xf32> -> vector<2x128xf32>
    %cst_481 = arith.constant dense<0.000000e+00> : vector<128xf32>
    %788 = vector.multi_reduction <add>, %526, %cst_481 [0] : vector<32x128xf32> to vector<128xf32>
    %789 = vector.shape_cast %788 : vector<128xf32> to vector<1x128xf32>
    %790 = arith.mulf %526, %526 : vector<32x128xf32>
    %cst_482 = arith.constant dense<0.000000e+00> : vector<128xf32>
    %791 = vector.multi_reduction <add>, %790, %cst_482 [0] : vector<32x128xf32> to vector<128xf32>
    %792 = vector.shape_cast %791 : vector<128xf32> to vector<1x128xf32>
    %793 = tpu.concatenate %789, %792 in 0 : vector<1x128xf32>, vector<1x128xf32> -> vector<2x128xf32>
    %cst_483 = arith.constant dense<0.000000e+00> : vector<128xf32>
    %794 = vector.multi_reduction <add>, %763, %cst_483 [0] : vector<32x128xf32> to vector<128xf32>
    %795 = vector.shape_cast %794 : vector<128xf32> to vector<1x128xf32>
    %796 = arith.mulf %763, %763 : vector<32x128xf32>
    %cst_484 = arith.constant dense<0.000000e+00> : vector<128xf32>
    %797 = vector.multi_reduction <add>, %796, %cst_484 [0] : vector<32x128xf32> to vector<128xf32>
    %798 = vector.shape_cast %797 : vector<128xf32> to vector<1x128xf32>
    %799 = tpu.concatenate %795, %798 in 0 : vector<1x128xf32>, vector<1x128xf32> -> vector<2x128xf32>
    %800 = tpu.concatenate %769, %775, %781, %787, %793, %799 in 0 : vector<2x128xf32>, vector<2x128xf32>, vector<2x128xf32>, vector<2x128xf32>, vector<2x128xf32>, vector<2x128xf32> -> vector<12x128xf32>
    %c0_485 = arith.constant 0 : index
    %c0_486 = arith.constant 0 : index
    %801 = vector.load %arg3[%c0_485, %c0_486] : memref<128x128xf32, #tpu.memory_space<vmem>>, vector<128x128xf32>
    %cst_487 = arith.constant dense<0.000000e+00> : vector<12x128xf32>
    %802 = tpu.matmul %800, %801, %cst_487 {dimension_numbers = #tpu.dot_dimension_numbers<[1], [0], [0], [1], [0, 0, 1, 1], [], []>} : vector<12x128xf32>, vector<128x128xf32>, vector<12x128xf32> -> vector<12x128xf32>
    %803 = vector.extract_strided_slice %802 {offsets = [0, 0], sizes = [2, 128], strides = [1, 1]} : vector<12x128xf32> to vector<2x128xf32>
    %804 = vector.extract_strided_slice %803 {offsets = [0, 0], sizes = [1, 128], strides = [1, 1]} : vector<2x128xf32> to vector<1x128xf32>
    %cst_488 = arith.constant 0.001953125 : f32
    %805 = vector.broadcast %cst_488 : f32 to vector<1x128xf32>
    %806 = arith.mulf %804, %805 : vector<1x128xf32>
    %807 = vector.extract_strided_slice %803 {offsets = [1, 0], sizes = [1, 128], strides = [1, 1]} : vector<2x128xf32> to vector<1x128xf32>
    %cst_489 = arith.constant 0.001953125 : f32
    %808 = vector.broadcast %cst_489 : f32 to vector<1x128xf32>
    %809 = arith.mulf %807, %808 : vector<1x128xf32>
    %810 = arith.mulf %806, %806 : vector<1x128xf32>
    %811 = arith.subf %809, %810 : vector<1x128xf32>
    %812 = vector.broadcast %806 : vector<1x128xf32> to vector<32x128xf32>
    %813 = arith.subf %46, %812 : vector<32x128xf32>
    %cst_490 = arith.constant 9.99999974E-6 : f32
    %814 = vector.broadcast %cst_490 : f32 to vector<1x128xf32>
    %815 = arith.addf %811, %814 : vector<1x128xf32>
    %816 = math.rsqrt %815 : vector<1x128xf32>
    %817 = vector.broadcast %816 : vector<1x128xf32> to vector<32x128xf32>
    %818 = arith.mulf %813, %817 : vector<32x128xf32>
    %819 = vector.extract_strided_slice %802 {offsets = [2, 0], sizes = [2, 128], strides = [1, 1]} : vector<12x128xf32> to vector<2x128xf32>
    %820 = vector.extract_strided_slice %819 {offsets = [0, 0], sizes = [1, 128], strides = [1, 1]} : vector<2x128xf32> to vector<1x128xf32>
    %cst_491 = arith.constant 0.001953125 : f32
    %821 = vector.broadcast %cst_491 : f32 to vector<1x128xf32>
    %822 = arith.mulf %820, %821 : vector<1x128xf32>
    %823 = vector.extract_strided_slice %819 {offsets = [1, 0], sizes = [1, 128], strides = [1, 1]} : vector<2x128xf32> to vector<1x128xf32>
    %cst_492 = arith.constant 0.001953125 : f32
    %824 = vector.broadcast %cst_492 : f32 to vector<1x128xf32>
    %825 = arith.mulf %823, %824 : vector<1x128xf32>
    %826 = arith.mulf %822, %822 : vector<1x128xf32>
    %827 = arith.subf %825, %826 : vector<1x128xf32>
    %828 = vector.broadcast %822 : vector<1x128xf32> to vector<32x128xf32>
    %829 = arith.subf %99, %828 : vector<32x128xf32>
    %cst_493 = arith.constant 9.99999974E-6 : f32
    %830 = vector.broadcast %cst_493 : f32 to vector<1x128xf32>
    %831 = arith.addf %827, %830 : vector<1x128xf32>
    %832 = math.rsqrt %831 : vector<1x128xf32>
    %833 = vector.broadcast %832 : vector<1x128xf32> to vector<32x128xf32>
    %834 = arith.mulf %829, %833 : vector<32x128xf32>
    %835 = vector.extract_strided_slice %802 {offsets = [4, 0], sizes = [2, 128], strides = [1, 1]} : vector<12x128xf32> to vector<2x128xf32>
    %836 = vector.extract_strided_slice %835 {offsets = [0, 0], sizes = [1, 128], strides = [1, 1]} : vector<2x128xf32> to vector<1x128xf32>
    %cst_494 = arith.constant 0.001953125 : f32
    %837 = vector.broadcast %cst_494 : f32 to vector<1x128xf32>
    %838 = arith.mulf %836, %837 : vector<1x128xf32>
    %839 = vector.extract_strided_slice %835 {offsets = [1, 0], sizes = [1, 128], strides = [1, 1]} : vector<2x128xf32> to vector<1x128xf32>
    %cst_495 = arith.constant 0.001953125 : f32
    %840 = vector.broadcast %cst_495 : f32 to vector<1x128xf32>
    %841 = arith.mulf %839, %840 : vector<1x128xf32>
    %842 = arith.mulf %838, %838 : vector<1x128xf32>
    %843 = arith.subf %841, %842 : vector<1x128xf32>
    %844 = vector.broadcast %838 : vector<1x128xf32> to vector<32x128xf32>
    %845 = arith.subf %194, %844 : vector<32x128xf32>
    %cst_496 = arith.constant 9.99999974E-6 : f32
    %846 = vector.broadcast %cst_496 : f32 to vector<1x128xf32>
    %847 = arith.addf %843, %846 : vector<1x128xf32>
    %848 = math.rsqrt %847 : vector<1x128xf32>
    %849 = vector.broadcast %848 : vector<1x128xf32> to vector<32x128xf32>
    %850 = arith.mulf %845, %849 : vector<32x128xf32>
    %851 = vector.extract_strided_slice %802 {offsets = [6, 0], sizes = [2, 128], strides = [1, 1]} : vector<12x128xf32> to vector<2x128xf32>
    %852 = vector.extract_strided_slice %851 {offsets = [0, 0], sizes = [1, 128], strides = [1, 1]} : vector<2x128xf32> to vector<1x128xf32>
    %cst_497 = arith.constant 0.001953125 : f32
    %853 = vector.broadcast %cst_497 : f32 to vector<1x128xf32>
    %854 = arith.mulf %852, %853 : vector<1x128xf32>
    %855 = vector.extract_strided_slice %851 {offsets = [1, 0], sizes = [1, 128], strides = [1, 1]} : vector<2x128xf32> to vector<1x128xf32>
    %cst_498 = arith.constant 0.001953125 : f32
    %856 = vector.broadcast %cst_498 : f32 to vector<1x128xf32>
    %857 = arith.mulf %855, %856 : vector<1x128xf32>
    %858 = arith.mulf %854, %854 : vector<1x128xf32>
    %859 = arith.subf %857, %858 : vector<1x128xf32>
    %860 = vector.broadcast %854 : vector<1x128xf32> to vector<32x128xf32>
    %861 = arith.subf %431, %860 : vector<32x128xf32>
    %cst_499 = arith.constant 9.99999974E-6 : f32
    %862 = vector.broadcast %cst_499 : f32 to vector<1x128xf32>
    %863 = arith.addf %859, %862 : vector<1x128xf32>
    %864 = math.rsqrt %863 : vector<1x128xf32>
    %865 = vector.broadcast %864 : vector<1x128xf32> to vector<32x128xf32>
    %866 = arith.mulf %861, %865 : vector<32x128xf32>
    %867 = vector.extract_strided_slice %802 {offsets = [8, 0], sizes = [2, 128], strides = [1, 1]} : vector<12x128xf32> to vector<2x128xf32>
    %868 = vector.extract_strided_slice %867 {offsets = [0, 0], sizes = [1, 128], strides = [1, 1]} : vector<2x128xf32> to vector<1x128xf32>
    %cst_500 = arith.constant 0.001953125 : f32
    %869 = vector.broadcast %cst_500 : f32 to vector<1x128xf32>
    %870 = arith.mulf %868, %869 : vector<1x128xf32>
    %871 = vector.extract_strided_slice %867 {offsets = [1, 0], sizes = [1, 128], strides = [1, 1]} : vector<2x128xf32> to vector<1x128xf32>
    %cst_501 = arith.constant 0.001953125 : f32
    %872 = vector.broadcast %cst_501 : f32 to vector<1x128xf32>
    %873 = arith.mulf %871, %872 : vector<1x128xf32>
    %874 = arith.mulf %870, %870 : vector<1x128xf32>
    %875 = arith.subf %873, %874 : vector<1x128xf32>
    %876 = vector.broadcast %870 : vector<1x128xf32> to vector<32x128xf32>
    %877 = arith.subf %526, %876 : vector<32x128xf32>
    %cst_502 = arith.constant 9.99999974E-6 : f32
    %878 = vector.broadcast %cst_502 : f32 to vector<1x128xf32>
    %879 = arith.addf %875, %878 : vector<1x128xf32>
    %880 = math.rsqrt %879 : vector<1x128xf32>
    %881 = vector.broadcast %880 : vector<1x128xf32> to vector<32x128xf32>
    %882 = arith.mulf %877, %881 : vector<32x128xf32>
    %883 = vector.extract_strided_slice %802 {offsets = [10, 0], sizes = [2, 128], strides = [1, 1]} : vector<12x128xf32> to vector<2x128xf32>
    %884 = vector.extract_strided_slice %883 {offsets = [0, 0], sizes = [1, 128], strides = [1, 1]} : vector<2x128xf32> to vector<1x128xf32>
    %cst_503 = arith.constant 0.001953125 : f32
    %885 = vector.broadcast %cst_503 : f32 to vector<1x128xf32>
    %886 = arith.mulf %884, %885 : vector<1x128xf32>
    %887 = vector.extract_strided_slice %883 {offsets = [1, 0], sizes = [1, 128], strides = [1, 1]} : vector<2x128xf32> to vector<1x128xf32>
    %cst_504 = arith.constant 0.001953125 : f32
    %888 = vector.broadcast %cst_504 : f32 to vector<1x128xf32>
    %889 = arith.mulf %887, %888 : vector<1x128xf32>
    %890 = arith.mulf %886, %886 : vector<1x128xf32>
    %891 = arith.subf %889, %890 : vector<1x128xf32>
    %892 = vector.broadcast %886 : vector<1x128xf32> to vector<32x128xf32>
    %893 = arith.subf %763, %892 : vector<32x128xf32>
    %cst_505 = arith.constant 9.99999974E-6 : f32
    %894 = vector.broadcast %cst_505 : f32 to vector<1x128xf32>
    %895 = arith.addf %891, %894 : vector<1x128xf32>
    %896 = math.rsqrt %895 : vector<1x128xf32>
    %897 = vector.broadcast %896 : vector<1x128xf32> to vector<32x128xf32>
    %898 = arith.mulf %893, %897 : vector<32x128xf32>
    %cst_506 = arith.constant 0.000000e+00 : f32
    %899 = vector.broadcast %cst_506 : f32 to vector<32x128xf32>
    %900 = arith.maximumf %850, %899 : vector<32x128xf32>
    %cst_507 = arith.constant 0.000000e+00 : f32
    %901 = vector.broadcast %cst_507 : f32 to vector<32x128xf32>
    %c8_i32_508 = arith.constant 8 : i32
    %902 = tpu.dynamic_rotate %900 by %c8_i32_508 dim 1 : vector<32x128xf32>, i32 -> vector<32x128xf32>
    %c8_i32_509 = arith.constant 8 : i32
    %903 = vector.broadcast %c8_i32_509 : i32 to vector<32x128xi32>
    %904 = arith.cmpi sge, %1, %903 : vector<32x128xi32>
    %cst_510 = arith.constant 0.000000e+00 : f32
    %905 = vector.broadcast %cst_510 : f32 to vector<32x128xf32>
    %906 = arith.select %904, %902, %905 : vector<32x128xi1>, vector<32x128xf32>
    %907 = vector.shape_cast %906 : vector<32x128xf32> to vector<2x16x128xf32>
    %c0_511 = arith.constant 0 : index
    %c8_512 = arith.constant 8 : index
    %c0_513 = arith.constant 0 : index
    %908 = vector.load %arg7[%c0_511, %c8_512, %c0_513] : memref<2x32x128xf32, #tpu.memory_space<vmem>>, vector<2x16x128xf32>
    tpu.vector_store %arg7[%c0_511, %c8_512, %c0_513], %907 {strides = array<i32>} : memref<2x32x128xf32, #tpu.memory_space<vmem>>, vector<2x16x128xf32>,
    %c9_514 = arith.constant 9 : index
    %c0_515 = arith.constant 0 : index
    %909 = vector.load %arg4[%c9_514, %c0_515] : memref<102x128xf32, #tpu.memory_space<vmem>>, vector<1x128xf32>
    %910 = vector.shape_cast %909 : vector<1x128xf32> to vector<128xf32>
    %911 = vector.shape_cast %910 : vector<128xf32> to vector<1x128xf32>
    %c0_516 = arith.constant 0 : index
    %c7_517 = arith.constant 7 : index
    %c0_518 = arith.constant 0 : index
    %912 = vector.load %arg7[%c0_516, %c7_517, %c0_518] : memref<2x32x128xf32, #tpu.memory_space<vmem>>, vector<2x16x128xf32>
    %913 = vector.shape_cast %912 : vector<2x16x128xf32> to vector<32x128xf32>
    %914 = vector.broadcast %911 : vector<1x128xf32> to vector<32x128xf32>
    %915 = arith.mulf %913, %914 : vector<32x128xf32>
    %916 = arith.addf %901, %915 : vector<32x128xf32>
    %c12_519 = arith.constant 12 : index
    %c0_520 = arith.constant 0 : index
    %917 = vector.load %arg4[%c12_519, %c0_520] : memref<102x128xf32, #tpu.memory_space<vmem>>, vector<1x128xf32>
    %918 = vector.shape_cast %917 : vector<1x128xf32> to vector<128xf32>
    %919 = vector.shape_cast %918 : vector<128xf32> to vector<1x128xf32>
    %c0_521 = arith.constant 0 : index
    %c8_522 = arith.constant 8 : index
    %c0_523 = arith.constant 0 : index
    %920 = vector.load %arg7[%c0_521, %c8_522, %c0_523] : memref<2x32x128xf32, #tpu.memory_space<vmem>>, vector<2x16x128xf32>
    %921 = vector.shape_cast %920 : vector<2x16x128xf32> to vector<32x128xf32>
    %922 = vector.broadcast %919 : vector<1x128xf32> to vector<32x128xf32>
    %923 = arith.mulf %921, %922 : vector<32x128xf32>
    %924 = arith.addf %916, %923 : vector<32x128xf32>
    %c15 = arith.constant 15 : index
    %c0_524 = arith.constant 0 : index
    %925 = vector.load %arg4[%c15, %c0_524] : memref<102x128xf32, #tpu.memory_space<vmem>>, vector<1x128xf32>
    %926 = vector.shape_cast %925 : vector<1x128xf32> to vector<128xf32>
    %927 = vector.shape_cast %926 : vector<128xf32> to vector<1x128xf32>
    %c0_525 = arith.constant 0 : index
    %c9_526 = arith.constant 9 : index
    %c0_527 = arith.constant 0 : index
    %928 = vector.load %arg7[%c0_525, %c9_526, %c0_527] : memref<2x32x128xf32, #tpu.memory_space<vmem>>, vector<2x16x128xf32>
    %929 = vector.shape_cast %928 : vector<2x16x128xf32> to vector<32x128xf32>
    %930 = vector.broadcast %927 : vector<1x128xf32> to vector<32x128xf32>
    %931 = arith.mulf %929, %930 : vector<32x128xf32>
    %932 = arith.addf %924, %931 : vector<32x128xf32>
    %933 = vector.shape_cast %900 : vector<32x128xf32> to vector<2x16x128xf32>
    %c0_528 = arith.constant 0 : index
    %c8_529 = arith.constant 8 : index
    %c0_530 = arith.constant 0 : index
    %934 = vector.load %arg7[%c0_528, %c8_529, %c0_530] : memref<2x32x128xf32, #tpu.memory_space<vmem>>, vector<2x16x128xf32>
    tpu.vector_store %arg7[%c0_528, %c8_529, %c0_530], %933 {strides = array<i32>} : memref<2x32x128xf32, #tpu.memory_space<vmem>>, vector<2x16x128xf32>,
    %c10_531 = arith.constant 10 : index
    %c0_532 = arith.constant 0 : index
    %935 = vector.load %arg4[%c10_531, %c0_532] : memref<102x128xf32, #tpu.memory_space<vmem>>, vector<1x128xf32>
    %936 = vector.shape_cast %935 : vector<1x128xf32> to vector<128xf32>
    %937 = vector.shape_cast %936 : vector<128xf32> to vector<1x128xf32>
    %c0_533 = arith.constant 0 : index
    %c7_534 = arith.constant 7 : index
    %c0_535 = arith.constant 0 : index
    %938 = vector.load %arg7[%c0_533, %c7_534, %c0_535] : memref<2x32x128xf32, #tpu.memory_space<vmem>>, vector<2x16x128xf32>
    %939 = vector.shape_cast %938 : vector<2x16x128xf32> to vector<32x128xf32>
    %940 = vector.broadcast %937 : vector<1x128xf32> to vector<32x128xf32>
    %941 = arith.mulf %939, %940 : vector<32x128xf32>
    %942 = arith.addf %932, %941 : vector<32x128xf32>
    %c13 = arith.constant 13 : index
    %c0_536 = arith.constant 0 : index
    %943 = vector.load %arg4[%c13, %c0_536] : memref<102x128xf32, #tpu.memory_space<vmem>>, vector<1x128xf32>
    %944 = vector.shape_cast %943 : vector<1x128xf32> to vector<128xf32>
    %945 = vector.shape_cast %944 : vector<128xf32> to vector<1x128xf32>
    %c0_537 = arith.constant 0 : index
    %c8_538 = arith.constant 8 : index
    %c0_539 = arith.constant 0 : index
    %946 = vector.load %arg7[%c0_537, %c8_538, %c0_539] : memref<2x32x128xf32, #tpu.memory_space<vmem>>, vector<2x16x128xf32>
    %947 = vector.shape_cast %946 : vector<2x16x128xf32> to vector<32x128xf32>
    %948 = vector.broadcast %945 : vector<1x128xf32> to vector<32x128xf32>
    %949 = arith.mulf %947, %948 : vector<32x128xf32>
    %950 = arith.addf %942, %949 : vector<32x128xf32>
    %c16 = arith.constant 16 : index
    %c0_540 = arith.constant 0 : index
    %951 = vector.load %arg4[%c16, %c0_540] : memref<102x128xf32, #tpu.memory_space<vmem>>, vector<1x128xf32>
    %952 = vector.shape_cast %951 : vector<1x128xf32> to vector<128xf32>
    %953 = vector.shape_cast %952 : vector<128xf32> to vector<1x128xf32>
    %c0_541 = arith.constant 0 : index
    %c9_542 = arith.constant 9 : index
    %c0_543 = arith.constant 0 : index
    %954 = vector.load %arg7[%c0_541, %c9_542, %c0_543] : memref<2x32x128xf32, #tpu.memory_space<vmem>>, vector<2x16x128xf32>
    %955 = vector.shape_cast %954 : vector<2x16x128xf32> to vector<32x128xf32>
    %956 = vector.broadcast %953 : vector<1x128xf32> to vector<32x128xf32>
    %957 = arith.mulf %955, %956 : vector<32x128xf32>
    %958 = arith.addf %950, %957 : vector<32x128xf32>
    %c120_i32_544 = arith.constant 120 : i32
    %959 = tpu.dynamic_rotate %900 by %c120_i32_544 dim 1 : vector<32x128xf32>, i32 -> vector<32x128xf32>
    %c120_i32_545 = arith.constant 120 : i32
    %960 = vector.broadcast %c120_i32_545 : i32 to vector<32x128xi32>
    %961 = arith.cmpi slt, %1, %960 : vector<32x128xi32>
    %cst_546 = arith.constant 0.000000e+00 : f32
    %962 = vector.broadcast %cst_546 : f32 to vector<32x128xf32>
    %963 = arith.select %961, %959, %962 : vector<32x128xi1>, vector<32x128xf32>
    %964 = vector.shape_cast %963 : vector<32x128xf32> to vector<2x16x128xf32>
    %c0_547 = arith.constant 0 : index
    %c8_548 = arith.constant 8 : index
    %c0_549 = arith.constant 0 : index
    %965 = vector.load %arg7[%c0_547, %c8_548, %c0_549] : memref<2x32x128xf32, #tpu.memory_space<vmem>>, vector<2x16x128xf32>
    tpu.vector_store %arg7[%c0_547, %c8_548, %c0_549], %964 {strides = array<i32>} : memref<2x32x128xf32, #tpu.memory_space<vmem>>, vector<2x16x128xf32>,
    %c11 = arith.constant 11 : index
    %c0_550 = arith.constant 0 : index
    %966 = vector.load %arg4[%c11, %c0_550] : memref<102x128xf32, #tpu.memory_space<vmem>>, vector<1x128xf32>
    %967 = vector.shape_cast %966 : vector<1x128xf32> to vector<128xf32>
    %968 = vector.shape_cast %967 : vector<128xf32> to vector<1x128xf32>
    %c0_551 = arith.constant 0 : index
    %c7_552 = arith.constant 7 : index
    %c0_553 = arith.constant 0 : index
    %969 = vector.load %arg7[%c0_551, %c7_552, %c0_553] : memref<2x32x128xf32, #tpu.memory_space<vmem>>, vector<2x16x128xf32>
    %970 = vector.shape_cast %969 : vector<2x16x128xf32> to vector<32x128xf32>
    %971 = vector.broadcast %968 : vector<1x128xf32> to vector<32x128xf32>
    %972 = arith.mulf %970, %971 : vector<32x128xf32>
    %973 = arith.addf %958, %972 : vector<32x128xf32>
    %c14 = arith.constant 14 : index
    %c0_554 = arith.constant 0 : index
    %974 = vector.load %arg4[%c14, %c0_554] : memref<102x128xf32, #tpu.memory_space<vmem>>, vector<1x128xf32>
    %975 = vector.shape_cast %974 : vector<1x128xf32> to vector<128xf32>
    %976 = vector.shape_cast %975 : vector<128xf32> to vector<1x128xf32>
    %c0_555 = arith.constant 0 : index
    %c8_556 = arith.constant 8 : index
    %c0_557 = arith.constant 0 : index
    %977 = vector.load %arg7[%c0_555, %c8_556, %c0_557] : memref<2x32x128xf32, #tpu.memory_space<vmem>>, vector<2x16x128xf32>
    %978 = vector.shape_cast %977 : vector<2x16x128xf32> to vector<32x128xf32>
    %979 = vector.broadcast %976 : vector<1x128xf32> to vector<32x128xf32>
    %980 = arith.mulf %978, %979 : vector<32x128xf32>
    %981 = arith.addf %973, %980 : vector<32x128xf32>
    %c17 = arith.constant 17 : index
    %c0_558 = arith.constant 0 : index
    %982 = vector.load %arg4[%c17, %c0_558] : memref<102x128xf32, #tpu.memory_space<vmem>>, vector<1x128xf32>
    %983 = vector.shape_cast %982 : vector<1x128xf32> to vector<128xf32>
    %984 = vector.shape_cast %983 : vector<128xf32> to vector<1x128xf32>
    %c0_559 = arith.constant 0 : index
    %c9_560 = arith.constant 9 : index
    %c0_561 = arith.constant 0 : index
    %985 = vector.load %arg7[%c0_559, %c9_560, %c0_561] : memref<2x32x128xf32, #tpu.memory_space<vmem>>, vector<2x16x128xf32>
    %986 = vector.shape_cast %985 : vector<2x16x128xf32> to vector<32x128xf32>
    %987 = vector.broadcast %984 : vector<1x128xf32> to vector<32x128xf32>
    %988 = arith.mulf %986, %987 : vector<32x128xf32>
    %989 = arith.addf %981, %988 : vector<32x128xf32>
    %990 = arith.truncf %989 : vector<32x128xf32> to vector<32x128xbf16>
    %c1_562 = arith.constant 1 : index
    %c0_563 = arith.constant 0 : index
    %c0_564 = arith.constant 0 : index
    %991 = vector.load %arg5[%c1_562, %c0_563, %c0_564] : memref<6x128x128xbf16, #tpu.memory_space<vmem>>, vector<1x128x128xbf16>
    %992 = vector.shape_cast %991 : vector<1x128x128xbf16> to vector<128x128xbf16>
    %cst_565 = arith.constant dense<0.000000e+00> : vector<32x128xf32>
    %993 = tpu.matmul %990, %992, %cst_565 {dimension_numbers = #tpu.dot_dimension_numbers<[1], [0], [0], [1], [0, 0, 1, 1], [], []>} : vector<32x128xbf16>, vector<128x128xbf16>, vector<32x128xf32> -> vector<32x128xf32>
    %cst_566 = arith.constant 0.000000e+00 : f32
    %994 = vector.broadcast %cst_566 : f32 to vector<32x128xf32>
    %995 = arith.maximumf %866, %994 : vector<32x128xf32>
    %cst_567 = arith.constant 0.000000e+00 : f32
    %996 = vector.broadcast %cst_567 : f32 to vector<32x128xf32>
    %c16_i32_568 = arith.constant 16 : i32
    %997 = tpu.dynamic_rotate %995 by %c16_i32_568 dim 1 : vector<32x128xf32>, i32 -> vector<32x128xf32>
    %c16_i32_569 = arith.constant 16 : i32
    %998 = vector.broadcast %c16_i32_569 : i32 to vector<32x128xi32>
    %999 = arith.cmpi sge, %1, %998 : vector<32x128xi32>
    %cst_570 = arith.constant 0.000000e+00 : f32
    %1000 = vector.broadcast %cst_570 : f32 to vector<32x128xf32>
    %1001 = arith.select %999, %997, %1000 : vector<32x128xi1>, vector<32x128xf32>
    %1002 = vector.shape_cast %1001 : vector<32x128xf32> to vector<2x16x128xf32>
    %c0_571 = arith.constant 0 : index
    %c8_572 = arith.constant 8 : index
    %c0_573 = arith.constant 0 : index
    %1003 = vector.load %arg7[%c0_571, %c8_572, %c0_573] : memref<2x32x128xf32, #tpu.memory_space<vmem>>, vector<2x16x128xf32>
    tpu.vector_store %arg7[%c0_571, %c8_572, %c0_573], %1002 {strides = array<i32>} : memref<2x32x128xf32, #tpu.memory_space<vmem>>, vector<2x16x128xf32>,
    %c52 = arith.constant 52 : index
    %c0_574 = arith.constant 0 : index
    %1004 = vector.load %arg4[%c52, %c0_574] : memref<102x128xf32, #tpu.memory_space<vmem>>, vector<1x128xf32>
    %1005 = vector.shape_cast %1004 : vector<1x128xf32> to vector<128xf32>
    %1006 = vector.shape_cast %1005 : vector<128xf32> to vector<1x128xf32>
    %c0_575 = arith.constant 0 : index
    %c6_576 = arith.constant 6 : index
    %c0_577 = arith.constant 0 : index
    %1007 = vector.load %arg7[%c0_575, %c6_576, %c0_577] : memref<2x32x128xf32, #tpu.memory_space<vmem>>, vector<2x16x128xf32>
    %1008 = vector.shape_cast %1007 : vector<2x16x128xf32> to vector<32x128xf32>
    %1009 = vector.broadcast %1006 : vector<1x128xf32> to vector<32x128xf32>
    %1010 = arith.mulf %1008, %1009 : vector<32x128xf32>
    %1011 = arith.addf %996, %1010 : vector<32x128xf32>
    %c57 = arith.constant 57 : index
    %c0_578 = arith.constant 0 : index
    %1012 = vector.load %arg4[%c57, %c0_578] : memref<102x128xf32, #tpu.memory_space<vmem>>, vector<1x128xf32>
    %1013 = vector.shape_cast %1012 : vector<1x128xf32> to vector<128xf32>
    %1014 = vector.shape_cast %1013 : vector<128xf32> to vector<1x128xf32>
    %c0_579 = arith.constant 0 : index
    %c7_580 = arith.constant 7 : index
    %c0_581 = arith.constant 0 : index
    %1015 = vector.load %arg7[%c0_579, %c7_580, %c0_581] : memref<2x32x128xf32, #tpu.memory_space<vmem>>, vector<2x16x128xf32>
    %1016 = vector.shape_cast %1015 : vector<2x16x128xf32> to vector<32x128xf32>
    %1017 = vector.broadcast %1014 : vector<1x128xf32> to vector<32x128xf32>
    %1018 = arith.mulf %1016, %1017 : vector<32x128xf32>
    %1019 = arith.addf %1011, %1018 : vector<32x128xf32>
    %c62 = arith.constant 62 : index
    %c0_582 = arith.constant 0 : index
    %1020 = vector.load %arg4[%c62, %c0_582] : memref<102x128xf32, #tpu.memory_space<vmem>>, vector<1x128xf32>
    %1021 = vector.shape_cast %1020 : vector<1x128xf32> to vector<128xf32>
    %1022 = vector.shape_cast %1021 : vector<128xf32> to vector<1x128xf32>
    %c0_583 = arith.constant 0 : index
    %c8_584 = arith.constant 8 : index
    %c0_585 = arith.constant 0 : index
    %1023 = vector.load %arg7[%c0_583, %c8_584, %c0_585] : memref<2x32x128xf32, #tpu.memory_space<vmem>>, vector<2x16x128xf32>
    %1024 = vector.shape_cast %1023 : vector<2x16x128xf32> to vector<32x128xf32>
    %1025 = vector.broadcast %1022 : vector<1x128xf32> to vector<32x128xf32>
    %1026 = arith.mulf %1024, %1025 : vector<32x128xf32>
    %1027 = arith.addf %1019, %1026 : vector<32x128xf32>
    %c67 = arith.constant 67 : index
    %c0_586 = arith.constant 0 : index
    %1028 = vector.load %arg4[%c67, %c0_586] : memref<102x128xf32, #tpu.memory_space<vmem>>, vector<1x128xf32>
    %1029 = vector.shape_cast %1028 : vector<1x128xf32> to vector<128xf32>
    %1030 = vector.shape_cast %1029 : vector<128xf32> to vector<1x128xf32>
    %c0_587 = arith.constant 0 : index
    %c9_588 = arith.constant 9 : index
    %c0_589 = arith.constant 0 : index
    %1031 = vector.load %arg7[%c0_587, %c9_588, %c0_589] : memref<2x32x128xf32, #tpu.memory_space<vmem>>, vector<2x16x128xf32>
    %1032 = vector.shape_cast %1031 : vector<2x16x128xf32> to vector<32x128xf32>
    %1033 = vector.broadcast %1030 : vector<1x128xf32> to vector<32x128xf32>
    %1034 = arith.mulf %1032, %1033 : vector<32x128xf32>
    %1035 = arith.addf %1027, %1034 : vector<32x128xf32>
    %c72 = arith.constant 72 : index
    %c0_590 = arith.constant 0 : index
    %1036 = vector.load %arg4[%c72, %c0_590] : memref<102x128xf32, #tpu.memory_space<vmem>>, vector<1x128xf32>
    %1037 = vector.shape_cast %1036 : vector<1x128xf32> to vector<128xf32>
    %1038 = vector.shape_cast %1037 : vector<128xf32> to vector<1x128xf32>
    %c0_591 = arith.constant 0 : index
    %c10_592 = arith.constant 10 : index
    %c0_593 = arith.constant 0 : index
    %1039 = vector.load %arg7[%c0_591, %c10_592, %c0_593] : memref<2x32x128xf32, #tpu.memory_space<vmem>>, vector<2x16x128xf32>
    %1040 = vector.shape_cast %1039 : vector<2x16x128xf32> to vector<32x128xf32>
    %1041 = vector.broadcast %1038 : vector<1x128xf32> to vector<32x128xf32>
    %1042 = arith.mulf %1040, %1041 : vector<32x128xf32>
    %1043 = arith.addf %1035, %1042 : vector<32x128xf32>
    %c8_i32_594 = arith.constant 8 : i32
    %1044 = tpu.dynamic_rotate %995 by %c8_i32_594 dim 1 : vector<32x128xf32>, i32 -> vector<32x128xf32>
    %c8_i32_595 = arith.constant 8 : i32
    %1045 = vector.broadcast %c8_i32_595 : i32 to vector<32x128xi32>
    %1046 = arith.cmpi sge, %1, %1045 : vector<32x128xi32>
    %cst_596 = arith.constant 0.000000e+00 : f32
    %1047 = vector.broadcast %cst_596 : f32 to vector<32x128xf32>
    %1048 = arith.select %1046, %1044, %1047 : vector<32x128xi1>, vector<32x128xf32>
    %1049 = vector.shape_cast %1048 : vector<32x128xf32> to vector<2x16x128xf32>
    %c0_597 = arith.constant 0 : index
    %c8_598 = arith.constant 8 : index
    %c0_599 = arith.constant 0 : index
    %1050 = vector.load %arg7[%c0_597, %c8_598, %c0_599] : memref<2x32x128xf32, #tpu.memory_space<vmem>>, vector<2x16x128xf32>
    tpu.vector_store %arg7[%c0_597, %c8_598, %c0_599], %1049 {strides = array<i32>} : memref<2x32x128xf32, #tpu.memory_space<vmem>>, vector<2x16x128xf32>,
    %c53 = arith.constant 53 : index
    %c0_600 = arith.constant 0 : index
    %1051 = vector.load %arg4[%c53, %c0_600] : memref<102x128xf32, #tpu.memory_space<vmem>>, vector<1x128xf32>
    %1052 = vector.shape_cast %1051 : vector<1x128xf32> to vector<128xf32>
    %1053 = vector.shape_cast %1052 : vector<128xf32> to vector<1x128xf32>
    %c0_601 = arith.constant 0 : index
    %c6_602 = arith.constant 6 : index
    %c0_603 = arith.constant 0 : index
    %1054 = vector.load %arg7[%c0_601, %c6_602, %c0_603] : memref<2x32x128xf32, #tpu.memory_space<vmem>>, vector<2x16x128xf32>
    %1055 = vector.shape_cast %1054 : vector<2x16x128xf32> to vector<32x128xf32>
    %1056 = vector.broadcast %1053 : vector<1x128xf32> to vector<32x128xf32>
    %1057 = arith.mulf %1055, %1056 : vector<32x128xf32>
    %1058 = arith.addf %1043, %1057 : vector<32x128xf32>
    %c58 = arith.constant 58 : index
    %c0_604 = arith.constant 0 : index
    %1059 = vector.load %arg4[%c58, %c0_604] : memref<102x128xf32, #tpu.memory_space<vmem>>, vector<1x128xf32>
    %1060 = vector.shape_cast %1059 : vector<1x128xf32> to vector<128xf32>
    %1061 = vector.shape_cast %1060 : vector<128xf32> to vector<1x128xf32>
    %c0_605 = arith.constant 0 : index
    %c7_606 = arith.constant 7 : index
    %c0_607 = arith.constant 0 : index
    %1062 = vector.load %arg7[%c0_605, %c7_606, %c0_607] : memref<2x32x128xf32, #tpu.memory_space<vmem>>, vector<2x16x128xf32>
    %1063 = vector.shape_cast %1062 : vector<2x16x128xf32> to vector<32x128xf32>
    %1064 = vector.broadcast %1061 : vector<1x128xf32> to vector<32x128xf32>
    %1065 = arith.mulf %1063, %1064 : vector<32x128xf32>
    %1066 = arith.addf %1058, %1065 : vector<32x128xf32>
    %c63 = arith.constant 63 : index
    %c0_608 = arith.constant 0 : index
    %1067 = vector.load %arg4[%c63, %c0_608] : memref<102x128xf32, #tpu.memory_space<vmem>>, vector<1x128xf32>
    %1068 = vector.shape_cast %1067 : vector<1x128xf32> to vector<128xf32>
    %1069 = vector.shape_cast %1068 : vector<128xf32> to vector<1x128xf32>
    %c0_609 = arith.constant 0 : index
    %c8_610 = arith.constant 8 : index
    %c0_611 = arith.constant 0 : index
    %1070 = vector.load %arg7[%c0_609, %c8_610, %c0_611] : memref<2x32x128xf32, #tpu.memory_space<vmem>>, vector<2x16x128xf32>
    %1071 = vector.shape_cast %1070 : vector<2x16x128xf32> to vector<32x128xf32>
    %1072 = vector.broadcast %1069 : vector<1x128xf32> to vector<32x128xf32>
    %1073 = arith.mulf %1071, %1072 : vector<32x128xf32>
    %1074 = arith.addf %1066, %1073 : vector<32x128xf32>
    %c68 = arith.constant 68 : index
    %c0_612 = arith.constant 0 : index
    %1075 = vector.load %arg4[%c68, %c0_612] : memref<102x128xf32, #tpu.memory_space<vmem>>, vector<1x128xf32>
    %1076 = vector.shape_cast %1075 : vector<1x128xf32> to vector<128xf32>
    %1077 = vector.shape_cast %1076 : vector<128xf32> to vector<1x128xf32>
    %c0_613 = arith.constant 0 : index
    %c9_614 = arith.constant 9 : index
    %c0_615 = arith.constant 0 : index
    %1078 = vector.load %arg7[%c0_613, %c9_614, %c0_615] : memref<2x32x128xf32, #tpu.memory_space<vmem>>, vector<2x16x128xf32>
    %1079 = vector.shape_cast %1078 : vector<2x16x128xf32> to vector<32x128xf32>
    %1080 = vector.broadcast %1077 : vector<1x128xf32> to vector<32x128xf32>
    %1081 = arith.mulf %1079, %1080 : vector<32x128xf32>
    %1082 = arith.addf %1074, %1081 : vector<32x128xf32>
    %c73 = arith.constant 73 : index
    %c0_616 = arith.constant 0 : index
    %1083 = vector.load %arg4[%c73, %c0_616] : memref<102x128xf32, #tpu.memory_space<vmem>>, vector<1x128xf32>
    %1084 = vector.shape_cast %1083 : vector<1x128xf32> to vector<128xf32>
    %1085 = vector.shape_cast %1084 : vector<128xf32> to vector<1x128xf32>
    %c0_617 = arith.constant 0 : index
    %c10_618 = arith.constant 10 : index
    %c0_619 = arith.constant 0 : index
    %1086 = vector.load %arg7[%c0_617, %c10_618, %c0_619] : memref<2x32x128xf32, #tpu.memory_space<vmem>>, vector<2x16x128xf32>
    %1087 = vector.shape_cast %1086 : vector<2x16x128xf32> to vector<32x128xf32>
    %1088 = vector.broadcast %1085 : vector<1x128xf32> to vector<32x128xf32>
    %1089 = arith.mulf %1087, %1088 : vector<32x128xf32>
    %1090 = arith.addf %1082, %1089 : vector<32x128xf32>
    %1091 = vector.shape_cast %995 : vector<32x128xf32> to vector<2x16x128xf32>
    %c0_620 = arith.constant 0 : index
    %c8_621 = arith.constant 8 : index
    %c0_622 = arith.constant 0 : index
    %1092 = vector.load %arg7[%c0_620, %c8_621, %c0_622] : memref<2x32x128xf32, #tpu.memory_space<vmem>>, vector<2x16x128xf32>
    tpu.vector_store %arg7[%c0_620, %c8_621, %c0_622], %1091 {strides = array<i32>} : memref<2x32x128xf32, #tpu.memory_space<vmem>>, vector<2x16x128xf32>,
    %c54 = arith.constant 54 : index
    %c0_623 = arith.constant 0 : index
    %1093 = vector.load %arg4[%c54, %c0_623] : memref<102x128xf32, #tpu.memory_space<vmem>>, vector<1x128xf32>
    %1094 = vector.shape_cast %1093 : vector<1x128xf32> to vector<128xf32>
    %1095 = vector.shape_cast %1094 : vector<128xf32> to vector<1x128xf32>
    %c0_624 = arith.constant 0 : index
    %c6_625 = arith.constant 6 : index
    %c0_626 = arith.constant 0 : index
    %1096 = vector.load %arg7[%c0_624, %c6_625, %c0_626] : memref<2x32x128xf32, #tpu.memory_space<vmem>>, vector<2x16x128xf32>
    %1097 = vector.shape_cast %1096 : vector<2x16x128xf32> to vector<32x128xf32>
    %1098 = vector.broadcast %1095 : vector<1x128xf32> to vector<32x128xf32>
    %1099 = arith.mulf %1097, %1098 : vector<32x128xf32>
    %1100 = arith.addf %1090, %1099 : vector<32x128xf32>
    %c59 = arith.constant 59 : index
    %c0_627 = arith.constant 0 : index
    %1101 = vector.load %arg4[%c59, %c0_627] : memref<102x128xf32, #tpu.memory_space<vmem>>, vector<1x128xf32>
    %1102 = vector.shape_cast %1101 : vector<1x128xf32> to vector<128xf32>
    %1103 = vector.shape_cast %1102 : vector<128xf32> to vector<1x128xf32>
    %c0_628 = arith.constant 0 : index
    %c7_629 = arith.constant 7 : index
    %c0_630 = arith.constant 0 : index
    %1104 = vector.load %arg7[%c0_628, %c7_629, %c0_630] : memref<2x32x128xf32, #tpu.memory_space<vmem>>, vector<2x16x128xf32>
    %1105 = vector.shape_cast %1104 : vector<2x16x128xf32> to vector<32x128xf32>
    %1106 = vector.broadcast %1103 : vector<1x128xf32> to vector<32x128xf32>
    %1107 = arith.mulf %1105, %1106 : vector<32x128xf32>
    %1108 = arith.addf %1100, %1107 : vector<32x128xf32>
    %c64 = arith.constant 64 : index
    %c0_631 = arith.constant 0 : index
    %1109 = vector.load %arg4[%c64, %c0_631] : memref<102x128xf32, #tpu.memory_space<vmem>>, vector<1x128xf32>
    %1110 = vector.shape_cast %1109 : vector<1x128xf32> to vector<128xf32>
    %1111 = vector.shape_cast %1110 : vector<128xf32> to vector<1x128xf32>
    %c0_632 = arith.constant 0 : index
    %c8_633 = arith.constant 8 : index
    %c0_634 = arith.constant 0 : index
    %1112 = vector.load %arg7[%c0_632, %c8_633, %c0_634] : memref<2x32x128xf32, #tpu.memory_space<vmem>>, vector<2x16x128xf32>
    %1113 = vector.shape_cast %1112 : vector<2x16x128xf32> to vector<32x128xf32>
    %1114 = vector.broadcast %1111 : vector<1x128xf32> to vector<32x128xf32>
    %1115 = arith.mulf %1113, %1114 : vector<32x128xf32>
    %1116 = arith.addf %1108, %1115 : vector<32x128xf32>
    %c69 = arith.constant 69 : index
    %c0_635 = arith.constant 0 : index
    %1117 = vector.load %arg4[%c69, %c0_635] : memref<102x128xf32, #tpu.memory_space<vmem>>, vector<1x128xf32>
    %1118 = vector.shape_cast %1117 : vector<1x128xf32> to vector<128xf32>
    %1119 = vector.shape_cast %1118 : vector<128xf32> to vector<1x128xf32>
    %c0_636 = arith.constant 0 : index
    %c9_637 = arith.constant 9 : index
    %c0_638 = arith.constant 0 : index
    %1120 = vector.load %arg7[%c0_636, %c9_637, %c0_638] : memref<2x32x128xf32, #tpu.memory_space<vmem>>, vector<2x16x128xf32>
    %1121 = vector.shape_cast %1120 : vector<2x16x128xf32> to vector<32x128xf32>
    %1122 = vector.broadcast %1119 : vector<1x128xf32> to vector<32x128xf32>
    %1123 = arith.mulf %1121, %1122 : vector<32x128xf32>
    %1124 = arith.addf %1116, %1123 : vector<32x128xf32>
    %c74 = arith.constant 74 : index
    %c0_639 = arith.constant 0 : index
    %1125 = vector.load %arg4[%c74, %c0_639] : memref<102x128xf32, #tpu.memory_space<vmem>>, vector<1x128xf32>
    %1126 = vector.shape_cast %1125 : vector<1x128xf32> to vector<128xf32>
    %1127 = vector.shape_cast %1126 : vector<128xf32> to vector<1x128xf32>
    %c0_640 = arith.constant 0 : index
    %c10_641 = arith.constant 10 : index
    %c0_642 = arith.constant 0 : index
    %1128 = vector.load %arg7[%c0_640, %c10_641, %c0_642] : memref<2x32x128xf32, #tpu.memory_space<vmem>>, vector<2x16x128xf32>
    %1129 = vector.shape_cast %1128 : vector<2x16x128xf32> to vector<32x128xf32>
    %1130 = vector.broadcast %1127 : vector<1x128xf32> to vector<32x128xf32>
    %1131 = arith.mulf %1129, %1130 : vector<32x128xf32>
    %1132 = arith.addf %1124, %1131 : vector<32x128xf32>
    %c120_i32_643 = arith.constant 120 : i32
    %1133 = tpu.dynamic_rotate %995 by %c120_i32_643 dim 1 : vector<32x128xf32>, i32 -> vector<32x128xf32>
    %c120_i32_644 = arith.constant 120 : i32
    %1134 = vector.broadcast %c120_i32_644 : i32 to vector<32x128xi32>
    %1135 = arith.cmpi slt, %1, %1134 : vector<32x128xi32>
    %cst_645 = arith.constant 0.000000e+00 : f32
    %1136 = vector.broadcast %cst_645 : f32 to vector<32x128xf32>
    %1137 = arith.select %1135, %1133, %1136 : vector<32x128xi1>, vector<32x128xf32>
    %1138 = vector.shape_cast %1137 : vector<32x128xf32> to vector<2x16x128xf32>
    %c0_646 = arith.constant 0 : index
    %c8_647 = arith.constant 8 : index
    %c0_648 = arith.constant 0 : index
    %1139 = vector.load %arg7[%c0_646, %c8_647, %c0_648] : memref<2x32x128xf32, #tpu.memory_space<vmem>>, vector<2x16x128xf32>
    tpu.vector_store %arg7[%c0_646, %c8_647, %c0_648], %1138 {strides = array<i32>} : memref<2x32x128xf32, #tpu.memory_space<vmem>>, vector<2x16x128xf32>,
    %c55 = arith.constant 55 : index
    %c0_649 = arith.constant 0 : index
    %1140 = vector.load %arg4[%c55, %c0_649] : memref<102x128xf32, #tpu.memory_space<vmem>>, vector<1x128xf32>
    %1141 = vector.shape_cast %1140 : vector<1x128xf32> to vector<128xf32>
    %1142 = vector.shape_cast %1141 : vector<128xf32> to vector<1x128xf32>
    %c0_650 = arith.constant 0 : index
    %c6_651 = arith.constant 6 : index
    %c0_652 = arith.constant 0 : index
    %1143 = vector.load %arg7[%c0_650, %c6_651, %c0_652] : memref<2x32x128xf32, #tpu.memory_space<vmem>>, vector<2x16x128xf32>
    %1144 = vector.shape_cast %1143 : vector<2x16x128xf32> to vector<32x128xf32>
    %1145 = vector.broadcast %1142 : vector<1x128xf32> to vector<32x128xf32>
    %1146 = arith.mulf %1144, %1145 : vector<32x128xf32>
    %1147 = arith.addf %1132, %1146 : vector<32x128xf32>
    %c60 = arith.constant 60 : index
    %c0_653 = arith.constant 0 : index
    %1148 = vector.load %arg4[%c60, %c0_653] : memref<102x128xf32, #tpu.memory_space<vmem>>, vector<1x128xf32>
    %1149 = vector.shape_cast %1148 : vector<1x128xf32> to vector<128xf32>
    %1150 = vector.shape_cast %1149 : vector<128xf32> to vector<1x128xf32>
    %c0_654 = arith.constant 0 : index
    %c7_655 = arith.constant 7 : index
    %c0_656 = arith.constant 0 : index
    %1151 = vector.load %arg7[%c0_654, %c7_655, %c0_656] : memref<2x32x128xf32, #tpu.memory_space<vmem>>, vector<2x16x128xf32>
    %1152 = vector.shape_cast %1151 : vector<2x16x128xf32> to vector<32x128xf32>
    %1153 = vector.broadcast %1150 : vector<1x128xf32> to vector<32x128xf32>
    %1154 = arith.mulf %1152, %1153 : vector<32x128xf32>
    %1155 = arith.addf %1147, %1154 : vector<32x128xf32>
    %c65 = arith.constant 65 : index
    %c0_657 = arith.constant 0 : index
    %1156 = vector.load %arg4[%c65, %c0_657] : memref<102x128xf32, #tpu.memory_space<vmem>>, vector<1x128xf32>
    %1157 = vector.shape_cast %1156 : vector<1x128xf32> to vector<128xf32>
    %1158 = vector.shape_cast %1157 : vector<128xf32> to vector<1x128xf32>
    %c0_658 = arith.constant 0 : index
    %c8_659 = arith.constant 8 : index
    %c0_660 = arith.constant 0 : index
    %1159 = vector.load %arg7[%c0_658, %c8_659, %c0_660] : memref<2x32x128xf32, #tpu.memory_space<vmem>>, vector<2x16x128xf32>
    %1160 = vector.shape_cast %1159 : vector<2x16x128xf32> to vector<32x128xf32>
    %1161 = vector.broadcast %1158 : vector<1x128xf32> to vector<32x128xf32>
    %1162 = arith.mulf %1160, %1161 : vector<32x128xf32>
    %1163 = arith.addf %1155, %1162 : vector<32x128xf32>
    %c70 = arith.constant 70 : index
    %c0_661 = arith.constant 0 : index
    %1164 = vector.load %arg4[%c70, %c0_661] : memref<102x128xf32, #tpu.memory_space<vmem>>, vector<1x128xf32>
    %1165 = vector.shape_cast %1164 : vector<1x128xf32> to vector<128xf32>
    %1166 = vector.shape_cast %1165 : vector<128xf32> to vector<1x128xf32>
    %c0_662 = arith.constant 0 : index
    %c9_663 = arith.constant 9 : index
    %c0_664 = arith.constant 0 : index
    %1167 = vector.load %arg7[%c0_662, %c9_663, %c0_664] : memref<2x32x128xf32, #tpu.memory_space<vmem>>, vector<2x16x128xf32>
    %1168 = vector.shape_cast %1167 : vector<2x16x128xf32> to vector<32x128xf32>
    %1169 = vector.broadcast %1166 : vector<1x128xf32> to vector<32x128xf32>
    %1170 = arith.mulf %1168, %1169 : vector<32x128xf32>
    %1171 = arith.addf %1163, %1170 : vector<32x128xf32>
    %c75 = arith.constant 75 : index
    %c0_665 = arith.constant 0 : index
    %1172 = vector.load %arg4[%c75, %c0_665] : memref<102x128xf32, #tpu.memory_space<vmem>>, vector<1x128xf32>
    %1173 = vector.shape_cast %1172 : vector<1x128xf32> to vector<128xf32>
    %1174 = vector.shape_cast %1173 : vector<128xf32> to vector<1x128xf32>
    %c0_666 = arith.constant 0 : index
    %c10_667 = arith.constant 10 : index
    %c0_668 = arith.constant 0 : index
    %1175 = vector.load %arg7[%c0_666, %c10_667, %c0_668] : memref<2x32x128xf32, #tpu.memory_space<vmem>>, vector<2x16x128xf32>
    %1176 = vector.shape_cast %1175 : vector<2x16x128xf32> to vector<32x128xf32>
    %1177 = vector.broadcast %1174 : vector<1x128xf32> to vector<32x128xf32>
    %1178 = arith.mulf %1176, %1177 : vector<32x128xf32>
    %1179 = arith.addf %1171, %1178 : vector<32x128xf32>
    %c112_i32_669 = arith.constant 112 : i32
    %1180 = tpu.dynamic_rotate %995 by %c112_i32_669 dim 1 : vector<32x128xf32>, i32 -> vector<32x128xf32>
    %c112_i32_670 = arith.constant 112 : i32
    %1181 = vector.broadcast %c112_i32_670 : i32 to vector<32x128xi32>
    %1182 = arith.cmpi slt, %1, %1181 : vector<32x128xi32>
    %cst_671 = arith.constant 0.000000e+00 : f32
    %1183 = vector.broadcast %cst_671 : f32 to vector<32x128xf32>
    %1184 = arith.select %1182, %1180, %1183 : vector<32x128xi1>, vector<32x128xf32>
    %1185 = vector.shape_cast %1184 : vector<32x128xf32> to vector<2x16x128xf32>
    %c0_672 = arith.constant 0 : index
    %c8_673 = arith.constant 8 : index
    %c0_674 = arith.constant 0 : index
    %1186 = vector.load %arg7[%c0_672, %c8_673, %c0_674] : memref<2x32x128xf32, #tpu.memory_space<vmem>>, vector<2x16x128xf32>
    tpu.vector_store %arg7[%c0_672, %c8_673, %c0_674], %1185 {strides = array<i32>} : memref<2x32x128xf32, #tpu.memory_space<vmem>>, vector<2x16x128xf32>,
    %c56 = arith.constant 56 : index
    %c0_675 = arith.constant 0 : index
    %1187 = vector.load %arg4[%c56, %c0_675] : memref<102x128xf32, #tpu.memory_space<vmem>>, vector<1x128xf32>
    %1188 = vector.shape_cast %1187 : vector<1x128xf32> to vector<128xf32>
    %1189 = vector.shape_cast %1188 : vector<128xf32> to vector<1x128xf32>
    %c0_676 = arith.constant 0 : index
    %c6_677 = arith.constant 6 : index
    %c0_678 = arith.constant 0 : index
    %1190 = vector.load %arg7[%c0_676, %c6_677, %c0_678] : memref<2x32x128xf32, #tpu.memory_space<vmem>>, vector<2x16x128xf32>
    %1191 = vector.shape_cast %1190 : vector<2x16x128xf32> to vector<32x128xf32>
    %1192 = vector.broadcast %1189 : vector<1x128xf32> to vector<32x128xf32>
    %1193 = arith.mulf %1191, %1192 : vector<32x128xf32>
    %1194 = arith.addf %1179, %1193 : vector<32x128xf32>
    %c61 = arith.constant 61 : index
    %c0_679 = arith.constant 0 : index
    %1195 = vector.load %arg4[%c61, %c0_679] : memref<102x128xf32, #tpu.memory_space<vmem>>, vector<1x128xf32>
    %1196 = vector.shape_cast %1195 : vector<1x128xf32> to vector<128xf32>
    %1197 = vector.shape_cast %1196 : vector<128xf32> to vector<1x128xf32>
    %c0_680 = arith.constant 0 : index
    %c7_681 = arith.constant 7 : index
    %c0_682 = arith.constant 0 : index
    %1198 = vector.load %arg7[%c0_680, %c7_681, %c0_682] : memref<2x32x128xf32, #tpu.memory_space<vmem>>, vector<2x16x128xf32>
    %1199 = vector.shape_cast %1198 : vector<2x16x128xf32> to vector<32x128xf32>
    %1200 = vector.broadcast %1197 : vector<1x128xf32> to vector<32x128xf32>
    %1201 = arith.mulf %1199, %1200 : vector<32x128xf32>
    %1202 = arith.addf %1194, %1201 : vector<32x128xf32>
    %c66 = arith.constant 66 : index
    %c0_683 = arith.constant 0 : index
    %1203 = vector.load %arg4[%c66, %c0_683] : memref<102x128xf32, #tpu.memory_space<vmem>>, vector<1x128xf32>
    %1204 = vector.shape_cast %1203 : vector<1x128xf32> to vector<128xf32>
    %1205 = vector.shape_cast %1204 : vector<128xf32> to vector<1x128xf32>
    %c0_684 = arith.constant 0 : index
    %c8_685 = arith.constant 8 : index
    %c0_686 = arith.constant 0 : index
    %1206 = vector.load %arg7[%c0_684, %c8_685, %c0_686] : memref<2x32x128xf32, #tpu.memory_space<vmem>>, vector<2x16x128xf32>
    %1207 = vector.shape_cast %1206 : vector<2x16x128xf32> to vector<32x128xf32>
    %1208 = vector.broadcast %1205 : vector<1x128xf32> to vector<32x128xf32>
    %1209 = arith.mulf %1207, %1208 : vector<32x128xf32>
    %1210 = arith.addf %1202, %1209 : vector<32x128xf32>
    %c71 = arith.constant 71 : index
    %c0_687 = arith.constant 0 : index
    %1211 = vector.load %arg4[%c71, %c0_687] : memref<102x128xf32, #tpu.memory_space<vmem>>, vector<1x128xf32>
    %1212 = vector.shape_cast %1211 : vector<1x128xf32> to vector<128xf32>
    %1213 = vector.shape_cast %1212 : vector<128xf32> to vector<1x128xf32>
    %c0_688 = arith.constant 0 : index
    %c9_689 = arith.constant 9 : index
    %c0_690 = arith.constant 0 : index
    %1214 = vector.load %arg7[%c0_688, %c9_689, %c0_690] : memref<2x32x128xf32, #tpu.memory_space<vmem>>, vector<2x16x128xf32>
    %1215 = vector.shape_cast %1214 : vector<2x16x128xf32> to vector<32x128xf32>
    %1216 = vector.broadcast %1213 : vector<1x128xf32> to vector<32x128xf32>
    %1217 = arith.mulf %1215, %1216 : vector<32x128xf32>
    %1218 = arith.addf %1210, %1217 : vector<32x128xf32>
    %c76 = arith.constant 76 : index
    %c0_691 = arith.constant 0 : index
    %1219 = vector.load %arg4[%c76, %c0_691] : memref<102x128xf32, #tpu.memory_space<vmem>>, vector<1x128xf32>
    %1220 = vector.shape_cast %1219 : vector<1x128xf32> to vector<128xf32>
    %1221 = vector.shape_cast %1220 : vector<128xf32> to vector<1x128xf32>
    %c0_692 = arith.constant 0 : index
    %c10_693 = arith.constant 10 : index
    %c0_694 = arith.constant 0 : index
    %1222 = vector.load %arg7[%c0_692, %c10_693, %c0_694] : memref<2x32x128xf32, #tpu.memory_space<vmem>>, vector<2x16x128xf32>
    %1223 = vector.shape_cast %1222 : vector<2x16x128xf32> to vector<32x128xf32>
    %1224 = vector.broadcast %1221 : vector<1x128xf32> to vector<32x128xf32>
    %1225 = arith.mulf %1223, %1224 : vector<32x128xf32>
    %1226 = arith.addf %1218, %1225 : vector<32x128xf32>
    %1227 = arith.truncf %1226 : vector<32x128xf32> to vector<32x128xbf16>
    %c4_695 = arith.constant 4 : index
    %c0_696 = arith.constant 0 : index
    %c0_697 = arith.constant 0 : index
    %1228 = vector.load %arg5[%c4_695, %c0_696, %c0_697] : memref<6x128x128xbf16, #tpu.memory_space<vmem>>, vector<1x128x128xbf16>
    %1229 = vector.shape_cast %1228 : vector<1x128x128xbf16> to vector<128x128xbf16>
    %cst_698 = arith.constant dense<0.000000e+00> : vector<32x128xf32>
    %1230 = tpu.matmul %1227, %1229, %cst_698 {dimension_numbers = #tpu.dot_dimension_numbers<[1], [0], [0], [1], [0, 0, 1, 1], [], []>} : vector<32x128xbf16>, vector<128x128xbf16>, vector<32x128xf32> -> vector<32x128xf32>
    %cst_699 = arith.constant dense<0.000000e+00> : vector<128xf32>
    %1231 = vector.multi_reduction <add>, %993, %cst_699 [0] : vector<32x128xf32> to vector<128xf32>
    %1232 = vector.shape_cast %1231 : vector<128xf32> to vector<1x128xf32>
    %1233 = arith.mulf %993, %993 : vector<32x128xf32>
    %cst_700 = arith.constant dense<0.000000e+00> : vector<128xf32>
    %1234 = vector.multi_reduction <add>, %1233, %cst_700 [0] : vector<32x128xf32> to vector<128xf32>
    %1235 = vector.shape_cast %1234 : vector<128xf32> to vector<1x128xf32>
    %1236 = tpu.concatenate %1232, %1235 in 0 : vector<1x128xf32>, vector<1x128xf32> -> vector<2x128xf32>
    %cst_701 = arith.constant dense<0.000000e+00> : vector<128xf32>
    %1237 = vector.multi_reduction <add>, %1230, %cst_701 [0] : vector<32x128xf32> to vector<128xf32>
    %1238 = vector.shape_cast %1237 : vector<128xf32> to vector<1x128xf32>
    %1239 = arith.mulf %1230, %1230 : vector<32x128xf32>
    %cst_702 = arith.constant dense<0.000000e+00> : vector<128xf32>
    %1240 = vector.multi_reduction <add>, %1239, %cst_702 [0] : vector<32x128xf32> to vector<128xf32>
    %1241 = vector.shape_cast %1240 : vector<128xf32> to vector<1x128xf32>
    %1242 = tpu.concatenate %1238, %1241 in 0 : vector<1x128xf32>, vector<1x128xf32> -> vector<2x128xf32>
    %1243 = tpu.concatenate %1236, %1242 in 0 : vector<2x128xf32>, vector<2x128xf32> -> vector<4x128xf32>
    %c0_703 = arith.constant 0 : index
    %c0_704 = arith.constant 0 : index
    %1244 = vector.load %arg3[%c0_703, %c0_704] : memref<128x128xf32, #tpu.memory_space<vmem>>, vector<128x128xf32>
    %cst_705 = arith.constant dense<0.000000e+00> : vector<4x128xf32>
    %1245 = tpu.matmul %1243, %1244, %cst_705 {dimension_numbers = #tpu.dot_dimension_numbers<[1], [0], [0], [1], [0, 0, 1, 1], [], []>} : vector<4x128xf32>, vector<128x128xf32>, vector<4x128xf32> -> vector<4x128xf32>
    %1246 = vector.extract_strided_slice %1245 {offsets = [0, 0], sizes = [2, 128], strides = [1, 1]} : vector<4x128xf32> to vector<2x128xf32>
    %1247 = vector.extract_strided_slice %1246 {offsets = [0, 0], sizes = [1, 128], strides = [1, 1]} : vector<2x128xf32> to vector<1x128xf32>
    %cst_706 = arith.constant 0.001953125 : f32
    %1248 = vector.broadcast %cst_706 : f32 to vector<1x128xf32>
    %1249 = arith.mulf %1247, %1248 : vector<1x128xf32>
    %1250 = vector.extract_strided_slice %1246 {offsets = [1, 0], sizes = [1, 128], strides = [1, 1]} : vector<2x128xf32> to vector<1x128xf32>
    %cst_707 = arith.constant 0.001953125 : f32
    %1251 = vector.broadcast %cst_707 : f32 to vector<1x128xf32>
    %1252 = arith.mulf %1250, %1251 : vector<1x128xf32>
    %1253 = arith.mulf %1249, %1249 : vector<1x128xf32>
    %1254 = arith.subf %1252, %1253 : vector<1x128xf32>
    %1255 = vector.broadcast %1249 : vector<1x128xf32> to vector<32x128xf32>
    %1256 = arith.subf %993, %1255 : vector<32x128xf32>
    %cst_708 = arith.constant 9.99999974E-6 : f32
    %1257 = vector.broadcast %cst_708 : f32 to vector<1x128xf32>
    %1258 = arith.addf %1254, %1257 : vector<1x128xf32>
    %1259 = math.rsqrt %1258 : vector<1x128xf32>
    %1260 = vector.broadcast %1259 : vector<1x128xf32> to vector<32x128xf32>
    %1261 = arith.mulf %1256, %1260 : vector<32x128xf32>
    %1262 = vector.extract_strided_slice %1245 {offsets = [2, 0], sizes = [2, 128], strides = [1, 1]} : vector<4x128xf32> to vector<2x128xf32>
    %1263 = vector.extract_strided_slice %1262 {offsets = [0, 0], sizes = [1, 128], strides = [1, 1]} : vector<2x128xf32> to vector<1x128xf32>
    %cst_709 = arith.constant 0.001953125 : f32
    %1264 = vector.broadcast %cst_709 : f32 to vector<1x128xf32>
    %1265 = arith.mulf %1263, %1264 : vector<1x128xf32>
    %1266 = vector.extract_strided_slice %1262 {offsets = [1, 0], sizes = [1, 128], strides = [1, 1]} : vector<2x128xf32> to vector<1x128xf32>
    %cst_710 = arith.constant 0.001953125 : f32
    %1267 = vector.broadcast %cst_710 : f32 to vector<1x128xf32>
    %1268 = arith.mulf %1266, %1267 : vector<1x128xf32>
    %1269 = arith.mulf %1265, %1265 : vector<1x128xf32>
    %1270 = arith.subf %1268, %1269 : vector<1x128xf32>
    %1271 = vector.broadcast %1265 : vector<1x128xf32> to vector<32x128xf32>
    %1272 = arith.subf %1230, %1271 : vector<32x128xf32>
    %cst_711 = arith.constant 9.99999974E-6 : f32
    %1273 = vector.broadcast %cst_711 : f32 to vector<1x128xf32>
    %1274 = arith.addf %1270, %1273 : vector<1x128xf32>
    %1275 = math.rsqrt %1274 : vector<1x128xf32>
    %1276 = vector.broadcast %1275 : vector<1x128xf32> to vector<32x128xf32>
    %1277 = arith.mulf %1272, %1276 : vector<32x128xf32>
    %c1_712 = arith.constant 1 : index
    %1278 = memref.load %arg1[%c1_712] : memref<8xf32, #tpu.memory_space<smem>>
    %1279 = vector.broadcast %1278 : f32 to vector<32x128xf32>
    %1280 = arith.mulf %1279, %818 : vector<32x128xf32>
    %c2_713 = arith.constant 2 : index
    %1281 = memref.load %arg1[%c2_713] : memref<8xf32, #tpu.memory_space<smem>>
    %1282 = vector.broadcast %1281 : f32 to vector<32x128xf32>
    %1283 = arith.mulf %1282, %834 : vector<32x128xf32>
    %1284 = arith.addf %1280, %1283 : vector<32x128xf32>
    %c3_714 = arith.constant 3 : index
    %1285 = memref.load %arg1[%c3_714] : memref<8xf32, #tpu.memory_space<smem>>
    %1286 = vector.broadcast %1285 : f32 to vector<32x128xf32>
    %1287 = arith.mulf %1286, %0 : vector<32x128xf32>
    %1288 = arith.addf %1284, %1287 : vector<32x128xf32>
    %c4_715 = arith.constant 4 : index
    %1289 = memref.load %arg1[%c4_715] : memref<8xf32, #tpu.memory_space<smem>>
    %1290 = vector.broadcast %1289 : f32 to vector<32x128xf32>
    %1291 = arith.mulf %1290, %1261 : vector<32x128xf32>
    %1292 = arith.addf %1288, %1291 : vector<32x128xf32>
    %c5_716 = arith.constant 5 : index
    %1293 = memref.load %arg1[%c5_716] : memref<8xf32, #tpu.memory_space<smem>>
    %1294 = vector.broadcast %1293 : f32 to vector<32x128xf32>
    %1295 = arith.mulf %1294, %1277 : vector<32x128xf32>
    %1296 = arith.addf %1292, %1295 : vector<32x128xf32>
    %c6_717 = arith.constant 6 : index
    %1297 = memref.load %arg1[%c6_717] : memref<8xf32, #tpu.memory_space<smem>>
    %1298 = vector.broadcast %1297 : f32 to vector<32x128xf32>
    %1299 = arith.mulf %1298, %882 : vector<32x128xf32>
    %1300 = arith.addf %1296, %1299 : vector<32x128xf32>
    %c7_718 = arith.constant 7 : index
    %1301 = memref.load %arg1[%c7_718] : memref<8xf32, #tpu.memory_space<smem>>
    %1302 = vector.broadcast %1301 : f32 to vector<32x128xf32>
    %1303 = arith.mulf %1302, %898 : vector<32x128xf32>
    %1304 = arith.addf %1300, %1303 : vector<32x128xf32>
    %c0_719 = arith.constant 0 : index
    %c0_720 = arith.constant 0 : index
    %1305 = vector.load %arg6[%c0_719, %c0_720] : memref<32x128xf32, #tpu.memory_space<vmem>>, vector<32x128xf32>
    tpu.vector_store %arg6[%c0_719, %c0_720], %1304 {strides = array<i32>} : memref<32x128xf32, #tpu.memory_space<vmem>>, vector<32x128xf32>,
    return
  }
}

</mosaic_0001>

<llo_original>
// kernel: tile.27
$region0: #{tile.27}
  %s0 = inlined_call_operand.vmem [shape: f32[9,16,1,1,8], index: 0, kind: input, shape index: {}]
  %s1 = inlined_call_operand.vmem [shape: f32[9,128], index: 1, kind: output, shape index: {}]
  %s2 = smov 3
  %v3 = vld [vmem:[%s0] ss:$16 sm:%s2]
  %s4 = smov 12
  %v5 = vld [vmem:[%s0] ss:$16 sm:%s4]
  %vm6 = vcmask 1043458
  %v7 = vsel %vm6, %v5, %v3
  %s8 = smov 48
  %v9 = vld [vmem:[%s0] ss:$16 sm:%s8]
  %vm10 = vcmask 1045508
  %v11 = vsel %vm10, %v9, %v7
  %s12 = smov 192
  %v13 = vld [vmem:[%s0] ss:$16 sm:%s12]
  %vm14 = vcmask 1047558
  %v15 = vsel %vm14, %v13, %v11
  %vm16 = vcmask 64512
  %17 = vst.msk [vmem:[%s1] sm:$0xff] %vm16, %v15
  %s18 = scalar_lea.vmem %s0, 128
  %v19 = vld [vmem:[%s18] sm:$0x1]
  %vm20 = vcmask 64512
  %s21 = scalar_lea.vmem %s1, 8
  %22 = vst.msk [vmem:[%s21] sm:$0x1] %vm20, %v19
  %s23 = scalar_lea.vmem %s0, 15
  %s24 = smov 3
  %v25 = vld [vmem:[%s23] ss:$16 sm:%s24]
  %s26 = scalar_lea.vmem %s0, 15
  %s27 = smov 12
  %v28 = vld [vmem:[%s26] ss:$16 sm:%s27]
  %vm29 = vcmask 1043458
  %v30 = vsel %vm29, %v28, %v25
  %s31 = scalar_lea.vmem %s0, 15
  %s32 = smov 48
  %v33 = vld [vmem:[%s31] ss:$16 sm:%s32]
  %vm34 = vcmask 1045508
  %v35 = vsel %vm34, %v33, %v30
  %s36 = scalar_lea.vmem %s0, 15
  %s37 = smov 192
  %v38 = vld [vmem:[%s36] ss:$16 sm:%s37]
  %vm39 = vcmask 1047558
  %v40 = vsel %vm39, %v38, %v35
  %41 = vrot.lane.b32.xlu0 %v40, 120
  %v42 = vpop.permute.xlu0 %41
  %vm43 = vcmask 1048512
  %44 = vst.msk [vmem:[%s1] sm:$0xff] %vm43, %v42
  %s45 = scalar_lea.vmem %s0, 143
  %v46 = vld [vmem:[%s45] sm:$0x1]
  %47 = vrot.lane.b32.xlu0 %v46, 120
  %v48 = vpop.permute.xlu0 %47
  %vm49 = vcmask 1048512
  %s50 = scalar_lea.vmem %s1, 8
  %51 = vst.msk [vmem:[%s50] sm:$0x1] %vm49, %v48
  %s52 = scalar_lea.vmem %s0, 14
  %s53 = smov 3
  %v54 = vld [vmem:[%s52] ss:$16 sm:%s53]
  %s55 = scalar_lea.vmem %s0, 14
  %s56 = smov 12
  %v57 = vld [vmem:[%s55] ss:$16 sm:%s56]
  %vm58 = vcmask 1043458
  %v59 = vsel %vm58, %v57, %v54
  %s60 = scalar_lea.vmem %s0, 14
  %s61 = smov 48
  %v62 = vld [vmem:[%s60] ss:$16 sm:%s61]
  %vm63 = vcmask 1045508
  %v64 = vsel %vm63, %v62, %v59
  %s65 = scalar_lea.vmem %s0, 14
  %s66 = smov 192
  %v67 = vld [vmem:[%s65] ss:$16 sm:%s66]
  %vm68 = vcmask 1047558
  %v69 = vsel %vm68, %v67, %v64
  %70 = vrot.lane.b32.xlu0 %v69, 112
  %v71 = vpop.permute.xlu0 %70
  %vm72 = vcmask 982912
  %73 = vst.msk [vmem:[%s1] sm:$0xff] %vm72, %v71
  %s74 = scalar_lea.vmem %s0, 142
  %v75 = vld [vmem:[%s74] sm:$0x1]
  %76 = vrot.lane.b32.xlu0 %v75, 112
  %v77 = vpop.permute.xlu0 %76
  %vm78 = vcmask 982912
  %s79 = scalar_lea.vmem %s1, 8
  %80 = vst.msk [vmem:[%s79] sm:$0x1] %vm78, %v77
  %s81 = scalar_lea.vmem %s0, 13
  %s82 = smov 3
  %v83 = vld [vmem:[%s81] ss:$16 sm:%s82]
  %s84 = scalar_lea.vmem %s0, 13
  %s85 = smov 12
  %v86 = vld [vmem:[%s84] ss:$16 sm:%s85]
  %vm87 = vcmask 1043458
  %v88 = vsel %vm87, %v86, %v83
  %s89 = scalar_lea.vmem %s0, 13
  %s90 = smov 48
  %v91 = vld [vmem:[%s89] ss:$16 sm:%s90]
  %vm92 = vcmask 1045508
  %v93 = vsel %vm92, %v91, %v88
  %s94 = scalar_lea.vmem %s0, 13
  %s95 = smov 192
  %v96 = vld [vmem:[%s94] ss:$16 sm:%s95]
  %vm97 = vcmask 1047558
  %v98 = vsel %vm97, %v96, %v93
  %99 = vrot.lane.b32.xlu0 %v98, 104
  %v100 = vpop.permute.xlu0 %99
  %vm101 = vcmask 917312
  %102 = vst.msk [vmem:[%s1] sm:$0xff] %vm101, %v100
  %s103 = scalar_lea.vmem %s0, 141
  %v104 = vld [vmem:[%s103] sm:$0x1]
  %105 = vrot.lane.b32.xlu0 %v104, 104
  %v106 = vpop.permute.xlu0 %105
  %vm107 = vcmask 917312
  %s108 = scalar_lea.vmem %s1, 8
  %109 = vst.msk [vmem:[%s108] sm:$0x1] %vm107, %v106
  %s110 = scalar_lea.vmem %s0, 12
  %s111 = smov 3
  %v112 = vld [vmem:[%s110] ss:$16 sm:%s111]
  %s113 = scalar_lea.vmem %s0, 12
  %s114 = smov 12
  %v115 = vld [vmem:[%s113] ss:$16 sm:%s114]
  %vm116 = vcmask 1043458
  %v117 = vsel %vm116, %v115, %v112
  %s118 = scalar_lea.vmem %s0, 12
  %s119 = smov 48
  %v120 = vld [vmem:[%s118] ss:$16 sm:%s119]
  %vm121 = vcmask 1045508
  %v122 = vsel %vm121, %v120, %v117
  %s123 = scalar_lea.vmem %s0, 12
  %s124 = smov 192
  %v125 = vld [vmem:[%s123] ss:$16 sm:%s124]
  %vm126 = vcmask 1047558
  %v127 = vsel %vm126, %v125, %v122
  %128 = vrot.lane.b32.xlu0 %v127, 96
  %v129 = vpop.permute.xlu0 %128
  %vm130 = vcmask 851712
  %131 = vst.msk [vmem:[%s1] sm:$0xff] %vm130, %v129
  %s132 = scalar_lea.vmem %s0, 140
  %v133 = vld [vmem:[%s132] sm:$0x1]
  %134 = vrot.lane.b32.xlu0 %v133, 96
  %v135 = vpop.permute.xlu0 %134
  %vm136 = vcmask 851712
  %s137 = scalar_lea.vmem %s1, 8
  %138 = vst.msk [vmem:[%s137] sm:$0x1] %vm136, %v135
  %s139 = scalar_lea.vmem %s0, 11
  %s140 = smov 3
  %v141 = vld [vmem:[%s139] ss:$16 sm:%s140]
  %s142 = scalar_lea.vmem %s0, 11
  %s143 = smov 12
  %v144 = vld [vmem:[%s142] ss:$16 sm:%s143]
  %vm145 = vcmask 1043458
  %v146 = vsel %vm145, %v144, %v141
  %s147 = scalar_lea.vmem %s0, 11
  %s148 = smov 48
  %v149 = vld [vmem:[%s147] ss:$16 sm:%s148]
  %vm150 = vcmask 1045508
  %v151 = vsel %vm150, %v149, %v146
  %s152 = scalar_lea.vmem %s0, 11
  %s153 = smov 192
  %v154 = vld [vmem:[%s152] ss:$16 sm:%s153]
  %vm155 = vcmask 1047558
  %v156 = vsel %vm155, %v154, %v151
  %157 = vrot.lane.b32.xlu0 %v156, 88
  %v158 = vpop.permute.xlu0 %157
  %vm159 = vcmask 786112
  %160 = vst.msk [vmem:[%s1] sm:$0xff] %vm159, %v158
  %s161 = scalar_lea.vmem %s0, 139
  %v162 = vld [vmem:[%s161] sm:$0x1]
  %163 = vrot.lane.b32.xlu0 %v162, 88
  %v164 = vpop.permute.xlu0 %163
  %vm165 = vcmask 786112
  %s166 = scalar_lea.vmem %s1, 8
  %167 = vst.msk [vmem:[%s166] sm:$0x1] %vm165, %v164
  %s168 = scalar_lea.vmem %s0, 10
  %s169 = smov 3
  %v170 = vld [vmem:[%s168] ss:$16 sm:%s169]
  %s171 = scalar_lea.vmem %s0, 10
  %s172 = smov 12
  %v173 = vld [vmem:[%s171] ss:$16 sm:%s172]
  %vm174 = vcmask 1043458
  %v175 = vsel %vm174, %v173, %v170
  %s176 = scalar_lea.vmem %s0, 10
  %s177 = smov 48
  %v178 = vld [vmem:[%s176] ss:$16 sm:%s177]
  %vm179 = vcmask 1045508
  %v180 = vsel %vm179, %v178, %v175
  %s181 = scalar_lea.vmem %s0, 10
  %s182 = smov 192
  %v183 = vld [vmem:[%s181] ss:$16 sm:%s182]
  %vm184 = vcmask 1047558
  %v185 = vsel %vm184, %v183, %v180
  %186 = vrot.lane.b32.xlu0 %v185, 80
  %v187 = vpop.permute.xlu0 %186
  %vm188 = vcmask 720512
  %189 = vst.msk [vmem:[%s1] sm:$0xff] %vm188, %v187
  %s190 = scalar_lea.vmem %s0, 138
  %v191 = vld [vmem:[%s190] sm:$0x1]
  %192 = vrot.lane.b32.xlu0 %v191, 80
  %v193 = vpop.permute.xlu0 %192
  %vm194 = vcmask 720512
  %s195 = scalar_lea.vmem %s1, 8
  %196 = vst.msk [vmem:[%s195] sm:$0x1] %vm194, %v193
  %s197 = scalar_lea.vmem %s0, 9
  %s198 = smov 3
  %v199 = vld [vmem:[%s197] ss:$16 sm:%s198]
  %s200 = scalar_lea.vmem %s0, 9
  %s201 = smov 12
  %v202 = vld [vmem:[%s200] ss:$16 sm:%s201]
  %vm203 = vcmask 1043458
  %v204 = vsel %vm203, %v202, %v199
  %s205 = scalar_lea.vmem %s0, 9
  %s206 = smov 48
  %v207 = vld [vmem:[%s205] ss:$16 sm:%s206]
  %vm208 = vcmask 1045508
  %v209 = vsel %vm208, %v207, %v204
  %s210 = scalar_lea.vmem %s0, 9
  %s211 = smov 192
  %v212 = vld [vmem:[%s210] ss:$16 sm:%s211]
  %vm213 = vcmask 1047558
  %v214 = vsel %vm213, %v212, %v209
  %215 = vrot.lane.b32.xlu0 %v214, 72
  %v216 = vpop.permute.xlu0 %215
  %vm217 = vcmask 654912
  %218 = vst.msk [vmem:[%s1] sm:$0xff] %vm217, %v216
  %s219 = scalar_lea.vmem %s0, 137
  %v220 = vld [vmem:[%s219] sm:$0x1]
  %221 = vrot.lane.b32.xlu0 %v220, 72
  %v222 = vpop.permute.xlu0 %221
  %vm223 = vcmask 654912
  %s224 = scalar_lea.vmem %s1, 8
  %225 = vst.msk [vmem:[%s224] sm:$0x1] %vm223, %v222
  %s226 = scalar_lea.vmem %s0, 8
  %s227 = smov 3
  %v228 = vld [vmem:[%s226] ss:$16 sm:%s227]
  %s229 = scalar_lea.vmem %s0, 8
  %s230 = smov 12
  %v231 = vld [vmem:[%s229] ss:$16 sm:%s230]
  %vm232 = vcmask 1043458
  %v233 = vsel %vm232, %v231, %v228
  %s234 = scalar_lea.vmem %s0, 8
  %s235 = smov 48
  %v236 = vld [vmem:[%s234] ss:$16 sm:%s235]
  %vm237 = vcmask 1045508
  %v238 = vsel %vm237, %v236, %v233
  %s239 = scalar_lea.vmem %s0, 8
  %s240 = smov 192
  %v241 = vld [vmem:[%s239] ss:$16 sm:%s240]
  %vm242 = vcmask 1047558
  %v243 = vsel %vm242, %v241, %v238
  %244 = vrot.lane.b32.xlu0 %v243, 64
  %v245 = vpop.permute.xlu0 %244
  %vm246 = vcmask 589312
  %247 = vst.msk [vmem:[%s1] sm:$0xff] %vm246, %v245
  %s248 = scalar_lea.vmem %s0, 136
  %v249 = vld [vmem:[%s248] sm:$0x1]
  %250 = vrot.lane.b32.xlu0 %v249, 64
  %v251 = vpop.permute.xlu0 %250
  %vm252 = vcmask 589312
  %s253 = scalar_lea.vmem %s1, 8
  %254 = vst.msk [vmem:[%s253] sm:$0x1] %vm252, %v251
  %s255 = scalar_lea.vmem %s0, 7
  %s256 = smov 3
  %v257 = vld [vmem:[%s255] ss:$16 sm:%s256]
  %s258 = scalar_lea.vmem %s0, 7
  %s259 = smov 12
  %v260 = vld [vmem:[%s258] ss:$16 sm:%s259]
  %vm261 = vcmask 1043458
  %v262 = vsel %vm261, %v260, %v257
  %s263 = scalar_lea.vmem %s0, 7
  %s264 = smov 48
  %v265 = vld [vmem:[%s263] ss:$16 sm:%s264]
  %vm266 = vcmask 1045508
  %v267 = vsel %vm266, %v265, %v262
  %s268 = scalar_lea.vmem %s0, 7
  %s269 = smov 192
  %v270 = vld [vmem:[%s268] ss:$16 sm:%s269]
  %vm271 = vcmask 1047558
  %v272 = vsel %vm271, %v270, %v267
  %273 = vrot.lane.b32.xlu0 %v272, 56
  %v274 = vpop.permute.xlu0 %273
  %vm275 = vcmask 523712
  %276 = vst.msk [vmem:[%s1] sm:$0xff] %vm275, %v274
  %s277 = scalar_lea.vmem %s0, 135
  %v278 = vld [vmem:[%s277] sm:$0x1]
  %279 = vrot.lane.b32.xlu0 %v278, 56
  %v280 = vpop.permute.xlu0 %279
  %vm281 = vcmask 523712
  %s282 = scalar_lea.vmem %s1, 8
  %283 = vst.msk [vmem:[%s282] sm:$0x1] %vm281, %v280
  %s284 = scalar_lea.vmem %s0, 6
  %s285 = smov 3
  %v286 = vld [vmem:[%s284] ss:$16 sm:%s285]
  %s287 = scalar_lea.vmem %s0, 6
  %s288 = smov 12
  %v289 = vld [vmem:[%s287] ss:$16 sm:%s288]
  %vm290 = vcmask 1043458
  %v291 = vsel %vm290, %v289, %v286
  %s292 = scalar_lea.vmem %s0, 6
  %s293 = smov 48
  %v294 = vld [vmem:[%s292] ss:$16 sm:%s293]
  %vm295 = vcmask 1045508
  %v296 = vsel %vm295, %v294, %v291
  %s297 = scalar_lea.vmem %s0, 6
  %s298 = smov 192
  %v299 = vld [vmem:[%s297] ss:$16 sm:%s298]
  %vm300 = vcmask 1047558
  %v301 = vsel %vm300, %v299, %v296
  %302 = vrot.lane.b32.xlu0 %v301, 48
  %v303 = vpop.permute.xlu0 %302
  %vm304 = vcmask 458112
  %305 = vst.msk [vmem:[%s1] sm:$0xff] %vm304, %v303
  %s306 = scalar_lea.vmem %s0, 134
  %v307 = vld [vmem:[%s306] sm:$0x1]
  %308 = vrot.lane.b32.xlu0 %v307, 48
  %v309 = vpop.permute.xlu0 %308
  %vm310 = vcmask 458112
  %s311 = scalar_lea.vmem %s1, 8
  %312 = vst.msk [vmem:[%s311] sm:$0x1] %vm310, %v309
  %s313 = scalar_lea.vmem %s0, 5
  %s314 = smov 3
  %v315 = vld [vmem:[%s313] ss:$16 sm:%s314]
  %s316 = scalar_lea.vmem %s0, 5
  %s317 = smov 12
  %v318 = vld [vmem:[%s316] ss:$16 sm:%s317]
  %vm319 = vcmask 1043458
  %v320 = vsel %vm319, %v318, %v315
  %s321 = scalar_lea.vmem %s0, 5
  %s322 = smov 48
  %v323 = vld [vmem:[%s321] ss:$16 sm:%s322]
  %vm324 = vcmask 1045508
  %v325 = vsel %vm324, %v323, %v320
  %s326 = scalar_lea.vmem %s0, 5
  %s327 = smov 192
  %v328 = vld [vmem:[%s326] ss:$16 sm:%s327]
  %vm329 = vcmask 1047558
  %v330 = vsel %vm329, %v328, %v325
  %331 = vrot.lane.b32.xlu0 %v330, 40
  %v332 = vpop.permute.xlu0 %331
  %vm333 = vcmask 392512
  %334 = vst.msk [vmem:[%s1] sm:$0xff] %vm333, %v332
  %s335 = scalar_lea.vmem %s0, 133
  %v336 = vld [vmem:[%s335] sm:$0x1]
  %337 = vrot.lane.b32.xlu0 %v336, 40
  %v338 = vpop.permute.xlu0 %337
  %vm339 = vcmask 392512
  %s340 = scalar_lea.vmem %s1, 8
  %341 = vst.msk [vmem:[%s340] sm:$0x1] %vm339, %v338
  %s342 = scalar_lea.vmem %s0, 4
  %s343 = smov 3
  %v344 = vld [vmem:[%s342] ss:$16 sm:%s343]
  %s345 = scalar_lea.vmem %s0, 4
  %s346 = smov 12
  %v347 = vld [vmem:[%s345] ss:$16 sm:%s346]
  %vm348 = vcmask 1043458
  %v349 = vsel %vm348, %v347, %v344
  %s350 = scalar_lea.vmem %s0, 4
  %s351 = smov 48
  %v352 = vld [vmem:[%s350] ss:$16 sm:%s351]
  %vm353 = vcmask 1045508
  %v354 = vsel %vm353, %v352, %v349
  %s355 = scalar_lea.vmem %s0, 4
  %s356 = smov 192
  %v357 = vld [vmem:[%s355] ss:$16 sm:%s356]
  %vm358 = vcmask 1047558
  %v359 = vsel %vm358, %v357, %v354
  %360 = vrot.lane.b32.xlu0 %v359, 32
  %v361 = vpop.permute.xlu0 %360
  %vm362 = vcmask 326912
  %363 = vst.msk [vmem:[%s1] sm:$0xff] %vm362, %v361
  %s364 = scalar_lea.vmem %s0, 132
  %v365 = vld [vmem:[%s364] sm:$0x1]
  %366 = vrot.lane.b32.xlu0 %v365, 32
  %v367 = vpop.permute.xlu0 %366
  %vm368 = vcmask 326912
  %s369 = scalar_lea.vmem %s1, 8
  %370 = vst.msk [vmem:[%s369] sm:$0x1] %vm368, %v367
  %s371 = scalar_lea.vmem %s0, 3
  %s372 = smov 3
  %v373 = vld [vmem:[%s371] ss:$16 sm:%s372]
  %s374 = scalar_lea.vmem %s0, 3
  %s375 = smov 12
  %v376 = vld [vmem:[%s374] ss:$16 sm:%s375]
  %vm377 = vcmask 1043458
  %v378 = vsel %vm377, %v376, %v373
  %s379 = scalar_lea.vmem %s0, 3
  %s380 = smov 48
  %v381 = vld [vmem:[%s379] ss:$16 sm:%s380]
  %vm382 = vcmask 1045508
  %v383 = vsel %vm382, %v381, %v378
  %s384 = scalar_lea.vmem %s0, 3
  %s385 = smov 192
  %v386 = vld [vmem:[%s384] ss:$16 sm:%s385]
  %vm387 = vcmask 1047558
  %v388 = vsel %vm387, %v386, %v383
  %389 = vrot.lane.b32.xlu0 %v388, 24
  %v390 = vpop.permute.xlu0 %389
  %vm391 = vcmask 261312
  %392 = vst.msk [vmem:[%s1] sm:$0xff] %vm391, %v390
  %s393 = scalar_lea.vmem %s0, 131
  %v394 = vld [vmem:[%s393] sm:$0x1]
  %395 = vrot.lane.b32.xlu0 %v394, 24
  %v396 = vpop.permute.xlu0 %395
  %vm397 = vcmask 261312
  %s398 = scalar_lea.vmem %s1, 8
  %399 = vst.msk [vmem:[%s398] sm:$0x1] %vm397, %v396
  %s400 = scalar_lea.vmem %s0, 2
  %s401 = smov 3
  %v402 = vld [vmem:[%s400] ss:$16 sm:%s401]
  %s403 = scalar_lea.vmem %s0, 2
  %s404 = smov 12
  %v405 = vld [vmem:[%s403] ss:$16 sm:%s404]
  %vm406 = vcmask 1043458
  %v407 = vsel %vm406, %v405, %v402
  %s408 = scalar_lea.vmem %s0, 2
  %s409 = smov 48
  %v410 = vld [vmem:[%s408] ss:$16 sm:%s409]
  %vm411 = vcmask 1045508
  %v412 = vsel %vm411, %v410, %v407
  %s413 = scalar_lea.vmem %s0, 2
  %s414 = smov 192
  %v415 = vld [vmem:[%s413] ss:$16 sm:%s414]
  %vm416 = vcmask 1047558
  %v417 = vsel %vm416, %v415, %v412
  %418 = vrot.lane.b32.xlu0 %v417, 16
  %v419 = vpop.permute.xlu0 %418
  %vm420 = vcmask 195712
  %421 = vst.msk [vmem:[%s1] sm:$0xff] %vm420, %v419
  %s422 = scalar_lea.vmem %s0, 130
  %v423 = vld [vmem:[%s422] sm:$0x1]
  %424 = vrot.lane.b32.xlu0 %v423, 16
  %v425 = vpop.permute.xlu0 %424
  %vm426 = vcmask 195712
  %s427 = scalar_lea.vmem %s1, 8
  %428 = vst.msk [vmem:[%s427] sm:$0x1] %vm426, %v425
  %s429 = scalar_lea.vmem %s0, 1
  %s430 = smov 3
  %v431 = vld [vmem:[%s429] ss:$16 sm:%s430]
  %s432 = scalar_lea.vmem %s0, 1
  %s433 = smov 12
  %v434 = vld [vmem:[%s432] ss:$16 sm:%s433]
  %vm435 = vcmask 1043458
  %v436 = vsel %vm435, %v434, %v431
  %s437 = scalar_lea.vmem %s0, 1
  %s438 = smov 48
  %v439 = vld [vmem:[%s437] ss:$16 sm:%s438]
  %vm440 = vcmask 1045508
  %v441 = vsel %vm440, %v439, %v436
  %s442 = scalar_lea.vmem %s0, 1
  %s443 = smov 192
  %v444 = vld [vmem:[%s442] ss:$16 sm:%s443]
  %vm445 = vcmask 1047558
  %v446 = vsel %vm445, %v444, %v441
  %447 = vrot.lane.b32.xlu0 %v446, 8
  %v448 = vpop.permute.xlu0 %447
  %vm449 = vcmask 130112
  %450 = vst.msk [vmem:[%s1] sm:$0xff] %vm449, %v448
  %s451 = scalar_lea.vmem %s0, 129
  %v452 = vld [vmem:[%s451] sm:$0x1]
  %453 = vrot.lane.b32.xlu0 %v452, 8
  %v454 = vpop.permute.xlu0 %453
  %vm455 = vcmask 130112
  %s456 = scalar_lea.vmem %s1, 8
  %457 = vst.msk [vmem:[%s456] sm:$0x1] %vm455, %v454

// kernel: mixed_layer.1
$region0: #{mixed_layer.1}
  #allocation0 [shape = 'u32[]', space=smem, size = 0x4, offset = 0x4, fixed_abs, tag = 'smem constant byte address 0x4 - core index']
  #allocation1 [shape = 'u32[144,128]{1,0:T(1,128)}', space=vmem, size = 0x12000, scoped, tag = 'internal scratch']
  #allocation2 [shape = 'f32[2,32,128]{2,1,0:T(8,128)}', space=vmem, size = 0x8000, scoped, tag = 'scratch operand']
  %s0 = inlined_call_operand.vmem [shape: f32[32,128], index: 0, kind: input, shape index: {}]
  %s1 = inlined_call_operand.vmem [shape: f32[8], index: 1, kind: input, shape index: {}]
  %s2 = inlined_call_operand.vmem [shape: f32[16,128], index: 2, kind: input, shape index: {}]
  %s3 = inlined_call_operand.vmem [shape: f32[128,128], index: 3, kind: input, shape index: {}]
  %s4 = inlined_call_operand.vmem [shape: f32[102,128], index: 4, kind: input, shape index: {}]
  %s5 = inlined_call_operand.vmem [shape: bf16[6,128,128], index: 5, kind: input, shape index: {}]
  %s6 = inlined_call_operand.vmem [shape: f32[32,128], index: 6, kind: output, shape index: {}]
  %s7 = sld [smem:[#allocation0]]
  $region38: #{mixed_layer.1} parent=0
    _
  %s9 = ssub.s32 1, %s7
  %s10 = scalar_select 0, %s9, %s7
  $region1: #{mixed_layer.1} parent=0
    #allocation3 [shape = 'u8[512]{0}', space=smem, size = 0x200, scoped, tag = 'input window, operand 1, single buffered']
    #allocation4 [shape = 's32[1]{0}', space=sflag, size = 0x4, scoped, tag = 'scoped memory for mixed_layer.1']
    %11 = vsyncpa [#allocation4], 0
    // Predicated region
    $region2: #{mixed_layer.1} parent=1 // pred_check
      _
    $region3: #{mixed_layer.1} parent=1 // pred_check_branch
      %13 = sbr.rel (0) target = $region5
    $region4: #{mixed_layer.1} parent=1 // pred_region
      _
    $region5: #{mixed_layer.1} parent=1 // pred_fallthru
      _
    // Predicated region
    $region6: #{mixed_layer.1} parent=1 // pred_check
      _
    $region7: #{mixed_layer.1} parent=1 // pred_check_branch
      %15 = sbr.rel (0) target = $region9
    $region8: #{mixed_layer.1} parent=1 // pred_region
      %s17 = ssub.s32 16, 16
      %18 = vsyncadd [#allocation4], %s17
      %s20 = sshll.u32 %s1, 4
      %s21 = int_to_ptr.vmem [resolvable:$true] %s20
      %23 = dma.vmem_to_smem %s21, 16, [#allocation3], [#allocation4]
    $region9: #{mixed_layer.1} parent=1 // pred_fallthru
      _
    // Predicated region
    $region10: #{mixed_layer.1} parent=1 // pred_check
      _
    $region11: #{mixed_layer.1} parent=1 // pred_check_branch
      %25 = sbr.rel (0) target = $region13
    $region12: #{mixed_layer.1} parent=1 // pred_region
      _
    $region13: #{mixed_layer.1} parent=1 // pred_fallthru
      _
    // Predicated region
    $region14: #{mixed_layer.1} parent=1 // pred_check
      _
    $region15: #{mixed_layer.1} parent=1 // pred_check_branch
      %27 = sbr.rel (0) target = $region17
    $region16: #{mixed_layer.1} parent=1 // pred_region
      _
    $region17: #{mixed_layer.1} parent=1 // pred_fallthru
      _
    // Predicated region
    $region18: #{mixed_layer.1} parent=1 // pred_check
      _
    $region19: #{mixed_layer.1} parent=1 // pred_check_branch
      %29 = sbr.rel (0) target = $region21
    $region20: #{mixed_layer.1} parent=1 // pred_region
      _
    $region21: #{mixed_layer.1} parent=1 // pred_fallthru
      _
    // Predicated region
    $region22: #{mixed_layer.1} parent=1 // pred_check
      _
    $region23: #{mixed_layer.1} parent=1 // pred_check_branch
      %31 = sbr.rel (0) target = $region25
    $region24: #{mixed_layer.1} parent=1 // pred_region
      _
    $region25: #{mixed_layer.1} parent=1 // pred_fallthru
      _
    // Predicated region
    $region26: #{mixed_layer.1} parent=1 // pred_check
      _
    $region27: #{mixed_layer.1} parent=1 // pred_check_branch
      %33 = sbr.rel (0) target = $region29
    $region28: #{mixed_layer.1} parent=1 // pred_region
      %34 = dma.done [#allocation4], 16
    $region29: #{mixed_layer.1} parent=1 // pred_fallthru
      _
    %35 = sfence
    %v37 = vld [vmem:[%s0] sm:$0xff]
    %v38 = vld [vmem:[%s0 + $0x8] sm:$0xff]
    %v39 = vld [vmem:[%s0 + $0x10] sm:$0xff]
    %v40 = vld [vmem:[%s0 + $0x18] sm:$0xff]
    %v41 = vlaneseq
    %v42 = vand.u32 %v41, 127
    %43 = vst [vmem:[#allocation2] sm:$0xff] -inf
    %44 = vst [vmem:[#allocation2 + $0x20] sm:$0xff] -inf
    %45 = vst [vmem:[#allocation2 + $0x18] sm:$0xff] -inf
    %46 = vst [vmem:[#allocation2 + $0x38] sm:$0xff] -inf
    %47 = vrot.lane.b32.xlu0 %v37, 8
    %v48 = vpop.permute.xlu0 %47
    %49 = vrot.lane.b32.xlu0 %v38, 8
    %v50 = vpop.permute.xlu0 %49
    %51 = vrot.lane.b32.xlu0 %v39, 8
    %v52 = vpop.permute.xlu0 %51
    %53 = vrot.lane.b32.xlu0 %v40, 8
    %v54 = vpop.permute.xlu0 %53
    %vm55 = vcmp.ge.s32.totalorder %v42, 8
    %v56 = vsel %vm55, %v48, -inf
    %v57 = vsel %vm55, %v50, -inf
    %v58 = vsel %vm55, %v52, -inf
    %v59 = vsel %vm55, %v54, -inf
    %60 = vst [vmem:[#allocation2 + $0x8] sm:$0xff] %v56
    %61 = vst [vmem:[#allocation2 + $0x10] sm:$0xff] %v57
    %62 = vst [vmem:[#allocation2 + $0x28] sm:$0xff] %v58
    %63 = vst [vmem:[#allocation2 + $0x30] sm:$0xff] %v59
    %v64 = vld [vmem:[#allocation2 + $0x7] sm:$0xff]
    %v65 = vld [vmem:[#allocation2 + $0xf] sm:$0xff]
    %v66 = vld [vmem:[#allocation2 + $0x27] sm:$0xff]
    %v67 = vld [vmem:[#allocation2 + $0x2f] sm:$0xff]
    %v68 = vld [vmem:[#allocation2 + $0x8] sm:$0xff]
    %v69 = vld [vmem:[#allocation2 + $0x10] sm:$0xff]
    %v70 = vld [vmem:[#allocation2 + $0x28] sm:$0xff]
    %v71 = vld [vmem:[#allocation2 + $0x30] sm:$0xff]
    %v72 = vmax.f32 %v64, %v68
    %v73 = vmax.f32 %v65, %v69
    %v74 = vmax.f32 %v66, %v70
    %v75 = vmax.f32 %v67, %v71
    %v76 = vld [vmem:[#allocation2 + $0x9] sm:$0xff]
    %v77 = vld [vmem:[#allocation2 + $0x11] sm:$0xff]
    %v78 = vld [vmem:[#allocation2 + $0x29] sm:$0xff]
    %v79 = vld [vmem:[#allocation2 + $0x31] sm:$0xff]
    %v80 = vmax.f32 %v72, %v76
    %v81 = vmax.f32 %v73, %v77
    %v82 = vmax.f32 %v74, %v78
    %v83 = vmax.f32 %v75, %v79
    %84 = vst [vmem:[#allocation2 + $0x8] sm:$0xff] %v37
    %85 = vst [vmem:[#allocation2 + $0x10] sm:$0xff] %v38
    %86 = vst [vmem:[#allocation2 + $0x28] sm:$0xff] %v39
    %87 = vst [vmem:[#allocation2 + $0x30] sm:$0xff] %v40
    %v88 = vld [vmem:[#allocation2 + $0x7] sm:$0xff]
    %v89 = vld [vmem:[#allocation2 + $0xf] sm:$0xff]
    %v90 = vld [vmem:[#allocation2 + $0x27] sm:$0xff]
    %v91 = vld [vmem:[#allocation2 + $0x2f] sm:$0xff]
    %v92 = vmax.f32 %v80, %v88
    %v93 = vmax.f32 %v81, %v89
    %v94 = vmax.f32 %v82, %v90
    %v95 = vmax.f32 %v83, %v91
    %v96 = vld [vmem:[#allocation2 + $0x8] sm:$0xff]
    %v97 = vld [vmem:[#allocation2 + $0x10] sm:$0xff]
    %v98 = vld [vmem:[#allocation2 + $0x28] sm:$0xff]
    %v99 = vld [vmem:[#allocation2 + $0x30] sm:$0xff]
    %v100 = vmax.f32 %v92, %v96
    %v101 = vmax.f32 %v93, %v97
    %v102 = vmax.f32 %v94, %v98
    %v103 = vmax.f32 %v95, %v99
    %v104 = vld [vmem:[#allocation2 + $0x9] sm:$0xff]
    %v105 = vld [vmem:[#allocation2 + $0x11] sm:$0xff]
    %v106 = vld [vmem:[#allocation2 + $0x29] sm:$0xff]
    %v107 = vld [vmem:[#allocation2 + $0x31] sm:$0xff]
    %v108 = vmax.f32 %v100, %v104
    %v109 = vmax.f32 %v101, %v105
    %v110 = vmax.f32 %v102, %v106
    %v111 = vmax.f32 %v103, %v107
    %112 = vrot.lane.b32.xlu0 %v37, 120
    %v113 = vpop.permute.xlu0 %112
    %114 = vrot.lane.b32.xlu0 %v38, 120
    %v115 = vpop.permute.xlu0 %114
    %116 = vrot.lane.b32.xlu0 %v39, 120
    %v117 = vpop.permute.xlu0 %116
    %118 = vrot.lane.b32.xlu0 %v40, 120
    %v119 = vpop.permute.xlu0 %118
    %vm120 = vcmp.lt.s32.totalorder %v42, 120
    %v121 = vsel %vm120, %v113, -inf
    %v122 = vsel %vm120, %v115, -inf
    %v123 = vsel %vm120, %v117, -inf
    %v124 = vsel %vm120, %v119, -inf
    %125 = vst [vmem:[#allocation2 + $0x8] sm:$0xff] %v121
    %126 = vst [vmem:[#allocation2 + $0x10] sm:$0xff] %v122
    %127 = vst [vmem:[#allocation2 + $0x28] sm:$0xff] %v123
    %128 = vst [vmem:[#allocation2 + $0x30] sm:$0xff] %v124
    %v129 = vld [vmem:[#allocation2 + $0x7] sm:$0xff]
    %v130 = vld [vmem:[#allocation2 + $0xf] sm:$0xff]
    %v131 = vld [vmem:[#allocation2 + $0x27] sm:$0xff]
    %v132 = vld [vmem:[#allocation2 + $0x2f] sm:$0xff]
    %v133 = vmax.f32 %v108, %v129
    %v134 = vmax.f32 %v109, %v130
    %v135 = vmax.f32 %v110, %v131
    %v136 = vmax.f32 %v111, %v132
    %v137 = vld [vmem:[#allocation2 + $0x8] sm:$0xff]
    %v138 = vld [vmem:[#allocation2 + $0x10] sm:$0xff]
    %v139 = vld [vmem:[#allocation2 + $0x28] sm:$0xff]
    %v140 = vld [vmem:[#allocation2 + $0x30] sm:$0xff]
    %v141 = vmax.f32 %v133, %v137
    %v142 = vmax.f32 %v134, %v138
    %v143 = vmax.f32 %v135, %v139
    %v144 = vmax.f32 %v136, %v140
    %v145 = vld [vmem:[#allocation2 + $0x9] sm:$0xff]
    %v146 = vld [vmem:[#allocation2 + $0x11] sm:$0xff]
    %v147 = vld [vmem:[#allocation2 + $0x29] sm:$0xff]
    %v148 = vld [vmem:[#allocation2 + $0x31] sm:$0xff]
    %v149 = vmax.f32 %v141, %v145
    %v150 = vmax.f32 %v142, %v146
    %v151 = vmax.f32 %v143, %v147
    %v152 = vmax.f32 %v144, %v148
    %153 = vst [vmem:[#allocation2] sm:$0xff] 0.0
    %154 = vst [vmem:[#allocation2 + $0x20] sm:$0xff] 0.0
    %155 = vst [vmem:[#allocation2 + $0x18] sm:$0xff] 0.0
    %156 = vst [vmem:[#allocation2 + $0x38] sm:$0xff] 0.0
    %v157 = vsel %vm55, %v48, 0.0
    %v158 = vsel %vm55, %v50, 0.0
    %v159 = vsel %vm55, %v52, 0.0
    %v160 = vsel %vm55, %v54, 0.0
    %161 = vst [vmem:[#allocation2 + $0x8] sm:$0xff] %v157
    %162 = vst [vmem:[#allocation2 + $0x10] sm:$0xff] %v158
    %163 = vst [vmem:[#allocation2 + $0x28] sm:$0xff] %v159
    %164 = vst [vmem:[#allocation2 + $0x30] sm:$0xff] %v160
    %v165 = vld [vmem:[#allocation2 + $0x7] sm:$0xff]
    %v166 = vld [vmem:[#allocation2 + $0xf] sm:$0xff]
    %v167 = vld [vmem:[#allocation2 + $0x27] sm:$0xff]
    %v168 = vld [vmem:[#allocation2 + $0x2f] sm:$0xff]
    %v169 = vadd.f32 %v165, 0.0
    %v170 = vadd.f32 %v166, 0.0
    %v171 = vadd.f32 %v167, 0.0
    %v172 = vadd.f32 %v168, 0.0
    %v173 = vld [vmem:[#allocation2 + $0x8] sm:$0xff]
    %v174 = vld [vmem:[#allocation2 + $0x10] sm:$0xff]
    %v175 = vld [vmem:[#allocation2 + $0x28] sm:$0xff]
    %v176 = vld [vmem:[#allocation2 + $0x30] sm:$0xff]
    %v177 = vadd.f32 %v169, %v173
    %v178 = vadd.f32 %v170, %v174
    %v179 = vadd.f32 %v171, %v175
    %v180 = vadd.f32 %v172, %v176
    %v181 = vld [vmem:[#allocation2 + $0x9] sm:$0xff]
    %v182 = vld [vmem:[#allocation2 + $0x11] sm:$0xff]
    %v183 = vld [vmem:[#allocation2 + $0x29] sm:$0xff]
    %v184 = vld [vmem:[#allocation2 + $0x31] sm:$0xff]
    %v185 = vadd.f32 %v177, %v181
    %v186 = vadd.f32 %v178, %v182
    %v187 = vadd.f32 %v179, %v183
    %v188 = vadd.f32 %v180, %v184
    %189 = vst [vmem:[#allocation2 + $0x8] sm:$0xff] %v37
    %190 = vst [vmem:[#allocation2 + $0x10] sm:$0xff] %v38
    %191 = vst [vmem:[#allocation2 + $0x28] sm:$0xff] %v39
    %192 = vst [vmem:[#allocation2 + $0x30] sm:$0xff] %v40
    %v193 = vld [vmem:[#allocation2 + $0x7] sm:$0xff]
    %v194 = vld [vmem:[#allocation2 + $0xf] sm:$0xff]
    %v195 = vld [vmem:[#allocation2 + $0x27] sm:$0xff]
    %v196 = vld [vmem:[#allocation2 + $0x2f] sm:$0xff]
    %v197 = vadd.f32 %v185, %v193
    %v198 = vadd.f32 %v186, %v194
    %v199 = vadd.f32 %v187, %v195
    %v200 = vadd.f32 %v188, %v196
    %v201 = vld [vmem:[#allocation2 + $0x8] sm:$0xff]
    %v202 = vld [vmem:[#allocation2 + $0x10] sm:$0xff]
    %v203 = vld [vmem:[#allocation2 + $0x28] sm:$0xff]
    %v204 = vld [vmem:[#allocation2 + $0x30] sm:$0xff]
    %v205 = vadd.f32 %v197, %v201
    %v206 = vadd.f32 %v198, %v202
    %v207 = vadd.f32 %v199, %v203
    %v208 = vadd.f32 %v200, %v204
    %v209 = vld [vmem:[#allocation2 + $0x9] sm:$0xff]
    %v210 = vld [vmem:[#allocation2 + $0x11] sm:$0xff]
    %v211 = vld [vmem:[#allocation2 + $0x29] sm:$0xff]
    %v212 = vld [vmem:[#allocation2 + $0x31] sm:$0xff]
    %v213 = vadd.f32 %v205, %v209
    %v214 = vadd.f32 %v206, %v210
    %v215 = vadd.f32 %v207, %v211
    %v216 = vadd.f32 %v208, %v212
    %v217 = vsel %vm120, %v113, 0.0
    %v218 = vsel %vm120, %v115, 0.0
    %v219 = vsel %vm120, %v117, 0.0
    %v220 = vsel %vm120, %v119, 0.0
    %221 = vst [vmem:[#allocation2 + $0x8] sm:$0xff] %v217
    %222 = vst [vmem:[#allocation2 + $0x10] sm:$0xff] %v218
    %223 = vst [vmem:[#allocation2 + $0x28] sm:$0xff] %v219
    %224 = vst [vmem:[#allocation2 + $0x30] sm:$0xff] %v220
    %v225 = vld [vmem:[#allocation2 + $0x7] sm:$0xff]
    %v226 = vld [vmem:[#allocation2 + $0xf] sm:$0xff]
    %v227 = vld [vmem:[#allocation2 + $0x27] sm:$0xff]
    %v228 = vld [vmem:[#allocation2 + $0x2f] sm:$0xff]
    %v229 = vadd.f32 %v213, %v225
    %v230 = vadd.f32 %v214, %v226
    %v231 = vadd.f32 %v215, %v227
    %v232 = vadd.f32 %v216, %v228
    %v233 = vld [vmem:[#allocation2 + $0x8] sm:$0xff]
    %v234 = vld [vmem:[#allocation2 + $0x10] sm:$0xff]
    %v235 = vld [vmem:[#allocation2 + $0x28] sm:$0xff]
    %v236 = vld [vmem:[#allocation2 + $0x30] sm:$0xff]
    %v237 = vadd.f32 %v229, %v233
    %v238 = vadd.f32 %v230, %v234
    %v239 = vadd.f32 %v231, %v235
    %v240 = vadd.f32 %v232, %v236
    %v241 = vld [vmem:[#allocation2 + $0x9] sm:$0xff]
    %v242 = vld [vmem:[#allocation2 + $0x11] sm:$0xff]
    %v243 = vld [vmem:[#allocation2 + $0x29] sm:$0xff]
    %v244 = vld [vmem:[#allocation2 + $0x31] sm:$0xff]
    %v245 = vadd.f32 %v237, %v241
    %v246 = vadd.f32 %v238, %v242
    %v247 = vadd.f32 %v239, %v243
    %v248 = vadd.f32 %v240, %v244
    %v249 = vld [vmem:[%s2] sm:$0xff]
    %v250 = vld [vmem:[%s2 + $0x8] sm:$0xff]
    %v251 = vmul.f32 %v245, %v249
    %v252 = vmul.f32 %v246, %v250
    %v253 = vmul.f32 %v247, %v249
    %v254 = vmul.f32 %v248, %v250
    %v255 = vmax.f32 %v37, 0.0
    %v256 = vmax.f32 %v38, 0.0
    %v257 = vmax.f32 %v39, 0.0
    %v258 = vmax.f32 %v40, 0.0
    %259 = vrot.lane.b32.xlu0 %v255, 8
    %v260 = vpop.permute.xlu0 %259
    %261 = vrot.lane.b32.xlu0 %v256, 8
    %v262 = vpop.permute.xlu0 %261
    %263 = vrot.lane.b32.xlu0 %v257, 8
    %v264 = vpop.permute.xlu0 %263
    %265 = vrot.lane.b32.xlu0 %v258, 8
    %v266 = vpop.permute.xlu0 %265
    %v267 = vsel %vm55, %v260, 0.0
    %v268 = vsel %vm55, %v262, 0.0
    %v269 = vsel %vm55, %v264, 0.0
    %v270 = vsel %vm55, %v266, 0.0
    %271 = vst [vmem:[#allocation2 + $0x8] sm:$0xff] %v267
    %272 = vst [vmem:[#allocation2 + $0x10] sm:$0xff] %v268
    %273 = vst [vmem:[#allocation2 + $0x28] sm:$0xff] %v269
    %274 = vst [vmem:[#allocation2 + $0x30] sm:$0xff] %v270
    %v275 = vld [vmem:[%s4] sm:$0x1]
    %v276 = vld [vmem:[#allocation2 + $0x7] sm:$0xff]
    %v277 = vld [vmem:[#allocation2 + $0xf] sm:$0xff]
    %v278 = vld [vmem:[#allocation2 + $0x27] sm:$0xff]
    %v279 = vld [vmem:[#allocation2 + $0x2f] sm:$0xff]
    %v280 = vlaneseq
    %v281 = vshrl.u32 %v280, 7
    %v282 = vsub.s32 0, %v281
    %v283 = vrot.slane %v275, %v282
    %v284 = vmul.f32 %v276, %v283
    %v285 = vmul.f32 %v277, %v283
    %v286 = vmul.f32 %v278, %v283
    %v287 = vmul.f32 %v279, %v283
    %v288 = vadd.f32 %v284, 0.0
    %v289 = vadd.f32 %v285, 0.0
    %v290 = vadd.f32 %v286, 0.0
    %v291 = vadd.f32 %v287, 0.0
    %v292 = vld [vmem:[%s4 + $0x3] sm:$0x1]
    %v293 = vld [vmem:[#allocation2 + $0x8] sm:$0xff]
    %v294 = vld [vmem:[#allocation2 + $0x10] sm:$0xff]
    %v295 = vld [vmem:[#allocation2 + $0x28] sm:$0xff]
    %v296 = vld [vmem:[#allocation2 + $0x30] sm:$0xff]
    %v297 = vlaneseq
    %v298 = vshrl.u32 %v297, 7
    %v299 = vsub.s32 0, %v298
    %v300 = vrot.slane %v292, %v299
    %v301 = vmul.f32 %v293, %v300
    %v302 = vmul.f32 %v294, %v300
    %v303 = vmul.f32 %v295, %v300
    %v304 = vmul.f32 %v296, %v300
    %v305 = vadd.f32 %v288, %v301
    %v306 = vadd.f32 %v289, %v302
    %v307 = vadd.f32 %v290, %v303
    %v308 = vadd.f32 %v291, %v304
    %v309 = vld [vmem:[%s4 + $0x6] sm:$0x1]
    %v310 = vld [vmem:[#allocation2 + $0x9] sm:$0xff]
    %v311 = vld [vmem:[#allocation2 + $0x11] sm:$0xff]
    %v312 = vld [vmem:[#allocation2 + $0x29] sm:$0xff]
    %v313 = vld [vmem:[#allocation2 + $0x31] sm:$0xff]
    %v314 = vlaneseq
    %v315 = vshrl.u32 %v314, 7
    %v316 = vsub.s32 0, %v315
    %v317 = vrot.slane %v309, %v316
    %v318 = vmul.f32 %v310, %v317
    %v319 = vmul.f32 %v311, %v317
    %v320 = vmul.f32 %v312, %v317
    %v321 = vmul.f32 %v313, %v317
    %v322 = vadd.f32 %v305, %v318
    %v323 = vadd.f32 %v306, %v319
    %v324 = vadd.f32 %v307, %v320
    %v325 = vadd.f32 %v308, %v321
    %326 = vst [vmem:[#allocation2 + $0x8] sm:$0xff] %v255
    %327 = vst [vmem:[#allocation2 + $0x10] sm:$0xff] %v256
    %328 = vst [vmem:[#allocation2 + $0x28] sm:$0xff] %v257
    %329 = vst [vmem:[#allocation2 + $0x30] sm:$0xff] %v258
    %v330 = vld [vmem:[%s4 + $0x1] sm:$0x1]
    %v331 = vld [vmem:[#allocation2 + $0x7] sm:$0xff]
    %v332 = vld [vmem:[#allocation2 + $0xf] sm:$0xff]
    %v333 = vld [vmem:[#allocation2 + $0x27] sm:$0xff]
    %v334 = vld [vmem:[#allocation2 + $0x2f] sm:$0xff]
    %v335 = vlaneseq
    %v336 = vshrl.u32 %v335, 7
    %v337 = vsub.s32 0, %v336
    %v338 = vrot.slane %v330, %v337
    %v339 = vmul.f32 %v331, %v338
    %v340 = vmul.f32 %v332, %v338
    %v341 = vmul.f32 %v333, %v338
    %v342 = vmul.f32 %v334, %v338
    %v343 = vadd.f32 %v322, %v339
    %v344 = vadd.f32 %v323, %v340
    %v345 = vadd.f32 %v324, %v341
    %v346 = vadd.f32 %v325, %v342
    %v347 = vld [vmem:[%s4 + $0x4] sm:$0x1]
    %v348 = vld [vmem:[#allocation2 + $0x8] sm:$0xff]
    %v349 = vld [vmem:[#allocation2 + $0x10] sm:$0xff]
    %v350 = vld [vmem:[#allocation2 + $0x28] sm:$0xff]
    %v351 = vld [vmem:[#allocation2 + $0x30] sm:$0xff]
    %v352 = vlaneseq
    %v353 = vshrl.u32 %v352, 7
    %v354 = vsub.s32 0, %v353
    %v355 = vrot.slane %v347, %v354
    %v356 = vmul.f32 %v348, %v355
    %v357 = vmul.f32 %v349, %v355
    %v358 = vmul.f32 %v350, %v355
    %v359 = vmul.f32 %v351, %v355
    %v360 = vadd.f32 %v343, %v356
    %v361 = vadd.f32 %v344, %v357
    %v362 = vadd.f32 %v345, %v358
    %v363 = vadd.f32 %v346, %v359
    %v364 = vld [vmem:[%s4 + $0x7] sm:$0x1]
    %v365 = vld [vmem:[#allocation2 + $0x9] sm:$0xff]
    %v366 = vld [vmem:[#allocation2 + $0x11] sm:$0xff]
    %v367 = vld [vmem:[#allocation2 + $0x29] sm:$0xff]
    %v368 = vld [vmem:[#allocation2 + $0x31] sm:$0xff]
    %v369 = vlaneseq
    %v370 = vshrl.u32 %v369, 7
    %v371 = vsub.s32 0, %v370
    %v372 = vrot.slane %v364, %v371
    %v373 = vmul.f32 %v365, %v372
    %v374 = vmul.f32 %v366, %v372
    %v375 = vmul.f32 %v367, %v372
    %v376 = vmul.f32 %v368, %v372
    %v377 = vadd.f32 %v360, %v373
    %v378 = vadd.f32 %v361, %v374
    %v379 = vadd.f32 %v362, %v375
    %v380 = vadd.f32 %v363, %v376
    %381 = vrot.lane.b32.xlu0 %v255, 120
    %v382 = vpop.permute.xlu0 %381
    %383 = vrot.lane.b32.xlu0 %v256, 120
    %v384 = vpop.permute.xlu0 %383
    %385 = vrot.lane.b32.xlu0 %v257, 120
    %v386 = vpop.permute.xlu0 %385
    %387 = vrot.lane.b32.xlu0 %v258, 120
    %v388 = vpop.permute.xlu0 %387
    %v389 = vsel %vm120, %v382, 0.0
    %v390 = vsel %vm120, %v384, 0.0
    %v391 = vsel %vm120, %v386, 0.0
    %v392 = vsel %vm120, %v388, 0.0
    %393 = vst [vmem:[#allocation2 + $0x8] sm:$0xff] %v389
    %394 = vst [vmem:[#allocation2 + $0x10] sm:$0xff] %v390
    %395 = vst [vmem:[#allocation2 + $0x28] sm:$0xff] %v391
    %396 = vst [vmem:[#allocation2 + $0x30] sm:$0xff] %v392
    %v397 = vld [vmem:[%s4 + $0x2] sm:$0x1]
    %v398 = vld [vmem:[#allocation2 + $0x7] sm:$0xff]
    %v399 = vld [vmem:[#allocation2 + $0xf] sm:$0xff]
    %v400 = vld [vmem:[#allocation2 + $0x27] sm:$0xff]
    %v401 = vld [vmem:[#allocation2 + $0x2f] sm:$0xff]
    %v402 = vlaneseq
    %v403 = vshrl.u32 %v402, 7
    %v404 = vsub.s32 0, %v403
    %v405 = vrot.slane %v397, %v404
    %v406 = vmul.f32 %v398, %v405
    %v407 = vmul.f32 %v399, %v405
    %v408 = vmul.f32 %v400, %v405
    %v409 = vmul.f32 %v401, %v405
    %v410 = vadd.f32 %v377, %v406
    %v411 = vadd.f32 %v378, %v407
    %v412 = vadd.f32 %v379, %v408
    %v413 = vadd.f32 %v380, %v409
    %v414 = vld [vmem:[%s4 + $0x5] sm:$0x1]
    %v415 = vld [vmem:[#allocation2 + $0x8] sm:$0xff]
    %v416 = vld [vmem:[#allocation2 + $0x10] sm:$0xff]
    %v417 = vld [vmem:[#allocation2 + $0x28] sm:$0xff]
    %v418 = vld [vmem:[#allocation2 + $0x30] sm:$0xff]
    %v419 = vlaneseq
    %v420 = vshrl.u32 %v419, 7
    %v421 = vsub.s32 0, %v420
    %v422 = vrot.slane %v414, %v421
    %v423 = vmul.f32 %v415, %v422
    %v424 = vmul.f32 %v416, %v422
    %v425 = vmul.f32 %v417, %v422
    %v426 = vmul.f32 %v418, %v422
    %v427 = vadd.f32 %v410, %v423
    %v428 = vadd.f32 %v411, %v424
    %v429 = vadd.f32 %v412, %v425
    %v430 = vadd.f32 %v413, %v426
    %v431 = vld [vmem:[%s4 + $0x8] sm:$0x1]
    %v432 = vld [vmem:[#allocation2 + $0x9] sm:$0xff]
    %v433 = vld [vmem:[#allocation2 + $0x11] sm:$0xff]
    %v434 = vld [vmem:[#allocation2 + $0x29] sm:$0xff]
    %v435 = vld [vmem:[#allocation2 + $0x31] sm:$0xff]
    %v436 = vlaneseq
    %v437 = vshrl.u32 %v436, 7
    %v438 = vsub.s32 0, %v437
    %v439 = vrot.slane %v431, %v438
    %v440 = vmul.f32 %v432, %v439
    %v441 = vmul.f32 %v433, %v439
    %v442 = vmul.f32 %v434, %v439
    %v443 = vmul.f32 %v435, %v439
    %v444 = vadd.f32 %v427, %v440
    %v445 = vadd.f32 %v428, %v441
    %v446 = vadd.f32 %v429, %v442
    %v447 = vadd.f32 %v430, %v443
    %v448 = vpack.c.bf16 %v445, %v444
    %v449 = vpack.c.bf16 %v447, %v446
    %v450 = vld [vmem:[%s5] sm:$0xf]
    %v451 = vld [vmem:[%s5 + $0x4] sm:$0xf]
    %v452 = vld [vmem:[%s5 + $0x8] sm:$0xf]
    %v453 = vld [vmem:[%s5 + $0xc] sm:$0xf]
    %v454 = vld [vmem:[%s5 + $0x10] sm:$0xf]
    %v455 = vld [vmem:[%s5 + $0x14] sm:$0xf]
    %v456 = vld [vmem:[%s5 + $0x18] sm:$0xf]
    %v457 = vld [vmem:[%s5 + $0x1c] sm:$0xf]
    %v458 = vld [vmem:[%s5 + $0x20] sm:$0xf]
    %v459 = vld [vmem:[%s5 + $0x24] sm:$0xf]
    %v460 = vld [vmem:[%s5 + $0x28] sm:$0xf]
    %v461 = vld [vmem:[%s5 + $0x2c] sm:$0xf]
    %v462 = vld [vmem:[%s5 + $0x30] sm:$0xf]
    %v463 = vld [vmem:[%s5 + $0x34] sm:$0xf]
    %v464 = vld [vmem:[%s5 + $0x38] sm:$0xf]
    %v465 = vld [vmem:[%s5 + $0x3c] sm:$0xf]
    %v482 = vunpack.c.l.b16 %v450
    %v483 = vunpack.c.l.b16 %v451
    %v484 = vunpack.c.l.b16 %v452
    %v485 = vunpack.c.l.b16 %v453
    %v486 = vunpack.c.l.b16 %v454
    %v487 = vunpack.c.l.b16 %v455
    %v488 = vunpack.c.l.b16 %v456
    %v489 = vunpack.c.l.b16 %v457
    %v490 = vunpack.c.l.b16 %v458
    %v491 = vunpack.c.l.b16 %v459
    %v492 = vunpack.c.l.b16 %v460
    %v493 = vunpack.c.l.b16 %v461
    %v494 = vunpack.c.l.b16 %v462
    %v495 = vunpack.c.l.b16 %v463
    %v496 = vunpack.c.l.b16 %v464
    %v497 = vunpack.c.l.b16 %v465
    %v498 = vpack.c.b16 %v483, %v482
    %v499 = vpack.c.b16 %v485, %v484
    %v500 = vpack.c.b16 %v487, %v486
    %v501 = vpack.c.b16 %v489, %v488
    %v502 = vpack.c.b16 %v491, %v490
    %v503 = vpack.c.b16 %v493, %v492
    %v504 = vpack.c.b16 %v495, %v494
    %v505 = vpack.c.b16 %v497, %v496
    %514 = vmatprep.subr.bf16.mxu0 0
    %515 = vmatpush1.bf16.msra.mxu0 %v505
    %516 = vmatprep.subr.bf16.mxu0 0
    %517 = vmatpush1.bf16.msra.mxu0 %v504
    %518 = vmatprep.subr.bf16.mxu0 0
    %519 = vmatpush1.bf16.msra.mxu0 %v503
    %520 = vmatprep.subr.bf16.mxu0 0
    %521 = vmatpush1.bf16.msra.mxu0 %v502
    %522 = vmatprep.subr.bf16.mxu0 0
    %523 = vmatpush1.bf16.msra.mxu0 %v501
    %524 = vmatprep.subr.bf16.mxu0 0
    %525 = vmatpush1.bf16.msra.mxu0 %v500
    %526 = vmatprep.subr.bf16.mxu0 0
    %527 = vmatpush1.bf16.msra.mxu0 %v499
    %528 = vmatprep.subr.bf16.mxu0 0
    %529 = vmatpush1.bf16.msra.mxu0 %v498
    %530 = vmatprep.subr.bf16.mxu0 0
    %531 = vmatpush2.bf16.msra.mxu0 0
    %532 = vmatprep.subr.bf16.mxu0 0
    %533 = vmatpush2.bf16.msra.mxu0 0
    %534 = vmatprep.subr.bf16.mxu0 0
    %535 = vmatpush2.bf16.msra.mxu0 0
    %536 = vmatprep.subr.bf16.mxu0 0
    %537 = vmatpush2.bf16.msra.mxu0 0
    %538 = vmatprep.subr.bf16.mxu0 0
    %539 = vmatpush2.bf16.msra.mxu0 0
    %540 = vmatprep.subr.bf16.mxu0 0
    %541 = vmatpush2.bf16.msra.mxu0 0
    %542 = vmatprep.subr.bf16.mxu0 0
    %543 = vmatpush2.bf16.msra.mxu0 0
    %544 = vmatprep.subr.bf16.mxu0 0
    %545 = vmatpush2.bf16.msra.mxu0 0
    %546 = vmatprep.mubr.bf16.mxu0 0
    %547 = vmatmul.mubr.bf16.gmra.mxu0 %v448
    %v548 = vpop.f32.mrf.mxu0
    %v549 = vadd.f32 0.0, %v548
    %v550 = vpop.f32.mrf.mxu0
    %v551 = vpop.f32.mrf.mxu0
    %v552 = vadd.f32 0.0, %v551
    %v553 = vpop.f32.mrf.mxu0
    %554 = vmatprep.mubr.bf16.mxu0 0
    %555 = vmatmul.mubr.bf16.gmra.mxu0 %v449
    %v556 = vpop.f32.mrf.mxu0
    %v557 = vadd.f32 0.0, %v556
    %v558 = vpop.f32.mrf.mxu0
    %v559 = vpop.f32.mrf.mxu0
    %v560 = vadd.f32 0.0, %v559
    %v561 = vpop.f32.mrf.mxu0
    %562 = vdwg.mxu0
    %563 = vrot.lane.b32.xlu0 %v255, 16
    %v564 = vpop.permute.xlu0 %563
    %565 = vrot.lane.b32.xlu0 %v256, 16
    %v566 = vpop.permute.xlu0 %565
    %567 = vrot.lane.b32.xlu0 %v257, 16
    %v568 = vpop.permute.xlu0 %567
    %569 = vrot.lane.b32.xlu0 %v258, 16
    %v570 = vpop.permute.xlu0 %569
    %vm571 = vcmp.ge.s32.totalorder %v42, 16
    %v572 = vsel %vm571, %v564, 0.0
    %v573 = vsel %vm571, %v566, 0.0
    %v574 = vsel %vm571, %v568, 0.0
    %v575 = vsel %vm571, %v570, 0.0
    %576 = vst [vmem:[#allocation2 + $0x8] sm:$0xff] %v572
    %577 = vst [vmem:[#allocation2 + $0x10] sm:$0xff] %v573
    %578 = vst [vmem:[#allocation2 + $0x28] sm:$0xff] %v574
    %579 = vst [vmem:[#allocation2 + $0x30] sm:$0xff] %v575
    %v580 = vld [vmem:[%s4 + $0x1b] sm:$0x1]
    %v581 = vld [vmem:[#allocation2 + $0x6] sm:$0xff]
    %v582 = vld [vmem:[#allocation2 + $0xe] sm:$0xff]
    %v583 = vld [vmem:[#allocation2 + $0x26] sm:$0xff]
    %v584 = vld [vmem:[#allocation2 + $0x2e] sm:$0xff]
    %v585 = vlaneseq
    %v586 = vshrl.u32 %v585, 7
    %v587 = vsub.s32 0, %v586
    %v588 = vrot.slane %v580, %v587
    %v589 = vmul.f32 %v581, %v588
    %v590 = vmul.f32 %v582, %v588
    %v591 = vmul.f32 %v583, %v588
    %v592 = vmul.f32 %v584, %v588
    %v593 = vadd.f32 %v589, 0.0
    %v594 = vadd.f32 %v590, 0.0
    %v595 = vadd.f32 %v591, 0.0
    %v596 = vadd.f32 %v592, 0.0
    %v597 = vld [vmem:[%s4 + $0x20] sm:$0x1]
    %v598 = vld [vmem:[#allocation2 + $0x7] sm:$0xff]
    %v599 = vld [vmem:[#allocation2 + $0xf] sm:$0xff]
    %v600 = vld [vmem:[#allocation2 + $0x27] sm:$0xff]
    %v601 = vld [vmem:[#allocation2 + $0x2f] sm:$0xff]
    %v602 = vlaneseq
    %v603 = vshrl.u32 %v602, 7
    %v604 = vsub.s32 0, %v603
    %v605 = vrot.slane %v597, %v604
    %v606 = vmul.f32 %v598, %v605
    %v607 = vmul.f32 %v599, %v605
    %v608 = vmul.f32 %v600, %v605
    %v609 = vmul.f32 %v601, %v605
    %v610 = vadd.f32 %v593, %v606
    %v611 = vadd.f32 %v594, %v607
    %v612 = vadd.f32 %v595, %v608
    %v613 = vadd.f32 %v596, %v609
    %v614 = vld [vmem:[%s4 + $0x25] sm:$0x1]
    %v615 = vld [vmem:[#allocation2 + $0x8] sm:$0xff]
    %v616 = vld [vmem:[#allocation2 + $0x10] sm:$0xff]
    %v617 = vld [vmem:[#allocation2 + $0x28] sm:$0xff]
    %v618 = vld [vmem:[#allocation2 + $0x30] sm:$0xff]
    %v619 = vlaneseq
    %v620 = vshrl.u32 %v619, 7
    %v621 = vsub.s32 0, %v620
    %v622 = vrot.slane %v614, %v621
    %v623 = vmul.f32 %v615, %v622
    %v624 = vmul.f32 %v616, %v622
    %v625 = vmul.f32 %v617, %v622
    %v626 = vmul.f32 %v618, %v622
    %v627 = vadd.f32 %v610, %v623
    %v628 = vadd.f32 %v611, %v624
    %v629 = vadd.f32 %v612, %v625
    %v630 = vadd.f32 %v613, %v626
    %v631 = vld [vmem:[%s4 + $0x2a] sm:$0x1]
    %v632 = vld [vmem:[#allocation2 + $0x9] sm:$0xff]
    %v633 = vld [vmem:[#allocation2 + $0x11] sm:$0xff]
    %v634 = vld [vmem:[#allocation2 + $0x29] sm:$0xff]
    %v635 = vld [vmem:[#allocation2 + $0x31] sm:$0xff]
    %v636 = vlaneseq
    %v637 = vshrl.u32 %v636, 7
    %v638 = vsub.s32 0, %v637
    %v639 = vrot.slane %v631, %v638
    %v640 = vmul.f32 %v632, %v639
    %v641 = vmul.f32 %v633, %v639
    %v642 = vmul.f32 %v634, %v639
    %v643 = vmul.f32 %v635, %v639
    %v644 = vadd.f32 %v627, %v640
    %v645 = vadd.f32 %v628, %v641
    %v646 = vadd.f32 %v629, %v642
    %v647 = vadd.f32 %v630, %v643
    %v648 = vld [vmem:[%s4 + $0x2f] sm:$0x1]
    %v649 = vld [vmem:[#allocation2 + $0xa] sm:$0xff]
    %v650 = vld [vmem:[#allocation2 + $0x12] sm:$0xff]
    %v651 = vld [vmem:[#allocation2 + $0x2a] sm:$0xff]
    %v652 = vld [vmem:[#allocation2 + $0x32] sm:$0xff]
    %v653 = vlaneseq
    %v654 = vshrl.u32 %v653, 7
    %v655 = vsub.s32 0, %v654
    %v656 = vrot.slane %v648, %v655
    %v657 = vmul.f32 %v649, %v656
    %v658 = vmul.f32 %v650, %v656
    %v659 = vmul.f32 %v651, %v656
    %v660 = vmul.f32 %v652, %v656
    %v661 = vadd.f32 %v644, %v657
    %v662 = vadd.f32 %v645, %v658
    %v663 = vadd.f32 %v646, %v659
    %v664 = vadd.f32 %v647, %v660
    %665 = vst [vmem:[#allocation2 + $0x8] sm:$0xff] %v267
    %666 = vst [vmem:[#allocation2 + $0x10] sm:$0xff] %v268
    %667 = vst [vmem:[#allocation2 + $0x28] sm:$0xff] %v269
    %668 = vst [vmem:[#allocation2 + $0x30] sm:$0xff] %v270
    %v669 = vld [vmem:[%s4 + $0x1c] sm:$0x1]
    %v670 = vld [vmem:[#allocation2 + $0x6] sm:$0xff]
    %v671 = vld [vmem:[#allocation2 + $0xe] sm:$0xff]
    %v672 = vld [vmem:[#allocation2 + $0x26] sm:$0xff]
    %v673 = vld [vmem:[#allocation2 + $0x2e] sm:$0xff]
    %v674 = vlaneseq
    %v675 = vshrl.u32 %v674, 7
    %v676 = vsub.s32 0, %v675
    %v677 = vrot.slane %v669, %v676
    %v678 = vmul.f32 %v670, %v677
    %v679 = vmul.f32 %v671, %v677
    %v680 = vmul.f32 %v672, %v677
    %v681 = vmul.f32 %v673, %v677
    %v682 = vadd.f32 %v661, %v678
    %v683 = vadd.f32 %v662, %v679
    %v684 = vadd.f32 %v663, %v680
    %v685 = vadd.f32 %v664, %v681
    %v686 = vld [vmem:[%s4 + $0x21] sm:$0x1]
    %v687 = vld [vmem:[#allocation2 + $0x7] sm:$0xff]
    %v688 = vld [vmem:[#allocation2 + $0xf] sm:$0xff]
    %v689 = vld [vmem:[#allocation2 + $0x27] sm:$0xff]
    %v690 = vld [vmem:[#allocation2 + $0x2f] sm:$0xff]
    %v691 = vlaneseq
    %v692 = vshrl.u32 %v691, 7
    %v693 = vsub.s32 0, %v692
    %v694 = vrot.slane %v686, %v693
    %v695 = vmul.f32 %v687, %v694
    %v696 = vmul.f32 %v688, %v694
    %v697 = vmul.f32 %v689, %v694
    %v698 = vmul.f32 %v690, %v694
    %v699 = vadd.f32 %v682, %v695
    %v700 = vadd.f32 %v683, %v696
    %v701 = vadd.f32 %v684, %v697
    %v702 = vadd.f32 %v685, %v698
    %v703 = vld [vmem:[%s4 + $0x26] sm:$0x1]
    %v704 = vld [vmem:[#allocation2 + $0x8] sm:$0xff]
    %v705 = vld [vmem:[#allocation2 + $0x10] sm:$0xff]
    %v706 = vld [vmem:[#allocation2 + $0x28] sm:$0xff]
    %v707 = vld [vmem:[#allocation2 + $0x30] sm:$0xff]
    %v708 = vlaneseq
    %v709 = vshrl.u32 %v708, 7
    %v710 = vsub.s32 0, %v709
    %v711 = vrot.slane %v703, %v710
    %v712 = vmul.f32 %v704, %v711
    %v713 = vmul.f32 %v705, %v711
    %v714 = vmul.f32 %v706, %v711
    %v715 = vmul.f32 %v707, %v711
    %v716 = vadd.f32 %v699, %v712
    %v717 = vadd.f32 %v700, %v713
    %v718 = vadd.f32 %v701, %v714
    %v719 = vadd.f32 %v702, %v715
    %v720 = vld [vmem:[%s4 + $0x2b] sm:$0x1]
    %v721 = vld [vmem:[#allocation2 + $0x9] sm:$0xff]
    %v722 = vld [vmem:[#allocation2 + $0x11] sm:$0xff]
    %v723 = vld [vmem:[#allocation2 + $0x29] sm:$0xff]
    %v724 = vld [vmem:[#allocation2 + $0x31] sm:$0xff]
    %v725 = vlaneseq
    %v726 = vshrl.u32 %v725, 7
    %v727 = vsub.s32 0, %v726
    %v728 = vrot.slane %v720, %v727
    %v729 = vmul.f32 %v721, %v728
    %v730 = vmul.f32 %v722, %v728
    %v731 = vmul.f32 %v723, %v728
    %v732 = vmul.f32 %v724, %v728
    %v733 = vadd.f32 %v716, %v729
    %v734 = vadd.f32 %v717, %v730
    %v735 = vadd.f32 %v718, %v731
    %v736 = vadd.f32 %v719, %v732
    %v737 = vld [vmem:[%s4 + $0x30] sm:$0x1]
    %v738 = vld [vmem:[#allocation2 + $0xa] sm:$0xff]
    %v739 = vld [vmem:[#allocation2 + $0x12] sm:$0xff]
    %v740 = vld [vmem:[#allocation2 + $0x2a] sm:$0xff]
    %v741 = vld [vmem:[#allocation2 + $0x32] sm:$0xff]
    %v742 = vlaneseq
    %v743 = vshrl.u32 %v742, 7
    %v744 = vsub.s32 0, %v743
    %v745 = vrot.slane %v737, %v744
    %v746 = vmul.f32 %v738, %v745
    %v747 = vmul.f32 %v739, %v745
    %v748 = vmul.f32 %v740, %v745
    %v749 = vmul.f32 %v741, %v745
    %v750 = vadd.f32 %v733, %v746
    %v751 = vadd.f32 %v734, %v747
    %v752 = vadd.f32 %v735, %v748
    %v753 = vadd.f32 %v736, %v749
    %754 = vst [vmem:[#allocation2 + $0x8] sm:$0xff] %v255
    %755 = vst [vmem:[#allocation2 + $0x10] sm:$0xff] %v256
    %756 = vst [vmem:[#allocation2 + $0x28] sm:$0xff] %v257
    %757 = vst [vmem:[#allocation2 + $0x30] sm:$0xff] %v258
    %v758 = vld [vmem:[%s4 + $0x1d] sm:$0x1]
    %v759 = vld [vmem:[#allocation2 + $0x6] sm:$0xff]
    %v760 = vld [vmem:[#allocation2 + $0xe] sm:$0xff]
    %v761 = vld [vmem:[#allocation2 + $0x26] sm:$0xff]
    %v762 = vld [vmem:[#allocation2 + $0x2e] sm:$0xff]
    %v763 = vlaneseq
    %v764 = vshrl.u32 %v763, 7
    %v765 = vsub.s32 0, %v764
    %v766 = vrot.slane %v758, %v765
    %v767 = vmul.f32 %v759, %v766
    %v768 = vmul.f32 %v760, %v766
    %v769 = vmul.f32 %v761, %v766
    %v770 = vmul.f32 %v762, %v766
    %v771 = vadd.f32 %v750, %v767
    %v772 = vadd.f32 %v751, %v768
    %v773 = vadd.f32 %v752, %v769
    %v774 = vadd.f32 %v753, %v770
    %v775 = vld [vmem:[%s4 + $0x22] sm:$0x1]
    %v776 = vld [vmem:[#allocation2 + $0x7] sm:$0xff]
    %v777 = vld [vmem:[#allocation2 + $0xf] sm:$0xff]
    %v778 = vld [vmem:[#allocation2 + $0x27] sm:$0xff]
    %v779 = vld [vmem:[#allocation2 + $0x2f] sm:$0xff]
    %v780 = vlaneseq
    %v781 = vshrl.u32 %v780, 7
    %v782 = vsub.s32 0, %v781
    %v783 = vrot.slane %v775, %v782
    %v784 = vmul.f32 %v776, %v783
    %v785 = vmul.f32 %v777, %v783
    %v786 = vmul.f32 %v778, %v783
    %v787 = vmul.f32 %v779, %v783
    %v788 = vadd.f32 %v771, %v784
    %v789 = vadd.f32 %v772, %v785
    %v790 = vadd.f32 %v773, %v786
    %v791 = vadd.f32 %v774, %v787
    %v792 = vld [vmem:[%s4 + $0x27] sm:$0x1]
    %v793 = vld [vmem:[#allocation2 + $0x8] sm:$0xff]
    %v794 = vld [vmem:[#allocation2 + $0x10] sm:$0xff]
    %v795 = vld [vmem:[#allocation2 + $0x28] sm:$0xff]
    %v796 = vld [vmem:[#allocation2 + $0x30] sm:$0xff]
    %v797 = vlaneseq
    %v798 = vshrl.u32 %v797, 7
    %v799 = vsub.s32 0, %v798
    %v800 = vrot.slane %v792, %v799
    %v801 = vmul.f32 %v793, %v800
    %v802 = vmul.f32 %v794, %v800
    %v803 = vmul.f32 %v795, %v800
    %v804 = vmul.f32 %v796, %v800
    %v805 = vadd.f32 %v788, %v801
    %v806 = vadd.f32 %v789, %v802
    %v807 = vadd.f32 %v790, %v803
    %v808 = vadd.f32 %v791, %v804
    %v809 = vld [vmem:[%s4 + $0x2c] sm:$0x1]
    %v810 = vld [vmem:[#allocation2 + $0x9] sm:$0xff]
    %v811 = vld [vmem:[#allocation2 + $0x11] sm:$0xff]
    %v812 = vld [vmem:[#allocation2 + $0x29] sm:$0xff]
    %v813 = vld [vmem:[#allocation2 + $0x31] sm:$0xff]
    %v814 = vlaneseq
    %v815 = vshrl.u32 %v814, 7
    %v816 = vsub.s32 0, %v815
    %v817 = vrot.slane %v809, %v816
    %v818 = vmul.f32 %v810, %v817
    %v819 = vmul.f32 %v811, %v817
    %v820 = vmul.f32 %v812, %v817
    %v821 = vmul.f32 %v813, %v817
    %v822 = vadd.f32 %v805, %v818
    %v823 = vadd.f32 %v806, %v819
    %v824 = vadd.f32 %v807, %v820
    %v825 = vadd.f32 %v808, %v821
    %v826 = vld [vmem:[%s4 + $0x31] sm:$0x1]
    %v827 = vld [vmem:[#allocation2 + $0xa] sm:$0xff]
    %v828 = vld [vmem:[#allocation2 + $0x12] sm:$0xff]
    %v829 = vld [vmem:[#allocation2 + $0x2a] sm:$0xff]
    %v830 = vld [vmem:[#allocation2 + $0x32] sm:$0xff]
    %v831 = vlaneseq
    %v832 = vshrl.u32 %v831, 7
    %v833 = vsub.s32 0, %v832
    %v834 = vrot.slane %v826, %v833
    %v835 = vmul.f32 %v827, %v834
    %v836 = vmul.f32 %v828, %v834
    %v837 = vmul.f32 %v829, %v834
    %v838 = vmul.f32 %v830, %v834
    %v839 = vadd.f32 %v822, %v835
    %v840 = vadd.f32 %v823, %v836
    %v841 = vadd.f32 %v824, %v837
    %v842 = vadd.f32 %v825, %v838
    %843 = vst [vmem:[#allocation2 + $0x8] sm:$0xff] %v389
    %844 = vst [vmem:[#allocation2 + $0x10] sm:$0xff] %v390
    %845 = vst [vmem:[#allocation2 + $0x28] sm:$0xff] %v391
    %846 = vst [vmem:[#allocation2 + $0x30] sm:$0xff] %v392
    %v847 = vld [vmem:[%s4 + $0x1e] sm:$0x1]
    %v848 = vld [vmem:[#allocation2 + $0x6] sm:$0xff]
    %v849 = vld [vmem:[#allocation2 + $0xe] sm:$0xff]
    %v850 = vld [vmem:[#allocation2 + $0x26] sm:$0xff]
    %v851 = vld [vmem:[#allocation2 + $0x2e] sm:$0xff]
    %v852 = vlaneseq
    %v853 = vshrl.u32 %v852, 7
    %v854 = vsub.s32 0, %v853
    %v855 = vrot.slane %v847, %v854
    %v856 = vmul.f32 %v848, %v855
    %v857 = vmul.f32 %v849, %v855
    %v858 = vmul.f32 %v850, %v855
    %v859 = vmul.f32 %v851, %v855
    %v860 = vadd.f32 %v839, %v856
    %v861 = vadd.f32 %v840, %v857
    %v862 = vadd.f32 %v841, %v858
    %v863 = vadd.f32 %v842, %v859
    %v864 = vld [vmem:[%s4 + $0x23] sm:$0x1]
    %v865 = vld [vmem:[#allocation2 + $0x7] sm:$0xff]
    %v866 = vld [vmem:[#allocation2 + $0xf] sm:$0xff]
    %v867 = vld [vmem:[#allocation2 + $0x27] sm:$0xff]
    %v868 = vld [vmem:[#allocation2 + $0x2f] sm:$0xff]
    %v869 = vlaneseq
    %v870 = vshrl.u32 %v869, 7
    %v871 = vsub.s32 0, %v870
    %v872 = vrot.slane %v864, %v871
    %v873 = vmul.f32 %v865, %v872
    %v874 = vmul.f32 %v866, %v872
    %v875 = vmul.f32 %v867, %v872
    %v876 = vmul.f32 %v868, %v872
    %v877 = vadd.f32 %v860, %v873
    %v878 = vadd.f32 %v861, %v874
    %v879 = vadd.f32 %v862, %v875
    %v880 = vadd.f32 %v863, %v876
    %v881 = vld [vmem:[%s4 + $0x28] sm:$0x1]
    %v882 = vld [vmem:[#allocation2 + $0x8] sm:$0xff]
    %v883 = vld [vmem:[#allocation2 + $0x10] sm:$0xff]
    %v884 = vld [vmem:[#allocation2 + $0x28] sm:$0xff]
    %v885 = vld [vmem:[#allocation2 + $0x30] sm:$0xff]
    %v886 = vlaneseq
    %v887 = vshrl.u32 %v886, 7
    %v888 = vsub.s32 0, %v887
    %v889 = vrot.slane %v881, %v888
    %v890 = vmul.f32 %v882, %v889
    %v891 = vmul.f32 %v883, %v889
    %v892 = vmul.f32 %v884, %v889
    %v893 = vmul.f32 %v885, %v889
    %v894 = vadd.f32 %v877, %v890
    %v895 = vadd.f32 %v878, %v891
    %v896 = vadd.f32 %v879, %v892
    %v897 = vadd.f32 %v880, %v893
    %v898 = vld [vmem:[%s4 + $0x2d] sm:$0x1]
    %v899 = vld [vmem:[#allocation2 + $0x9] sm:$0xff]
    %v900 = vld [vmem:[#allocation2 + $0x11] sm:$0xff]
    %v901 = vld [vmem:[#allocation2 + $0x29] sm:$0xff]
    %v902 = vld [vmem:[#allocation2 + $0x31] sm:$0xff]
    %v903 = vlaneseq
    %v904 = vshrl.u32 %v903, 7
    %v905 = vsub.s32 0, %v904
    %v906 = vrot.slane %v898, %v905
    %v907 = vmul.f32 %v899, %v906
    %v908 = vmul.f32 %v900, %v906
    %v909 = vmul.f32 %v901, %v906
    %v910 = vmul.f32 %v902, %v906
    %v911 = vadd.f32 %v894, %v907
    %v912 = vadd.f32 %v895, %v908
    %v913 = vadd.f32 %v896, %v909
    %v914 = vadd.f32 %v897, %v910
    %v915 = vld [vmem:[%s4 + $0x32] sm:$0x1]
    %v916 = vld [vmem:[#allocation2 + $0xa] sm:$0xff]
    %v917 = vld [vmem:[#allocation2 + $0x12] sm:$0xff]
    %v918 = vld [vmem:[#allocation2 + $0x2a] sm:$0xff]
    %v919 = vld [vmem:[#allocation2 + $0x32] sm:$0xff]
    %v920 = vlaneseq
    %v921 = vshrl.u32 %v920, 7
    %v922 = vsub.s32 0, %v921
    %v923 = vrot.slane %v915, %v922
    %v924 = vmul.f32 %v916, %v923
    %v925 = vmul.f32 %v917, %v923
    %v926 = vmul.f32 %v918, %v923
    %v927 = vmul.f32 %v919, %v923
    %v928 = vadd.f32 %v911, %v924
    %v929 = vadd.f32 %v912, %v925
    %v930 = vadd.f32 %v913, %v926
    %v931 = vadd.f32 %v914, %v927
    %932 = vrot.lane.b32.xlu0 %v255, 112
    %v933 = vpop.permute.xlu0 %932
    %934 = vrot.lane.b32.xlu0 %v256, 112
    %v935 = vpop.permute.xlu0 %934
    %936 = vrot.lane.b32.xlu0 %v257, 112
    %v937 = vpop.permute.xlu0 %936
    %938 = vrot.lane.b32.xlu0 %v258, 112
    %v939 = vpop.permute.xlu0 %938
    %vm940 = vcmp.lt.s32.totalorder %v42, 112
    %v941 = vsel %vm940, %v933, 0.0
    %v942 = vsel %vm940, %v935, 0.0
    %v943 = vsel %vm940, %v937, 0.0
    %v944 = vsel %vm940, %v939, 0.0
    %945 = vst [vmem:[#allocation2 + $0x8] sm:$0xff] %v941
    %946 = vst [vmem:[#allocation2 + $0x10] sm:$0xff] %v942
    %947 = vst [vmem:[#allocation2 + $0x28] sm:$0xff] %v943
    %948 = vst [vmem:[#allocation2 + $0x30] sm:$0xff] %v944
    %v949 = vld [vmem:[%s4 + $0x1f] sm:$0x1]
    %v950 = vld [vmem:[#allocation2 + $0x6] sm:$0xff]
    %v951 = vld [vmem:[#allocation2 + $0xe] sm:$0xff]
    %v952 = vld [vmem:[#allocation2 + $0x26] sm:$0xff]
    %v953 = vld [vmem:[#allocation2 + $0x2e] sm:$0xff]
    %v954 = vlaneseq
    %v955 = vshrl.u32 %v954, 7
    %v956 = vsub.s32 0, %v955
    %v957 = vrot.slane %v949, %v956
    %v958 = vmul.f32 %v950, %v957
    %v959 = vmul.f32 %v951, %v957
    %v960 = vmul.f32 %v952, %v957
    %v961 = vmul.f32 %v953, %v957
    %v962 = vadd.f32 %v928, %v958
    %v963 = vadd.f32 %v929, %v959
    %v964 = vadd.f32 %v930, %v960
    %v965 = vadd.f32 %v931, %v961
    %v966 = vld [vmem:[%s4 + $0x24] sm:$0x1]
    %v967 = vld [vmem:[#allocation2 + $0x7] sm:$0xff]
    %v968 = vld [vmem:[#allocation2 + $0xf] sm:$0xff]
    %v969 = vld [vmem:[#allocation2 + $0x27] sm:$0xff]
    %v970 = vld [vmem:[#allocation2 + $0x2f] sm:$0xff]
    %v971 = vlaneseq
    %v972 = vshrl.u32 %v971, 7
    %v973 = vsub.s32 0, %v972
    %v974 = vrot.slane %v966, %v973
    %v975 = vmul.f32 %v967, %v974
    %v976 = vmul.f32 %v968, %v974
    %v977 = vmul.f32 %v969, %v974
    %v978 = vmul.f32 %v970, %v974
    %v979 = vadd.f32 %v962, %v975
    %v980 = vadd.f32 %v963, %v976
    %v981 = vadd.f32 %v964, %v977
    %v982 = vadd.f32 %v965, %v978
    %v983 = vld [vmem:[%s4 + $0x29] sm:$0x1]
    %v984 = vld [vmem:[#allocation2 + $0x8] sm:$0xff]
    %v985 = vld [vmem:[#allocation2 + $0x10] sm:$0xff]
    %v986 = vld [vmem:[#allocation2 + $0x28] sm:$0xff]
    %v987 = vld [vmem:[#allocation2 + $0x30] sm:$0xff]
    %v988 = vlaneseq
    %v989 = vshrl.u32 %v988, 7
    %v990 = vsub.s32 0, %v989
    %v991 = vrot.slane %v983, %v990
    %v992 = vmul.f32 %v984, %v991
    %v993 = vmul.f32 %v985, %v991
    %v994 = vmul.f32 %v986, %v991
    %v995 = vmul.f32 %v987, %v991
    %v996 = vadd.f32 %v979, %v992
    %v997 = vadd.f32 %v980, %v993
    %v998 = vadd.f32 %v981, %v994
    %v999 = vadd.f32 %v982, %v995
    %v1000 = vld [vmem:[%s4 + $0x2e] sm:$0x1]
    %v1001 = vld [vmem:[#allocation2 + $0x9] sm:$0xff]
    %v1002 = vld [vmem:[#allocation2 + $0x11] sm:$0xff]
    %v1003 = vld [vmem:[#allocation2 + $0x29] sm:$0xff]
    %v1004 = vld [vmem:[#allocation2 + $0x31] sm:$0xff]
    %v1005 = vlaneseq
    %v1006 = vshrl.u32 %v1005, 7
    %v1007 = vsub.s32 0, %v1006
    %v1008 = vrot.slane %v1000, %v1007
    %v1009 = vmul.f32 %v1001, %v1008
    %v1010 = vmul.f32 %v1002, %v1008
    %v1011 = vmul.f32 %v1003, %v1008
    %v1012 = vmul.f32 %v1004, %v1008
    %v1013 = vadd.f32 %v996, %v1009
    %v1014 = vadd.f32 %v997, %v1010
    %v1015 = vadd.f32 %v998, %v1011
    %v1016 = vadd.f32 %v999, %v1012
    %v1017 = vld [vmem:[%s4 + $0x33] sm:$0x1]
    %v1018 = vld [vmem:[#allocation2 + $0xa] sm:$0xff]
    %v1019 = vld [vmem:[#allocation2 + $0x12] sm:$0xff]
    %v1020 = vld [vmem:[#allocation2 + $0x2a] sm:$0xff]
    %v1021 = vld [vmem:[#allocation2 + $0x32] sm:$0xff]
    %v1022 = vlaneseq
    %v1023 = vshrl.u32 %v1022, 7
    %v1024 = vsub.s32 0, %v1023
    %v1025 = vrot.slane %v1017, %v1024
    %v1026 = vmul.f32 %v1018, %v1025
    %v1027 = vmul.f32 %v1019, %v1025
    %v1028 = vmul.f32 %v1020, %v1025
    %v1029 = vmul.f32 %v1021, %v1025
    %v1030 = vadd.f32 %v1013, %v1026
    %v1031 = vadd.f32 %v1014, %v1027
    %v1032 = vadd.f32 %v1015, %v1028
    %v1033 = vadd.f32 %v1016, %v1029
    %v1034 = vpack.c.bf16 %v1031, %v1030
    %v1035 = vpack.c.bf16 %v1033, %v1032
    %s1036 = scalar_lea.vmem %s5, 192
    %v1037 = vld [vmem:[%s1036] sm:$0xf]
    %v1038 = vld [vmem:[%s1036 + $0x4] sm:$0xf]
    %v1039 = vld [vmem:[%s1036 + $0x8] sm:$0xf]
    %v1040 = vld [vmem:[%s1036 + $0xc] sm:$0xf]
    %v1041 = vld [vmem:[%s1036 + $0x10] sm:$0xf]
    %v1042 = vld [vmem:[%s1036 + $0x14] sm:$0xf]
    %v1043 = vld [vmem:[%s1036 + $0x18] sm:$0xf]
    %v1044 = vld [vmem:[%s1036 + $0x1c] sm:$0xf]
    %v1045 = vld [vmem:[%s1036 + $0x20] sm:$0xf]
    %v1046 = vld [vmem:[%s1036 + $0x24] sm:$0xf]
    %v1047 = vld [vmem:[%s1036 + $0x28] sm:$0xf]
    %v1048 = vld [vmem:[%s1036 + $0x2c] sm:$0xf]
    %v1049 = vld [vmem:[%s1036 + $0x30] sm:$0xf]
    %v1050 = vld [vmem:[%s1036 + $0x34] sm:$0xf]
    %v1051 = vld [vmem:[%s1036 + $0x38] sm:$0xf]
    %v1052 = vld [vmem:[%s1036 + $0x3c] sm:$0xf]
    %v1069 = vunpack.c.l.b16 %v1037
    %v1070 = vunpack.c.l.b16 %v1038
    %v1071 = vunpack.c.l.b16 %v1039
    %v1072 = vunpack.c.l.b16 %v1040
    %v1073 = vunpack.c.l.b16 %v1041
    %v1074 = vunpack.c.l.b16 %v1042
    %v1075 = vunpack.c.l.b16 %v1043
    %v1076 = vunpack.c.l.b16 %v1044
    %v1077 = vunpack.c.l.b16 %v1045
    %v1078 = vunpack.c.l.b16 %v1046
    %v1079 = vunpack.c.l.b16 %v1047
    %v1080 = vunpack.c.l.b16 %v1048
    %v1081 = vunpack.c.l.b16 %v1049
    %v1082 = vunpack.c.l.b16 %v1050
    %v1083 = vunpack.c.l.b16 %v1051
    %v1084 = vunpack.c.l.b16 %v1052
    %v1085 = vpack.c.b16 %v1070, %v1069
    %v1086 = vpack.c.b16 %v1072, %v1071
    %v1087 = vpack.c.b16 %v1074, %v1073
    %v1088 = vpack.c.b16 %v1076, %v1075
    %v1089 = vpack.c.b16 %v1078, %v1077
    %v1090 = vpack.c.b16 %v1080, %v1079
    %v1091 = vpack.c.b16 %v1082, %v1081
    %v1092 = vpack.c.b16 %v1084, %v1083
    %1101 = vmatprep.subr.bf16.mxu0 0
    %1102 = vmatpush1.bf16.msra.mxu0 %v1092
    %1103 = vmatprep.subr.bf16.mxu0 0
    %1104 = vmatpush1.bf16.msra.mxu0 %v1091
    %1105 = vmatprep.subr.bf16.mxu0 0
    %1106 = vmatpush1.bf16.msra.mxu0 %v1090
    %1107 = vmatprep.subr.bf16.mxu0 0
    %1108 = vmatpush1.bf16.msra.mxu0 %v1089
    %1109 = vmatprep.subr.bf16.mxu0 0
    %1110 = vmatpush1.bf16.msra.mxu0 %v1088
    %1111 = vmatprep.subr.bf16.mxu0 0
    %1112 = vmatpush1.bf16.msra.mxu0 %v1087
    %1113 = vmatprep.subr.bf16.mxu0 0
    %1114 = vmatpush1.bf16.msra.mxu0 %v1086
    %1115 = vmatprep.subr.bf16.mxu0 0
    %1116 = vmatpush1.bf16.msra.mxu0 %v1085
    %1117 = vmatprep.subr.bf16.mxu0 0
    %1118 = vmatpush2.bf16.msra.mxu0 0
    %1119 = vmatprep.subr.bf16.mxu0 0
    %1120 = vmatpush2.bf16.msra.mxu0 0
    %1121 = vmatprep.subr.bf16.mxu0 0
    %1122 = vmatpush2.bf16.msra.mxu0 0
    %1123 = vmatprep.subr.bf16.mxu0 0
    %1124 = vmatpush2.bf16.msra.mxu0 0
    %1125 = vmatprep.subr.bf16.mxu0 0
    %1126 = vmatpush2.bf16.msra.mxu0 0
    %1127 = vmatprep.subr.bf16.mxu0 0
    %1128 = vmatpush2.bf16.msra.mxu0 0
    %1129 = vmatprep.subr.bf16.mxu0 0
    %1130 = vmatpush2.bf16.msra.mxu0 0
    %1131 = vmatprep.subr.bf16.mxu0 0
    %1132 = vmatpush2.bf16.msra.mxu0 0
    %1133 = vmatprep.mubr.bf16.mxu0 0
    %1134 = vmatmul.mubr.bf16.gmra.mxu0 %v1034
    %v1135 = vpop.f32.mrf.mxu0
    %v1136 = vadd.f32 0.0, %v1135
    %v1137 = vpop.f32.mrf.mxu0
    %v1138 = vpop.f32.mrf.mxu0
    %v1139 = vadd.f32 0.0, %v1138
    %v1140 = vpop.f32.mrf.mxu0
    %1141 = vmatprep.mubr.bf16.mxu0 0
    %1142 = vmatmul.mubr.bf16.gmra.mxu0 %v1035
    %v1143 = vpop.f32.mrf.mxu0
    %v1144 = vadd.f32 0.0, %v1143
    %v1145 = vpop.f32.mrf.mxu0
    %v1146 = vpop.f32.mrf.mxu0
    %v1147 = vadd.f32 0.0, %v1146
    %v1148 = vpop.f32.mrf.mxu0
    %1149 = vdwg.mxu0
    %1150 = vst [vmem:[#allocation2 + $0x8] sm:$0xff] %v572
    %1151 = vst [vmem:[#allocation2 + $0x10] sm:$0xff] %v573
    %1152 = vst [vmem:[#allocation2 + $0x28] sm:$0xff] %v574
    %1153 = vst [vmem:[#allocation2 + $0x30] sm:$0xff] %v575
    %v1154 = vld [vmem:[%s4 + $0x12] sm:$0x1]
    %v1155 = vld [vmem:[#allocation2 + $0x6] sm:$0xff]
    %v1156 = vld [vmem:[#allocation2 + $0xe] sm:$0xff]
    %v1157 = vld [vmem:[#allocation2 + $0x26] sm:$0xff]
    %v1158 = vld [vmem:[#allocation2 + $0x2e] sm:$0xff]
    %v1159 = vlaneseq
    %v1160 = vshrl.u32 %v1159, 7
    %v1161 = vsub.s32 0, %v1160
    %v1162 = vrot.slane %v1154, %v1161
    %v1163 = vmul.f32 %v1155, %v1162
    %v1164 = vmul.f32 %v1156, %v1162
    %v1165 = vmul.f32 %v1157, %v1162
    %v1166 = vmul.f32 %v1158, %v1162
    %v1167 = vadd.f32 %v1163, 0.0
    %v1168 = vadd.f32 %v1164, 0.0
    %v1169 = vadd.f32 %v1165, 0.0
    %v1170 = vadd.f32 %v1166, 0.0
    %v1171 = vld [vmem:[%s4 + $0x15] sm:$0x1]
    %v1172 = vld [vmem:[#allocation2 + $0x8] sm:$0xff]
    %v1173 = vld [vmem:[#allocation2 + $0x10] sm:$0xff]
    %v1174 = vld [vmem:[#allocation2 + $0x28] sm:$0xff]
    %v1175 = vld [vmem:[#allocation2 + $0x30] sm:$0xff]
    %v1176 = vlaneseq
    %v1177 = vshrl.u32 %v1176, 7
    %v1178 = vsub.s32 0, %v1177
    %v1179 = vrot.slane %v1171, %v1178
    %v1180 = vmul.f32 %v1172, %v1179
    %v1181 = vmul.f32 %v1173, %v1179
    %v1182 = vmul.f32 %v1174, %v1179
    %v1183 = vmul.f32 %v1175, %v1179
    %v1184 = vadd.f32 %v1167, %v1180
    %v1185 = vadd.f32 %v1168, %v1181
    %v1186 = vadd.f32 %v1169, %v1182
    %v1187 = vadd.f32 %v1170, %v1183
    %v1188 = vld [vmem:[%s4 + $0x18] sm:$0x1]
    %v1189 = vld [vmem:[#allocation2 + $0xa] sm:$0xff]
    %v1190 = vld [vmem:[#allocation2 + $0x12] sm:$0xff]
    %v1191 = vld [vmem:[#allocation2 + $0x2a] sm:$0xff]
    %v1192 = vld [vmem:[#allocation2 + $0x32] sm:$0xff]
    %v1193 = vlaneseq
    %v1194 = vshrl.u32 %v1193, 7
    %v1195 = vsub.s32 0, %v1194
    %v1196 = vrot.slane %v1188, %v1195
    %v1197 = vmul.f32 %v1189, %v1196
    %v1198 = vmul.f32 %v1190, %v1196
    %v1199 = vmul.f32 %v1191, %v1196
    %v1200 = vmul.f32 %v1192, %v1196
    %v1201 = vadd.f32 %v1184, %v1197
    %v1202 = vadd.f32 %v1185, %v1198
    %v1203 = vadd.f32 %v1186, %v1199
    %v1204 = vadd.f32 %v1187, %v1200
    %1205 = vst [vmem:[#allocation2 + $0x8] sm:$0xff] %v255
    %1206 = vst [vmem:[#allocation2 + $0x10] sm:$0xff] %v256
    %1207 = vst [vmem:[#allocation2 + $0x28] sm:$0xff] %v257
    %1208 = vst [vmem:[#allocation2 + $0x30] sm:$0xff] %v258
    %v1209 = vld [vmem:[%s4 + $0x13] sm:$0x1]
    %v1210 = vld [vmem:[#allocation2 + $0x6] sm:$0xff]
    %v1211 = vld [vmem:[#allocation2 + $0xe] sm:$0xff]
    %v1212 = vld [vmem:[#allocation2 + $0x26] sm:$0xff]
    %v1213 = vld [vmem:[#allocation2 + $0x2e] sm:$0xff]
    %v1214 = vlaneseq
    %v1215 = vshrl.u32 %v1214, 7
    %v1216 = vsub.s32 0, %v1215
    %v1217 = vrot.slane %v1209, %v1216
    %v1218 = vmul.f32 %v1210, %v1217
    %v1219 = vmul.f32 %v1211, %v1217
    %v1220 = vmul.f32 %v1212, %v1217
    %v1221 = vmul.f32 %v1213, %v1217
    %v1222 = vadd.f32 %v1201, %v1218
    %v1223 = vadd.f32 %v1202, %v1219
    %v1224 = vadd.f32 %v1203, %v1220
    %v1225 = vadd.f32 %v1204, %v1221
    %v1226 = vld [vmem:[%s4 + $0x16] sm:$0x1]
    %v1227 = vld [vmem:[#allocation2 + $0x8] sm:$0xff]
    %v1228 = vld [vmem:[#allocation2 + $0x10] sm:$0xff]
    %v1229 = vld [vmem:[#allocation2 + $0x28] sm:$0xff]
    %v1230 = vld [vmem:[#allocation2 + $0x30] sm:$0xff]
    %v1231 = vlaneseq
    %v1232 = vshrl.u32 %v1231, 7
    %v1233 = vsub.s32 0, %v1232
    %v1234 = vrot.slane %v1226, %v1233
    %v1235 = vmul.f32 %v1227, %v1234
    %v1236 = vmul.f32 %v1228, %v1234
    %v1237 = vmul.f32 %v1229, %v1234
    %v1238 = vmul.f32 %v1230, %v1234
    %v1239 = vadd.f32 %v1222, %v1235
    %v1240 = vadd.f32 %v1223, %v1236
    %v1241 = vadd.f32 %v1224, %v1237
    %v1242 = vadd.f32 %v1225, %v1238
    %v1243 = vld [vmem:[%s4 + $0x19] sm:$0x1]
    %v1244 = vld [vmem:[#allocation2 + $0xa] sm:$0xff]
    %v1245 = vld [vmem:[#allocation2 + $0x12] sm:$0xff]
    %v1246 = vld [vmem:[#allocation2 + $0x2a] sm:$0xff]
    %v1247 = vld [vmem:[#allocation2 + $0x32] sm:$0xff]
    %v1248 = vlaneseq
    %v1249 = vshrl.u32 %v1248, 7
    %v1250 = vsub.s32 0, %v1249
    %v1251 = vrot.slane %v1243, %v1250
    %v1252 = vmul.f32 %v1244, %v1251
    %v1253 = vmul.f32 %v1245, %v1251
    %v1254 = vmul.f32 %v1246, %v1251
    %v1255 = vmul.f32 %v1247, %v1251
    %v1256 = vadd.f32 %v1239, %v1252
    %v1257 = vadd.f32 %v1240, %v1253
    %v1258 = vadd.f32 %v1241, %v1254
    %v1259 = vadd.f32 %v1242, %v1255
    %1260 = vst [vmem:[#allocation2 + $0x8] sm:$0xff] %v941
    %1261 = vst [vmem:[#allocation2 + $0x10] sm:$0xff] %v942
    %1262 = vst [vmem:[#allocation2 + $0x28] sm:$0xff] %v943
    %1263 = vst [vmem:[#allocation2 + $0x30] sm:$0xff] %v944
    %v1264 = vld [vmem:[%s4 + $0x14] sm:$0x1]
    %v1265 = vld [vmem:[#allocation2 + $0x6] sm:$0xff]
    %v1266 = vld [vmem:[#allocation2 + $0xe] sm:$0xff]
    %v1267 = vld [vmem:[#allocation2 + $0x26] sm:$0xff]
    %v1268 = vld [vmem:[#allocation2 + $0x2e] sm:$0xff]
    %v1269 = vlaneseq
    %v1270 = vshrl.u32 %v1269, 7
    %v1271 = vsub.s32 0, %v1270
    %v1272 = vrot.slane %v1264, %v1271
    %v1273 = vmul.f32 %v1265, %v1272
    %v1274 = vmul.f32 %v1266, %v1272
    %v1275 = vmul.f32 %v1267, %v1272
    %v1276 = vmul.f32 %v1268, %v1272
    %v1277 = vadd.f32 %v1256, %v1273
    %v1278 = vadd.f32 %v1257, %v1274
    %v1279 = vadd.f32 %v1258, %v1275
    %v1280 = vadd.f32 %v1259, %v1276
    %v1281 = vld [vmem:[%s4 + $0x17] sm:$0x1]
    %v1282 = vld [vmem:[#allocation2 + $0x8] sm:$0xff]
    %v1283 = vld [vmem:[#allocation2 + $0x10] sm:$0xff]
    %v1284 = vld [vmem:[#allocation2 + $0x28] sm:$0xff]
    %v1285 = vld [vmem:[#allocation2 + $0x30] sm:$0xff]
    %v1286 = vlaneseq
    %v1287 = vshrl.u32 %v1286, 7
    %v1288 = vsub.s32 0, %v1287
    %v1289 = vrot.slane %v1281, %v1288
    %v1290 = vmul.f32 %v1282, %v1289
    %v1291 = vmul.f32 %v1283, %v1289
    %v1292 = vmul.f32 %v1284, %v1289
    %v1293 = vmul.f32 %v1285, %v1289
    %v1294 = vadd.f32 %v1277, %v1290
    %v1295 = vadd.f32 %v1278, %v1291
    %v1296 = vadd.f32 %v1279, %v1292
    %v1297 = vadd.f32 %v1280, %v1293
    %v1298 = vld [vmem:[%s4 + $0x1a] sm:$0x1]
    %v1299 = vld [vmem:[#allocation2 + $0xa] sm:$0xff]
    %v1300 = vld [vmem:[#allocation2 + $0x12] sm:$0xff]
    %v1301 = vld [vmem:[#allocation2 + $0x2a] sm:$0xff]
    %v1302 = vld [vmem:[#allocation2 + $0x32] sm:$0xff]
    %v1303 = vlaneseq
    %v1304 = vshrl.u32 %v1303, 7
    %v1305 = vsub.s32 0, %v1304
    %v1306 = vrot.slane %v1298, %v1305
    %v1307 = vmul.f32 %v1299, %v1306
    %v1308 = vmul.f32 %v1300, %v1306
    %v1309 = vmul.f32 %v1301, %v1306
    %v1310 = vmul.f32 %v1302, %v1306
    %v1311 = vadd.f32 %v1294, %v1307
    %v1312 = vadd.f32 %v1295, %v1308
    %v1313 = vadd.f32 %v1296, %v1309
    %v1314 = vadd.f32 %v1297, %v1310
    %v1315 = vpack.c.bf16 %v1312, %v1311
    %v1316 = vpack.c.bf16 %v1314, %v1313
    %s1317 = scalar_lea.vmem %s5, 128
    %v1318 = vld [vmem:[%s1317] sm:$0xf]
    %v1319 = vld [vmem:[%s1317 + $0x4] sm:$0xf]
    %v1320 = vld [vmem:[%s1317 + $0x8] sm:$0xf]
    %v1321 = vld [vmem:[%s1317 + $0xc] sm:$0xf]
    %v1322 = vld [vmem:[%s1317 + $0x10] sm:$0xf]
    %v1323 = vld [vmem:[%s1317 + $0x14] sm:$0xf]
    %v1324 = vld [vmem:[%s1317 + $0x18] sm:$0xf]
    %v1325 = vld [vmem:[%s1317 + $0x1c] sm:$0xf]
    %v1326 = vld [vmem:[%s1317 + $0x20] sm:$0xf]
    %v1327 = vld [vmem:[%s1317 + $0x24] sm:$0xf]
    %v1328 = vld [vmem:[%s1317 + $0x28] sm:$0xf]
    %v1329 = vld [vmem:[%s1317 + $0x2c] sm:$0xf]
    %v1330 = vld [vmem:[%s1317 + $0x30] sm:$0xf]
    %v1331 = vld [vmem:[%s1317 + $0x34] sm:$0xf]
    %v1332 = vld [vmem:[%s1317 + $0x38] sm:$0xf]
    %v1333 = vld [vmem:[%s1317 + $0x3c] sm:$0xf]
    %v1350 = vunpack.c.l.b16 %v1318
    %v1351 = vunpack.c.l.b16 %v1319
    %v1352 = vunpack.c.l.b16 %v1320
    %v1353 = vunpack.c.l.b16 %v1321
    %v1354 = vunpack.c.l.b16 %v1322
    %v1355 = vunpack.c.l.b16 %v1323
    %v1356 = vunpack.c.l.b16 %v1324
    %v1357 = vunpack.c.l.b16 %v1325
    %v1358 = vunpack.c.l.b16 %v1326
    %v1359 = vunpack.c.l.b16 %v1327
    %v1360 = vunpack.c.l.b16 %v1328
    %v1361 = vunpack.c.l.b16 %v1329
    %v1362 = vunpack.c.l.b16 %v1330
    %v1363 = vunpack.c.l.b16 %v1331
    %v1364 = vunpack.c.l.b16 %v1332
    %v1365 = vunpack.c.l.b16 %v1333
    %v1366 = vpack.c.b16 %v1351, %v1350
    %v1367 = vpack.c.b16 %v1353, %v1352
    %v1368 = vpack.c.b16 %v1355, %v1354
    %v1369 = vpack.c.b16 %v1357, %v1356
    %v1370 = vpack.c.b16 %v1359, %v1358
    %v1371 = vpack.c.b16 %v1361, %v1360
    %v1372 = vpack.c.b16 %v1363, %v1362
    %v1373 = vpack.c.b16 %v1365, %v1364
    %1382 = vmatprep.subr.bf16.mxu0 0
    %1383 = vmatpush1.bf16.msra.mxu0 %v1373
    %1384 = vmatprep.subr.bf16.mxu0 0
    %1385 = vmatpush1.bf16.msra.mxu0 %v1372
    %1386 = vmatprep.subr.bf16.mxu0 0
    %1387 = vmatpush1.bf16.msra.mxu0 %v1371
    %1388 = vmatprep.subr.bf16.mxu0 0
    %1389 = vmatpush1.bf16.msra.mxu0 %v1370
    %1390 = vmatprep.subr.bf16.mxu0 0
    %1391 = vmatpush1.bf16.msra.mxu0 %v1369
    %1392 = vmatprep.subr.bf16.mxu0 0
    %1393 = vmatpush1.bf16.msra.mxu0 %v1368
    %1394 = vmatprep.subr.bf16.mxu0 0
    %1395 = vmatpush1.bf16.msra.mxu0 %v1367
    %1396 = vmatprep.subr.bf16.mxu0 0
    %1397 = vmatpush1.bf16.msra.mxu0 %v1366
    %1398 = vmatprep.subr.bf16.mxu0 0
    %1399 = vmatpush2.bf16.msra.mxu0 0
    %1400 = vmatprep.subr.bf16.mxu0 0
    %1401 = vmatpush2.bf16.msra.mxu0 0
    %1402 = vmatprep.subr.bf16.mxu0 0
    %1403 = vmatpush2.bf16.msra.mxu0 0
    %1404 = vmatprep.subr.bf16.mxu0 0
    %1405 = vmatpush2.bf16.msra.mxu0 0
    %1406 = vmatprep.subr.bf16.mxu0 0
    %1407 = vmatpush2.bf16.msra.mxu0 0
    %1408 = vmatprep.subr.bf16.mxu0 0
    %1409 = vmatpush2.bf16.msra.mxu0 0
    %1410 = vmatprep.subr.bf16.mxu0 0
    %1411 = vmatpush2.bf16.msra.mxu0 0
    %1412 = vmatprep.subr.bf16.mxu0 0
    %1413 = vmatpush2.bf16.msra.mxu0 0
    %1414 = vmatprep.mubr.bf16.mxu0 0
    %1415 = vmatmul.mubr.bf16.gmra.mxu0 %v1315
    %v1416 = vpop.f32.mrf.mxu0
    %v1417 = vadd.f32 0.0, %v1416
    %v1418 = vpop.f32.mrf.mxu0
    %v1419 = vpop.f32.mrf.mxu0
    %v1420 = vadd.f32 0.0, %v1419
    %v1421 = vpop.f32.mrf.mxu0
    %1422 = vmatprep.mubr.bf16.mxu0 0
    %1423 = vmatmul.mubr.bf16.gmra.mxu0 %v1316
    %v1424 = vpop.f32.mrf.mxu0
    %v1425 = vadd.f32 0.0, %v1424
    %v1426 = vpop.f32.mrf.mxu0
    %v1427 = vpop.f32.mrf.mxu0
    %v1428 = vadd.f32 0.0, %v1427
    %v1429 = vpop.f32.mrf.mxu0
    %1430 = vdwg.mxu0
    %1431 = vrot.lane.b32.xlu0 %v255, 32
    %v1432 = vpop.permute.xlu0 %1431
    %1433 = vrot.lane.b32.xlu0 %v256, 32
    %v1434 = vpop.permute.xlu0 %1433
    %1435 = vrot.lane.b32.xlu0 %v257, 32
    %v1436 = vpop.permute.xlu0 %1435
    %1437 = vrot.lane.b32.xlu0 %v258, 32
    %v1438 = vpop.permute.xlu0 %1437
    %vm1439 = vcmp.ge.s32.totalorder %v42, 32
    %v1440 = vsel %vm1439, %v1432, 0.0
    %v1441 = vsel %vm1439, %v1434, 0.0
    %v1442 = vsel %vm1439, %v1436, 0.0
    %v1443 = vsel %vm1439, %v1438, 0.0
    %1444 = vst [vmem:[#allocation2 + $0x8] sm:$0xff] %v1440
    %1445 = vst [vmem:[#allocation2 + $0x10] sm:$0xff] %v1441
    %1446 = vst [vmem:[#allocation2 + $0x28] sm:$0xff] %v1442
    %1447 = vst [vmem:[#allocation2 + $0x30] sm:$0xff] %v1443
    %v1448 = vld [vmem:[%s4 + $0x4d] sm:$0x1]
    %v1449 = vld [vmem:[#allocation2 + $0x4] sm:$0xff]
    %v1450 = vld [vmem:[#allocation2 + $0xc] sm:$0xff]
    %v1451 = vld [vmem:[#allocation2 + $0x24] sm:$0xff]
    %v1452 = vld [vmem:[#allocation2 + $0x2c] sm:$0xff]
    %v1453 = vlaneseq
    %v1454 = vshrl.u32 %v1453, 7
    %v1455 = vsub.s32 0, %v1454
    %v1456 = vrot.slane %v1448, %v1455
    %v1457 = vmul.f32 %v1449, %v1456
    %v1458 = vmul.f32 %v1450, %v1456
    %v1459 = vmul.f32 %v1451, %v1456
    %v1460 = vmul.f32 %v1452, %v1456
    %v1461 = vadd.f32 %v1457, 0.0
    %v1462 = vadd.f32 %v1458, 0.0
    %v1463 = vadd.f32 %v1459, 0.0
    %v1464 = vadd.f32 %v1460, 0.0
    %v1465 = vld [vmem:[%s4 + $0x52] sm:$0x1]
    %v1466 = vld [vmem:[#allocation2 + $0x6] sm:$0xff]
    %v1467 = vld [vmem:[#allocation2 + $0xe] sm:$0xff]
    %v1468 = vld [vmem:[#allocation2 + $0x26] sm:$0xff]
    %v1469 = vld [vmem:[#allocation2 + $0x2e] sm:$0xff]
    %v1470 = vlaneseq
    %v1471 = vshrl.u32 %v1470, 7
    %v1472 = vsub.s32 0, %v1471
    %v1473 = vrot.slane %v1465, %v1472
    %v1474 = vmul.f32 %v1466, %v1473
    %v1475 = vmul.f32 %v1467, %v1473
    %v1476 = vmul.f32 %v1468, %v1473
    %v1477 = vmul.f32 %v1469, %v1473
    %v1478 = vadd.f32 %v1461, %v1474
    %v1479 = vadd.f32 %v1462, %v1475
    %v1480 = vadd.f32 %v1463, %v1476
    %v1481 = vadd.f32 %v1464, %v1477
    %v1482 = vld [vmem:[%s4 + $0x57] sm:$0x1]
    %v1483 = vld [vmem:[#allocation2 + $0x8] sm:$0xff]
    %v1484 = vld [vmem:[#allocation2 + $0x10] sm:$0xff]
    %v1485 = vld [vmem:[#allocation2 + $0x28] sm:$0xff]
    %v1486 = vld [vmem:[#allocation2 + $0x30] sm:$0xff]
    %v1487 = vlaneseq
    %v1488 = vshrl.u32 %v1487, 7
    %v1489 = vsub.s32 0, %v1488
    %v1490 = vrot.slane %v1482, %v1489
    %v1491 = vmul.f32 %v1483, %v1490
    %v1492 = vmul.f32 %v1484, %v1490
    %v1493 = vmul.f32 %v1485, %v1490
    %v1494 = vmul.f32 %v1486, %v1490
    %v1495 = vadd.f32 %v1478, %v1491
    %v1496 = vadd.f32 %v1479, %v1492
    %v1497 = vadd.f32 %v1480, %v1493
    %v1498 = vadd.f32 %v1481, %v1494
    %v1499 = vld [vmem:[%s4 + $0x5c] sm:$0x1]
    %v1500 = vld [vmem:[#allocation2 + $0xa] sm:$0xff]
    %v1501 = vld [vmem:[#allocation2 + $0x12] sm:$0xff]
    %v1502 = vld [vmem:[#allocation2 + $0x2a] sm:$0xff]
    %v1503 = vld [vmem:[#allocation2 + $0x32] sm:$0xff]
    %v1504 = vlaneseq
    %v1505 = vshrl.u32 %v1504, 7
    %v1506 = vsub.s32 0, %v1505
    %v1507 = vrot.slane %v1499, %v1506
    %v1508 = vmul.f32 %v1500, %v1507
    %v1509 = vmul.f32 %v1501, %v1507
    %v1510 = vmul.f32 %v1502, %v1507
    %v1511 = vmul.f32 %v1503, %v1507
    %v1512 = vadd.f32 %v1495, %v1508
    %v1513 = vadd.f32 %v1496, %v1509
    %v1514 = vadd.f32 %v1497, %v1510
    %v1515 = vadd.f32 %v1498, %v1511
    %v1516 = vld [vmem:[%s4 + $0x61] sm:$0x1]
    %v1517 = vld [vmem:[#allocation2 + $0x14] sm:$0xff]
    %v1518 = vld [vmem:[#allocation2 + $0x34] sm:$0xff]
    %v1519 = vlaneseq
    %v1520 = vshrl.u32 %v1519, 7
    %v1521 = vsub.s32 0, %v1520
    %v1522 = vrot.slane %v1516, %v1521
    %v1523 = vmul.f32 %v1450, %v1522
    %v1524 = vmul.f32 %v1517, %v1522
    %v1525 = vmul.f32 %v1452, %v1522
    %v1526 = vmul.f32 %v1518, %v1522
    %v1527 = vadd.f32 %v1512, %v1523
    %v1528 = vadd.f32 %v1513, %v1524
    %v1529 = vadd.f32 %v1514, %v1525
    %v1530 = vadd.f32 %v1515, %v1526
    %1531 = vst [vmem:[#allocation2 + $0x8] sm:$0xff] %v572
    %1532 = vst [vmem:[#allocation2 + $0x10] sm:$0xff] %v573
    %1533 = vst [vmem:[#allocation2 + $0x28] sm:$0xff] %v574
    %1534 = vst [vmem:[#allocation2 + $0x30] sm:$0xff] %v575
    %v1535 = vld [vmem:[%s4 + $0x4e] sm:$0x1]
    %v1536 = vld [vmem:[#allocation2 + $0x4] sm:$0xff]
    %v1537 = vld [vmem:[#allocation2 + $0xc] sm:$0xff]
    %v1538 = vld [vmem:[#allocation2 + $0x24] sm:$0xff]
    %v1539 = vld [vmem:[#allocation2 + $0x2c] sm:$0xff]
    %v1540 = vlaneseq
    %v1541 = vshrl.u32 %v1540, 7
    %v1542 = vsub.s32 0, %v1541
    %v1543 = vrot.slane %v1535, %v1542
    %v1544 = vmul.f32 %v1536, %v1543
    %v1545 = vmul.f32 %v1537, %v1543
    %v1546 = vmul.f32 %v1538, %v1543
    %v1547 = vmul.f32 %v1539, %v1543
    %v1548 = vadd.f32 %v1527, %v1544
    %v1549 = vadd.f32 %v1528, %v1545
    %v1550 = vadd.f32 %v1529, %v1546
    %v1551 = vadd.f32 %v1530, %v1547
    %v1552 = vld [vmem:[%s4 + $0x53] sm:$0x1]
    %v1553 = vld [vmem:[#allocation2 + $0x6] sm:$0xff]
    %v1554 = vld [vmem:[#allocation2 + $0xe] sm:$0xff]
    %v1555 = vld [vmem:[#allocation2 + $0x26] sm:$0xff]
    %v1556 = vld [vmem:[#allocation2 + $0x2e] sm:$0xff]
    %v1557 = vlaneseq
    %v1558 = vshrl.u32 %v1557, 7
    %v1559 = vsub.s32 0, %v1558
    %v1560 = vrot.slane %v1552, %v1559
    %v1561 = vmul.f32 %v1553, %v1560
    %v1562 = vmul.f32 %v1554, %v1560
    %v1563 = vmul.f32 %v1555, %v1560
    %v1564 = vmul.f32 %v1556, %v1560
    %v1565 = vadd.f32 %v1548, %v1561
    %v1566 = vadd.f32 %v1549, %v1562
    %v1567 = vadd.f32 %v1550, %v1563
    %v1568 = vadd.f32 %v1551, %v1564
    %v1569 = vld [vmem:[%s4 + $0x58] sm:$0x1]
    %v1570 = vld [vmem:[#allocation2 + $0x8] sm:$0xff]
    %v1571 = vld [vmem:[#allocation2 + $0x10] sm:$0xff]
    %v1572 = vld [vmem:[#allocation2 + $0x28] sm:$0xff]
    %v1573 = vld [vmem:[#allocation2 + $0x30] sm:$0xff]
    %v1574 = vlaneseq
    %v1575 = vshrl.u32 %v1574, 7
    %v1576 = vsub.s32 0, %v1575
    %v1577 = vrot.slane %v1569, %v1576
    %v1578 = vmul.f32 %v1570, %v1577
    %v1579 = vmul.f32 %v1571, %v1577
    %v1580 = vmul.f32 %v1572, %v1577
    %v1581 = vmul.f32 %v1573, %v1577
    %v1582 = vadd.f32 %v1565, %v1578
    %v1583 = vadd.f32 %v1566, %v1579
    %v1584 = vadd.f32 %v1567, %v1580
    %v1585 = vadd.f32 %v1568, %v1581
    %v1586 = vld [vmem:[%s4 + $0x5d] sm:$0x1]
    %v1587 = vld [vmem:[#allocation2 + $0xa] sm:$0xff]
    %v1588 = vld [vmem:[#allocation2 + $0x12] sm:$0xff]
    %v1589 = vld [vmem:[#allocation2 + $0x2a] sm:$0xff]
    %v1590 = vld [vmem:[#allocation2 + $0x32] sm:$0xff]
    %v1591 = vlaneseq
    %v1592 = vshrl.u32 %v1591, 7
    %v1593 = vsub.s32 0, %v1592
    %v1594 = vrot.slane %v1586, %v1593
    %v1595 = vmul.f32 %v1587, %v1594
    %v1596 = vmul.f32 %v1588, %v1594
    %v1597 = vmul.f32 %v1589, %v1594
    %v1598 = vmul.f32 %v1590, %v1594
    %v1599 = vadd.f32 %v1582, %v1595
    %v1600 = vadd.f32 %v1583, %v1596
    %v1601 = vadd.f32 %v1584, %v1597
    %v1602 = vadd.f32 %v1585, %v1598
    %v1603 = vld [vmem:[%s4 + $0x62] sm:$0x1]
    %v1604 = vld [vmem:[#allocation2 + $0x14] sm:$0xff]
    %v1605 = vld [vmem:[#allocation2 + $0x34] sm:$0xff]
    %v1606 = vlaneseq
    %v1607 = vshrl.u32 %v1606, 7
    %v1608 = vsub.s32 0, %v1607
    %v1609 = vrot.slane %v1603, %v1608
    %v1610 = vmul.f32 %v1537, %v1609
    %v1611 = vmul.f32 %v1604, %v1609
    %v1612 = vmul.f32 %v1539, %v1609
    %v1613 = vmul.f32 %v1605, %v1609
    %v1614 = vadd.f32 %v1599, %v1610
    %v1615 = vadd.f32 %v1600, %v1611
    %v1616 = vadd.f32 %v1601, %v1612
    %v1617 = vadd.f32 %v1602, %v1613
    %1618 = vst [vmem:[#allocation2 + $0x8] sm:$0xff] %v255
    %1619 = vst [vmem:[#allocation2 + $0x10] sm:$0xff] %v256
    %1620 = vst [vmem:[#allocation2 + $0x28] sm:$0xff] %v257
    %1621 = vst [vmem:[#allocation2 + $0x30] sm:$0xff] %v258
    %v1622 = vld [vmem:[%s4 + $0x4f] sm:$0x1]
    %v1623 = vld [vmem:[#allocation2 + $0x4] sm:$0xff]
    %v1624 = vld [vmem:[#allocation2 + $0xc] sm:$0xff]
    %v1625 = vld [vmem:[#allocation2 + $0x24] sm:$0xff]
    %v1626 = vld [vmem:[#allocation2 + $0x2c] sm:$0xff]
    %v1627 = vlaneseq
    %v1628 = vshrl.u32 %v1627, 7
    %v1629 = vsub.s32 0, %v1628
    %v1630 = vrot.slane %v1622, %v1629
    %v1631 = vmul.f32 %v1623, %v1630
    %v1632 = vmul.f32 %v1624, %v1630
    %v1633 = vmul.f32 %v1625, %v1630
    %v1634 = vmul.f32 %v1626, %v1630
    %v1635 = vadd.f32 %v1614, %v1631
    %v1636 = vadd.f32 %v1615, %v1632
    %v1637 = vadd.f32 %v1616, %v1633
    %v1638 = vadd.f32 %v1617, %v1634
    %v1639 = vld [vmem:[%s4 + $0x54] sm:$0x1]
    %v1640 = vld [vmem:[#allocation2 + $0x6] sm:$0xff]
    %v1641 = vld [vmem:[#allocation2 + $0xe] sm:$0xff]
    %v1642 = vld [vmem:[#allocation2 + $0x26] sm:$0xff]
    %v1643 = vld [vmem:[#allocation2 + $0x2e] sm:$0xff]
    %v1644 = vlaneseq
    %v1645 = vshrl.u32 %v1644, 7
    %v1646 = vsub.s32 0, %v1645
    %v1647 = vrot.slane %v1639, %v1646
    %v1648 = vmul.f32 %v1640, %v1647
    %v1649 = vmul.f32 %v1641, %v1647
    %v1650 = vmul.f32 %v1642, %v1647
    %v1651 = vmul.f32 %v1643, %v1647
    %v1652 = vadd.f32 %v1635, %v1648
    %v1653 = vadd.f32 %v1636, %v1649
    %v1654 = vadd.f32 %v1637, %v1650
    %v1655 = vadd.f32 %v1638, %v1651
    %v1656 = vld [vmem:[%s4 + $0x59] sm:$0x1]
    %v1657 = vld [vmem:[#allocation2 + $0x8] sm:$0xff]
    %v1658 = vld [vmem:[#allocation2 + $0x10] sm:$0xff]
    %v1659 = vld [vmem:[#allocation2 + $0x28] sm:$0xff]
    %v1660 = vld [vmem:[#allocation2 + $0x30] sm:$0xff]
    %v1661 = vlaneseq
    %v1662 = vshrl.u32 %v1661, 7
    %v1663 = vsub.s32 0, %v1662
    %v1664 = vrot.slane %v1656, %v1663
    %v1665 = vmul.f32 %v1657, %v1664
    %v1666 = vmul.f32 %v1658, %v1664
    %v1667 = vmul.f32 %v1659, %v1664
    %v1668 = vmul.f32 %v1660, %v1664
    %v1669 = vadd.f32 %v1652, %v1665
    %v1670 = vadd.f32 %v1653, %v1666
    %v1671 = vadd.f32 %v1654, %v1667
    %v1672 = vadd.f32 %v1655, %v1668
    %v1673 = vld [vmem:[%s4 + $0x5e] sm:$0x1]
    %v1674 = vld [vmem:[#allocation2 + $0xa] sm:$0xff]
    %v1675 = vld [vmem:[#allocation2 + $0x12] sm:$0xff]
    %v1676 = vld [vmem:[#allocation2 + $0x2a] sm:$0xff]
    %v1677 = vld [vmem:[#allocation2 + $0x32] sm:$0xff]
    %v1678 = vlaneseq
    %v1679 = vshrl.u32 %v1678, 7
    %v1680 = vsub.s32 0, %v1679
    %v1681 = vrot.slane %v1673, %v1680
    %v1682 = vmul.f32 %v1674, %v1681
    %v1683 = vmul.f32 %v1675, %v1681
    %v1684 = vmul.f32 %v1676, %v1681
    %v1685 = vmul.f32 %v1677, %v1681
    %v1686 = vadd.f32 %v1669, %v1682
    %v1687 = vadd.f32 %v1670, %v1683
    %v1688 = vadd.f32 %v1671, %v1684
    %v1689 = vadd.f32 %v1672, %v1685
    %v1690 = vld [vmem:[%s4 + $0x63] sm:$0x1]
    %v1691 = vld [vmem:[#allocation2 + $0x14] sm:$0xff]
    %v1692 = vld [vmem:[#allocation2 + $0x34] sm:$0xff]
    %v1693 = vlaneseq
    %v1694 = vshrl.u32 %v1693, 7
    %v1695 = vsub.s32 0, %v1694
    %v1696 = vrot.slane %v1690, %v1695
    %v1697 = vmul.f32 %v1624, %v1696
    %v1698 = vmul.f32 %v1691, %v1696
    %v1699 = vmul.f32 %v1626, %v1696
    %v1700 = vmul.f32 %v1692, %v1696
    %v1701 = vadd.f32 %v1686, %v1697
    %v1702 = vadd.f32 %v1687, %v1698
    %v1703 = vadd.f32 %v1688, %v1699
    %v1704 = vadd.f32 %v1689, %v1700
    %1705 = vst [vmem:[#allocation2 + $0x8] sm:$0xff] %v941
    %1706 = vst [vmem:[#allocation2 + $0x10] sm:$0xff] %v942
    %1707 = vst [vmem:[#allocation2 + $0x28] sm:$0xff] %v943
    %1708 = vst [vmem:[#allocation2 + $0x30] sm:$0xff] %v944
    %v1709 = vld [vmem:[%s4 + $0x50] sm:$0x1]
    %v1710 = vld [vmem:[#allocation2 + $0x4] sm:$0xff]
    %v1711 = vld [vmem:[#allocation2 + $0xc] sm:$0xff]
    %v1712 = vld [vmem:[#allocation2 + $0x24] sm:$0xff]
    %v1713 = vld [vmem:[#allocation2 + $0x2c] sm:$0xff]
    %v1714 = vlaneseq
    %v1715 = vshrl.u32 %v1714, 7
    %v1716 = vsub.s32 0, %v1715
    %v1717 = vrot.slane %v1709, %v1716
    %v1718 = vmul.f32 %v1710, %v1717
    %v1719 = vmul.f32 %v1711, %v1717
    %v1720 = vmul.f32 %v1712, %v1717
    %v1721 = vmul.f32 %v1713, %v1717
    %v1722 = vadd.f32 %v1701, %v1718
    %v1723 = vadd.f32 %v1702, %v1719
    %v1724 = vadd.f32 %v1703, %v1720
    %v1725 = vadd.f32 %v1704, %v1721
    %v1726 = vld [vmem:[%s4 + $0x55] sm:$0x1]
    %v1727 = vld [vmem:[#allocation2 + $0x6] sm:$0xff]
    %v1728 = vld [vmem:[#allocation2 + $0xe] sm:$0xff]
    %v1729 = vld [vmem:[#allocation2 + $0x26] sm:$0xff]
    %v1730 = vld [vmem:[#allocation2 + $0x2e] sm:$0xff]
    %v1731 = vlaneseq
    %v1732 = vshrl.u32 %v1731, 7
    %v1733 = vsub.s32 0, %v1732
    %v1734 = vrot.slane %v1726, %v1733
    %v1735 = vmul.f32 %v1727, %v1734
    %v1736 = vmul.f32 %v1728, %v1734
    %v1737 = vmul.f32 %v1729, %v1734
    %v1738 = vmul.f32 %v1730, %v1734
    %v1739 = vadd.f32 %v1722, %v1735
    %v1740 = vadd.f32 %v1723, %v1736
    %v1741 = vadd.f32 %v1724, %v1737
    %v1742 = vadd.f32 %v1725, %v1738
    %v1743 = vld [vmem:[%s4 + $0x5a] sm:$0x1]
    %v1744 = vld [vmem:[#allocation2 + $0x8] sm:$0xff]
    %v1745 = vld [vmem:[#allocation2 + $0x10] sm:$0xff]
    %v1746 = vld [vmem:[#allocation2 + $0x28] sm:$0xff]
    %v1747 = vld [vmem:[#allocation2 + $0x30] sm:$0xff]
    %v1748 = vlaneseq
    %v1749 = vshrl.u32 %v1748, 7
    %v1750 = vsub.s32 0, %v1749
    %v1751 = vrot.slane %v1743, %v1750
    %v1752 = vmul.f32 %v1744, %v1751
    %v1753 = vmul.f32 %v1745, %v1751
    %v1754 = vmul.f32 %v1746, %v1751
    %v1755 = vmul.f32 %v1747, %v1751
    %v1756 = vadd.f32 %v1739, %v1752
    %v1757 = vadd.f32 %v1740, %v1753
    %v1758 = vadd.f32 %v1741, %v1754
    %v1759 = vadd.f32 %v1742, %v1755
    %v1760 = vld [vmem:[%s4 + $0x5f] sm:$0x1]
    %v1761 = vld [vmem:[#allocation2 + $0xa] sm:$0xff]
    %v1762 = vld [vmem:[#allocation2 + $0x12] sm:$0xff]
    %v1763 = vld [vmem:[#allocation2 + $0x2a] sm:$0xff]
    %v1764 = vld [vmem:[#allocation2 + $0x32] sm:$0xff]
    %v1765 = vlaneseq
    %v1766 = vshrl.u32 %v1765, 7
    %v1767 = vsub.s32 0, %v1766
    %v1768 = vrot.slane %v1760, %v1767
    %v1769 = vmul.f32 %v1761, %v1768
    %v1770 = vmul.f32 %v1762, %v1768
    %v1771 = vmul.f32 %v1763, %v1768
    %v1772 = vmul.f32 %v1764, %v1768
    %v1773 = vadd.f32 %v1756, %v1769
    %v1774 = vadd.f32 %v1757, %v1770
    %v1775 = vadd.f32 %v1758, %v1771
    %v1776 = vadd.f32 %v1759, %v1772
    %v1777 = vld [vmem:[%s4 + $0x64] sm:$0x1]
    %v1778 = vld [vmem:[#allocation2 + $0x14] sm:$0xff]
    %v1779 = vld [vmem:[#allocation2 + $0x34] sm:$0xff]
    %v1780 = vlaneseq
    %v1781 = vshrl.u32 %v1780, 7
    %v1782 = vsub.s32 0, %v1781
    %v1783 = vrot.slane %v1777, %v1782
    %v1784 = vmul.f32 %v1711, %v1783
    %v1785 = vmul.f32 %v1778, %v1783
    %v1786 = vmul.f32 %v1713, %v1783
    %v1787 = vmul.f32 %v1779, %v1783
    %v1788 = vadd.f32 %v1773, %v1784
    %v1789 = vadd.f32 %v1774, %v1785
    %v1790 = vadd.f32 %v1775, %v1786
    %v1791 = vadd.f32 %v1776, %v1787
    %1792 = vrot.lane.b32.xlu0 %v255, 96
    %v1793 = vpop.permute.xlu0 %1792
    %1794 = vrot.lane.b32.xlu0 %v256, 96
    %v1795 = vpop.permute.xlu0 %1794
    %1796 = vrot.lane.b32.xlu0 %v257, 96
    %v1797 = vpop.permute.xlu0 %1796
    %1798 = vrot.lane.b32.xlu0 %v258, 96
    %v1799 = vpop.permute.xlu0 %1798
    %vm1800 = vcmp.lt.s32.totalorder %v42, 96
    %v1801 = vsel %vm1800, %v1793, 0.0
    %v1802 = vsel %vm1800, %v1795, 0.0
    %v1803 = vsel %vm1800, %v1797, 0.0
    %v1804 = vsel %vm1800, %v1799, 0.0
    %1805 = vst [vmem:[#allocation2 + $0x8] sm:$0xff] %v1801
    %1806 = vst [vmem:[#allocation2 + $0x10] sm:$0xff] %v1802
    %1807 = vst [vmem:[#allocation2 + $0x28] sm:$0xff] %v1803
    %1808 = vst [vmem:[#allocation2 + $0x30] sm:$0xff] %v1804
    %v1809 = vld [vmem:[%s4 + $0x51] sm:$0x1]
    %v1810 = vld [vmem:[#allocation2 + $0x4] sm:$0xff]
    %v1811 = vld [vmem:[#allocation2 + $0xc] sm:$0xff]
    %v1812 = vld [vmem:[#allocation2 + $0x24] sm:$0xff]
    %v1813 = vld [vmem:[#allocation2 + $0x2c] sm:$0xff]
    %v1814 = vlaneseq
    %v1815 = vshrl.u32 %v1814, 7
    %v1816 = vsub.s32 0, %v1815
    %v1817 = vrot.slane %v1809, %v1816
    %v1818 = vmul.f32 %v1810, %v1817
    %v1819 = vmul.f32 %v1811, %v1817
    %v1820 = vmul.f32 %v1812, %v1817
    %v1821 = vmul.f32 %v1813, %v1817
    %v1822 = vadd.f32 %v1788, %v1818
    %v1823 = vadd.f32 %v1789, %v1819
    %v1824 = vadd.f32 %v1790, %v1820
    %v1825 = vadd.f32 %v1791, %v1821
    %v1826 = vld [vmem:[%s4 + $0x56] sm:$0x1]
    %v1827 = vld [vmem:[#allocation2 + $0x6] sm:$0xff]
    %v1828 = vld [vmem:[#allocation2 + $0xe] sm:$0xff]
    %v1829 = vld [vmem:[#allocation2 + $0x26] sm:$0xff]
    %v1830 = vld [vmem:[#allocation2 + $0x2e] sm:$0xff]
    %v1831 = vlaneseq
    %v1832 = vshrl.u32 %v1831, 7
    %v1833 = vsub.s32 0, %v1832
    %v1834 = vrot.slane %v1826, %v1833
    %v1835 = vmul.f32 %v1827, %v1834
    %v1836 = vmul.f32 %v1828, %v1834
    %v1837 = vmul.f32 %v1829, %v1834
    %v1838 = vmul.f32 %v1830, %v1834
    %v1839 = vadd.f32 %v1822, %v1835
    %v1840 = vadd.f32 %v1823, %v1836
    %v1841 = vadd.f32 %v1824, %v1837
    %v1842 = vadd.f32 %v1825, %v1838
    %v1843 = vld [vmem:[%s4 + $0x5b] sm:$0x1]
    %v1844 = vld [vmem:[#allocation2 + $0x8] sm:$0xff]
    %v1845 = vld [vmem:[#allocation2 + $0x10] sm:$0xff]
    %v1846 = vld [vmem:[#allocation2 + $0x28] sm:$0xff]
    %v1847 = vld [vmem:[#allocation2 + $0x30] sm:$0xff]
    %v1848 = vlaneseq
    %v1849 = vshrl.u32 %v1848, 7
    %v1850 = vsub.s32 0, %v1849
    %v1851 = vrot.slane %v1843, %v1850
    %v1852 = vmul.f32 %v1844, %v1851
    %v1853 = vmul.f32 %v1845, %v1851
    %v1854 = vmul.f32 %v1846, %v1851
    %v1855 = vmul.f32 %v1847, %v1851
    %v1856 = vadd.f32 %v1839, %v1852
    %v1857 = vadd.f32 %v1840, %v1853
    %v1858 = vadd.f32 %v1841, %v1854
    %v1859 = vadd.f32 %v1842, %v1855
    %v1860 = vld [vmem:[%s4 + $0x60] sm:$0x1]
    %v1861 = vld [vmem:[#allocation2 + $0xa] sm:$0xff]
    %v1862 = vld [vmem:[#allocation2 + $0x12] sm:$0xff]
    %v1863 = vld [vmem:[#allocation2 + $0x2a] sm:$0xff]
    %v1864 = vld [vmem:[#allocation2 + $0x32] sm:$0xff]
    %v1865 = vlaneseq
    %v1866 = vshrl.u32 %v1865, 7
    %v1867 = vsub.s32 0, %v1866
    %v1868 = vrot.slane %v1860, %v1867
    %v1869 = vmul.f32 %v1861, %v1868
    %v1870 = vmul.f32 %v1862, %v1868
    %v1871 = vmul.f32 %v1863, %v1868
    %v1872 = vmul.f32 %v1864, %v1868
    %v1873 = vadd.f32 %v1856, %v1869
    %v1874 = vadd.f32 %v1857, %v1870
    %v1875 = vadd.f32 %v1858, %v1871
    %v1876 = vadd.f32 %v1859, %v1872
    %v1877 = vld [vmem:[%s4 + $0x65] sm:$0x1]
    %v1878 = vld [vmem:[#allocation2 + $0x14] sm:$0xff]
    %v1879 = vld [vmem:[#allocation2 + $0x34] sm:$0xff]
    %v1880 = vlaneseq
    %v1881 = vshrl.u32 %v1880, 7
    %v1882 = vsub.s32 0, %v1881
    %v1883 = vrot.slane %v1877, %v1882
    %v1884 = vmul.f32 %v1811, %v1883
    %v1885 = vmul.f32 %v1878, %v1883
    %v1886 = vmul.f32 %v1813, %v1883
    %v1887 = vmul.f32 %v1879, %v1883
    %v1888 = vadd.f32 %v1873, %v1884
    %v1889 = vadd.f32 %v1874, %v1885
    %v1890 = vadd.f32 %v1875, %v1886
    %v1891 = vadd.f32 %v1876, %v1887
    %v1892 = vpack.c.bf16 %v1889, %v1888
    %v1893 = vpack.c.bf16 %v1891, %v1890
    %s1894 = scalar_lea.vmem %s5, 320
    %v1895 = vld [vmem:[%s1894] sm:$0xf]
    %v1896 = vld [vmem:[%s1894 + $0x4] sm:$0xf]
    %v1897 = vld [vmem:[%s1894 + $0x8] sm:$0xf]
    %v1898 = vld [vmem:[%s1894 + $0xc] sm:$0xf]
    %v1899 = vld [vmem:[%s1894 + $0x10] sm:$0xf]
    %v1900 = vld [vmem:[%s1894 + $0x14] sm:$0xf]
    %v1901 = vld [vmem:[%s1894 + $0x18] sm:$0xf]
    %v1902 = vld [vmem:[%s1894 + $0x1c] sm:$0xf]
    %v1903 = vld [vmem:[%s1894 + $0x20] sm:$0xf]
    %v1904 = vld [vmem:[%s1894 + $0x24] sm:$0xf]
    %v1905 = vld [vmem:[%s1894 + $0x28] sm:$0xf]
    %v1906 = vld [vmem:[%s1894 + $0x2c] sm:$0xf]
    %v1907 = vld [vmem:[%s1894 + $0x30] sm:$0xf]
    %v1908 = vld [vmem:[%s1894 + $0x34] sm:$0xf]
    %v1909 = vld [vmem:[%s1894 + $0x38] sm:$0xf]
    %v1910 = vld [vmem:[%s1894 + $0x3c] sm:$0xf]
    %v1927 = vunpack.c.l.b16 %v1895
    %v1928 = vunpack.c.l.b16 %v1896
    %v1929 = vunpack.c.l.b16 %v1897
    %v1930 = vunpack.c.l.b16 %v1898
    %v1931 = vunpack.c.l.b16 %v1899
    %v1932 = vunpack.c.l.b16 %v1900
    %v1933 = vunpack.c.l.b16 %v1901
    %v1934 = vunpack.c.l.b16 %v1902
    %v1935 = vunpack.c.l.b16 %v1903
    %v1936 = vunpack.c.l.b16 %v1904
    %v1937 = vunpack.c.l.b16 %v1905
    %v1938 = vunpack.c.l.b16 %v1906
    %v1939 = vunpack.c.l.b16 %v1907
    %v1940 = vunpack.c.l.b16 %v1908
    %v1941 = vunpack.c.l.b16 %v1909
    %v1942 = vunpack.c.l.b16 %v1910
    %v1943 = vpack.c.b16 %v1928, %v1927
    %v1944 = vpack.c.b16 %v1930, %v1929
    %v1945 = vpack.c.b16 %v1932, %v1931
    %v1946 = vpack.c.b16 %v1934, %v1933
    %v1947 = vpack.c.b16 %v1936, %v1935
    %v1948 = vpack.c.b16 %v1938, %v1937
    %v1949 = vpack.c.b16 %v1940, %v1939
    %v1950 = vpack.c.b16 %v1942, %v1941
    %1959 = vmatprep.subr.bf16.mxu0 0
    %1960 = vmatpush1.bf16.msra.mxu0 %v1950
    %1961 = vmatprep.subr.bf16.mxu0 0
    %1962 = vmatpush1.bf16.msra.mxu0 %v1949
    %1963 = vmatprep.subr.bf16.mxu0 0
    %1964 = vmatpush1.bf16.msra.mxu0 %v1948
    %1965 = vmatprep.subr.bf16.mxu0 0
    %1966 = vmatpush1.bf16.msra.mxu0 %v1947
    %1967 = vmatprep.subr.bf16.mxu0 0
    %1968 = vmatpush1.bf16.msra.mxu0 %v1946
    %1969 = vmatprep.subr.bf16.mxu0 0
    %1970 = vmatpush1.bf16.msra.mxu0 %v1945
    %1971 = vmatprep.subr.bf16.mxu0 0
    %1972 = vmatpush1.bf16.msra.mxu0 %v1944
    %1973 = vmatprep.subr.bf16.mxu0 0
    %1974 = vmatpush1.bf16.msra.mxu0 %v1943
    %1975 = vmatprep.subr.bf16.mxu0 0
    %1976 = vmatpush2.bf16.msra.mxu0 0
    %1977 = vmatprep.subr.bf16.mxu0 0
    %1978 = vmatpush2.bf16.msra.mxu0 0
    %1979 = vmatprep.subr.bf16.mxu0 0
    %1980 = vmatpush2.bf16.msra.mxu0 0
    %1981 = vmatprep.subr.bf16.mxu0 0
    %1982 = vmatpush2.bf16.msra.mxu0 0
    %1983 = vmatprep.subr.bf16.mxu0 0
    %1984 = vmatpush2.bf16.msra.mxu0 0
    %1985 = vmatprep.subr.bf16.mxu0 0
    %1986 = vmatpush2.bf16.msra.mxu0 0
    %1987 = vmatprep.subr.bf16.mxu0 0
    %1988 = vmatpush2.bf16.msra.mxu0 0
    %1989 = vmatprep.subr.bf16.mxu0 0
    %1990 = vmatpush2.bf16.msra.mxu0 0
    %1991 = vmatprep.mubr.bf16.mxu0 0
    %1992 = vmatmul.mubr.bf16.gmra.mxu0 %v1892
    %v1993 = vpop.f32.mrf.mxu0
    %v1994 = vadd.f32 0.0, %v1993
    %v1995 = vpop.f32.mrf.mxu0
    %v1996 = vpop.f32.mrf.mxu0
    %v1997 = vadd.f32 0.0, %v1996
    %v1998 = vpop.f32.mrf.mxu0
    %1999 = vmatprep.mubr.bf16.mxu0 0
    %2000 = vmatmul.mubr.bf16.gmra.mxu0 %v1893
    %v2001 = vpop.f32.mrf.mxu0
    %v2002 = vadd.f32 0.0, %v2001
    %v2003 = vpop.f32.mrf.mxu0
    %v2004 = vpop.f32.mrf.mxu0
    %v2005 = vadd.f32 0.0, %v2004
    %v2006 = vpop.f32.mrf.mxu0
    %2007 = vdwg.mxu0
    %v2008 = vadd.f32 %v149, %v150
    %v2009 = vadd.f32 %v2008, %v151
    %v2010 = vadd.f32 %v2009, %v152
    %v2011 = vrot.slane %v2010, 4
    %v2012 = vadd.f32 %v2010, %v2011
    %v2013 = vrot.slane %v2012, 2
    %v2014 = vadd.f32 %v2012, %v2013
    %v2015 = vrot.slane %v2014, 1
    %v2016 = vadd.f32 %v2014, %v2015
    %v2017 = vmul.f32 %v149, %v149
    %v2018 = vmul.f32 %v150, %v150
    %v2019 = vmul.f32 %v151, %v151
    %v2020 = vmul.f32 %v152, %v152
    %v2021 = vadd.f32 %v2017, %v2018
    %v2022 = vadd.f32 %v2021, %v2019
    %v2023 = vadd.f32 %v2022, %v2020
    %v2024 = vrot.slane %v2023, 4
    %v2025 = vadd.f32 %v2023, %v2024
    %v2026 = vrot.slane %v2025, 2
    %v2027 = vadd.f32 %v2025, %v2026
    %v2028 = vrot.slane %v2027, 1
    %v2029 = vadd.f32 %v2027, %v2028
    %vm2030 = vcmask 1040384
    %v2031 = vsel %vm2030, %v2016, %v2029
    %v2032 = vadd.f32 %v251, %v252
    %v2033 = vadd.f32 %v2032, %v253
    %v2034 = vadd.f32 %v2033, %v254
    %v2035 = vrot.slane %v2034, 4
    %v2036 = vadd.f32 %v2034, %v2035
    %v2037 = vrot.slane %v2036, 2
    %v2038 = vadd.f32 %v2036, %v2037
    %v2039 = vrot.slane %v2038, 1
    %v2040 = vadd.f32 %v2038, %v2039
    %v2041 = vmul.f32 %v251, %v251
    %v2042 = vmul.f32 %v252, %v252
    %v2043 = vmul.f32 %v253, %v253
    %v2044 = vmul.f32 %v254, %v254
    %v2045 = vadd.f32 %v2041, %v2042
    %v2046 = vadd.f32 %v2045, %v2043
    %v2047 = vadd.f32 %v2046, %v2044
    %v2048 = vrot.slane %v2047, 4
    %v2049 = vadd.f32 %v2047, %v2048
    %v2050 = vrot.slane %v2049, 2
    %v2051 = vadd.f32 %v2049, %v2050
    %v2052 = vrot.slane %v2051, 1
    %v2053 = vadd.f32 %v2051, %v2052
    %v2054 = vsel %vm2030, %v2040, %v2053
    %v2055 = vadd.f32 %v549, %v552
    %v2056 = vadd.f32 %v2055, %v557
    %v2057 = vadd.f32 %v2056, %v560
    %v2058 = vrot.slane %v2057, 4
    %v2059 = vadd.f32 %v2057, %v2058
    %v2060 = vrot.slane %v2059, 2
    %v2061 = vadd.f32 %v2059, %v2060
    %v2062 = vrot.slane %v2061, 1
    %v2063 = vadd.f32 %v2061, %v2062
    %v2064 = vmul.f32 %v549, %v549
    %v2065 = vmul.f32 %v552, %v552
    %v2066 = vmul.f32 %v557, %v557
    %v2067 = vmul.f32 %v560, %v560
    %v2068 = vadd.f32 %v2064, %v2065
    %v2069 = vadd.f32 %v2068, %v2066
    %v2070 = vadd.f32 %v2069, %v2067
    %v2071 = vrot.slane %v2070, 4
    %v2072 = vadd.f32 %v2070, %v2071
    %v2073 = vrot.slane %v2072, 2
    %v2074 = vadd.f32 %v2072, %v2073
    %v2075 = vrot.slane %v2074, 1
    %v2076 = vadd.f32 %v2074, %v2075
    %v2077 = vsel %vm2030, %v2063, %v2076
    %v2078 = vadd.f32 %v1136, %v1139
    %v2079 = vadd.f32 %v2078, %v1144
    %v2080 = vadd.f32 %v2079, %v1147
    %v2081 = vrot.slane %v2080, 4
    %v2082 = vadd.f32 %v2080, %v2081
    %v2083 = vrot.slane %v2082, 2
    %v2084 = vadd.f32 %v2082, %v2083
    %v2085 = vrot.slane %v2084, 1
    %v2086 = vadd.f32 %v2084, %v2085
    %v2087 = vmul.f32 %v1136, %v1136
    %v2088 = vmul.f32 %v1139, %v1139
    %v2089 = vmul.f32 %v1144, %v1144
    %v2090 = vmul.f32 %v1147, %v1147
    %v2091 = vadd.f32 %v2087, %v2088
    %v2092 = vadd.f32 %v2091, %v2089
    %v2093 = vadd.f32 %v2092, %v2090
    %v2094 = vrot.slane %v2093, 4
    %v2095 = vadd.f32 %v2093, %v2094
    %v2096 = vrot.slane %v2095, 2
    %v2097 = vadd.f32 %v2095, %v2096
    %v2098 = vrot.slane %v2097, 1
    %v2099 = vadd.f32 %v2097, %v2098
    %v2100 = vsel %vm2030, %v2086, %v2099
    %v2101 = vadd.f32 %v1417, %v1420
    %v2102 = vadd.f32 %v2101, %v1425
    %v2103 = vadd.f32 %v2102, %v1428
    %v2104 = vrot.slane %v2103, 4
    %v2105 = vadd.f32 %v2103, %v2104
    %v2106 = vrot.slane %v2105, 2
    %v2107 = vadd.f32 %v2105, %v2106
    %v2108 = vrot.slane %v2107, 1
    %v2109 = vadd.f32 %v2107, %v2108
    %v2110 = vmul.f32 %v1417, %v1417
    %v2111 = vmul.f32 %v1420, %v1420
    %v2112 = vmul.f32 %v1425, %v1425
    %v2113 = vmul.f32 %v1428, %v1428
    %v2114 = vadd.f32 %v2110, %v2111
    %v2115 = vadd.f32 %v2114, %v2112
    %v2116 = vadd.f32 %v2115, %v2113
    %v2117 = vrot.slane %v2116, 4
    %v2118 = vadd.f32 %v2116, %v2117
    %v2119 = vrot.slane %v2118, 2
    %v2120 = vadd.f32 %v2118, %v2119
    %v2121 = vrot.slane %v2120, 1
    %v2122 = vadd.f32 %v2120, %v2121
    %v2123 = vsel %vm2030, %v2109, %v2122
    %v2124 = vadd.f32 %v1994, %v1997
    %v2125 = vadd.f32 %v2124, %v2002
    %v2126 = vadd.f32 %v2125, %v2005
    %v2127 = vrot.slane %v2126, 4
    %v2128 = vadd.f32 %v2126, %v2127
    %v2129 = vrot.slane %v2128, 2
    %v2130 = vadd.f32 %v2128, %v2129
    %v2131 = vrot.slane %v2130, 1
    %v2132 = vadd.f32 %v2130, %v2131
    %v2133 = vmul.f32 %v1994, %v1994
    %v2134 = vmul.f32 %v1997, %v1997
    %v2135 = vmul.f32 %v2002, %v2002
    %v2136 = vmul.f32 %v2005, %v2005
    %v2137 = vadd.f32 %v2133, %v2134
    %v2138 = vadd.f32 %v2137, %v2135
    %v2139 = vadd.f32 %v2138, %v2136
    %v2140 = vrot.slane %v2139, 4
    %v2141 = vadd.f32 %v2139, %v2140
    %v2142 = vrot.slane %v2141, 2
    %v2143 = vadd.f32 %v2141, %v2142
    %v2144 = vrot.slane %v2143, 1
    %v2145 = vadd.f32 %v2143, %v2144
    %v2146 = vsel %vm2030, %v2132, %v2145
    %v2148 = vrot.slane %v2054, 6
    %v2151 = vrot.slane %v2077, 4
    %v2154 = vrot.slane %v2100, 2
    %v2157 = vrot.slane %v2146, 6
    %vm2159 = vcmask 1041408
    %v2160 = vsel %vm2159, %v2031, %v2148
    %vm2161 = vcmask 1043456
    %v2162 = vsel %vm2161, %v2160, %v2151
    %vm2163 = vcmask 1045504
    %v2164 = vsel %vm2163, %v2162, %v2154
    %v2165 = vsel %vm2159, %v2123, %v2157
    %v2166 = vld [vmem:[%s3] sm:$0xff]
    %v2167 = vld [vmem:[%s3 + $0x8] sm:$0xff]
    %v2168 = vld [vmem:[%s3 + $0x10] sm:$0xff]
    %v2169 = vld [vmem:[%s3 + $0x18] sm:$0xff]
    %v2170 = vld [vmem:[%s3 + $0x20] sm:$0xff]
    %v2171 = vld [vmem:[%s3 + $0x28] sm:$0xff]
    %v2172 = vld [vmem:[%s3 + $0x30] sm:$0xff]
    %v2173 = vld [vmem:[%s3 + $0x38] sm:$0xff]
    %v2174 = vld [vmem:[%s3 + $0x40] sm:$0xff]
    %v2175 = vld [vmem:[%s3 + $0x48] sm:$0xff]
    %v2176 = vld [vmem:[%s3 + $0x50] sm:$0xff]
    %v2177 = vld [vmem:[%s3 + $0x58] sm:$0xff]
    %v2178 = vld [vmem:[%s3 + $0x60] sm:$0xff]
    %v2179 = vld [vmem:[%s3 + $0x68] sm:$0xff]
    %v2180 = vld [vmem:[%s3 + $0x70] sm:$0xff]
    %v2181 = vld [vmem:[%s3 + $0x78] sm:$0xff]
    %2182 = vmatprep.subr.mxu0 0.0
    %2183 = vmatpush1.msra.mxu0 %v2181
    %2184 = vmatprep.subr.mxu0 0.0
    %2185 = vmatpush1.msra.mxu0 %v2180
    %2186 = vmatprep.subr.mxu0 0.0
    %2187 = vmatpush1.msra.mxu0 %v2179
    %2188 = vmatprep.subr.mxu0 0.0
    %2189 = vmatpush1.msra.mxu0 %v2178
    %2190 = vmatprep.subr.mxu0 0.0
    %2191 = vmatpush1.msra.mxu0 %v2177
    %2192 = vmatprep.subr.mxu0 0.0
    %2193 = vmatpush1.msra.mxu0 %v2176
    %2194 = vmatprep.subr.mxu0 0.0
    %2195 = vmatpush1.msra.mxu0 %v2175
    %2196 = vmatprep.subr.mxu0 0.0
    %2197 = vmatpush1.msra.mxu0 %v2174
    %2198 = vmatprep.subr.mxu0 0.0
    %2199 = vmatpush1.msra.mxu0 %v2173
    %2200 = vmatprep.subr.mxu0 0.0
    %2201 = vmatpush1.msra.mxu0 %v2172
    %2202 = vmatprep.subr.mxu0 0.0
    %2203 = vmatpush1.msra.mxu0 %v2171
    %2204 = vmatprep.subr.mxu0 0.0
    %2205 = vmatpush1.msra.mxu0 %v2170
    %2206 = vmatprep.subr.mxu0 0.0
    %2207 = vmatpush1.msra.mxu0 %v2169
    %2208 = vmatprep.subr.mxu0 0.0
    %2209 = vmatpush1.msra.mxu0 %v2168
    %2210 = vmatprep.subr.mxu0 0.0
    %2211 = vmatpush1.msra.mxu0 %v2167
    %2212 = vmatprep.subr.mxu0 0.0
    %2213 = vmatpush1.msra.mxu0 %v2166
    %2214 = vmatprep.subr.mxu0 0.0
    %2215 = vmatpush2.msra.mxu0 0.0
    %2216 = vmatprep.subr.mxu0 0.0
    %2217 = vmatpush2.msra.mxu0 0.0
    %2218 = vmatprep.subr.mxu0 0.0
    %2219 = vmatpush2.msra.mxu0 0.0
    %2220 = vmatprep.subr.mxu0 0.0
    %2221 = vmatpush2.msra.mxu0 0.0
    %2222 = vmatprep.subr.mxu0 0.0
    %2223 = vmatpush2.msra.mxu0 0.0
    %2224 = vmatprep.subr.mxu0 0.0
    %2225 = vmatpush2.msra.mxu0 0.0
    %2226 = vmatprep.subr.mxu0 0.0
    %2227 = vmatpush2.msra.mxu0 0.0
    %2228 = vmatprep.subr.mxu0 0.0
    %2229 = vmatpush2.msra.mxu0 0.0
    %2230 = vmatprep.subr.mxu0 0.0
    %2231 = vmatpush2.msra.mxu0 0.0
    %2232 = vmatprep.subr.mxu0 0.0
    %2233 = vmatpush2.msra.mxu0 0.0
    %2234 = vmatprep.subr.mxu0 0.0
    %2235 = vmatpush2.msra.mxu0 0.0
    %2236 = vmatprep.subr.mxu0 0.0
    %2237 = vmatpush2.msra.mxu0 0.0
    %2238 = vmatprep.subr.mxu0 0.0
    %2239 = vmatpush2.msra.mxu0 0.0
    %2240 = vmatprep.subr.mxu0 0.0
    %2241 = vmatpush2.msra.mxu0 0.0
    %2242 = vmatprep.subr.mxu0 0.0
    %2243 = vmatpush2.msra.mxu0 0.0
    %2244 = vmatprep.subr.mxu0 0.0
    %2245 = vmatpush2.msra.mxu0 0.0
    %2246 = vmatprep.mubr.f32.mxu0 0.0
    %2247 = vmatmul.mubr.f32.gmra.mxu0 %v2164
    %v2248 = vpop.f32.mrf.mxu0
    %v2249 = vadd.f32 0.0, %v2248
    %v2250 = vpop.f32.mrf.mxu0
    %2251 = vmatprep.mubr.f32.mxu0 0.0
    %2252 = vmatmul.mubr.f32.gmra.mxu0 %v2165
    %v2253 = vpop.f32.mrf.mxu0
    %v2254 = vadd.f32 0.0, %v2253
    %v2255 = vpop.f32.mrf.mxu0
    %2256 = vdwg.mxu0
    %v2257 = vmul.f32 %v2249, 0.001953125
    %v2258 = vmul.f32 %v2257, %v2257
    %v2260 = vrot.slane %v2258, 7
    %v2262 = vsub.f32 %v2257, %v2260
    %v2263 = vlaneseq
    %v2264 = vshrl.u32 %v2263, 7
    %v2265 = vsub.s32 0, %v2264
    %v2266 = vrot.slane %v2257, %v2265
    %v2267 = vsub.f32 %v149, %v2266
    %v2268 = vsub.f32 %v150, %v2266
    %v2269 = vsub.f32 %v151, %v2266
    %v2270 = vsub.f32 %v152, %v2266
    %v2271 = vadd.f32 %v2262, 1e-05
    %v2272 = vrsqrt.pop %v2271
    %v2273 = vlaneseq
    %v2274 = vshrl.u32 %v2273, 7
    %v2275 = vsub.s32 1, %v2274
    %v2276 = vrot.slane %v2272, %v2275
    %v2277 = vmul.f32 %v2267, %v2276
    %v2278 = vmul.f32 %v2268, %v2276
    %v2279 = vmul.f32 %v2269, %v2276
    %v2280 = vmul.f32 %v2270, %v2276
    %v2281 = vlaneseq
    %v2282 = vshrl.u32 %v2281, 7
    %v2283 = vsub.s32 2, %v2282
    %v2284 = vrot.slane %v2257, %v2283
    %v2285 = vsub.f32 %v251, %v2284
    %v2286 = vsub.f32 %v252, %v2284
    %v2287 = vsub.f32 %v253, %v2284
    %v2288 = vsub.f32 %v254, %v2284
    %v2289 = vlaneseq
    %v2290 = vshrl.u32 %v2289, 7
    %v2291 = vsub.s32 3, %v2290
    %v2292 = vrot.slane %v2272, %v2291
    %v2293 = vmul.f32 %v2285, %v2292
    %v2294 = vmul.f32 %v2286, %v2292
    %v2295 = vmul.f32 %v2287, %v2292
    %v2296 = vmul.f32 %v2288, %v2292
    %v2297 = vlaneseq
    %v2298 = vshrl.u32 %v2297, 7
    %v2299 = vsub.s32 4, %v2298
    %v2300 = vrot.slane %v2257, %v2299
    %v2301 = vsub.f32 %v549, %v2300
    %v2302 = vsub.f32 %v552, %v2300
    %v2303 = vsub.f32 %v557, %v2300
    %v2304 = vsub.f32 %v560, %v2300
    %v2305 = vlaneseq
    %v2306 = vshrl.u32 %v2305, 7
    %v2307 = vsub.s32 5, %v2306
    %v2308 = vrot.slane %v2272, %v2307
    %v2309 = vmul.f32 %v2301, %v2308
    %v2310 = vmul.f32 %v2302, %v2308
    %v2311 = vmul.f32 %v2303, %v2308
    %v2312 = vmul.f32 %v2304, %v2308
    %v2313 = vlaneseq
    %v2314 = vshrl.u32 %v2313, 7
    %v2315 = vsub.s32 6, %v2314
    %v2316 = vrot.slane %v2257, %v2315
    %v2317 = vsub.f32 %v1136, %v2316
    %v2318 = vsub.f32 %v1139, %v2316
    %v2319 = vsub.f32 %v1144, %v2316
    %v2320 = vsub.f32 %v1147, %v2316
    %v2321 = vlaneseq
    %v2322 = vshrl.u32 %v2321, 7
    %v2323 = vsub.s32 7, %v2322
    %v2324 = vrot.slane %v2272, %v2323
    %v2325 = vmul.f32 %v2317, %v2324
    %v2326 = vmul.f32 %v2318, %v2324
    %v2327 = vmul.f32 %v2319, %v2324
    %v2328 = vmul.f32 %v2320, %v2324
    %v2329 = vmul.f32 %v2254, 0.001953125
    %v2330 = vmul.f32 %v2329, %v2329
    %v2332 = vrot.slane %v2330, 7
    %v2334 = vsub.f32 %v2329, %v2332
    %v2335 = vlaneseq
    %v2336 = vshrl.u32 %v2335, 7
    %v2337 = vsub.s32 0, %v2336
    %v2338 = vrot.slane %v2329, %v2337
    %v2339 = vsub.f32 %v1417, %v2338
    %v2340 = vsub.f32 %v1420, %v2338
    %v2341 = vsub.f32 %v1425, %v2338
    %v2342 = vsub.f32 %v1428, %v2338
    %v2343 = vadd.f32 %v2334, 1e-05
    %v2344 = vrsqrt.pop %v2343
    %v2345 = vlaneseq
    %v2346 = vshrl.u32 %v2345, 7
    %v2347 = vsub.s32 1, %v2346
    %v2348 = vrot.slane %v2344, %v2347
    %v2349 = vmul.f32 %v2339, %v2348
    %v2350 = vmul.f32 %v2340, %v2348
    %v2351 = vmul.f32 %v2341, %v2348
    %v2352 = vmul.f32 %v2342, %v2348
    %v2353 = vlaneseq
    %v2354 = vshrl.u32 %v2353, 7
    %v2355 = vsub.s32 2, %v2354
    %v2356 = vrot.slane %v2329, %v2355
    %v2357 = vsub.f32 %v1994, %v2356
    %v2358 = vsub.f32 %v1997, %v2356
    %v2359 = vsub.f32 %v2002, %v2356
    %v2360 = vsub.f32 %v2005, %v2356
    %v2361 = vlaneseq
    %v2362 = vshrl.u32 %v2361, 7
    %v2363 = vsub.s32 3, %v2362
    %v2364 = vrot.slane %v2344, %v2363
    %v2365 = vmul.f32 %v2357, %v2364
    %v2366 = vmul.f32 %v2358, %v2364
    %v2367 = vmul.f32 %v2359, %v2364
    %v2368 = vmul.f32 %v2360, %v2364
    %v2369 = vmax.f32 %v2309, 0.0
    %v2370 = vmax.f32 %v2310, 0.0
    %v2371 = vmax.f32 %v2311, 0.0
    %v2372 = vmax.f32 %v2312, 0.0
    %2373 = vrot.lane.b32.xlu0 %v2369, 8
    %v2374 = vpop.permute.xlu0 %2373
    %2375 = vrot.lane.b32.xlu0 %v2370, 8
    %v2376 = vpop.permute.xlu0 %2375
    %2377 = vrot.lane.b32.xlu0 %v2371, 8
    %v2378 = vpop.permute.xlu0 %2377
    %2379 = vrot.lane.b32.xlu0 %v2372, 8
    %v2380 = vpop.permute.xlu0 %2379
    %v2381 = vsel %vm55, %v2374, 0.0
    %v2382 = vsel %vm55, %v2376, 0.0
    %v2383 = vsel %vm55, %v2378, 0.0
    %v2384 = vsel %vm55, %v2380, 0.0
    %2385 = vst [vmem:[#allocation2 + $0x8] sm:$0xff] %v2381
    %2386 = vst [vmem:[#allocation2 + $0x10] sm:$0xff] %v2382
    %2387 = vst [vmem:[#allocation2 + $0x28] sm:$0xff] %v2383
    %2388 = vst [vmem:[#allocation2 + $0x30] sm:$0xff] %v2384
    %v2389 = vld [vmem:[%s4 + $0x9] sm:$0x1]
    %v2390 = vld [vmem:[#allocation2 + $0x7] sm:$0xff]
    %v2391 = vld [vmem:[#allocation2 + $0xf] sm:$0xff]
    %v2392 = vld [vmem:[#allocation2 + $0x27] sm:$0xff]
    %v2393 = vld [vmem:[#allocation2 + $0x2f] sm:$0xff]
    %v2394 = vlaneseq
    %v2395 = vshrl.u32 %v2394, 7
    %v2396 = vsub.s32 0, %v2395
    %v2397 = vrot.slane %v2389, %v2396
    %v2398 = vmul.f32 %v2390, %v2397
    %v2399 = vmul.f32 %v2391, %v2397
    %v2400 = vmul.f32 %v2392, %v2397
    %v2401 = vmul.f32 %v2393, %v2397
    %v2402 = vadd.f32 %v2398, 0.0
    %v2403 = vadd.f32 %v2399, 0.0
    %v2404 = vadd.f32 %v2400, 0.0
    %v2405 = vadd.f32 %v2401, 0.0
    %v2406 = vld [vmem:[%s4 + $0xc] sm:$0x1]
    %v2407 = vld [vmem:[#allocation2 + $0x8] sm:$0xff]
    %v2408 = vld [vmem:[#allocation2 + $0x10] sm:$0xff]
    %v2409 = vld [vmem:[#allocation2 + $0x28] sm:$0xff]
    %v2410 = vld [vmem:[#allocation2 + $0x30] sm:$0xff]
    %v2411 = vlaneseq
    %v2412 = vshrl.u32 %v2411, 7
    %v2413 = vsub.s32 0, %v2412
    %v2414 = vrot.slane %v2406, %v2413
    %v2415 = vmul.f32 %v2407, %v2414
    %v2416 = vmul.f32 %v2408, %v2414
    %v2417 = vmul.f32 %v2409, %v2414
    %v2418 = vmul.f32 %v2410, %v2414
    %v2419 = vadd.f32 %v2402, %v2415
    %v2420 = vadd.f32 %v2403, %v2416
    %v2421 = vadd.f32 %v2404, %v2417
    %v2422 = vadd.f32 %v2405, %v2418
    %v2423 = vld [vmem:[%s4 + $0xf] sm:$0x1]
    %v2424 = vld [vmem:[#allocation2 + $0x9] sm:$0xff]
    %v2425 = vld [vmem:[#allocation2 + $0x11] sm:$0xff]
    %v2426 = vld [vmem:[#allocation2 + $0x29] sm:$0xff]
    %v2427 = vld [vmem:[#allocation2 + $0x31] sm:$0xff]
    %v2428 = vlaneseq
    %v2429 = vshrl.u32 %v2428, 7
    %v2430 = vsub.s32 0, %v2429
    %v2431 = vrot.slane %v2423, %v2430
    %v2432 = vmul.f32 %v2424, %v2431
    %v2433 = vmul.f32 %v2425, %v2431
    %v2434 = vmul.f32 %v2426, %v2431
    %v2435 = vmul.f32 %v2427, %v2431
    %v2436 = vadd.f32 %v2419, %v2432
    %v2437 = vadd.f32 %v2420, %v2433
    %v2438 = vadd.f32 %v2421, %v2434
    %v2439 = vadd.f32 %v2422, %v2435
    %2440 = vst [vmem:[#allocation2 + $0x8] sm:$0xff] %v2369
    %2441 = vst [vmem:[#allocation2 + $0x10] sm:$0xff] %v2370
    %2442 = vst [vmem:[#allocation2 + $0x28] sm:$0xff] %v2371
    %2443 = vst [vmem:[#allocation2 + $0x30] sm:$0xff] %v2372
    %v2444 = vld [vmem:[%s4 + $0xa] sm:$0x1]
    %v2445 = vld [vmem:[#allocation2 + $0x7] sm:$0xff]
    %v2446 = vld [vmem:[#allocation2 + $0xf] sm:$0xff]
    %v2447 = vld [vmem:[#allocation2 + $0x27] sm:$0xff]
    %v2448 = vld [vmem:[#allocation2 + $0x2f] sm:$0xff]
    %v2449 = vlaneseq
    %v2450 = vshrl.u32 %v2449, 7
    %v2451 = vsub.s32 0, %v2450
    %v2452 = vrot.slane %v2444, %v2451
    %v2453 = vmul.f32 %v2445, %v2452
    %v2454 = vmul.f32 %v2446, %v2452
    %v2455 = vmul.f32 %v2447, %v2452
    %v2456 = vmul.f32 %v2448, %v2452
    %v2457 = vadd.f32 %v2436, %v2453
    %v2458 = vadd.f32 %v2437, %v2454
    %v2459 = vadd.f32 %v2438, %v2455
    %v2460 = vadd.f32 %v2439, %v2456
    %v2461 = vld [vmem:[%s4 + $0xd] sm:$0x1]
    %v2462 = vld [vmem:[#allocation2 + $0x8] sm:$0xff]
    %v2463 = vld [vmem:[#allocation2 + $0x10] sm:$0xff]
    %v2464 = vld [vmem:[#allocation2 + $0x28] sm:$0xff]
    %v2465 = vld [vmem:[#allocation2 + $0x30] sm:$0xff]
    %v2466 = vlaneseq
    %v2467 = vshrl.u32 %v2466, 7
    %v2468 = vsub.s32 0, %v2467
    %v2469 = vrot.slane %v2461, %v2468
    %v2470 = vmul.f32 %v2462, %v2469
    %v2471 = vmul.f32 %v2463, %v2469
    %v2472 = vmul.f32 %v2464, %v2469
    %v2473 = vmul.f32 %v2465, %v2469
    %v2474 = vadd.f32 %v2457, %v2470
    %v2475 = vadd.f32 %v2458, %v2471
    %v2476 = vadd.f32 %v2459, %v2472
    %v2477 = vadd.f32 %v2460, %v2473
    %v2478 = vld [vmem:[%s4 + $0x10] sm:$0x1]
    %v2479 = vld [vmem:[#allocation2 + $0x9] sm:$0xff]
    %v2480 = vld [vmem:[#allocation2 + $0x11] sm:$0xff]
    %v2481 = vld [vmem:[#allocation2 + $0x29] sm:$0xff]
    %v2482 = vld [vmem:[#allocation2 + $0x31] sm:$0xff]
    %v2483 = vlaneseq
    %v2484 = vshrl.u32 %v2483, 7
    %v2485 = vsub.s32 0, %v2484
    %v2486 = vrot.slane %v2478, %v2485
    %v2487 = vmul.f32 %v2479, %v2486
    %v2488 = vmul.f32 %v2480, %v2486
    %v2489 = vmul.f32 %v2481, %v2486
    %v2490 = vmul.f32 %v2482, %v2486
    %v2491 = vadd.f32 %v2474, %v2487
    %v2492 = vadd.f32 %v2475, %v2488
    %v2493 = vadd.f32 %v2476, %v2489
    %v2494 = vadd.f32 %v2477, %v2490
    %2495 = vrot.lane.b32.xlu0 %v2369, 120
    %v2496 = vpop.permute.xlu0 %2495
    %2497 = vrot.lane.b32.xlu0 %v2370, 120
    %v2498 = vpop.permute.xlu0 %2497
    %2499 = vrot.lane.b32.xlu0 %v2371, 120
    %v2500 = vpop.permute.xlu0 %2499
    %2501 = vrot.lane.b32.xlu0 %v2372, 120
    %v2502 = vpop.permute.xlu0 %2501
    %v2503 = vsel %vm120, %v2496, 0.0
    %v2504 = vsel %vm120, %v2498, 0.0
    %v2505 = vsel %vm120, %v2500, 0.0
    %v2506 = vsel %vm120, %v2502, 0.0
    %2507 = vst [vmem:[#allocation2 + $0x8] sm:$0xff] %v2503
    %2508 = vst [vmem:[#allocation2 + $0x10] sm:$0xff] %v2504
    %2509 = vst [vmem:[#allocation2 + $0x28] sm:$0xff] %v2505
    %2510 = vst [vmem:[#allocation2 + $0x30] sm:$0xff] %v2506
    %v2511 = vld [vmem:[%s4 + $0xb] sm:$0x1]
    %v2512 = vld [vmem:[#allocation2 + $0x7] sm:$0xff]
    %v2513 = vld [vmem:[#allocation2 + $0xf] sm:$0xff]
    %v2514 = vld [vmem:[#allocation2 + $0x27] sm:$0xff]
    %v2515 = vld [vmem:[#allocation2 + $0x2f] sm:$0xff]
    %v2516 = vlaneseq
    %v2517 = vshrl.u32 %v2516, 7
    %v2518 = vsub.s32 0, %v2517
    %v2519 = vrot.slane %v2511, %v2518
    %v2520 = vmul.f32 %v2512, %v2519
    %v2521 = vmul.f32 %v2513, %v2519
    %v2522 = vmul.f32 %v2514, %v2519
    %v2523 = vmul.f32 %v2515, %v2519
    %v2524 = vadd.f32 %v2491, %v2520
    %v2525 = vadd.f32 %v2492, %v2521
    %v2526 = vadd.f32 %v2493, %v2522
    %v2527 = vadd.f32 %v2494, %v2523
    %v2528 = vld [vmem:[%s4 + $0xe] sm:$0x1]
    %v2529 = vld [vmem:[#allocation2 + $0x8] sm:$0xff]
    %v2530 = vld [vmem:[#allocation2 + $0x10] sm:$0xff]
    %v2531 = vld [vmem:[#allocation2 + $0x28] sm:$0xff]
    %v2532 = vld [vmem:[#allocation2 + $0x30] sm:$0xff]
    %v2533 = vlaneseq
    %v2534 = vshrl.u32 %v2533, 7
    %v2535 = vsub.s32 0, %v2534
    %v2536 = vrot.slane %v2528, %v2535
    %v2537 = vmul.f32 %v2529, %v2536
    %v2538 = vmul.f32 %v2530, %v2536
    %v2539 = vmul.f32 %v2531, %v2536
    %v2540 = vmul.f32 %v2532, %v2536
    %v2541 = vadd.f32 %v2524, %v2537
    %v2542 = vadd.f32 %v2525, %v2538
    %v2543 = vadd.f32 %v2526, %v2539
    %v2544 = vadd.f32 %v2527, %v2540
    %v2545 = vld [vmem:[%s4 + $0x11] sm:$0x1]
    %v2546 = vld [vmem:[#allocation2 + $0x9] sm:$0xff]
    %v2547 = vld [vmem:[#allocation2 + $0x11] sm:$0xff]
    %v2548 = vld [vmem:[#allocation2 + $0x29] sm:$0xff]
    %v2549 = vld [vmem:[#allocation2 + $0x31] sm:$0xff]
    %v2550 = vlaneseq
    %v2551 = vshrl.u32 %v2550, 7
    %v2552 = vsub.s32 0, %v2551
    %v2553 = vrot.slane %v2545, %v2552
    %v2554 = vmul.f32 %v2546, %v2553
    %v2555 = vmul.f32 %v2547, %v2553
    %v2556 = vmul.f32 %v2548, %v2553
    %v2557 = vmul.f32 %v2549, %v2553
    %v2558 = vadd.f32 %v2541, %v2554
    %v2559 = vadd.f32 %v2542, %v2555
    %v2560 = vadd.f32 %v2543, %v2556
    %v2561 = vadd.f32 %v2544, %v2557
    %v2562 = vpack.c.bf16 %v2559, %v2558
    %v2563 = vpack.c.bf16 %v2561, %v2560
    %s2564 = scalar_lea.vmem %s5, 64
    %v2565 = vld [vmem:[%s2564] sm:$0xf]
    %v2566 = vld [vmem:[%s2564 + $0x4] sm:$0xf]
    %v2567 = vld [vmem:[%s2564 + $0x8] sm:$0xf]
    %v2568 = vld [vmem:[%s2564 + $0xc] sm:$0xf]
    %v2569 = vld [vmem:[%s2564 + $0x10] sm:$0xf]
    %v2570 = vld [vmem:[%s2564 + $0x14] sm:$0xf]
    %v2571 = vld [vmem:[%s2564 + $0x18] sm:$0xf]
    %v2572 = vld [vmem:[%s2564 + $0x1c] sm:$0xf]
    %v2573 = vld [vmem:[%s2564 + $0x20] sm:$0xf]
    %v2574 = vld [vmem:[%s2564 + $0x24] sm:$0xf]
    %v2575 = vld [vmem:[%s2564 + $0x28] sm:$0xf]
    %v2576 = vld [vmem:[%s2564 + $0x2c] sm:$0xf]
    %v2577 = vld [vmem:[%s2564 + $0x30] sm:$0xf]
    %v2578 = vld [vmem:[%s2564 + $0x34] sm:$0xf]
    %v2579 = vld [vmem:[%s2564 + $0x38] sm:$0xf]
    %v2580 = vld [vmem:[%s2564 + $0x3c] sm:$0xf]
    %v2597 = vunpack.c.l.b16 %v2565
    %v2598 = vunpack.c.l.b16 %v2566
    %v2599 = vunpack.c.l.b16 %v2567
    %v2600 = vunpack.c.l.b16 %v2568
    %v2601 = vunpack.c.l.b16 %v2569
    %v2602 = vunpack.c.l.b16 %v2570
    %v2603 = vunpack.c.l.b16 %v2571
    %v2604 = vunpack.c.l.b16 %v2572
    %v2605 = vunpack.c.l.b16 %v2573
    %v2606 = vunpack.c.l.b16 %v2574
    %v2607 = vunpack.c.l.b16 %v2575
    %v2608 = vunpack.c.l.b16 %v2576
    %v2609 = vunpack.c.l.b16 %v2577
    %v2610 = vunpack.c.l.b16 %v2578
    %v2611 = vunpack.c.l.b16 %v2579
    %v2612 = vunpack.c.l.b16 %v2580
    %v2613 = vpack.c.b16 %v2598, %v2597
    %v2614 = vpack.c.b16 %v2600, %v2599
    %v2615 = vpack.c.b16 %v2602, %v2601
    %v2616 = vpack.c.b16 %v2604, %v2603
    %v2617 = vpack.c.b16 %v2606, %v2605
    %v2618 = vpack.c.b16 %v2608, %v2607
    %v2619 = vpack.c.b16 %v2610, %v2609
    %v2620 = vpack.c.b16 %v2612, %v2611
    %2629 = vmatprep.subr.bf16.mxu0 0
    %2630 = vmatpush1.bf16.msra.mxu0 %v2620
    %2631 = vmatprep.subr.bf16.mxu0 0
    %2632 = vmatpush1.bf16.msra.mxu0 %v2619
    %2633 = vmatprep.subr.bf16.mxu0 0
    %2634 = vmatpush1.bf16.msra.mxu0 %v2618
    %2635 = vmatprep.subr.bf16.mxu0 0
    %2636 = vmatpush1.bf16.msra.mxu0 %v2617
    %2637 = vmatprep.subr.bf16.mxu0 0
    %2638 = vmatpush1.bf16.msra.mxu0 %v2616
    %2639 = vmatprep.subr.bf16.mxu0 0
    %2640 = vmatpush1.bf16.msra.mxu0 %v2615
    %2641 = vmatprep.subr.bf16.mxu0 0
    %2642 = vmatpush1.bf16.msra.mxu0 %v2614
    %2643 = vmatprep.subr.bf16.mxu0 0
    %2644 = vmatpush1.bf16.msra.mxu0 %v2613
    %2645 = vmatprep.subr.bf16.mxu0 0
    %2646 = vmatpush2.bf16.msra.mxu0 0
    %2647 = vmatprep.subr.bf16.mxu0 0
    %2648 = vmatpush2.bf16.msra.mxu0 0
    %2649 = vmatprep.subr.bf16.mxu0 0
    %2650 = vmatpush2.bf16.msra.mxu0 0
    %2651 = vmatprep.subr.bf16.mxu0 0
    %2652 = vmatpush2.bf16.msra.mxu0 0
    %2653 = vmatprep.subr.bf16.mxu0 0
    %2654 = vmatpush2.bf16.msra.mxu0 0
    %2655 = vmatprep.subr.bf16.mxu0 0
    %2656 = vmatpush2.bf16.msra.mxu0 0
    %2657 = vmatprep.subr.bf16.mxu0 0
    %2658 = vmatpush2.bf16.msra.mxu0 0
    %2659 = vmatprep.subr.bf16.mxu0 0
    %2660 = vmatpush2.bf16.msra.mxu0 0
    %2661 = vmatprep.mubr.bf16.mxu0 0
    %2662 = vmatmul.mubr.bf16.gmra.mxu0 %v2562
    %v2663 = vpop.f32.mrf.mxu0
    %v2664 = vadd.f32 0.0, %v2663
    %v2665 = vpop.f32.mrf.mxu0
    %v2666 = vpop.f32.mrf.mxu0
    %v2667 = vadd.f32 0.0, %v2666
    %v2668 = vpop.f32.mrf.mxu0
    %2669 = vmatprep.mubr.bf16.mxu0 0
    %2670 = vmatmul.mubr.bf16.gmra.mxu0 %v2563
    %v2671 = vpop.f32.mrf.mxu0
    %v2672 = vadd.f32 0.0, %v2671
    %v2673 = vpop.f32.mrf.mxu0
    %v2674 = vpop.f32.mrf.mxu0
    %v2675 = vadd.f32 0.0, %v2674
    %v2676 = vpop.f32.mrf.mxu0
    %2677 = vdwg.mxu0
    %v2678 = vmax.f32 %v2325, 0.0
    %v2679 = vmax.f32 %v2326, 0.0
    %v2680 = vmax.f32 %v2327, 0.0
    %v2681 = vmax.f32 %v2328, 0.0
    %2682 = vrot.lane.b32.xlu0 %v2678, 16
    %v2683 = vpop.permute.xlu0 %2682
    %2684 = vrot.lane.b32.xlu0 %v2679, 16
    %v2685 = vpop.permute.xlu0 %2684
    %2686 = vrot.lane.b32.xlu0 %v2680, 16
    %v2687 = vpop.permute.xlu0 %2686
    %2688 = vrot.lane.b32.xlu0 %v2681, 16
    %v2689 = vpop.permute.xlu0 %2688
    %v2690 = vsel %vm571, %v2683, 0.0
    %v2691 = vsel %vm571, %v2685, 0.0
    %v2692 = vsel %vm571, %v2687, 0.0
    %v2693 = vsel %vm571, %v2689, 0.0
    %2694 = vst [vmem:[#allocation2 + $0x8] sm:$0xff] %v2690
    %2695 = vst [vmem:[#allocation2 + $0x10] sm:$0xff] %v2691
    %2696 = vst [vmem:[#allocation2 + $0x28] sm:$0xff] %v2692
    %2697 = vst [vmem:[#allocation2 + $0x30] sm:$0xff] %v2693
    %v2698 = vld [vmem:[%s4 + $0x34] sm:$0x1]
    %v2699 = vld [vmem:[#allocation2 + $0x6] sm:$0xff]
    %v2700 = vld [vmem:[#allocation2 + $0xe] sm:$0xff]
    %v2701 = vld [vmem:[#allocation2 + $0x26] sm:$0xff]
    %v2702 = vld [vmem:[#allocation2 + $0x2e] sm:$0xff]
    %v2703 = vlaneseq
    %v2704 = vshrl.u32 %v2703, 7
    %v2705 = vsub.s32 0, %v2704
    %v2706 = vrot.slane %v2698, %v2705
    %v2707 = vmul.f32 %v2699, %v2706
    %v2708 = vmul.f32 %v2700, %v2706
    %v2709 = vmul.f32 %v2701, %v2706
    %v2710 = vmul.f32 %v2702, %v2706
    %v2711 = vadd.f32 %v2707, 0.0
    %v2712 = vadd.f32 %v2708, 0.0
    %v2713 = vadd.f32 %v2709, 0.0
    %v2714 = vadd.f32 %v2710, 0.0
    %v2715 = vld [vmem:[%s4 + $0x39] sm:$0x1]
    %v2716 = vld [vmem:[#allocation2 + $0x7] sm:$0xff]
    %v2717 = vld [vmem:[#allocation2 + $0xf] sm:$0xff]
    %v2718 = vld [vmem:[#allocation2 + $0x27] sm:$0xff]
    %v2719 = vld [vmem:[#allocation2 + $0x2f] sm:$0xff]
    %v2720 = vlaneseq
    %v2721 = vshrl.u32 %v2720, 7
    %v2722 = vsub.s32 0, %v2721
    %v2723 = vrot.slane %v2715, %v2722
    %v2724 = vmul.f32 %v2716, %v2723
    %v2725 = vmul.f32 %v2717, %v2723
    %v2726 = vmul.f32 %v2718, %v2723
    %v2727 = vmul.f32 %v2719, %v2723
    %v2728 = vadd.f32 %v2711, %v2724
    %v2729 = vadd.f32 %v2712, %v2725
    %v2730 = vadd.f32 %v2713, %v2726
    %v2731 = vadd.f32 %v2714, %v2727
    %v2732 = vld [vmem:[%s4 + $0x3e] sm:$0x1]
    %v2733 = vld [vmem:[#allocation2 + $0x8] sm:$0xff]
    %v2734 = vld [vmem:[#allocation2 + $0x10] sm:$0xff]
    %v2735 = vld [vmem:[#allocation2 + $0x28] sm:$0xff]
    %v2736 = vld [vmem:[#allocation2 + $0x30] sm:$0xff]
    %v2737 = vlaneseq
    %v2738 = vshrl.u32 %v2737, 7
    %v2739 = vsub.s32 0, %v2738
    %v2740 = vrot.slane %v2732, %v2739
    %v2741 = vmul.f32 %v2733, %v2740
    %v2742 = vmul.f32 %v2734, %v2740
    %v2743 = vmul.f32 %v2735, %v2740
    %v2744 = vmul.f32 %v2736, %v2740
    %v2745 = vadd.f32 %v2728, %v2741
    %v2746 = vadd.f32 %v2729, %v2742
    %v2747 = vadd.f32 %v2730, %v2743
    %v2748 = vadd.f32 %v2731, %v2744
    %v2749 = vld [vmem:[%s4 + $0x43] sm:$0x1]
    %v2750 = vld [vmem:[#allocation2 + $0x9] sm:$0xff]
    %v2751 = vld [vmem:[#allocation2 + $0x11] sm:$0xff]
    %v2752 = vld [vmem:[#allocation2 + $0x29] sm:$0xff]
    %v2753 = vld [vmem:[#allocation2 + $0x31] sm:$0xff]
    %v2754 = vlaneseq
    %v2755 = vshrl.u32 %v2754, 7
    %v2756 = vsub.s32 0, %v2755
    %v2757 = vrot.slane %v2749, %v2756
    %v2758 = vmul.f32 %v2750, %v2757
    %v2759 = vmul.f32 %v2751, %v2757
    %v2760 = vmul.f32 %v2752, %v2757
    %v2761 = vmul.f32 %v2753, %v2757
    %v2762 = vadd.f32 %v2745, %v2758
    %v2763 = vadd.f32 %v2746, %v2759
    %v2764 = vadd.f32 %v2747, %v2760
    %v2765 = vadd.f32 %v2748, %v2761
    %v2766 = vld [vmem:[%s4 + $0x48] sm:$0x1]
    %v2767 = vld [vmem:[#allocation2 + $0xa] sm:$0xff]
    %v2768 = vld [vmem:[#allocation2 + $0x12] sm:$0xff]
    %v2769 = vld [vmem:[#allocation2 + $0x2a] sm:$0xff]
    %v2770 = vld [vmem:[#allocation2 + $0x32] sm:$0xff]
    %v2771 = vlaneseq
    %v2772 = vshrl.u32 %v2771, 7
    %v2773 = vsub.s32 0, %v2772
    %v2774 = vrot.slane %v2766, %v2773
    %v2775 = vmul.f32 %v2767, %v2774
    %v2776 = vmul.f32 %v2768, %v2774
    %v2777 = vmul.f32 %v2769, %v2774
    %v2778 = vmul.f32 %v2770, %v2774
    %v2779 = vadd.f32 %v2762, %v2775
    %v2780 = vadd.f32 %v2763, %v2776
    %v2781 = vadd.f32 %v2764, %v2777
    %v2782 = vadd.f32 %v2765, %v2778
    %2783 = vrot.lane.b32.xlu0 %v2678, 8
    %v2784 = vpop.permute.xlu0 %2783
    %2785 = vrot.lane.b32.xlu0 %v2679, 8
    %v2786 = vpop.permute.xlu0 %2785
    %2787 = vrot.lane.b32.xlu0 %v2680, 8
    %v2788 = vpop.permute.xlu0 %2787
    %2789 = vrot.lane.b32.xlu0 %v2681, 8
    %v2790 = vpop.permute.xlu0 %2789
    %v2791 = vsel %vm55, %v2784, 0.0
    %v2792 = vsel %vm55, %v2786, 0.0
    %v2793 = vsel %vm55, %v2788, 0.0
    %v2794 = vsel %vm55, %v2790, 0.0
    %2795 = vst [vmem:[#allocation2 + $0x8] sm:$0xff] %v2791
    %2796 = vst [vmem:[#allocation2 + $0x10] sm:$0xff] %v2792
    %2797 = vst [vmem:[#allocation2 + $0x28] sm:$0xff] %v2793
    %2798 = vst [vmem:[#allocation2 + $0x30] sm:$0xff] %v2794
    %v2799 = vld [vmem:[%s4 + $0x35] sm:$0x1]
    %v2800 = vld [vmem:[#allocation2 + $0x6] sm:$0xff]
    %v2801 = vld [vmem:[#allocation2 + $0xe] sm:$0xff]
    %v2802 = vld [vmem:[#allocation2 + $0x26] sm:$0xff]
    %v2803 = vld [vmem:[#allocation2 + $0x2e] sm:$0xff]
    %v2804 = vlaneseq
    %v2805 = vshrl.u32 %v2804, 7
    %v2806 = vsub.s32 0, %v2805
    %v2807 = vrot.slane %v2799, %v2806
    %v2808 = vmul.f32 %v2800, %v2807
    %v2809 = vmul.f32 %v2801, %v2807
    %v2810 = vmul.f32 %v2802, %v2807
    %v2811 = vmul.f32 %v2803, %v2807
    %v2812 = vadd.f32 %v2779, %v2808
    %v2813 = vadd.f32 %v2780, %v2809
    %v2814 = vadd.f32 %v2781, %v2810
    %v2815 = vadd.f32 %v2782, %v2811
    %v2816 = vld [vmem:[%s4 + $0x3a] sm:$0x1]
    %v2817 = vld [vmem:[#allocation2 + $0x7] sm:$0xff]
    %v2818 = vld [vmem:[#allocation2 + $0xf] sm:$0xff]
    %v2819 = vld [vmem:[#allocation2 + $0x27] sm:$0xff]
    %v2820 = vld [vmem:[#allocation2 + $0x2f] sm:$0xff]
    %v2821 = vlaneseq
    %v2822 = vshrl.u32 %v2821, 7
    %v2823 = vsub.s32 0, %v2822
    %v2824 = vrot.slane %v2816, %v2823
    %v2825 = vmul.f32 %v2817, %v2824
    %v2826 = vmul.f32 %v2818, %v2824
    %v2827 = vmul.f32 %v2819, %v2824
    %v2828 = vmul.f32 %v2820, %v2824
    %v2829 = vadd.f32 %v2812, %v2825
    %v2830 = vadd.f32 %v2813, %v2826
    %v2831 = vadd.f32 %v2814, %v2827
    %v2832 = vadd.f32 %v2815, %v2828
    %v2833 = vld [vmem:[%s4 + $0x3f] sm:$0x1]
    %v2834 = vld [vmem:[#allocation2 + $0x8] sm:$0xff]
    %v2835 = vld [vmem:[#allocation2 + $0x10] sm:$0xff]
    %v2836 = vld [vmem:[#allocation2 + $0x28] sm:$0xff]
    %v2837 = vld [vmem:[#allocation2 + $0x30] sm:$0xff]
    %v2838 = vlaneseq
    %v2839 = vshrl.u32 %v2838, 7
    %v2840 = vsub.s32 0, %v2839
    %v2841 = vrot.slane %v2833, %v2840
    %v2842 = vmul.f32 %v2834, %v2841
    %v2843 = vmul.f32 %v2835, %v2841
    %v2844 = vmul.f32 %v2836, %v2841
    %v2845 = vmul.f32 %v2837, %v2841
    %v2846 = vadd.f32 %v2829, %v2842
    %v2847 = vadd.f32 %v2830, %v2843
    %v2848 = vadd.f32 %v2831, %v2844
    %v2849 = vadd.f32 %v2832, %v2845
    %v2850 = vld [vmem:[%s4 + $0x44] sm:$0x1]
    %v2851 = vld [vmem:[#allocation2 + $0x9] sm:$0xff]
    %v2852 = vld [vmem:[#allocation2 + $0x11] sm:$0xff]
    %v2853 = vld [vmem:[#allocation2 + $0x29] sm:$0xff]
    %v2854 = vld [vmem:[#allocation2 + $0x31] sm:$0xff]
    %v2855 = vlaneseq
    %v2856 = vshrl.u32 %v2855, 7
    %v2857 = vsub.s32 0, %v2856
    %v2858 = vrot.slane %v2850, %v2857
    %v2859 = vmul.f32 %v2851, %v2858
    %v2860 = vmul.f32 %v2852, %v2858
    %v2861 = vmul.f32 %v2853, %v2858
    %v2862 = vmul.f32 %v2854, %v2858
    %v2863 = vadd.f32 %v2846, %v2859
    %v2864 = vadd.f32 %v2847, %v2860
    %v2865 = vadd.f32 %v2848, %v2861
    %v2866 = vadd.f32 %v2849, %v2862
    %v2867 = vld [vmem:[%s4 + $0x49] sm:$0x1]
    %v2868 = vld [vmem:[#allocation2 + $0xa] sm:$0xff]
    %v2869 = vld [vmem:[#allocation2 + $0x12] sm:$0xff]
    %v2870 = vld [vmem:[#allocation2 + $0x2a] sm:$0xff]
    %v2871 = vld [vmem:[#allocation2 + $0x32] sm:$0xff]
    %v2872 = vlaneseq
    %v2873 = vshrl.u32 %v2872, 7
    %v2874 = vsub.s32 0, %v2873
    %v2875 = vrot.slane %v2867, %v2874
    %v2876 = vmul.f32 %v2868, %v2875
    %v2877 = vmul.f32 %v2869, %v2875
    %v2878 = vmul.f32 %v2870, %v2875
    %v2879 = vmul.f32 %v2871, %v2875
    %v2880 = vadd.f32 %v2863, %v2876
    %v2881 = vadd.f32 %v2864, %v2877
    %v2882 = vadd.f32 %v2865, %v2878
    %v2883 = vadd.f32 %v2866, %v2879
    %2884 = vst [vmem:[#allocation2 + $0x8] sm:$0xff] %v2678
    %2885 = vst [vmem:[#allocation2 + $0x10] sm:$0xff] %v2679
    %2886 = vst [vmem:[#allocation2 + $0x28] sm:$0xff] %v2680
    %2887 = vst [vmem:[#allocation2 + $0x30] sm:$0xff] %v2681
    %v2888 = vld [vmem:[%s4 + $0x36] sm:$0x1]
    %v2889 = vld [vmem:[#allocation2 + $0x6] sm:$0xff]
    %v2890 = vld [vmem:[#allocation2 + $0xe] sm:$0xff]
    %v2891 = vld [vmem:[#allocation2 + $0x26] sm:$0xff]
    %v2892 = vld [vmem:[#allocation2 + $0x2e] sm:$0xff]
    %v2893 = vlaneseq
    %v2894 = vshrl.u32 %v2893, 7
    %v2895 = vsub.s32 0, %v2894
    %v2896 = vrot.slane %v2888, %v2895
    %v2897 = vmul.f32 %v2889, %v2896
    %v2898 = vmul.f32 %v2890, %v2896
    %v2899 = vmul.f32 %v2891, %v2896
    %v2900 = vmul.f32 %v2892, %v2896
    %v2901 = vadd.f32 %v2880, %v2897
    %v2902 = vadd.f32 %v2881, %v2898
    %v2903 = vadd.f32 %v2882, %v2899
    %v2904 = vadd.f32 %v2883, %v2900
    %v2905 = vld [vmem:[%s4 + $0x3b] sm:$0x1]
    %v2906 = vld [vmem:[#allocation2 + $0x7] sm:$0xff]
    %v2907 = vld [vmem:[#allocation2 + $0xf] sm:$0xff]
    %v2908 = vld [vmem:[#allocation2 + $0x27] sm:$0xff]
    %v2909 = vld [vmem:[#allocation2 + $0x2f] sm:$0xff]
    %v2910 = vlaneseq
    %v2911 = vshrl.u32 %v2910, 7
    %v2912 = vsub.s32 0, %v2911
    %v2913 = vrot.slane %v2905, %v2912
    %v2914 = vmul.f32 %v2906, %v2913
    %v2915 = vmul.f32 %v2907, %v2913
    %v2916 = vmul.f32 %v2908, %v2913
    %v2917 = vmul.f32 %v2909, %v2913
    %v2918 = vadd.f32 %v2901, %v2914
    %v2919 = vadd.f32 %v2902, %v2915
    %v2920 = vadd.f32 %v2903, %v2916
    %v2921 = vadd.f32 %v2904, %v2917
    %v2922 = vld [vmem:[%s4 + $0x40] sm:$0x1]
    %v2923 = vld [vmem:[#allocation2 + $0x8] sm:$0xff]
    %v2924 = vld [vmem:[#allocation2 + $0x10] sm:$0xff]
    %v2925 = vld [vmem:[#allocation2 + $0x28] sm:$0xff]
    %v2926 = vld [vmem:[#allocation2 + $0x30] sm:$0xff]
    %v2927 = vlaneseq
    %v2928 = vshrl.u32 %v2927, 7
    %v2929 = vsub.s32 0, %v2928
    %v2930 = vrot.slane %v2922, %v2929
    %v2931 = vmul.f32 %v2923, %v2930
    %v2932 = vmul.f32 %v2924, %v2930
    %v2933 = vmul.f32 %v2925, %v2930
    %v2934 = vmul.f32 %v2926, %v2930
    %v2935 = vadd.f32 %v2918, %v2931
    %v2936 = vadd.f32 %v2919, %v2932
    %v2937 = vadd.f32 %v2920, %v2933
    %v2938 = vadd.f32 %v2921, %v2934
    %v2939 = vld [vmem:[%s4 + $0x45] sm:$0x1]
    %v2940 = vld [vmem:[#allocation2 + $0x9] sm:$0xff]
    %v2941 = vld [vmem:[#allocation2 + $0x11] sm:$0xff]
    %v2942 = vld [vmem:[#allocation2 + $0x29] sm:$0xff]
    %v2943 = vld [vmem:[#allocation2 + $0x31] sm:$0xff]
    %v2944 = vlaneseq
    %v2945 = vshrl.u32 %v2944, 7
    %v2946 = vsub.s32 0, %v2945
    %v2947 = vrot.slane %v2939, %v2946
    %v2948 = vmul.f32 %v2940, %v2947
    %v2949 = vmul.f32 %v2941, %v2947
    %v2950 = vmul.f32 %v2942, %v2947
    %v2951 = vmul.f32 %v2943, %v2947
    %v2952 = vadd.f32 %v2935, %v2948
    %v2953 = vadd.f32 %v2936, %v2949
    %v2954 = vadd.f32 %v2937, %v2950
    %v2955 = vadd.f32 %v2938, %v2951
    %v2956 = vld [vmem:[%s4 + $0x4a] sm:$0x1]
    %v2957 = vld [vmem:[#allocation2 + $0xa] sm:$0xff]
    %v2958 = vld [vmem:[#allocation2 + $0x12] sm:$0xff]
    %v2959 = vld [vmem:[#allocation2 + $0x2a] sm:$0xff]
    %v2960 = vld [vmem:[#allocation2 + $0x32] sm:$0xff]
    %v2961 = vlaneseq
    %v2962 = vshrl.u32 %v2961, 7
    %v2963 = vsub.s32 0, %v2962
    %v2964 = vrot.slane %v2956, %v2963
    %v2965 = vmul.f32 %v2957, %v2964
    %v2966 = vmul.f32 %v2958, %v2964
    %v2967 = vmul.f32 %v2959, %v2964
    %v2968 = vmul.f32 %v2960, %v2964
    %v2969 = vadd.f32 %v2952, %v2965
    %v2970 = vadd.f32 %v2953, %v2966
    %v2971 = vadd.f32 %v2954, %v2967
    %v2972 = vadd.f32 %v2955, %v2968
    %2973 = vrot.lane.b32.xlu0 %v2678, 120
    %v2974 = vpop.permute.xlu0 %2973
    %2975 = vrot.lane.b32.xlu0 %v2679, 120
    %v2976 = vpop.permute.xlu0 %2975
    %2977 = vrot.lane.b32.xlu0 %v2680, 120
    %v2978 = vpop.permute.xlu0 %2977
    %2979 = vrot.lane.b32.xlu0 %v2681, 120
    %v2980 = vpop.permute.xlu0 %2979
    %v2981 = vsel %vm120, %v2974, 0.0
    %v2982 = vsel %vm120, %v2976, 0.0
    %v2983 = vsel %vm120, %v2978, 0.0
    %v2984 = vsel %vm120, %v2980, 0.0
    %2985 = vst [vmem:[#allocation2 + $0x8] sm:$0xff] %v2981
    %2986 = vst [vmem:[#allocation2 + $0x10] sm:$0xff] %v2982
    %2987 = vst [vmem:[#allocation2 + $0x28] sm:$0xff] %v2983
    %2988 = vst [vmem:[#allocation2 + $0x30] sm:$0xff] %v2984
    %v2989 = vld [vmem:[%s4 + $0x37] sm:$0x1]
    %v2990 = vld [vmem:[#allocation2 + $0x6] sm:$0xff]
    %v2991 = vld [vmem:[#allocation2 + $0xe] sm:$0xff]
    %v2992 = vld [vmem:[#allocation2 + $0x26] sm:$0xff]
    %v2993 = vld [vmem:[#allocation2 + $0x2e] sm:$0xff]
    %v2994 = vlaneseq
    %v2995 = vshrl.u32 %v2994, 7
    %v2996 = vsub.s32 0, %v2995
    %v2997 = vrot.slane %v2989, %v2996
    %v2998 = vmul.f32 %v2990, %v2997
    %v2999 = vmul.f32 %v2991, %v2997
    %v3000 = vmul.f32 %v2992, %v2997
    %v3001 = vmul.f32 %v2993, %v2997
    %v3002 = vadd.f32 %v2969, %v2998
    %v3003 = vadd.f32 %v2970, %v2999
    %v3004 = vadd.f32 %v2971, %v3000
    %v3005 = vadd.f32 %v2972, %v3001
    %v3006 = vld [vmem:[%s4 + $0x3c] sm:$0x1]
    %v3007 = vld [vmem:[#allocation2 + $0x7] sm:$0xff]
    %v3008 = vld [vmem:[#allocation2 + $0xf] sm:$0xff]
    %v3009 = vld [vmem:[#allocation2 + $0x27] sm:$0xff]
    %v3010 = vld [vmem:[#allocation2 + $0x2f] sm:$0xff]
    %v3011 = vlaneseq
    %v3012 = vshrl.u32 %v3011, 7
    %v3013 = vsub.s32 0, %v3012
    %v3014 = vrot.slane %v3006, %v3013
    %v3015 = vmul.f32 %v3007, %v3014
    %v3016 = vmul.f32 %v3008, %v3014
    %v3017 = vmul.f32 %v3009, %v3014
    %v3018 = vmul.f32 %v3010, %v3014
    %v3019 = vadd.f32 %v3002, %v3015
    %v3020 = vadd.f32 %v3003, %v3016
    %v3021 = vadd.f32 %v3004, %v3017
    %v3022 = vadd.f32 %v3005, %v3018
    %v3023 = vld [vmem:[%s4 + $0x41] sm:$0x1]
    %v3024 = vld [vmem:[#allocation2 + $0x8] sm:$0xff]
    %v3025 = vld [vmem:[#allocation2 + $0x10] sm:$0xff]
    %v3026 = vld [vmem:[#allocation2 + $0x28] sm:$0xff]
    %v3027 = vld [vmem:[#allocation2 + $0x30] sm:$0xff]
    %v3028 = vlaneseq
    %v3029 = vshrl.u32 %v3028, 7
    %v3030 = vsub.s32 0, %v3029
    %v3031 = vrot.slane %v3023, %v3030
    %v3032 = vmul.f32 %v3024, %v3031
    %v3033 = vmul.f32 %v3025, %v3031
    %v3034 = vmul.f32 %v3026, %v3031
    %v3035 = vmul.f32 %v3027, %v3031
    %v3036 = vadd.f32 %v3019, %v3032
    %v3037 = vadd.f32 %v3020, %v3033
    %v3038 = vadd.f32 %v3021, %v3034
    %v3039 = vadd.f32 %v3022, %v3035
    %v3040 = vld [vmem:[%s4 + $0x46] sm:$0x1]
    %v3041 = vld [vmem:[#allocation2 + $0x9] sm:$0xff]
    %v3042 = vld [vmem:[#allocation2 + $0x11] sm:$0xff]
    %v3043 = vld [vmem:[#allocation2 + $0x29] sm:$0xff]
    %v3044 = vld [vmem:[#allocation2 + $0x31] sm:$0xff]
    %v3045 = vlaneseq
    %v3046 = vshrl.u32 %v3045, 7
    %v3047 = vsub.s32 0, %v3046
    %v3048 = vrot.slane %v3040, %v3047
    %v3049 = vmul.f32 %v3041, %v3048
    %v3050 = vmul.f32 %v3042, %v3048
    %v3051 = vmul.f32 %v3043, %v3048
    %v3052 = vmul.f32 %v3044, %v3048
    %v3053 = vadd.f32 %v3036, %v3049
    %v3054 = vadd.f32 %v3037, %v3050
    %v3055 = vadd.f32 %v3038, %v3051
    %v3056 = vadd.f32 %v3039, %v3052
    %v3057 = vld [vmem:[%s4 + $0x4b] sm:$0x1]
    %v3058 = vld [vmem:[#allocation2 + $0xa] sm:$0xff]
    %v3059 = vld [vmem:[#allocation2 + $0x12] sm:$0xff]
    %v3060 = vld [vmem:[#allocation2 + $0x2a] sm:$0xff]
    %v3061 = vld [vmem:[#allocation2 + $0x32] sm:$0xff]
    %v3062 = vlaneseq
    %v3063 = vshrl.u32 %v3062, 7
    %v3064 = vsub.s32 0, %v3063
    %v3065 = vrot.slane %v3057, %v3064
    %v3066 = vmul.f32 %v3058, %v3065
    %v3067 = vmul.f32 %v3059, %v3065
    %v3068 = vmul.f32 %v3060, %v3065
    %v3069 = vmul.f32 %v3061, %v3065
    %v3070 = vadd.f32 %v3053, %v3066
    %v3071 = vadd.f32 %v3054, %v3067
    %v3072 = vadd.f32 %v3055, %v3068
    %v3073 = vadd.f32 %v3056, %v3069
    %3074 = vrot.lane.b32.xlu0 %v2678, 112
    %v3075 = vpop.permute.xlu0 %3074
    %3076 = vrot.lane.b32.xlu0 %v2679, 112
    %v3077 = vpop.permute.xlu0 %3076
    %3078 = vrot.lane.b32.xlu0 %v2680, 112
    %v3079 = vpop.permute.xlu0 %3078
    %3080 = vrot.lane.b32.xlu0 %v2681, 112
    %v3081 = vpop.permute.xlu0 %3080
    %v3082 = vsel %vm940, %v3075, 0.0
    %v3083 = vsel %vm940, %v3077, 0.0
    %v3084 = vsel %vm940, %v3079, 0.0
    %v3085 = vsel %vm940, %v3081, 0.0
    %3086 = vst [vmem:[#allocation2 + $0x8] sm:$0xff] %v3082
    %3087 = vst [vmem:[#allocation2 + $0x10] sm:$0xff] %v3083
    %3088 = vst [vmem:[#allocation2 + $0x28] sm:$0xff] %v3084
    %3089 = vst [vmem:[#allocation2 + $0x30] sm:$0xff] %v3085
    %v3090 = vld [vmem:[%s4 + $0x38] sm:$0x1]
    %v3091 = vld [vmem:[#allocation2 + $0x6] sm:$0xff]
    %v3092 = vld [vmem:[#allocation2 + $0xe] sm:$0xff]
    %v3093 = vld [vmem:[#allocation2 + $0x26] sm:$0xff]
    %v3094 = vld [vmem:[#allocation2 + $0x2e] sm:$0xff]
    %v3095 = vlaneseq
    %v3096 = vshrl.u32 %v3095, 7
    %v3097 = vsub.s32 0, %v3096
    %v3098 = vrot.slane %v3090, %v3097
    %v3099 = vmul.f32 %v3091, %v3098
    %v3100 = vmul.f32 %v3092, %v3098
    %v3101 = vmul.f32 %v3093, %v3098
    %v3102 = vmul.f32 %v3094, %v3098
    %v3103 = vadd.f32 %v3070, %v3099
    %v3104 = vadd.f32 %v3071, %v3100
    %v3105 = vadd.f32 %v3072, %v3101
    %v3106 = vadd.f32 %v3073, %v3102
    %v3107 = vld [vmem:[%s4 + $0x3d] sm:$0x1]
    %v3108 = vld [vmem:[#allocation2 + $0x7] sm:$0xff]
    %v3109 = vld [vmem:[#allocation2 + $0xf] sm:$0xff]
    %v3110 = vld [vmem:[#allocation2 + $0x27] sm:$0xff]
    %v3111 = vld [vmem:[#allocation2 + $0x2f] sm:$0xff]
    %v3112 = vlaneseq
    %v3113 = vshrl.u32 %v3112, 7
    %v3114 = vsub.s32 0, %v3113
    %v3115 = vrot.slane %v3107, %v3114
    %v3116 = vmul.f32 %v3108, %v3115
    %v3117 = vmul.f32 %v3109, %v3115
    %v3118 = vmul.f32 %v3110, %v3115
    %v3119 = vmul.f32 %v3111, %v3115
    %v3120 = vadd.f32 %v3103, %v3116
    %v3121 = vadd.f32 %v3104, %v3117
    %v3122 = vadd.f32 %v3105, %v3118
    %v3123 = vadd.f32 %v3106, %v3119
    %v3124 = vld [vmem:[%s4 + $0x42] sm:$0x1]
    %v3125 = vld [vmem:[#allocation2 + $0x8] sm:$0xff]
    %v3126 = vld [vmem:[#allocation2 + $0x10] sm:$0xff]
    %v3127 = vld [vmem:[#allocation2 + $0x28] sm:$0xff]
    %v3128 = vld [vmem:[#allocation2 + $0x30] sm:$0xff]
    %v3129 = vlaneseq
    %v3130 = vshrl.u32 %v3129, 7
    %v3131 = vsub.s32 0, %v3130
    %v3132 = vrot.slane %v3124, %v3131
    %v3133 = vmul.f32 %v3125, %v3132
    %v3134 = vmul.f32 %v3126, %v3132
    %v3135 = vmul.f32 %v3127, %v3132
    %v3136 = vmul.f32 %v3128, %v3132
    %v3137 = vadd.f32 %v3120, %v3133
    %v3138 = vadd.f32 %v3121, %v3134
    %v3139 = vadd.f32 %v3122, %v3135
    %v3140 = vadd.f32 %v3123, %v3136
    %v3141 = vld [vmem:[%s4 + $0x47] sm:$0x1]
    %v3142 = vld [vmem:[#allocation2 + $0x9] sm:$0xff]
    %v3143 = vld [vmem:[#allocation2 + $0x11] sm:$0xff]
    %v3144 = vld [vmem:[#allocation2 + $0x29] sm:$0xff]
    %v3145 = vld [vmem:[#allocation2 + $0x31] sm:$0xff]
    %v3146 = vlaneseq
    %v3147 = vshrl.u32 %v3146, 7
    %v3148 = vsub.s32 0, %v3147
    %v3149 = vrot.slane %v3141, %v3148
    %v3150 = vmul.f32 %v3142, %v3149
    %v3151 = vmul.f32 %v3143, %v3149
    %v3152 = vmul.f32 %v3144, %v3149
    %v3153 = vmul.f32 %v3145, %v3149
    %v3154 = vadd.f32 %v3137, %v3150
    %v3155 = vadd.f32 %v3138, %v3151
    %v3156 = vadd.f32 %v3139, %v3152
    %v3157 = vadd.f32 %v3140, %v3153
    %v3158 = vld [vmem:[%s4 + $0x4c] sm:$0x1]
    %v3159 = vld [vmem:[#allocation2 + $0xa] sm:$0xff]
    %v3160 = vld [vmem:[#allocation2 + $0x12] sm:$0xff]
    %v3161 = vld [vmem:[#allocation2 + $0x2a] sm:$0xff]
    %v3162 = vld [vmem:[#allocation2 + $0x32] sm:$0xff]
    %v3163 = vlaneseq
    %v3164 = vshrl.u32 %v3163, 7
    %v3165 = vsub.s32 0, %v3164
    %v3166 = vrot.slane %v3158, %v3165
    %v3167 = vmul.f32 %v3159, %v3166
    %v3168 = vmul.f32 %v3160, %v3166
    %v3169 = vmul.f32 %v3161, %v3166
    %v3170 = vmul.f32 %v3162, %v3166
    %v3171 = vadd.f32 %v3154, %v3167
    %v3172 = vadd.f32 %v3155, %v3168
    %v3173 = vadd.f32 %v3156, %v3169
    %v3174 = vadd.f32 %v3157, %v3170
    %v3175 = vpack.c.bf16 %v3172, %v3171
    %v3176 = vpack.c.bf16 %v3174, %v3173
    %s3177 = scalar_lea.vmem %s5, 256
    %v3178 = vld [vmem:[%s3177] sm:$0xf]
    %v3179 = vld [vmem:[%s3177 + $0x4] sm:$0xf]
    %v3180 = vld [vmem:[%s3177 + $0x8] sm:$0xf]
    %v3181 = vld [vmem:[%s3177 + $0xc] sm:$0xf]
    %v3182 = vld [vmem:[%s3177 + $0x10] sm:$0xf]
    %v3183 = vld [vmem:[%s3177 + $0x14] sm:$0xf]
    %v3184 = vld [vmem:[%s3177 + $0x18] sm:$0xf]
    %v3185 = vld [vmem:[%s3177 + $0x1c] sm:$0xf]
    %v3186 = vld [vmem:[%s3177 + $0x20] sm:$0xf]
    %v3187 = vld [vmem:[%s3177 + $0x24] sm:$0xf]
    %v3188 = vld [vmem:[%s3177 + $0x28] sm:$0xf]
    %v3189 = vld [vmem:[%s3177 + $0x2c] sm:$0xf]
    %v3190 = vld [vmem:[%s3177 + $0x30] sm:$0xf]
    %v3191 = vld [vmem:[%s3177 + $0x34] sm:$0xf]
    %v3192 = vld [vmem:[%s3177 + $0x38] sm:$0xf]
    %v3193 = vld [vmem:[%s3177 + $0x3c] sm:$0xf]
    %v3210 = vunpack.c.l.b16 %v3178
    %v3211 = vunpack.c.l.b16 %v3179
    %v3212 = vunpack.c.l.b16 %v3180
    %v3213 = vunpack.c.l.b16 %v3181
    %v3214 = vunpack.c.l.b16 %v3182
    %v3215 = vunpack.c.l.b16 %v3183
    %v3216 = vunpack.c.l.b16 %v3184
    %v3217 = vunpack.c.l.b16 %v3185
    %v3218 = vunpack.c.l.b16 %v3186
    %v3219 = vunpack.c.l.b16 %v3187
    %v3220 = vunpack.c.l.b16 %v3188
    %v3221 = vunpack.c.l.b16 %v3189
    %v3222 = vunpack.c.l.b16 %v3190
    %v3223 = vunpack.c.l.b16 %v3191
    %v3224 = vunpack.c.l.b16 %v3192
    %v3225 = vunpack.c.l.b16 %v3193
    %v3226 = vpack.c.b16 %v3211, %v3210
    %v3227 = vpack.c.b16 %v3213, %v3212
    %v3228 = vpack.c.b16 %v3215, %v3214
    %v3229 = vpack.c.b16 %v3217, %v3216
    %v3230 = vpack.c.b16 %v3219, %v3218
    %v3231 = vpack.c.b16 %v3221, %v3220
    %v3232 = vpack.c.b16 %v3223, %v3222
    %v3233 = vpack.c.b16 %v3225, %v3224
    %3242 = vmatprep.subr.bf16.mxu0 0
    %3243 = vmatpush1.bf16.msra.mxu0 %v3233
    %3244 = vmatprep.subr.bf16.mxu0 0
    %3245 = vmatpush1.bf16.msra.mxu0 %v3232
    %3246 = vmatprep.subr.bf16.mxu0 0
    %3247 = vmatpush1.bf16.msra.mxu0 %v3231
    %3248 = vmatprep.subr.bf16.mxu0 0
    %3249 = vmatpush1.bf16.msra.mxu0 %v3230
    %3250 = vmatprep.subr.bf16.mxu0 0
    %3251 = vmatpush1.bf16.msra.mxu0 %v3229
    %3252 = vmatprep.subr.bf16.mxu0 0
    %3253 = vmatpush1.bf16.msra.mxu0 %v3228
    %3254 = vmatprep.subr.bf16.mxu0 0
    %3255 = vmatpush1.bf16.msra.mxu0 %v3227
    %3256 = vmatprep.subr.bf16.mxu0 0
    %3257 = vmatpush1.bf16.msra.mxu0 %v3226
    %3258 = vmatprep.subr.bf16.mxu0 0
    %3259 = vmatpush2.bf16.msra.mxu0 0
    %3260 = vmatprep.subr.bf16.mxu0 0
    %3261 = vmatpush2.bf16.msra.mxu0 0
    %3262 = vmatprep.subr.bf16.mxu0 0
    %3263 = vmatpush2.bf16.msra.mxu0 0
    %3264 = vmatprep.subr.bf16.mxu0 0
    %3265 = vmatpush2.bf16.msra.mxu0 0
    %3266 = vmatprep.subr.bf16.mxu0 0
    %3267 = vmatpush2.bf16.msra.mxu0 0
    %3268 = vmatprep.subr.bf16.mxu0 0
    %3269 = vmatpush2.bf16.msra.mxu0 0
    %3270 = vmatprep.subr.bf16.mxu0 0
    %3271 = vmatpush2.bf16.msra.mxu0 0
    %3272 = vmatprep.subr.bf16.mxu0 0
    %3273 = vmatpush2.bf16.msra.mxu0 0
    %3274 = vmatprep.mubr.bf16.mxu0 0
    %3275 = vmatmul.mubr.bf16.gmra.mxu0 %v3175
    %v3276 = vpop.f32.mrf.mxu0
    %v3277 = vadd.f32 0.0, %v3276
    %v3278 = vpop.f32.mrf.mxu0
    %v3279 = vpop.f32.mrf.mxu0
    %v3280 = vadd.f32 0.0, %v3279
    %v3281 = vpop.f32.mrf.mxu0
    %3282 = vmatprep.mubr.bf16.mxu0 0
    %3283 = vmatmul.mubr.bf16.gmra.mxu0 %v3176
    %v3284 = vpop.f32.mrf.mxu0
    %v3285 = vadd.f32 0.0, %v3284
    %v3286 = vpop.f32.mrf.mxu0
    %v3287 = vpop.f32.mrf.mxu0
    %v3288 = vadd.f32 0.0, %v3287
    %v3289 = vpop.f32.mrf.mxu0
    %3290 = vdwg.mxu0
    %v3291 = vadd.f32 %v2664, %v2667
    %v3292 = vadd.f32 %v3291, %v2672
    %v3293 = vadd.f32 %v3292, %v2675
    %v3294 = vrot.slane %v3293, 4
    %v3295 = vadd.f32 %v3293, %v3294
    %v3296 = vrot.slane %v3295, 2
    %v3297 = vadd.f32 %v3295, %v3296
    %v3298 = vrot.slane %v3297, 1
    %v3299 = vadd.f32 %v3297, %v3298
    %v3300 = vmul.f32 %v2664, %v2664
    %v3301 = vmul.f32 %v2667, %v2667
    %v3302 = vmul.f32 %v2672, %v2672
    %v3303 = vmul.f32 %v2675, %v2675
    %v3304 = vadd.f32 %v3300, %v3301
    %v3305 = vadd.f32 %v3304, %v3302
    %v3306 = vadd.f32 %v3305, %v3303
    %v3307 = vrot.slane %v3306, 4
    %v3308 = vadd.f32 %v3306, %v3307
    %v3309 = vrot.slane %v3308, 2
    %v3310 = vadd.f32 %v3308, %v3309
    %v3311 = vrot.slane %v3310, 1
    %v3312 = vadd.f32 %v3310, %v3311
    %v3313 = vsel %vm2030, %v3299, %v3312
    %v3314 = vadd.f32 %v3277, %v3280
    %v3315 = vadd.f32 %v3314, %v3285
    %v3316 = vadd.f32 %v3315, %v3288
    %v3317 = vrot.slane %v3316, 4
    %v3318 = vadd.f32 %v3316, %v3317
    %v3319 = vrot.slane %v3318, 2
    %v3320 = vadd.f32 %v3318, %v3319
    %v3321 = vrot.slane %v3320, 1
    %v3322 = vadd.f32 %v3320, %v3321
    %v3323 = vmul.f32 %v3277, %v3277
    %v3324 = vmul.f32 %v3280, %v3280
    %v3325 = vmul.f32 %v3285, %v3285
    %v3326 = vmul.f32 %v3288, %v3288
    %v3327 = vadd.f32 %v3323, %v3324
    %v3328 = vadd.f32 %v3327, %v3325
    %v3329 = vadd.f32 %v3328, %v3326
    %v3330 = vrot.slane %v3329, 4
    %v3331 = vadd.f32 %v3329, %v3330
    %v3332 = vrot.slane %v3331, 2
    %v3333 = vadd.f32 %v3331, %v3332
    %v3334 = vrot.slane %v3333, 1
    %v3335 = vadd.f32 %v3333, %v3334
    %v3336 = vsel %vm2030, %v3322, %v3335
    %v3338 = vrot.slane %v3336, 6
    %v3340 = vsel %vm2159, %v3313, %v3338
    %v3341 = vld [vmem:[%s3] sm:$0xff]
    %v3342 = vld [vmem:[%s3 + $0x8] sm:$0xff]
    %v3343 = vld [vmem:[%s3 + $0x10] sm:$0xff]
    %v3344 = vld [vmem:[%s3 + $0x18] sm:$0xff]
    %v3345 = vld [vmem:[%s3 + $0x20] sm:$0xff]
    %v3346 = vld [vmem:[%s3 + $0x28] sm:$0xff]
    %v3347 = vld [vmem:[%s3 + $0x30] sm:$0xff]
    %v3348 = vld [vmem:[%s3 + $0x38] sm:$0xff]
    %v3349 = vld [vmem:[%s3 + $0x40] sm:$0xff]
    %v3350 = vld [vmem:[%s3 + $0x48] sm:$0xff]
    %v3351 = vld [vmem:[%s3 + $0x50] sm:$0xff]
    %v3352 = vld [vmem:[%s3 + $0x58] sm:$0xff]
    %v3353 = vld [vmem:[%s3 + $0x60] sm:$0xff]
    %v3354 = vld [vmem:[%s3 + $0x68] sm:$0xff]
    %v3355 = vld [vmem:[%s3 + $0x70] sm:$0xff]
    %v3356 = vld [vmem:[%s3 + $0x78] sm:$0xff]
    %3357 = vmatprep.subr.mxu0 0.0
    %3358 = vmatpush1.msra.mxu0 %v3356
    %3359 = vmatprep.subr.mxu0 0.0
    %3360 = vmatpush1.msra.mxu0 %v3355
    %3361 = vmatprep.subr.mxu0 0.0
    %3362 = vmatpush1.msra.mxu0 %v3354
    %3363 = vmatprep.subr.mxu0 0.0
    %3364 = vmatpush1.msra.mxu0 %v3353
    %3365 = vmatprep.subr.mxu0 0.0
    %3366 = vmatpush1.msra.mxu0 %v3352
    %3367 = vmatprep.subr.mxu0 0.0
    %3368 = vmatpush1.msra.mxu0 %v3351
    %3369 = vmatprep.subr.mxu0 0.0
    %3370 = vmatpush1.msra.mxu0 %v3350
    %3371 = vmatprep.subr.mxu0 0.0
    %3372 = vmatpush1.msra.mxu0 %v3349
    %3373 = vmatprep.subr.mxu0 0.0
    %3374 = vmatpush1.msra.mxu0 %v3348
    %3375 = vmatprep.subr.mxu0 0.0
    %3376 = vmatpush1.msra.mxu0 %v3347
    %3377 = vmatprep.subr.mxu0 0.0
    %3378 = vmatpush1.msra.mxu0 %v3346
    %3379 = vmatprep.subr.mxu0 0.0
    %3380 = vmatpush1.msra.mxu0 %v3345
    %3381 = vmatprep.subr.mxu0 0.0
    %3382 = vmatpush1.msra.mxu0 %v3344
    %3383 = vmatprep.subr.mxu0 0.0
    %3384 = vmatpush1.msra.mxu0 %v3343
    %3385 = vmatprep.subr.mxu0 0.0
    %3386 = vmatpush1.msra.mxu0 %v3342
    %3387 = vmatprep.subr.mxu0 0.0
    %3388 = vmatpush1.msra.mxu0 %v3341
    %3389 = vmatprep.subr.mxu0 0.0
    %3390 = vmatpush2.msra.mxu0 0.0
    %3391 = vmatprep.subr.mxu0 0.0
    %3392 = vmatpush2.msra.mxu0 0.0
    %3393 = vmatprep.subr.mxu0 0.0
    %3394 = vmatpush2.msra.mxu0 0.0
    %3395 = vmatprep.subr.mxu0 0.0
    %3396 = vmatpush2.msra.mxu0 0.0
    %3397 = vmatprep.subr.mxu0 0.0
    %3398 = vmatpush2.msra.mxu0 0.0
    %3399 = vmatprep.subr.mxu0 0.0
    %3400 = vmatpush2.msra.mxu0 0.0
    %3401 = vmatprep.subr.mxu0 0.0
    %3402 = vmatpush2.msra.mxu0 0.0
    %3403 = vmatprep.subr.mxu0 0.0
    %3404 = vmatpush2.msra.mxu0 0.0
    %3405 = vmatprep.subr.mxu0 0.0
    %3406 = vmatpush2.msra.mxu0 0.0
    %3407 = vmatprep.subr.mxu0 0.0
    %3408 = vmatpush2.msra.mxu0 0.0
    %3409 = vmatprep.subr.mxu0 0.0
    %3410 = vmatpush2.msra.mxu0 0.0
    %3411 = vmatprep.subr.mxu0 0.0
    %3412 = vmatpush2.msra.mxu0 0.0
    %3413 = vmatprep.subr.mxu0 0.0
    %3414 = vmatpush2.msra.mxu0 0.0
    %3415 = vmatprep.subr.mxu0 0.0
    %3416 = vmatpush2.msra.mxu0 0.0
    %3417 = vmatprep.subr.mxu0 0.0
    %3418 = vmatpush2.msra.mxu0 0.0
    %3419 = vmatprep.subr.mxu0 0.0
    %3420 = vmatpush2.msra.mxu0 0.0
    %3421 = vmatprep.mubr.f32.mxu0 0.0
    %3422 = vmatmul.mubr.f32.gmra.mxu0 %v3340
    %v3423 = vpop.f32.mrf.mxu0
    %v3424 = vadd.f32 0.0, %v3423
    %v3425 = vpop.f32.mrf.mxu0
    %3426 = vdwg.mxu0
    %v3427 = vmul.f32 %v3424, 0.001953125
    %v3428 = vmul.f32 %v3427, %v3427
    %v3430 = vrot.slane %v3428, 7
    %v3432 = vsub.f32 %v3427, %v3430
    %v3433 = vlaneseq
    %v3434 = vshrl.u32 %v3433, 7
    %v3435 = vsub.s32 0, %v3434
    %v3436 = vrot.slane %v3427, %v3435
    %v3437 = vsub.f32 %v2664, %v3436
    %v3438 = vsub.f32 %v2667, %v3436
    %v3439 = vsub.f32 %v2672, %v3436
    %v3440 = vsub.f32 %v2675, %v3436
    %v3441 = vadd.f32 %v3432, 1e-05
    %v3442 = vrsqrt.pop %v3441
    %v3443 = vlaneseq
    %v3444 = vshrl.u32 %v3443, 7
    %v3445 = vsub.s32 1, %v3444
    %v3446 = vrot.slane %v3442, %v3445
    %v3447 = vmul.f32 %v3437, %v3446
    %v3448 = vmul.f32 %v3438, %v3446
    %v3449 = vmul.f32 %v3439, %v3446
    %v3450 = vmul.f32 %v3440, %v3446
    %v3451 = vlaneseq
    %v3452 = vshrl.u32 %v3451, 7
    %v3453 = vsub.s32 2, %v3452
    %v3454 = vrot.slane %v3427, %v3453
    %v3455 = vsub.f32 %v3277, %v3454
    %v3456 = vsub.f32 %v3280, %v3454
    %v3457 = vsub.f32 %v3285, %v3454
    %v3458 = vsub.f32 %v3288, %v3454
    %v3459 = vlaneseq
    %v3460 = vshrl.u32 %v3459, 7
    %v3461 = vsub.s32 3, %v3460
    %v3462 = vrot.slane %v3442, %v3461
    %v3463 = vmul.f32 %v3455, %v3462
    %v3464 = vmul.f32 %v3456, %v3462
    %v3465 = vmul.f32 %v3457, %v3462
    %v3466 = vmul.f32 %v3458, %v3462
    %s3467 = sld [smem:[#allocation3 + $0x1]]
    %v3468 = vstv %s3467
    %v3469 = vmul.f32 %v3468, %v2277
    %v3470 = vmul.f32 %v3468, %v2278
    %v3471 = vmul.f32 %v3468, %v2279
    %v3472 = vmul.f32 %v3468, %v2280
    %s3473 = sld [smem:[#allocation3 + $0x2]]
    %v3474 = vstv %s3473
    %v3475 = vmul.f32 %v3474, %v2293
    %v3476 = vmul.f32 %v3474, %v2294
    %v3477 = vmul.f32 %v3474, %v2295
    %v3478 = vmul.f32 %v3474, %v2296
    %v3479 = vadd.f32 %v3469, %v3475
    %v3480 = vadd.f32 %v3470, %v3476
    %v3481 = vadd.f32 %v3471, %v3477
    %v3482 = vadd.f32 %v3472, %v3478
    %s3483 = sld [smem:[#allocation3 + $0x3]]
    %v3484 = vstv %s3483
    %v3485 = vmul.f32 %v3484, %v37
    %v3486 = vmul.f32 %v3484, %v38
    %v3487 = vmul.f32 %v3484, %v39
    %v3488 = vmul.f32 %v3484, %v40
    %v3489 = vadd.f32 %v3479, %v3485
    %v3490 = vadd.f32 %v3480, %v3486
    %v3491 = vadd.f32 %v3481, %v3487
    %v3492 = vadd.f32 %v3482, %v3488
    %s3493 = sld [smem:[#allocation3 + $0x4]]
    %v3494 = vstv %s3493
    %v3495 = vmul.f32 %v3494, %v3447
    %v3496 = vmul.f32 %v3494, %v3448
    %v3497 = vmul.f32 %v3494, %v3449
    %v3498 = vmul.f32 %v3494, %v3450
    %v3499 = vadd.f32 %v3489, %v3495
    %v3500 = vadd.f32 %v3490, %v3496
    %v3501 = vadd.f32 %v3491, %v3497
    %v3502 = vadd.f32 %v3492, %v3498
    %s3503 = sld [smem:[#allocation3 + $0x5]]
    %v3504 = vstv %s3503
    %v3505 = vmul.f32 %v3504, %v3463
    %v3506 = vmul.f32 %v3504, %v3464
    %v3507 = vmul.f32 %v3504, %v3465
    %v3508 = vmul.f32 %v3504, %v3466
    %v3509 = vadd.f32 %v3499, %v3505
    %v3510 = vadd.f32 %v3500, %v3506
    %v3511 = vadd.f32 %v3501, %v3507
    %v3512 = vadd.f32 %v3502, %v3508
    %s3513 = sld [smem:[#allocation3 + $0x6]]
    %v3514 = vstv %s3513
    %v3515 = vmul.f32 %v3514, %v2349
    %v3516 = vmul.f32 %v3514, %v2350
    %v3517 = vmul.f32 %v3514, %v2351
    %v3518 = vmul.f32 %v3514, %v2352
    %v3519 = vadd.f32 %v3509, %v3515
    %v3520 = vadd.f32 %v3510, %v3516
    %v3521 = vadd.f32 %v3511, %v3517
    %v3522 = vadd.f32 %v3512, %v3518
    %s3523 = sld [smem:[#allocation3 + $0x7]]
    %v3524 = vstv %s3523
    %v3525 = vmul.f32 %v3524, %v2365
    %v3526 = vmul.f32 %v3524, %v2366
    %v3527 = vmul.f32 %v3524, %v2367
    %v3528 = vmul.f32 %v3524, %v2368
    %v3529 = vadd.f32 %v3519, %v3525
    %v3530 = vadd.f32 %v3520, %v3526
    %v3531 = vadd.f32 %v3521, %v3527
    %v3532 = vadd.f32 %v3522, %v3528
    %3533 = vst [vmem:[%s6] sm:$0xff] %v3529
    %3534 = vst [vmem:[%s6 + $0x8] sm:$0xff] %v3530
    %3535 = vst [vmem:[%s6 + $0x10] sm:$0xff] %v3531
    %3536 = vst [vmem:[%s6 + $0x18] sm:$0xff] %v3532
    // Predicated region
    $region30: #{mixed_layer.1} parent=1 // pred_check
      _
    $region31: #{mixed_layer.1} parent=1 // pred_check_branch
      %3538 = sbr.rel (0) target = $region33
    $region32: #{mixed_layer.1} parent=1 // pred_region
      _
    $region33: #{mixed_layer.1} parent=1 // pred_fallthru
      _
    // Predicated region
    $region34: #{mixed_layer.1} parent=1 // pred_check
      _
    $region35: #{mixed_layer.1} parent=1 // pred_check_branch
      %3540 = sbr.rel (0) target = $region37
    $region36: #{mixed_layer.1} parent=1 // pred_region
      _
    $region37: #{mixed_layer.1} parent=1 // pred_fallthru
      _
    %3541 = vsyncpa [#allocation4], 1

</llo_original>
